<compile_context>
chip_gen: v5e
topology: v5e:2x2
jax: 0.10.0
libtpu: 0.0.40
codegen_flags: <defaults>
</compile_context>

<pallas_src>
import numpy as np
import jax
import jax.numpy as jnp
from jax.experimental import pallas as pl
from jax.experimental.pallas import tpu as pltpu

KERNEL_SIZE = 11
SIGMA = 1.5
PAD = KERNEL_SIZE // 2
C1 = 0.01 ** 2
C2 = 0.03 ** 2
_MM_PREC = jax.lax.Precision.HIGHEST   # exact f32 matmuls on the MXU


def _gaussian_1d(kernel_size: int, sigma: float) -> np.ndarray:
    # matches torch: arange((1-k)/2, (1+k)/2), exp(-(t/sigma)^2/2), normalize
    start = (1 - kernel_size) / 2
    end = (1 + kernel_size) / 2
    k = np.arange(start, end, step=1, dtype=np.float32)
    k = np.exp(-np.power(k / sigma, 2) / 2)
    return (k / k.sum()).astype(np.float32)


def _band_matrix(n: int) -> np.ndarray:
    """m[j, i] = g[j - i + PAD]; X @ m == zero-padded 1-D gaussian blur of X's rows."""
    g = _gaussian_1d(KERNEL_SIZE, SIGMA)
    m = np.zeros((n, n), dtype=np.float32)
    for i in range(n):              # output position
        for k in range(KERNEL_SIZE):
            j = i + k - PAD         # input position (out-of-range == zero pad)
            if 0 <= j < n:
                m[j, i] = g[k]
    return m


def _ssim_image(xb, yb, bh, bv):
    """Per-pixel SSIM map of one (H, W) image pair. All math in f32, blur on the MXU."""
    def blur(img):
        t = jnp.dot(img, bh, preferred_element_type=jnp.float32, precision=_MM_PREC)
        return jnp.dot(bv, t, preferred_element_type=jnp.float32, precision=_MM_PREC)

    ux = blur(xb)
    uy = blur(yb)
    uxux = ux * ux
    uyuy = uy * uy
    uxuy = ux * uy
    # fold each moment blur straight into the variance terms (small live set)
    vx = blur(xb * xb) - uxux
    vy = blur(yb * yb) - uyuy
    vxy = blur(xb * yb) - uxuy
    num = (2.0 * uxuy + C1) * (2.0 * vxy + C2)
    den = (uxux + uyuy + C1) * (vx + vy + C2)
    return num * pl.reciprocal(den + 1e-12, approx=False)


def _ssim_sum_kernel(x_ref, y_ref, bh_ref, bv_ref, psum_ref):
    # x_ref, y_ref : (Bblk, H, W) images for this grid step
    # psum_ref     : (1, 1) per-program partial SSIM sum (written once)
    bh = bh_ref[...]
    bv = bv_ref[...]
    nb = x_ref.shape[0]
    total = jnp.zeros((1, 1), jnp.float32)
    for b in range(nb):  # static unroll over images in the block
        ssim = _ssim_image(x_ref[b], y_ref[b], bh, bv)
        total = total + jnp.sum(ssim, axis=(0, 1), keepdims=True)
    psum_ref[...] = total


def _ssim_map_kernel(x_ref, y_ref, bh_ref, bv_ref, map_ref):
    # map_ref : (Bblk, H, W) per-pixel SSIM map (only used when as_loss=False)
    bh = bh_ref[...]
    bv = bv_ref[...]
    nb = x_ref.shape[0]
    for b in range(nb):
        map_ref[b] = _ssim_image(x_ref[b], y_ref[b], bh, bv)


def _pick_block_images(G, H, W, budget_bytes=4 * 1024 * 1024, max_unroll=16):
    # ~14 live f32 (H, W) arrays per image inside the kernel; keep the block
    # well under the (v7x-safe) scoped-VMEM budget and the unroll bounded.
    per_image = H * W * 4 * 14
    b = max(1, min(G, max_unroll, budget_bytes // max(per_image, 1)))
    while G % b != 0:
        b -= 1
    return b


def ssim_loss(x, y, as_loss: bool = True):
    """x, y: (N, C, H, W) float32, NCHW like the PyTorch module (C == 3)."""
    N, C, H, W = x.shape
    G = N * C
    xf = x.reshape(G, H, W).astype(jnp.float32)
    yf = y.reshape(G, H, W).astype(jnp.float32)
    bh = jnp.asarray(_band_matrix(W))      # (W, W) right-multiply band (horizontal)
    bv = jnp.asarray(_band_matrix(H).T)    # (H, H) left-multiply band  (vertical)

    bblk = _pick_block_images(G, H, W)
    num_blocks = G // bblk

    in_specs = [
        pl.BlockSpec((bblk, H, W), lambda i: (i, 0, 0)),
        pl.BlockSpec((bblk, H, W), lambda i: (i, 0, 0)),
        pl.BlockSpec((W, W), lambda i: (0, 0)),
        pl.BlockSpec((H, H), lambda i: (0, 0)),
    ]
    cparams = pltpu.CompilerParams(
        dimension_semantics=("parallel",),          # per-program outputs -> safe to shard
        vmem_limit_bytes=64 * 1024 * 1024,
    )

    if as_loss:
        # Loss path: only per-program partial sums are written to HBM (no map).
        psums = pl.pallas_call(
            _ssim_sum_kernel,
            out_shape=jax.ShapeDtypeStruct((num_blocks, 1), jnp.float32),
            grid_spec=pltpu.PrefetchScalarGridSpec(
                num_scalar_prefetch=0,
                grid=(num_blocks,),
                in_specs=in_specs,
                out_specs=pl.BlockSpec((1, 1), lambda i: (i, 0)),
            ),
            compiler_params=cparams,
        )(xf, yf, bh, bv)
        return 1.0 - jnp.sum(psums) / float(G * H * W)

    smap = pl.pallas_call(
        _ssim_map_kernel,
        out_shape=jax.ShapeDtypeStruct((G, H, W), jnp.float32),
        grid_spec=pltpu.PrefetchScalarGridSpec(
            num_scalar_prefetch=0,
            grid=(num_blocks,),
            in_specs=in_specs,
            out_specs=pl.BlockSpec((bblk, H, W), lambda i: (i, 0, 0)),
        ),
        compiler_params=cparams,
    )(xf, yf, bh, bv)
    return smap.reshape(N, C, H, W)


def _ssim_map_ref(x, y):
    """Pure-JAX reference mirroring the PyTorch module (for verification)."""
    g1 = jnp.asarray(_gaussian_1d(KERNEL_SIZE, SIGMA))
    g2 = jnp.outer(g1, g1)
    C = x.shape[1]
    w = jnp.broadcast_to(g2, (C, 1, KERNEL_SIZE, KERNEL_SIZE))

    def conv(z):
        return jax.lax.conv_general_dilated(
            z, w, window_strides=(1, 1),
            padding=[(PAD, PAD), (PAD, PAD)],
            dimension_numbers=("NCHW", "OIHW", "NCHW"),
            feature_group_count=C,
            precision=_MM_PREC)

    ux, uy = conv(x), conv(y)
    vx = conv(x * x) - ux * ux
    vy = conv(y * y) - uy * uy
    vxy = conv(x * y) - ux * uy
    num = (2 * ux * uy + C1) * (2 * vxy + C2)
    den = (ux ** 2 + uy ** 2 + C1) * (vx + vy + C2)
    return num / (den + 1e-12)


if __name__ == "__main__":
    key = jax.random.PRNGKey(0)
    kx, ky = jax.random.split(key)
    # N=2, C=3 (module requires 3 channels: groups=3 depthwise gaussian), 16x16
    x = jax.random.uniform(kx, (2, 3, 16, 16), dtype=jnp.float32)
    y = jax.random.uniform(ky, (2, 3, 16, 16), dtype=jnp.float32)

    loss = jax.block_until_ready(ssim_loss(x, y, as_loss=True))
    ssim_map = jax.block_until_ready(ssim_loss(x, y, as_loss=False))

    ref_map = jax.block_until_ready(_ssim_map_ref(x, y))
    ref_loss = 1.0 - jnp.mean(ref_map)
    np.testing.assert_allclose(np.asarray(loss), np.asarray(ref_loss),
                               rtol=1e-4, atol=1e-4)
    np.testing.assert_allclose(np.asarray(ssim_map), np.asarray(ref_map),
                               rtol=1e-4, atol=1e-4)
    assert ssim_map.shape == (2, 3, 16, 16)

    print("KERNEL_OK")
</pallas_src>

<mosaic_0001>
module attributes {stable_mosaic.version = 11 : i64} {
  func.func @_ssim_sum_kernel(%arg0: i32, %arg1: memref<6x16x16xf32, #tpu.memory_space<vmem>>, %arg2: memref<6x16x16xf32, #tpu.memory_space<vmem>>, %arg3: memref<16x16xf32, #tpu.memory_space<vmem>>, %arg4: memref<16x16xf32, #tpu.memory_space<vmem>>, %arg5: memref<1x1xf32, #tpu.memory_space<vmem>>) attributes {dimension_semantics = [#tpu.dimension_semantics<parallel>], iteration_bounds = array<i64: 1>, scalar_prefetch = 0 : i64, scratch_operands = 0 : i64, tpu.core_type = #tpu.core_type<tc>, window_params = [{transform_indices = @transform_0, window_bounds = array<i64: 6, 16, 16>}, {transform_indices = @transform_1, window_bounds = array<i64: 6, 16, 16>}, {pipeline_mode = #tpu.pipeline_mode<synchronous>, transform_indices = @transform_2, window_bounds = array<i64: 16, 16>}, {pipeline_mode = #tpu.pipeline_mode<synchronous>, transform_indices = @transform_3, window_bounds = array<i64: 16, 16>}, {transform_indices = @transform_4, window_bounds = array<i64: 1, 1>}]} {
    %c0 = arith.constant 0 : index
    %c0_0 = arith.constant 0 : index
    %0 = vector.load %arg3[%c0, %c0_0] : memref<16x16xf32, #tpu.memory_space<vmem>>, vector<16x16xf32>
    %c0_1 = arith.constant 0 : index
    %c0_2 = arith.constant 0 : index
    %1 = vector.load %arg4[%c0_1, %c0_2] : memref<16x16xf32, #tpu.memory_space<vmem>>, vector<16x16xf32>
    %cst = arith.constant 0.000000e+00 : f32
    %2 = vector.broadcast %cst : f32 to vector<1x1xf32>
    %c0_3 = arith.constant 0 : index
    %c0_4 = arith.constant 0 : index
    %c0_5 = arith.constant 0 : index
    %3 = vector.load %arg1[%c0_3, %c0_4, %c0_5] : memref<6x16x16xf32, #tpu.memory_space<vmem>>, vector<1x16x16xf32>
    %4 = vector.shape_cast %3 : vector<1x16x16xf32> to vector<16x16xf32>
    %c0_6 = arith.constant 0 : index
    %c0_7 = arith.constant 0 : index
    %c0_8 = arith.constant 0 : index
    %5 = vector.load %arg2[%c0_6, %c0_7, %c0_8] : memref<6x16x16xf32, #tpu.memory_space<vmem>>, vector<1x16x16xf32>
    %6 = vector.shape_cast %5 : vector<1x16x16xf32> to vector<16x16xf32>
    %cst_9 = arith.constant dense<0.000000e+00> : vector<16x16xf32>
    %7 = tpu.matmul %4, %0, %cst_9 {dimension_numbers = #tpu.dot_dimension_numbers<[1], [0], [0], [1], [0, 0, 1, 1], [], []>, precision = #tpu.contract_precision<fp32>} : vector<16x16xf32>, vector<16x16xf32>, vector<16x16xf32> -> vector<16x16xf32>
    %cst_10 = arith.constant dense<0.000000e+00> : vector<16x16xf32>
    %8 = tpu.matmul %1, %7, %cst_10 {dimension_numbers = #tpu.dot_dimension_numbers<[1], [0], [0], [1], [0, 0, 1, 1], [], []>, precision = #tpu.contract_precision<fp32>} : vector<16x16xf32>, vector<16x16xf32>, vector<16x16xf32> -> vector<16x16xf32>
    %cst_11 = arith.constant dense<0.000000e+00> : vector<16x16xf32>
    %9 = tpu.matmul %6, %0, %cst_11 {dimension_numbers = #tpu.dot_dimension_numbers<[1], [0], [0], [1], [0, 0, 1, 1], [], []>, precision = #tpu.contract_precision<fp32>} : vector<16x16xf32>, vector<16x16xf32>, vector<16x16xf32> -> vector<16x16xf32>
    %cst_12 = arith.constant dense<0.000000e+00> : vector<16x16xf32>
    %10 = tpu.matmul %1, %9, %cst_12 {dimension_numbers = #tpu.dot_dimension_numbers<[1], [0], [0], [1], [0, 0, 1, 1], [], []>, precision = #tpu.contract_precision<fp32>} : vector<16x16xf32>, vector<16x16xf32>, vector<16x16xf32> -> vector<16x16xf32>
    %11 = arith.mulf %8, %8 : vector<16x16xf32>
    %12 = arith.mulf %10, %10 : vector<16x16xf32>
    %13 = arith.mulf %8, %10 : vector<16x16xf32>
    %14 = arith.mulf %4, %4 : vector<16x16xf32>
    %cst_13 = arith.constant dense<0.000000e+00> : vector<16x16xf32>
    %15 = tpu.matmul %14, %0, %cst_13 {dimension_numbers = #tpu.dot_dimension_numbers<[1], [0], [0], [1], [0, 0, 1, 1], [], []>, precision = #tpu.contract_precision<fp32>} : vector<16x16xf32>, vector<16x16xf32>, vector<16x16xf32> -> vector<16x16xf32>
    %cst_14 = arith.constant dense<0.000000e+00> : vector<16x16xf32>
    %16 = tpu.matmul %1, %15, %cst_14 {dimension_numbers = #tpu.dot_dimension_numbers<[1], [0], [0], [1], [0, 0, 1, 1], [], []>, precision = #tpu.contract_precision<fp32>} : vector<16x16xf32>, vector<16x16xf32>, vector<16x16xf32> -> vector<16x16xf32>
    %17 = arith.subf %16, %11 : vector<16x16xf32>
    %18 = arith.mulf %6, %6 : vector<16x16xf32>
    %cst_15 = arith.constant dense<0.000000e+00> : vector<16x16xf32>
    %19 = tpu.matmul %18, %0, %cst_15 {dimension_numbers = #tpu.dot_dimension_numbers<[1], [0], [0], [1], [0, 0, 1, 1], [], []>, precision = #tpu.contract_precision<fp32>} : vector<16x16xf32>, vector<16x16xf32>, vector<16x16xf32> -> vector<16x16xf32>
    %cst_16 = arith.constant dense<0.000000e+00> : vector<16x16xf32>
    %20 = tpu.matmul %1, %19, %cst_16 {dimension_numbers = #tpu.dot_dimension_numbers<[1], [0], [0], [1], [0, 0, 1, 1], [], []>, precision = #tpu.contract_precision<fp32>} : vector<16x16xf32>, vector<16x16xf32>, vector<16x16xf32> -> vector<16x16xf32>
    %21 = arith.subf %20, %12 : vector<16x16xf32>
    %22 = arith.mulf %4, %6 : vector<16x16xf32>
    %cst_17 = arith.constant dense<0.000000e+00> : vector<16x16xf32>
    %23 = tpu.matmul %22, %0, %cst_17 {dimension_numbers = #tpu.dot_dimension_numbers<[1], [0], [0], [1], [0, 0, 1, 1], [], []>, precision = #tpu.contract_precision<fp32>} : vector<16x16xf32>, vector<16x16xf32>, vector<16x16xf32> -> vector<16x16xf32>
    %cst_18 = arith.constant dense<0.000000e+00> : vector<16x16xf32>
    %24 = tpu.matmul %1, %23, %cst_18 {dimension_numbers = #tpu.dot_dimension_numbers<[1], [0], [0], [1], [0, 0, 1, 1], [], []>, precision = #tpu.contract_precision<fp32>} : vector<16x16xf32>, vector<16x16xf32>, vector<16x16xf32> -> vector<16x16xf32>
    %25 = arith.subf %24, %13 : vector<16x16xf32>
    %cst_19 = arith.constant 2.000000e+00 : f32
    %26 = vector.broadcast %cst_19 : f32 to vector<16x16xf32>
    %27 = arith.mulf %26, %13 : vector<16x16xf32>
    %cst_20 = arith.constant 9.99999974E-5 : f32
    %28 = vector.broadcast %cst_20 : f32 to vector<16x16xf32>
    %29 = arith.addf %27, %28 : vector<16x16xf32>
    %cst_21 = arith.constant 2.000000e+00 : f32
    %30 = vector.broadcast %cst_21 : f32 to vector<16x16xf32>
    %31 = arith.mulf %30, %25 : vector<16x16xf32>
    %cst_22 = arith.constant 8.99999984E-4 : f32
    %32 = vector.broadcast %cst_22 : f32 to vector<16x16xf32>
    %33 = arith.addf %31, %32 : vector<16x16xf32>
    %34 = arith.mulf %29, %33 : vector<16x16xf32>
    %35 = arith.addf %11, %12 : vector<16x16xf32>
    %cst_23 = arith.constant 9.99999974E-5 : f32
    %36 = vector.broadcast %cst_23 : f32 to vector<16x16xf32>
    %37 = arith.addf %35, %36 : vector<16x16xf32>
    %38 = arith.addf %17, %21 : vector<16x16xf32>
    %cst_24 = arith.constant 8.99999984E-4 : f32
    %39 = vector.broadcast %cst_24 : f32 to vector<16x16xf32>
    %40 = arith.addf %38, %39 : vector<16x16xf32>
    %41 = arith.mulf %37, %40 : vector<16x16xf32>
    %cst_25 = arith.constant 9.99999996E-13 : f32
    %42 = vector.broadcast %cst_25 : f32 to vector<16x16xf32>
    %43 = arith.addf %41, %42 : vector<16x16xf32>
    %44 = tpu.reciprocal %43 : vector<16x16xf32> -> vector<16x16xf32>
    %45 = arith.mulf %34, %44 : vector<16x16xf32>
    %46 = vector.shape_cast %45 : vector<16x16xf32> to vector<1x16x16xf32>
    %cst_26 = arith.constant dense<0.000000e+00> : vector<1xf32>
    %47 = vector.multi_reduction <add>, %46, %cst_26 [1, 2] : vector<1x16x16xf32> to vector<1xf32>
    %48 = vector.shape_cast %47 : vector<1xf32> to vector<1x1x1xf32>
    %49 = vector.extract %48[0, 0, 0] : f32 from vector<1x1x1xf32>
    %50 = vector.broadcast %49 : f32 to vector<1x1xf32>
    %51 = arith.addf %2, %50 : vector<1x1xf32>
    %c1 = arith.constant 1 : index
    %c0_27 = arith.constant 0 : index
    %c0_28 = arith.constant 0 : index
    %52 = vector.load %arg1[%c1, %c0_27, %c0_28] : memref<6x16x16xf32, #tpu.memory_space<vmem>>, vector<1x16x16xf32>
    %53 = vector.shape_cast %52 : vector<1x16x16xf32> to vector<16x16xf32>
    %c1_29 = arith.constant 1 : index
    %c0_30 = arith.constant 0 : index
    %c0_31 = arith.constant 0 : index
    %54 = vector.load %arg2[%c1_29, %c0_30, %c0_31] : memref<6x16x16xf32, #tpu.memory_space<vmem>>, vector<1x16x16xf32>
    %55 = vector.shape_cast %54 : vector<1x16x16xf32> to vector<16x16xf32>
    %cst_32 = arith.constant dense<0.000000e+00> : vector<16x16xf32>
    %56 = tpu.matmul %53, %0, %cst_32 {dimension_numbers = #tpu.dot_dimension_numbers<[1], [0], [0], [1], [0, 0, 1, 1], [], []>, precision = #tpu.contract_precision<fp32>} : vector<16x16xf32>, vector<16x16xf32>, vector<16x16xf32> -> vector<16x16xf32>
    %cst_33 = arith.constant dense<0.000000e+00> : vector<16x16xf32>
    %57 = tpu.matmul %1, %56, %cst_33 {dimension_numbers = #tpu.dot_dimension_numbers<[1], [0], [0], [1], [0, 0, 1, 1], [], []>, precision = #tpu.contract_precision<fp32>} : vector<16x16xf32>, vector<16x16xf32>, vector<16x16xf32> -> vector<16x16xf32>
    %cst_34 = arith.constant dense<0.000000e+00> : vector<16x16xf32>
    %58 = tpu.matmul %55, %0, %cst_34 {dimension_numbers = #tpu.dot_dimension_numbers<[1], [0], [0], [1], [0, 0, 1, 1], [], []>, precision = #tpu.contract_precision<fp32>} : vector<16x16xf32>, vector<16x16xf32>, vector<16x16xf32> -> vector<16x16xf32>
    %cst_35 = arith.constant dense<0.000000e+00> : vector<16x16xf32>
    %59 = tpu.matmul %1, %58, %cst_35 {dimension_numbers = #tpu.dot_dimension_numbers<[1], [0], [0], [1], [0, 0, 1, 1], [], []>, precision = #tpu.contract_precision<fp32>} : vector<16x16xf32>, vector<16x16xf32>, vector<16x16xf32> -> vector<16x16xf32>
    %60 = arith.mulf %57, %57 : vector<16x16xf32>
    %61 = arith.mulf %59, %59 : vector<16x16xf32>
    %62 = arith.mulf %57, %59 : vector<16x16xf32>
    %63 = arith.mulf %53, %53 : vector<16x16xf32>
    %cst_36 = arith.constant dense<0.000000e+00> : vector<16x16xf32>
    %64 = tpu.matmul %63, %0, %cst_36 {dimension_numbers = #tpu.dot_dimension_numbers<[1], [0], [0], [1], [0, 0, 1, 1], [], []>, precision = #tpu.contract_precision<fp32>} : vector<16x16xf32>, vector<16x16xf32>, vector<16x16xf32> -> vector<16x16xf32>
    %cst_37 = arith.constant dense<0.000000e+00> : vector<16x16xf32>
    %65 = tpu.matmul %1, %64, %cst_37 {dimension_numbers = #tpu.dot_dimension_numbers<[1], [0], [0], [1], [0, 0, 1, 1], [], []>, precision = #tpu.contract_precision<fp32>} : vector<16x16xf32>, vector<16x16xf32>, vector<16x16xf32> -> vector<16x16xf32>
    %66 = arith.subf %65, %60 : vector<16x16xf32>
    %67 = arith.mulf %55, %55 : vector<16x16xf32>
    %cst_38 = arith.constant dense<0.000000e+00> : vector<16x16xf32>
    %68 = tpu.matmul %67, %0, %cst_38 {dimension_numbers = #tpu.dot_dimension_numbers<[1], [0], [0], [1], [0, 0, 1, 1], [], []>, precision = #tpu.contract_precision<fp32>} : vector<16x16xf32>, vector<16x16xf32>, vector<16x16xf32> -> vector<16x16xf32>
    %cst_39 = arith.constant dense<0.000000e+00> : vector<16x16xf32>
    %69 = tpu.matmul %1, %68, %cst_39 {dimension_numbers = #tpu.dot_dimension_numbers<[1], [0], [0], [1], [0, 0, 1, 1], [], []>, precision = #tpu.contract_precision<fp32>} : vector<16x16xf32>, vector<16x16xf32>, vector<16x16xf32> -> vector<16x16xf32>
    %70 = arith.subf %69, %61 : vector<16x16xf32>
    %71 = arith.mulf %53, %55 : vector<16x16xf32>
    %cst_40 = arith.constant dense<0.000000e+00> : vector<16x16xf32>
    %72 = tpu.matmul %71, %0, %cst_40 {dimension_numbers = #tpu.dot_dimension_numbers<[1], [0], [0], [1], [0, 0, 1, 1], [], []>, precision = #tpu.contract_precision<fp32>} : vector<16x16xf32>, vector<16x16xf32>, vector<16x16xf32> -> vector<16x16xf32>
    %cst_41 = arith.constant dense<0.000000e+00> : vector<16x16xf32>
    %73 = tpu.matmul %1, %72, %cst_41 {dimension_numbers = #tpu.dot_dimension_numbers<[1], [0], [0], [1], [0, 0, 1, 1], [], []>, precision = #tpu.contract_precision<fp32>} : vector<16x16xf32>, vector<16x16xf32>, vector<16x16xf32> -> vector<16x16xf32>
    %74 = arith.subf %73, %62 : vector<16x16xf32>
    %cst_42 = arith.constant 2.000000e+00 : f32
    %75 = vector.broadcast %cst_42 : f32 to vector<16x16xf32>
    %76 = arith.mulf %75, %62 : vector<16x16xf32>
    %cst_43 = arith.constant 9.99999974E-5 : f32
    %77 = vector.broadcast %cst_43 : f32 to vector<16x16xf32>
    %78 = arith.addf %76, %77 : vector<16x16xf32>
    %cst_44 = arith.constant 2.000000e+00 : f32
    %79 = vector.broadcast %cst_44 : f32 to vector<16x16xf32>
    %80 = arith.mulf %79, %74 : vector<16x16xf32>
    %cst_45 = arith.constant 8.99999984E-4 : f32
    %81 = vector.broadcast %cst_45 : f32 to vector<16x16xf32>
    %82 = arith.addf %80, %81 : vector<16x16xf32>
    %83 = arith.mulf %78, %82 : vector<16x16xf32>
    %84 = arith.addf %60, %61 : vector<16x16xf32>
    %cst_46 = arith.constant 9.99999974E-5 : f32
    %85 = vector.broadcast %cst_46 : f32 to vector<16x16xf32>
    %86 = arith.addf %84, %85 : vector<16x16xf32>
    %87 = arith.addf %66, %70 : vector<16x16xf32>
    %cst_47 = arith.constant 8.99999984E-4 : f32
    %88 = vector.broadcast %cst_47 : f32 to vector<16x16xf32>
    %89 = arith.addf %87, %88 : vector<16x16xf32>
    %90 = arith.mulf %86, %89 : vector<16x16xf32>
    %cst_48 = arith.constant 9.99999996E-13 : f32
    %91 = vector.broadcast %cst_48 : f32 to vector<16x16xf32>
    %92 = arith.addf %90, %91 : vector<16x16xf32>
    %93 = tpu.reciprocal %92 : vector<16x16xf32> -> vector<16x16xf32>
    %94 = arith.mulf %83, %93 : vector<16x16xf32>
    %95 = vector.shape_cast %94 : vector<16x16xf32> to vector<1x16x16xf32>
    %cst_49 = arith.constant dense<0.000000e+00> : vector<1xf32>
    %96 = vector.multi_reduction <add>, %95, %cst_49 [1, 2] : vector<1x16x16xf32> to vector<1xf32>
    %97 = vector.shape_cast %96 : vector<1xf32> to vector<1x1x1xf32>
    %98 = vector.extract %97[0, 0, 0] : f32 from vector<1x1x1xf32>
    %99 = vector.broadcast %98 : f32 to vector<1x1xf32>
    %100 = arith.addf %51, %99 : vector<1x1xf32>
    %c2 = arith.constant 2 : index
    %c0_50 = arith.constant 0 : index
    %c0_51 = arith.constant 0 : index
    %101 = vector.load %arg1[%c2, %c0_50, %c0_51] : memref<6x16x16xf32, #tpu.memory_space<vmem>>, vector<1x16x16xf32>
    %102 = vector.shape_cast %101 : vector<1x16x16xf32> to vector<16x16xf32>
    %c2_52 = arith.constant 2 : index
    %c0_53 = arith.constant 0 : index
    %c0_54 = arith.constant 0 : index
    %103 = vector.load %arg2[%c2_52, %c0_53, %c0_54] : memref<6x16x16xf32, #tpu.memory_space<vmem>>, vector<1x16x16xf32>
    %104 = vector.shape_cast %103 : vector<1x16x16xf32> to vector<16x16xf32>
    %cst_55 = arith.constant dense<0.000000e+00> : vector<16x16xf32>
    %105 = tpu.matmul %102, %0, %cst_55 {dimension_numbers = #tpu.dot_dimension_numbers<[1], [0], [0], [1], [0, 0, 1, 1], [], []>, precision = #tpu.contract_precision<fp32>} : vector<16x16xf32>, vector<16x16xf32>, vector<16x16xf32> -> vector<16x16xf32>
    %cst_56 = arith.constant dense<0.000000e+00> : vector<16x16xf32>
    %106 = tpu.matmul %1, %105, %cst_56 {dimension_numbers = #tpu.dot_dimension_numbers<[1], [0], [0], [1], [0, 0, 1, 1], [], []>, precision = #tpu.contract_precision<fp32>} : vector<16x16xf32>, vector<16x16xf32>, vector<16x16xf32> -> vector<16x16xf32>
    %cst_57 = arith.constant dense<0.000000e+00> : vector<16x16xf32>
    %107 = tpu.matmul %104, %0, %cst_57 {dimension_numbers = #tpu.dot_dimension_numbers<[1], [0], [0], [1], [0, 0, 1, 1], [], []>, precision = #tpu.contract_precision<fp32>} : vector<16x16xf32>, vector<16x16xf32>, vector<16x16xf32> -> vector<16x16xf32>
    %cst_58 = arith.constant dense<0.000000e+00> : vector<16x16xf32>
    %108 = tpu.matmul %1, %107, %cst_58 {dimension_numbers = #tpu.dot_dimension_numbers<[1], [0], [0], [1], [0, 0, 1, 1], [], []>, precision = #tpu.contract_precision<fp32>} : vector<16x16xf32>, vector<16x16xf32>, vector<16x16xf32> -> vector<16x16xf32>
    %109 = arith.mulf %106, %106 : vector<16x16xf32>
    %110 = arith.mulf %108, %108 : vector<16x16xf32>
    %111 = arith.mulf %106, %108 : vector<16x16xf32>
    %112 = arith.mulf %102, %102 : vector<16x16xf32>
    %cst_59 = arith.constant dense<0.000000e+00> : vector<16x16xf32>
    %113 = tpu.matmul %112, %0, %cst_59 {dimension_numbers = #tpu.dot_dimension_numbers<[1], [0], [0], [1], [0, 0, 1, 1], [], []>, precision = #tpu.contract_precision<fp32>} : vector<16x16xf32>, vector<16x16xf32>, vector<16x16xf32> -> vector<16x16xf32>
    %cst_60 = arith.constant dense<0.000000e+00> : vector<16x16xf32>
    %114 = tpu.matmul %1, %113, %cst_60 {dimension_numbers = #tpu.dot_dimension_numbers<[1], [0], [0], [1], [0, 0, 1, 1], [], []>, precision = #tpu.contract_precision<fp32>} : vector<16x16xf32>, vector<16x16xf32>, vector<16x16xf32> -> vector<16x16xf32>
    %115 = arith.subf %114, %109 : vector<16x16xf32>
    %116 = arith.mulf %104, %104 : vector<16x16xf32>
    %cst_61 = arith.constant dense<0.000000e+00> : vector<16x16xf32>
    %117 = tpu.matmul %116, %0, %cst_61 {dimension_numbers = #tpu.dot_dimension_numbers<[1], [0], [0], [1], [0, 0, 1, 1], [], []>, precision = #tpu.contract_precision<fp32>} : vector<16x16xf32>, vector<16x16xf32>, vector<16x16xf32> -> vector<16x16xf32>
    %cst_62 = arith.constant dense<0.000000e+00> : vector<16x16xf32>
    %118 = tpu.matmul %1, %117, %cst_62 {dimension_numbers = #tpu.dot_dimension_numbers<[1], [0], [0], [1], [0, 0, 1, 1], [], []>, precision = #tpu.contract_precision<fp32>} : vector<16x16xf32>, vector<16x16xf32>, vector<16x16xf32> -> vector<16x16xf32>
    %119 = arith.subf %118, %110 : vector<16x16xf32>
    %120 = arith.mulf %102, %104 : vector<16x16xf32>
    %cst_63 = arith.constant dense<0.000000e+00> : vector<16x16xf32>
    %121 = tpu.matmul %120, %0, %cst_63 {dimension_numbers = #tpu.dot_dimension_numbers<[1], [0], [0], [1], [0, 0, 1, 1], [], []>, precision = #tpu.contract_precision<fp32>} : vector<16x16xf32>, vector<16x16xf32>, vector<16x16xf32> -> vector<16x16xf32>
    %cst_64 = arith.constant dense<0.000000e+00> : vector<16x16xf32>
    %122 = tpu.matmul %1, %121, %cst_64 {dimension_numbers = #tpu.dot_dimension_numbers<[1], [0], [0], [1], [0, 0, 1, 1], [], []>, precision = #tpu.contract_precision<fp32>} : vector<16x16xf32>, vector<16x16xf32>, vector<16x16xf32> -> vector<16x16xf32>
    %123 = arith.subf %122, %111 : vector<16x16xf32>
    %cst_65 = arith.constant 2.000000e+00 : f32
    %124 = vector.broadcast %cst_65 : f32 to vector<16x16xf32>
    %125 = arith.mulf %124, %111 : vector<16x16xf32>
    %cst_66 = arith.constant 9.99999974E-5 : f32
    %126 = vector.broadcast %cst_66 : f32 to vector<16x16xf32>
    %127 = arith.addf %125, %126 : vector<16x16xf32>
    %cst_67 = arith.constant 2.000000e+00 : f32
    %128 = vector.broadcast %cst_67 : f32 to vector<16x16xf32>
    %129 = arith.mulf %128, %123 : vector<16x16xf32>
    %cst_68 = arith.constant 8.99999984E-4 : f32
    %130 = vector.broadcast %cst_68 : f32 to vector<16x16xf32>
    %131 = arith.addf %129, %130 : vector<16x16xf32>
    %132 = arith.mulf %127, %131 : vector<16x16xf32>
    %133 = arith.addf %109, %110 : vector<16x16xf32>
    %cst_69 = arith.constant 9.99999974E-5 : f32
    %134 = vector.broadcast %cst_69 : f32 to vector<16x16xf32>
    %135 = arith.addf %133, %134 : vector<16x16xf32>
    %136 = arith.addf %115, %119 : vector<16x16xf32>
    %cst_70 = arith.constant 8.99999984E-4 : f32
    %137 = vector.broadcast %cst_70 : f32 to vector<16x16xf32>
    %138 = arith.addf %136, %137 : vector<16x16xf32>
    %139 = arith.mulf %135, %138 : vector<16x16xf32>
    %cst_71 = arith.constant 9.99999996E-13 : f32
    %140 = vector.broadcast %cst_71 : f32 to vector<16x16xf32>
    %141 = arith.addf %139, %140 : vector<16x16xf32>
    %142 = tpu.reciprocal %141 : vector<16x16xf32> -> vector<16x16xf32>
    %143 = arith.mulf %132, %142 : vector<16x16xf32>
    %144 = vector.shape_cast %143 : vector<16x16xf32> to vector<1x16x16xf32>
    %cst_72 = arith.constant dense<0.000000e+00> : vector<1xf32>
    %145 = vector.multi_reduction <add>, %144, %cst_72 [1, 2] : vector<1x16x16xf32> to vector<1xf32>
    %146 = vector.shape_cast %145 : vector<1xf32> to vector<1x1x1xf32>
    %147 = vector.extract %146[0, 0, 0] : f32 from vector<1x1x1xf32>
    %148 = vector.broadcast %147 : f32 to vector<1x1xf32>
    %149 = arith.addf %100, %148 : vector<1x1xf32>
    %c3 = arith.constant 3 : index
    %c0_73 = arith.constant 0 : index
    %c0_74 = arith.constant 0 : index
    %150 = vector.load %arg1[%c3, %c0_73, %c0_74] : memref<6x16x16xf32, #tpu.memory_space<vmem>>, vector<1x16x16xf32>
    %151 = vector.shape_cast %150 : vector<1x16x16xf32> to vector<16x16xf32>
    %c3_75 = arith.constant 3 : index
    %c0_76 = arith.constant 0 : index
    %c0_77 = arith.constant 0 : index
    %152 = vector.load %arg2[%c3_75, %c0_76, %c0_77] : memref<6x16x16xf32, #tpu.memory_space<vmem>>, vector<1x16x16xf32>
    %153 = vector.shape_cast %152 : vector<1x16x16xf32> to vector<16x16xf32>
    %cst_78 = arith.constant dense<0.000000e+00> : vector<16x16xf32>
    %154 = tpu.matmul %151, %0, %cst_78 {dimension_numbers = #tpu.dot_dimension_numbers<[1], [0], [0], [1], [0, 0, 1, 1], [], []>, precision = #tpu.contract_precision<fp32>} : vector<16x16xf32>, vector<16x16xf32>, vector<16x16xf32> -> vector<16x16xf32>
    %cst_79 = arith.constant dense<0.000000e+00> : vector<16x16xf32>
    %155 = tpu.matmul %1, %154, %cst_79 {dimension_numbers = #tpu.dot_dimension_numbers<[1], [0], [0], [1], [0, 0, 1, 1], [], []>, precision = #tpu.contract_precision<fp32>} : vector<16x16xf32>, vector<16x16xf32>, vector<16x16xf32> -> vector<16x16xf32>
    %cst_80 = arith.constant dense<0.000000e+00> : vector<16x16xf32>
    %156 = tpu.matmul %153, %0, %cst_80 {dimension_numbers = #tpu.dot_dimension_numbers<[1], [0], [0], [1], [0, 0, 1, 1], [], []>, precision = #tpu.contract_precision<fp32>} : vector<16x16xf32>, vector<16x16xf32>, vector<16x16xf32> -> vector<16x16xf32>
    %cst_81 = arith.constant dense<0.000000e+00> : vector<16x16xf32>
    %157 = tpu.matmul %1, %156, %cst_81 {dimension_numbers = #tpu.dot_dimension_numbers<[1], [0], [0], [1], [0, 0, 1, 1], [], []>, precision = #tpu.contract_precision<fp32>} : vector<16x16xf32>, vector<16x16xf32>, vector<16x16xf32> -> vector<16x16xf32>
    %158 = arith.mulf %155, %155 : vector<16x16xf32>
    %159 = arith.mulf %157, %157 : vector<16x16xf32>
    %160 = arith.mulf %155, %157 : vector<16x16xf32>
    %161 = arith.mulf %151, %151 : vector<16x16xf32>
    %cst_82 = arith.constant dense<0.000000e+00> : vector<16x16xf32>
    %162 = tpu.matmul %161, %0, %cst_82 {dimension_numbers = #tpu.dot_dimension_numbers<[1], [0], [0], [1], [0, 0, 1, 1], [], []>, precision = #tpu.contract_precision<fp32>} : vector<16x16xf32>, vector<16x16xf32>, vector<16x16xf32> -> vector<16x16xf32>
    %cst_83 = arith.constant dense<0.000000e+00> : vector<16x16xf32>
    %163 = tpu.matmul %1, %162, %cst_83 {dimension_numbers = #tpu.dot_dimension_numbers<[1], [0], [0], [1], [0, 0, 1, 1], [], []>, precision = #tpu.contract_precision<fp32>} : vector<16x16xf32>, vector<16x16xf32>, vector<16x16xf32> -> vector<16x16xf32>
    %164 = arith.subf %163, %158 : vector<16x16xf32>
    %165 = arith.mulf %153, %153 : vector<16x16xf32>
    %cst_84 = arith.constant dense<0.000000e+00> : vector<16x16xf32>
    %166 = tpu.matmul %165, %0, %cst_84 {dimension_numbers = #tpu.dot_dimension_numbers<[1], [0], [0], [1], [0, 0, 1, 1], [], []>, precision = #tpu.contract_precision<fp32>} : vector<16x16xf32>, vector<16x16xf32>, vector<16x16xf32> -> vector<16x16xf32>
    %cst_85 = arith.constant dense<0.000000e+00> : vector<16x16xf32>
    %167 = tpu.matmul %1, %166, %cst_85 {dimension_numbers = #tpu.dot_dimension_numbers<[1], [0], [0], [1], [0, 0, 1, 1], [], []>, precision = #tpu.contract_precision<fp32>} : vector<16x16xf32>, vector<16x16xf32>, vector<16x16xf32> -> vector<16x16xf32>
    %168 = arith.subf %167, %159 : vector<16x16xf32>
    %169 = arith.mulf %151, %153 : vector<16x16xf32>
    %cst_86 = arith.constant dense<0.000000e+00> : vector<16x16xf32>
    %170 = tpu.matmul %169, %0, %cst_86 {dimension_numbers = #tpu.dot_dimension_numbers<[1], [0], [0], [1], [0, 0, 1, 1], [], []>, precision = #tpu.contract_precision<fp32>} : vector<16x16xf32>, vector<16x16xf32>, vector<16x16xf32> -> vector<16x16xf32>
    %cst_87 = arith.constant dense<0.000000e+00> : vector<16x16xf32>
    %171 = tpu.matmul %1, %170, %cst_87 {dimension_numbers = #tpu.dot_dimension_numbers<[1], [0], [0], [1], [0, 0, 1, 1], [], []>, precision = #tpu.contract_precision<fp32>} : vector<16x16xf32>, vector<16x16xf32>, vector<16x16xf32> -> vector<16x16xf32>
    %172 = arith.subf %171, %160 : vector<16x16xf32>
    %cst_88 = arith.constant 2.000000e+00 : f32
    %173 = vector.broadcast %cst_88 : f32 to vector<16x16xf32>
    %174 = arith.mulf %173, %160 : vector<16x16xf32>
    %cst_89 = arith.constant 9.99999974E-5 : f32
    %175 = vector.broadcast %cst_89 : f32 to vector<16x16xf32>
    %176 = arith.addf %174, %175 : vector<16x16xf32>
    %cst_90 = arith.constant 2.000000e+00 : f32
    %177 = vector.broadcast %cst_90 : f32 to vector<16x16xf32>
    %178 = arith.mulf %177, %172 : vector<16x16xf32>
    %cst_91 = arith.constant 8.99999984E-4 : f32
    %179 = vector.broadcast %cst_91 : f32 to vector<16x16xf32>
    %180 = arith.addf %178, %179 : vector<16x16xf32>
    %181 = arith.mulf %176, %180 : vector<16x16xf32>
    %182 = arith.addf %158, %159 : vector<16x16xf32>
    %cst_92 = arith.constant 9.99999974E-5 : f32
    %183 = vector.broadcast %cst_92 : f32 to vector<16x16xf32>
    %184 = arith.addf %182, %183 : vector<16x16xf32>
    %185 = arith.addf %164, %168 : vector<16x16xf32>
    %cst_93 = arith.constant 8.99999984E-4 : f32
    %186 = vector.broadcast %cst_93 : f32 to vector<16x16xf32>
    %187 = arith.addf %185, %186 : vector<16x16xf32>
    %188 = arith.mulf %184, %187 : vector<16x16xf32>
    %cst_94 = arith.constant 9.99999996E-13 : f32
    %189 = vector.broadcast %cst_94 : f32 to vector<16x16xf32>
    %190 = arith.addf %188, %189 : vector<16x16xf32>
    %191 = tpu.reciprocal %190 : vector<16x16xf32> -> vector<16x16xf32>
    %192 = arith.mulf %181, %191 : vector<16x16xf32>
    %193 = vector.shape_cast %192 : vector<16x16xf32> to vector<1x16x16xf32>
    %cst_95 = arith.constant dense<0.000000e+00> : vector<1xf32>
    %194 = vector.multi_reduction <add>, %193, %cst_95 [1, 2] : vector<1x16x16xf32> to vector<1xf32>
    %195 = vector.shape_cast %194 : vector<1xf32> to vector<1x1x1xf32>
    %196 = vector.extract %195[0, 0, 0] : f32 from vector<1x1x1xf32>
    %197 = vector.broadcast %196 : f32 to vector<1x1xf32>
    %198 = arith.addf %149, %197 : vector<1x1xf32>
    %c4 = arith.constant 4 : index
    %c0_96 = arith.constant 0 : index
    %c0_97 = arith.constant 0 : index
    %199 = vector.load %arg1[%c4, %c0_96, %c0_97] : memref<6x16x16xf32, #tpu.memory_space<vmem>>, vector<1x16x16xf32>
    %200 = vector.shape_cast %199 : vector<1x16x16xf32> to vector<16x16xf32>
    %c4_98 = arith.constant 4 : index
    %c0_99 = arith.constant 0 : index
    %c0_100 = arith.constant 0 : index
    %201 = vector.load %arg2[%c4_98, %c0_99, %c0_100] : memref<6x16x16xf32, #tpu.memory_space<vmem>>, vector<1x16x16xf32>
    %202 = vector.shape_cast %201 : vector<1x16x16xf32> to vector<16x16xf32>
    %cst_101 = arith.constant dense<0.000000e+00> : vector<16x16xf32>
    %203 = tpu.matmul %200, %0, %cst_101 {dimension_numbers = #tpu.dot_dimension_numbers<[1], [0], [0], [1], [0, 0, 1, 1], [], []>, precision = #tpu.contract_precision<fp32>} : vector<16x16xf32>, vector<16x16xf32>, vector<16x16xf32> -> vector<16x16xf32>
    %cst_102 = arith.constant dense<0.000000e+00> : vector<16x16xf32>
    %204 = tpu.matmul %1, %203, %cst_102 {dimension_numbers = #tpu.dot_dimension_numbers<[1], [0], [0], [1], [0, 0, 1, 1], [], []>, precision = #tpu.contract_precision<fp32>} : vector<16x16xf32>, vector<16x16xf32>, vector<16x16xf32> -> vector<16x16xf32>
    %cst_103 = arith.constant dense<0.000000e+00> : vector<16x16xf32>
    %205 = tpu.matmul %202, %0, %cst_103 {dimension_numbers = #tpu.dot_dimension_numbers<[1], [0], [0], [1], [0, 0, 1, 1], [], []>, precision = #tpu.contract_precision<fp32>} : vector<16x16xf32>, vector<16x16xf32>, vector<16x16xf32> -> vector<16x16xf32>
    %cst_104 = arith.constant dense<0.000000e+00> : vector<16x16xf32>
    %206 = tpu.matmul %1, %205, %cst_104 {dimension_numbers = #tpu.dot_dimension_numbers<[1], [0], [0], [1], [0, 0, 1, 1], [], []>, precision = #tpu.contract_precision<fp32>} : vector<16x16xf32>, vector<16x16xf32>, vector<16x16xf32> -> vector<16x16xf32>
    %207 = arith.mulf %204, %204 : vector<16x16xf32>
    %208 = arith.mulf %206, %206 : vector<16x16xf32>
    %209 = arith.mulf %204, %206 : vector<16x16xf32>
    %210 = arith.mulf %200, %200 : vector<16x16xf32>
    %cst_105 = arith.constant dense<0.000000e+00> : vector<16x16xf32>
    %211 = tpu.matmul %210, %0, %cst_105 {dimension_numbers = #tpu.dot_dimension_numbers<[1], [0], [0], [1], [0, 0, 1, 1], [], []>, precision = #tpu.contract_precision<fp32>} : vector<16x16xf32>, vector<16x16xf32>, vector<16x16xf32> -> vector<16x16xf32>
    %cst_106 = arith.constant dense<0.000000e+00> : vector<16x16xf32>
    %212 = tpu.matmul %1, %211, %cst_106 {dimension_numbers = #tpu.dot_dimension_numbers<[1], [0], [0], [1], [0, 0, 1, 1], [], []>, precision = #tpu.contract_precision<fp32>} : vector<16x16xf32>, vector<16x16xf32>, vector<16x16xf32> -> vector<16x16xf32>
    %213 = arith.subf %212, %207 : vector<16x16xf32>
    %214 = arith.mulf %202, %202 : vector<16x16xf32>
    %cst_107 = arith.constant dense<0.000000e+00> : vector<16x16xf32>
    %215 = tpu.matmul %214, %0, %cst_107 {dimension_numbers = #tpu.dot_dimension_numbers<[1], [0], [0], [1], [0, 0, 1, 1], [], []>, precision = #tpu.contract_precision<fp32>} : vector<16x16xf32>, vector<16x16xf32>, vector<16x16xf32> -> vector<16x16xf32>
    %cst_108 = arith.constant dense<0.000000e+00> : vector<16x16xf32>
    %216 = tpu.matmul %1, %215, %cst_108 {dimension_numbers = #tpu.dot_dimension_numbers<[1], [0], [0], [1], [0, 0, 1, 1], [], []>, precision = #tpu.contract_precision<fp32>} : vector<16x16xf32>, vector<16x16xf32>, vector<16x16xf32> -> vector<16x16xf32>
    %217 = arith.subf %216, %208 : vector<16x16xf32>
    %218 = arith.mulf %200, %202 : vector<16x16xf32>
    %cst_109 = arith.constant dense<0.000000e+00> : vector<16x16xf32>
    %219 = tpu.matmul %218, %0, %cst_109 {dimension_numbers = #tpu.dot_dimension_numbers<[1], [0], [0], [1], [0, 0, 1, 1], [], []>, precision = #tpu.contract_precision<fp32>} : vector<16x16xf32>, vector<16x16xf32>, vector<16x16xf32> -> vector<16x16xf32>
    %cst_110 = arith.constant dense<0.000000e+00> : vector<16x16xf32>
    %220 = tpu.matmul %1, %219, %cst_110 {dimension_numbers = #tpu.dot_dimension_numbers<[1], [0], [0], [1], [0, 0, 1, 1], [], []>, precision = #tpu.contract_precision<fp32>} : vector<16x16xf32>, vector<16x16xf32>, vector<16x16xf32> -> vector<16x16xf32>
    %221 = arith.subf %220, %209 : vector<16x16xf32>
    %cst_111 = arith.constant 2.000000e+00 : f32
    %222 = vector.broadcast %cst_111 : f32 to vector<16x16xf32>
    %223 = arith.mulf %222, %209 : vector<16x16xf32>
    %cst_112 = arith.constant 9.99999974E-5 : f32
    %224 = vector.broadcast %cst_112 : f32 to vector<16x16xf32>
    %225 = arith.addf %223, %224 : vector<16x16xf32>
    %cst_113 = arith.constant 2.000000e+00 : f32
    %226 = vector.broadcast %cst_113 : f32 to vector<16x16xf32>
    %227 = arith.mulf %226, %221 : vector<16x16xf32>
    %cst_114 = arith.constant 8.99999984E-4 : f32
    %228 = vector.broadcast %cst_114 : f32 to vector<16x16xf32>
    %229 = arith.addf %227, %228 : vector<16x16xf32>
    %230 = arith.mulf %225, %229 : vector<16x16xf32>
    %231 = arith.addf %207, %208 : vector<16x16xf32>
    %cst_115 = arith.constant 9.99999974E-5 : f32
    %232 = vector.broadcast %cst_115 : f32 to vector<16x16xf32>
    %233 = arith.addf %231, %232 : vector<16x16xf32>
    %234 = arith.addf %213, %217 : vector<16x16xf32>
    %cst_116 = arith.constant 8.99999984E-4 : f32
    %235 = vector.broadcast %cst_116 : f32 to vector<16x16xf32>
    %236 = arith.addf %234, %235 : vector<16x16xf32>
    %237 = arith.mulf %233, %236 : vector<16x16xf32>
    %cst_117 = arith.constant 9.99999996E-13 : f32
    %238 = vector.broadcast %cst_117 : f32 to vector<16x16xf32>
    %239 = arith.addf %237, %238 : vector<16x16xf32>
    %240 = tpu.reciprocal %239 : vector<16x16xf32> -> vector<16x16xf32>
    %241 = arith.mulf %230, %240 : vector<16x16xf32>
    %242 = vector.shape_cast %241 : vector<16x16xf32> to vector<1x16x16xf32>
    %cst_118 = arith.constant dense<0.000000e+00> : vector<1xf32>
    %243 = vector.multi_reduction <add>, %242, %cst_118 [1, 2] : vector<1x16x16xf32> to vector<1xf32>
    %244 = vector.shape_cast %243 : vector<1xf32> to vector<1x1x1xf32>
    %245 = vector.extract %244[0, 0, 0] : f32 from vector<1x1x1xf32>
    %246 = vector.broadcast %245 : f32 to vector<1x1xf32>
    %247 = arith.addf %198, %246 : vector<1x1xf32>
    %c5 = arith.constant 5 : index
    %c0_119 = arith.constant 0 : index
    %c0_120 = arith.constant 0 : index
    %248 = vector.load %arg1[%c5, %c0_119, %c0_120] : memref<6x16x16xf32, #tpu.memory_space<vmem>>, vector<1x16x16xf32>
    %249 = vector.shape_cast %248 : vector<1x16x16xf32> to vector<16x16xf32>
    %c5_121 = arith.constant 5 : index
    %c0_122 = arith.constant 0 : index
    %c0_123 = arith.constant 0 : index
    %250 = vector.load %arg2[%c5_121, %c0_122, %c0_123] : memref<6x16x16xf32, #tpu.memory_space<vmem>>, vector<1x16x16xf32>
    %251 = vector.shape_cast %250 : vector<1x16x16xf32> to vector<16x16xf32>
    %cst_124 = arith.constant dense<0.000000e+00> : vector<16x16xf32>
    %252 = tpu.matmul %249, %0, %cst_124 {dimension_numbers = #tpu.dot_dimension_numbers<[1], [0], [0], [1], [0, 0, 1, 1], [], []>, precision = #tpu.contract_precision<fp32>} : vector<16x16xf32>, vector<16x16xf32>, vector<16x16xf32> -> vector<16x16xf32>
    %cst_125 = arith.constant dense<0.000000e+00> : vector<16x16xf32>
    %253 = tpu.matmul %1, %252, %cst_125 {dimension_numbers = #tpu.dot_dimension_numbers<[1], [0], [0], [1], [0, 0, 1, 1], [], []>, precision = #tpu.contract_precision<fp32>} : vector<16x16xf32>, vector<16x16xf32>, vector<16x16xf32> -> vector<16x16xf32>
    %cst_126 = arith.constant dense<0.000000e+00> : vector<16x16xf32>
    %254 = tpu.matmul %251, %0, %cst_126 {dimension_numbers = #tpu.dot_dimension_numbers<[1], [0], [0], [1], [0, 0, 1, 1], [], []>, precision = #tpu.contract_precision<fp32>} : vector<16x16xf32>, vector<16x16xf32>, vector<16x16xf32> -> vector<16x16xf32>
    %cst_127 = arith.constant dense<0.000000e+00> : vector<16x16xf32>
    %255 = tpu.matmul %1, %254, %cst_127 {dimension_numbers = #tpu.dot_dimension_numbers<[1], [0], [0], [1], [0, 0, 1, 1], [], []>, precision = #tpu.contract_precision<fp32>} : vector<16x16xf32>, vector<16x16xf32>, vector<16x16xf32> -> vector<16x16xf32>
    %256 = arith.mulf %253, %253 : vector<16x16xf32>
    %257 = arith.mulf %255, %255 : vector<16x16xf32>
    %258 = arith.mulf %253, %255 : vector<16x16xf32>
    %259 = arith.mulf %249, %249 : vector<16x16xf32>
    %cst_128 = arith.constant dense<0.000000e+00> : vector<16x16xf32>
    %260 = tpu.matmul %259, %0, %cst_128 {dimension_numbers = #tpu.dot_dimension_numbers<[1], [0], [0], [1], [0, 0, 1, 1], [], []>, precision = #tpu.contract_precision<fp32>} : vector<16x16xf32>, vector<16x16xf32>, vector<16x16xf32> -> vector<16x16xf32>
    %cst_129 = arith.constant dense<0.000000e+00> : vector<16x16xf32>
    %261 = tpu.matmul %1, %260, %cst_129 {dimension_numbers = #tpu.dot_dimension_numbers<[1], [0], [0], [1], [0, 0, 1, 1], [], []>, precision = #tpu.contract_precision<fp32>} : vector<16x16xf32>, vector<16x16xf32>, vector<16x16xf32> -> vector<16x16xf32>
    %262 = arith.subf %261, %256 : vector<16x16xf32>
    %263 = arith.mulf %251, %251 : vector<16x16xf32>
    %cst_130 = arith.constant dense<0.000000e+00> : vector<16x16xf32>
    %264 = tpu.matmul %263, %0, %cst_130 {dimension_numbers = #tpu.dot_dimension_numbers<[1], [0], [0], [1], [0, 0, 1, 1], [], []>, precision = #tpu.contract_precision<fp32>} : vector<16x16xf32>, vector<16x16xf32>, vector<16x16xf32> -> vector<16x16xf32>
    %cst_131 = arith.constant dense<0.000000e+00> : vector<16x16xf32>
    %265 = tpu.matmul %1, %264, %cst_131 {dimension_numbers = #tpu.dot_dimension_numbers<[1], [0], [0], [1], [0, 0, 1, 1], [], []>, precision = #tpu.contract_precision<fp32>} : vector<16x16xf32>, vector<16x16xf32>, vector<16x16xf32> -> vector<16x16xf32>
    %266 = arith.subf %265, %257 : vector<16x16xf32>
    %267 = arith.mulf %249, %251 : vector<16x16xf32>
    %cst_132 = arith.constant dense<0.000000e+00> : vector<16x16xf32>
    %268 = tpu.matmul %267, %0, %cst_132 {dimension_numbers = #tpu.dot_dimension_numbers<[1], [0], [0], [1], [0, 0, 1, 1], [], []>, precision = #tpu.contract_precision<fp32>} : vector<16x16xf32>, vector<16x16xf32>, vector<16x16xf32> -> vector<16x16xf32>
    %cst_133 = arith.constant dense<0.000000e+00> : vector<16x16xf32>
    %269 = tpu.matmul %1, %268, %cst_133 {dimension_numbers = #tpu.dot_dimension_numbers<[1], [0], [0], [1], [0, 0, 1, 1], [], []>, precision = #tpu.contract_precision<fp32>} : vector<16x16xf32>, vector<16x16xf32>, vector<16x16xf32> -> vector<16x16xf32>
    %270 = arith.subf %269, %258 : vector<16x16xf32>
    %cst_134 = arith.constant 2.000000e+00 : f32
    %271 = vector.broadcast %cst_134 : f32 to vector<16x16xf32>
    %272 = arith.mulf %271, %258 : vector<16x16xf32>
    %cst_135 = arith.constant 9.99999974E-5 : f32
    %273 = vector.broadcast %cst_135 : f32 to vector<16x16xf32>
    %274 = arith.addf %272, %273 : vector<16x16xf32>
    %cst_136 = arith.constant 2.000000e+00 : f32
    %275 = vector.broadcast %cst_136 : f32 to vector<16x16xf32>
    %276 = arith.mulf %275, %270 : vector<16x16xf32>
    %cst_137 = arith.constant 8.99999984E-4 : f32
    %277 = vector.broadcast %cst_137 : f32 to vector<16x16xf32>
    %278 = arith.addf %276, %277 : vector<16x16xf32>
    %279 = arith.mulf %274, %278 : vector<16x16xf32>
    %280 = arith.addf %256, %257 : vector<16x16xf32>
    %cst_138 = arith.constant 9.99999974E-5 : f32
    %281 = vector.broadcast %cst_138 : f32 to vector<16x16xf32>
    %282 = arith.addf %280, %281 : vector<16x16xf32>
    %283 = arith.addf %262, %266 : vector<16x16xf32>
    %cst_139 = arith.constant 8.99999984E-4 : f32
    %284 = vector.broadcast %cst_139 : f32 to vector<16x16xf32>
    %285 = arith.addf %283, %284 : vector<16x16xf32>
    %286 = arith.mulf %282, %285 : vector<16x16xf32>
    %cst_140 = arith.constant 9.99999996E-13 : f32
    %287 = vector.broadcast %cst_140 : f32 to vector<16x16xf32>
    %288 = arith.addf %286, %287 : vector<16x16xf32>
    %289 = tpu.reciprocal %288 : vector<16x16xf32> -> vector<16x16xf32>
    %290 = arith.mulf %279, %289 : vector<16x16xf32>
    %291 = vector.shape_cast %290 : vector<16x16xf32> to vector<1x16x16xf32>
    %cst_141 = arith.constant dense<0.000000e+00> : vector<1xf32>
    %292 = vector.multi_reduction <add>, %291, %cst_141 [1, 2] : vector<1x16x16xf32> to vector<1xf32>
    %293 = vector.shape_cast %292 : vector<1xf32> to vector<1x1x1xf32>
    %294 = vector.extract %293[0, 0, 0] : f32 from vector<1x1x1xf32>
    %295 = vector.broadcast %294 : f32 to vector<1x1xf32>
    %296 = arith.addf %247, %295 : vector<1x1xf32>
    %c0_142 = arith.constant 0 : index
    %c0_143 = arith.constant 0 : index
    %297 = vector.load %arg5[%c0_142, %c0_143] : memref<1x1xf32, #tpu.memory_space<vmem>>, vector<1x1xf32>
    tpu.vector_store %arg5[%c0_142, %c0_143], %296 {strides = array<i32>} : memref<1x1xf32, #tpu.memory_space<vmem>>, vector<1x1xf32>,
    return
  }
  func.func @transform_0(%arg0: i32) -> (i32, i32, i32) {
    %c0_i32 = arith.constant 0 : i32
    %c0_i32_0 = arith.constant 0 : i32
    %c0_i32_1 = arith.constant 0 : i32
    return %arg0, %c0_i32, %c0_i32_0 : i32, i32, i32
  }
  func.func @transform_1(%arg0: i32) -> (i32, i32, i32) {
    %c0_i32 = arith.constant 0 : i32
    %c0_i32_0 = arith.constant 0 : i32
    %c0_i32_1 = arith.constant 0 : i32
    return %arg0, %c0_i32, %c0_i32_0 : i32, i32, i32
  }
  func.func @transform_2(%arg0: i32) -> (i32, i32) {
    %c0_i32 = arith.constant 0 : i32
    %c0_i32_0 = arith.constant 0 : i32
    %c0_i32_1 = arith.constant 0 : i32
    return %c0_i32, %c0_i32_0 : i32, i32
  }
  func.func @transform_3(%arg0: i32) -> (i32, i32) {
    %c0_i32 = arith.constant 0 : i32
    %c0_i32_0 = arith.constant 0 : i32
    %c0_i32_1 = arith.constant 0 : i32
    return %c0_i32, %c0_i32_0 : i32, i32
  }
  func.func @transform_4(%arg0: i32) -> (i32, i32) {
    %c0_i32 = arith.constant 0 : i32
    %c0_i32_0 = arith.constant 0 : i32
    return %arg0, %c0_i32 : i32, i32
  }
}

</mosaic_0001>

<llo_original>
// kernel: tpu_custom_call.1
$region0: #{tpu_custom_call.1}
  #allocation0 [shape = 'u32[]', space=smem, size = 0x4, offset = 0x4, fixed_abs, tag = 'smem constant byte address 0x4 - core index']
  #allocation1 [shape = 'u32[72,128]{1,0:T(1,128)}', space=vmem, size = 0x9000, scoped, tag = 'internal scratch']
  %s0 = inlined_call_operand.hbm [shape: f32[6,16,16], index: 0, kind: input, shape index: {}]
  %s1 = inlined_call_operand.hbm [shape: f32[6,16,16], index: 1, kind: input, shape index: {}]
  %s2 = inlined_call_operand.hbm [shape: f32[16,16], index: 2, kind: input, shape index: {}]
  %s3 = inlined_call_operand.hbm [shape: f32[16,16], index: 3, kind: input, shape index: {}]
  %s4 = inlined_call_operand.hbm [shape: f32[1,1], index: 4, kind: output, shape index: {}]
  %s5 = sld [smem:[#allocation0]]
  $region42: #{tpu_custom_call.1} parent=0
    _
  %s7 = ssub.s32 1, %s5
  %s8 = scalar_select 0, %s7, %s5
  $region1: #{tpu_custom_call.1} parent=0
    #allocation2 [shape = 'u8[49152]{0}', space=vmem, size = 0xc000, scoped, tag = 'input window, operand 0, single buffered']
    #allocation3 [shape = 's32[1]{0}', space=sflag, size = 0x4, scoped, tag = 'scoped memory for tpu_custom_call.1']
    #allocation4 [shape = 's32[1]{0}', space=sflag, size = 0x4, scoped, tag = 'scoped memory for tpu_custom_call.1']
    #allocation5 [shape = 'u8[49152]{0}', space=vmem, size = 0xc000, scoped, tag = 'input window, operand 1, single buffered']
    #allocation6 [shape = 's32[1]{0}', space=sflag, size = 0x4, scoped, tag = 'scoped memory for tpu_custom_call.1']
    #allocation7 [shape = 'u8[8192]{0}', space=vmem, size = 0x2000, scoped, tag = 'input window, operand 2, single buffered']
    #allocation8 [shape = 'u8[8192]{0}', space=vmem, size = 0x2000, scoped, tag = 'input window, operand 3, single buffered']
    #allocation9 [shape = 's32[1]{0}', space=sflag, size = 0x4, scoped, tag = 'scoped memory for tpu_custom_call.1']
    #allocation10 [shape = 'u8[512]{0}', space=vmem, size = 0x400, scoped, tag = 'output window, operand 0, single buffered']
    %9 = vsyncpa [#allocation3], 0
    %10 = vsyncpa [#allocation6], 0
    %11 = vsyncpa [#allocation9], 0
    %12 = vsyncpa [#allocation4], 0
    // Predicated region
    $region2: #{tpu_custom_call.1} parent=1 // pred_check
      _
    $region3: #{tpu_custom_call.1} parent=1 // pred_check_branch
      %14 = sbr.rel (0) target = $region5
    $region4: #{tpu_custom_call.1} parent=1 // pred_region
      %16 = vsyncadd [#allocation3], 0
      %s17 = sshll.u32 %s0, 4
      %s18 = int_to_ptr.hbm [resolvable:$true] %s17
      %s19 = sshll.u32 [#allocation2], 4
      %s20 = int_to_ptr.vmem [resolvable:$true] %s19
      %25 = dma.hbm_to_vmem [thread:$0]  %s18, 1536, %s20, [#allocation3], 128, 128, 8
    $region5: #{tpu_custom_call.1} parent=1 // pred_fallthru
      _
    // Predicated region
    $region6: #{tpu_custom_call.1} parent=1 // pred_check
      _
    $region7: #{tpu_custom_call.1} parent=1 // pred_check_branch
      %27 = sbr.rel (0) target = $region9
    $region8: #{tpu_custom_call.1} parent=1 // pred_region
      %29 = vsyncadd [#allocation6], 0
      %s30 = sshll.u32 %s1, 4
      %s31 = int_to_ptr.hbm [resolvable:$true] %s30
      %s32 = sshll.u32 [#allocation5], 4
      %s33 = int_to_ptr.vmem [resolvable:$true] %s32
      %38 = dma.hbm_to_vmem [thread:$0]  %s31, 1536, %s33, [#allocation6], 128, 128, 8
    $region9: #{tpu_custom_call.1} parent=1 // pred_fallthru
      _
    // Predicated region
    $region10: #{tpu_custom_call.1} parent=1 // pred_check
      _
    $region11: #{tpu_custom_call.1} parent=1 // pred_check_branch
      %40 = sbr.rel (0) target = $region13
    $region12: #{tpu_custom_call.1} parent=1 // pred_region
      %42 = vsyncadd [#allocation6], 0
      %s43 = sshll.u32 %s2, 4
      %s44 = int_to_ptr.hbm [resolvable:$true] %s43
      %s45 = sshll.u32 [#allocation7], 4
      %s46 = int_to_ptr.vmem [resolvable:$true] %s45
      %51 = dma.hbm_to_vmem [thread:$0]  %s44, 256, %s46, [#allocation6], 128, 128, 8
    $region13: #{tpu_custom_call.1} parent=1 // pred_fallthru
      _
    // Predicated region
    $region14: #{tpu_custom_call.1} parent=1 // pred_check
      _
    $region15: #{tpu_custom_call.1} parent=1 // pred_check_branch
      %53 = sbr.rel (0) target = $region17
    $region16: #{tpu_custom_call.1} parent=1 // pred_region
      %55 = vsyncadd [#allocation9], 0
      %s56 = sshll.u32 %s3, 4
      %s57 = int_to_ptr.hbm [resolvable:$true] %s56
      %s58 = sshll.u32 [#allocation8], 4
      %s59 = int_to_ptr.vmem [resolvable:$true] %s58
      %64 = dma.hbm_to_vmem [thread:$0]  %s57, 256, %s59, [#allocation9], 128, 128, 8
    $region17: #{tpu_custom_call.1} parent=1 // pred_fallthru
      _
    // Predicated region
    $region18: #{tpu_custom_call.1} parent=1 // pred_check
      _
    $region19: #{tpu_custom_call.1} parent=1 // pred_check_branch
      %66 = sbr.rel (0) target = $region21
    $region20: #{tpu_custom_call.1} parent=1 // pred_region
      %68 = dma.done [#allocation3], 1536
    $region21: #{tpu_custom_call.1} parent=1 // pred_fallthru
      _
    // Predicated region
    $region22: #{tpu_custom_call.1} parent=1 // pred_check
      _
    $region23: #{tpu_custom_call.1} parent=1 // pred_check_branch
      %70 = sbr.rel (0) target = $region25
    $region24: #{tpu_custom_call.1} parent=1 // pred_region
      %72 = dma.done [#allocation6], 1536
    $region25: #{tpu_custom_call.1} parent=1 // pred_fallthru
      _
    // Predicated region
    $region26: #{tpu_custom_call.1} parent=1 // pred_check
      _
    $region27: #{tpu_custom_call.1} parent=1 // pred_check_branch
      %74 = sbr.rel (0) target = $region29
    $region28: #{tpu_custom_call.1} parent=1 // pred_region
      %76 = dma.done [#allocation6], 256
    $region29: #{tpu_custom_call.1} parent=1 // pred_fallthru
      _
    // Predicated region
    $region30: #{tpu_custom_call.1} parent=1 // pred_check
      _
    $region31: #{tpu_custom_call.1} parent=1 // pred_check_branch
      %78 = sbr.rel (0) target = $region33
    $region32: #{tpu_custom_call.1} parent=1 // pred_region
      %80 = dma.done [#allocation9], 256
    $region33: #{tpu_custom_call.1} parent=1 // pred_fallthru
      _
    %v81 = vld [vmem:[#allocation7] sm:$0xff]
    %v82 = vld [vmem:[#allocation7 + $0x8] sm:$0xff]
    %v83 = vld [vmem:[#allocation8] sm:$0xff]
    %v84 = vld [vmem:[#allocation8 + $0x8] sm:$0xff]
    %v85 = vld [vmem:[#allocation2] sm:$0xff]
    %v86 = vld [vmem:[#allocation2 + $0x8] sm:$0xff]
    %v87 = vld [vmem:[#allocation5] sm:$0xff]
    %v88 = vld [vmem:[#allocation5 + $0x8] sm:$0xff]
    %vm89 = vcmask 130048
    %v91 = vsel %vm89, %v85, 0
    %v94 = vsel %vm89, %v86, 0
    %96 = vmatpush.msra.mxu0 0.0
    %97 = vmatpush.msra.mxu0 0.0
    %98 = vmatpush.msra.mxu0 0.0
    %99 = vmatpush.msra.mxu0 0.0
    %100 = vmatpush.msra.mxu0 0.0
    %101 = vmatpush.msra.mxu0 0.0
    %102 = vmatpush.msra.mxu0 0.0
    %103 = vmatpush.msra.mxu0 0.0
    %104 = vmatpush.msra.mxu0 0.0
    %105 = vmatpush.msra.mxu0 0.0
    %106 = vmatpush.msra.mxu0 0.0
    %107 = vmatpush.msra.mxu0 0.0
    %108 = vmatpush.msra.mxu0 0.0
    %109 = vmatpush.msra.mxu0 0.0
    %v110 = vand.u32 %v82, 4294901760
    %111 = vmatpush.msra.mxu0 %v110
    %v112 = vand.u32 %v81, 4294901760
    %113 = vmatpush.msra.mxu0 %v112
    %v114 = vand.u32 %v91, 4294901760
    %v115 = vsub.f32 %v91, %v114
    %v116 = vand.u32 %v115, 4294901760
    %v117 = vsub.f32 %v115, %v116
    %v118 = vand.u32 %v117, 4294901760
    %119 = vmatmul.f32.gmra.mxu0 %v118
    %v120 = vpop.f32.mrf.mxu0
    %v121 = vadd.f32 0.0, %v120
    %v122 = vand.u32 %v94, 4294901760
    %v123 = vsub.f32 %v94, %v122
    %v124 = vand.u32 %v123, 4294901760
    %v125 = vsub.f32 %v123, %v124
    %v126 = vand.u32 %v125, 4294901760
    %127 = vmatmul.f32.gmra.mxu0 %v126
    %v128 = vpop.f32.mrf.mxu0
    %v129 = vadd.f32 0.0, %v128
    %130 = vdwg.mxu0
    %131 = vmatpush.msra.mxu0 0.0
    %132 = vmatpush.msra.mxu0 0.0
    %133 = vmatpush.msra.mxu0 0.0
    %134 = vmatpush.msra.mxu0 0.0
    %135 = vmatpush.msra.mxu0 0.0
    %136 = vmatpush.msra.mxu0 0.0
    %137 = vmatpush.msra.mxu0 0.0
    %138 = vmatpush.msra.mxu0 0.0
    %139 = vmatpush.msra.mxu0 0.0
    %140 = vmatpush.msra.mxu0 0.0
    %141 = vmatpush.msra.mxu0 0.0
    %142 = vmatpush.msra.mxu0 0.0
    %143 = vmatpush.msra.mxu0 0.0
    %144 = vmatpush.msra.mxu0 0.0
    %v145 = vand.u32 %v82, 4294901760
    %v146 = vsub.f32 %v82, %v145
    %v147 = vand.u32 %v146, 4294901760
    %v148 = vsub.f32 %v146, %v147
    %v149 = vand.u32 %v148, 4294901760
    %150 = vmatpush.msra.mxu0 %v149
    %v151 = vand.u32 %v81, 4294901760
    %v152 = vsub.f32 %v81, %v151
    %v153 = vand.u32 %v152, 4294901760
    %v154 = vsub.f32 %v152, %v153
    %v155 = vand.u32 %v154, 4294901760
    %156 = vmatpush.msra.mxu0 %v155
    %v157 = vand.u32 %v91, 4294901760
    %158 = vmatmul.f32.gmra.mxu0 %v157
    %v159 = vpop.f32.mrf.mxu0
    %v160 = vadd.f32 %v121, %v159
    %v161 = vand.u32 %v94, 4294901760
    %162 = vmatmul.f32.gmra.mxu0 %v161
    %v163 = vpop.f32.mrf.mxu0
    %v164 = vadd.f32 %v129, %v163
    %165 = vdwg.mxu0
    %166 = vmatpush.msra.mxu0 0.0
    %167 = vmatpush.msra.mxu0 0.0
    %168 = vmatpush.msra.mxu0 0.0
    %169 = vmatpush.msra.mxu0 0.0
    %170 = vmatpush.msra.mxu0 0.0
    %171 = vmatpush.msra.mxu0 0.0
    %172 = vmatpush.msra.mxu0 0.0
    %173 = vmatpush.msra.mxu0 0.0
    %174 = vmatpush.msra.mxu0 0.0
    %175 = vmatpush.msra.mxu0 0.0
    %176 = vmatpush.msra.mxu0 0.0
    %177 = vmatpush.msra.mxu0 0.0
    %178 = vmatpush.msra.mxu0 0.0
    %179 = vmatpush.msra.mxu0 0.0
    %v180 = vand.u32 %v82, 4294901760
    %v181 = vsub.f32 %v82, %v180
    %182 = vmatpush.msra.mxu0 %v181
    %v183 = vand.u32 %v81, 4294901760
    %v184 = vsub.f32 %v81, %v183
    %185 = vmatpush.msra.mxu0 %v184
    %v186 = vand.u32 %v91, 4294901760
    %v187 = vsub.f32 %v91, %v186
    %188 = vmatmul.f32.gmra.mxu0 %v187
    %v189 = vpop.f32.mrf.mxu0
    %v190 = vadd.f32 %v160, %v189
    %v191 = vand.u32 %v94, 4294901760
    %v192 = vsub.f32 %v94, %v191
    %193 = vmatmul.f32.gmra.mxu0 %v192
    %v194 = vpop.f32.mrf.mxu0
    %v195 = vadd.f32 %v164, %v194
    %196 = vdwg.mxu0
    %197 = vmatpush.msra.mxu0 0.0
    %198 = vmatpush.msra.mxu0 0.0
    %199 = vmatpush.msra.mxu0 0.0
    %200 = vmatpush.msra.mxu0 0.0
    %201 = vmatpush.msra.mxu0 0.0
    %202 = vmatpush.msra.mxu0 0.0
    %203 = vmatpush.msra.mxu0 0.0
    %204 = vmatpush.msra.mxu0 0.0
    %205 = vmatpush.msra.mxu0 0.0
    %206 = vmatpush.msra.mxu0 0.0
    %207 = vmatpush.msra.mxu0 0.0
    %208 = vmatpush.msra.mxu0 0.0
    %209 = vmatpush.msra.mxu0 0.0
    %210 = vmatpush.msra.mxu0 0.0
    %v211 = vand.u32 %v82, 4294901760
    %212 = vmatpush.msra.mxu0 %v211
    %v213 = vand.u32 %v81, 4294901760
    %214 = vmatpush.msra.mxu0 %v213
    %v215 = vand.u32 %v91, 4294901760
    %v216 = vsub.f32 %v91, %v215
    %v217 = vand.u32 %v216, 4294901760
    %218 = vmatmul.f32.gmra.mxu0 %v217
    %v219 = vpop.f32.mrf.mxu0
    %v220 = vadd.f32 %v190, %v219
    %v221 = vand.u32 %v94, 4294901760
    %v222 = vsub.f32 %v94, %v221
    %v223 = vand.u32 %v222, 4294901760
    %224 = vmatmul.f32.gmra.mxu0 %v223
    %v225 = vpop.f32.mrf.mxu0
    %v226 = vadd.f32 %v195, %v225
    %227 = vdwg.mxu0
    %228 = vmatpush.msra.mxu0 0.0
    %229 = vmatpush.msra.mxu0 0.0
    %230 = vmatpush.msra.mxu0 0.0
    %231 = vmatpush.msra.mxu0 0.0
    %232 = vmatpush.msra.mxu0 0.0
    %233 = vmatpush.msra.mxu0 0.0
    %234 = vmatpush.msra.mxu0 0.0
    %235 = vmatpush.msra.mxu0 0.0
    %236 = vmatpush.msra.mxu0 0.0
    %237 = vmatpush.msra.mxu0 0.0
    %238 = vmatpush.msra.mxu0 0.0
    %239 = vmatpush.msra.mxu0 0.0
    %240 = vmatpush.msra.mxu0 0.0
    %241 = vmatpush.msra.mxu0 0.0
    %v242 = vand.u32 %v82, 4294901760
    %v243 = vsub.f32 %v82, %v242
    %v244 = vand.u32 %v243, 4294901760
    %245 = vmatpush.msra.mxu0 %v244
    %v246 = vand.u32 %v81, 4294901760
    %v247 = vsub.f32 %v81, %v246
    %v248 = vand.u32 %v247, 4294901760
    %249 = vmatpush.msra.mxu0 %v248
    %v250 = vand.u32 %v91, 4294901760
    %251 = vmatmul.f32.gmra.mxu0 %v250
    %v252 = vpop.f32.mrf.mxu0
    %v253 = vadd.f32 %v220, %v252
    %v254 = vand.u32 %v94, 4294901760
    %255 = vmatmul.f32.gmra.mxu0 %v254
    %v256 = vpop.f32.mrf.mxu0
    %v257 = vadd.f32 %v226, %v256
    %258 = vdwg.mxu0
    %259 = vmatpush.msra.mxu0 0.0
    %260 = vmatpush.msra.mxu0 0.0
    %261 = vmatpush.msra.mxu0 0.0
    %262 = vmatpush.msra.mxu0 0.0
    %263 = vmatpush.msra.mxu0 0.0
    %264 = vmatpush.msra.mxu0 0.0
    %265 = vmatpush.msra.mxu0 0.0
    %266 = vmatpush.msra.mxu0 0.0
    %267 = vmatpush.msra.mxu0 0.0
    %268 = vmatpush.msra.mxu0 0.0
    %269 = vmatpush.msra.mxu0 0.0
    %270 = vmatpush.msra.mxu0 0.0
    %271 = vmatpush.msra.mxu0 0.0
    %272 = vmatpush.msra.mxu0 0.0
    %v273 = vand.u32 %v82, 4294901760
    %274 = vmatpush.msra.mxu0 %v273
    %v275 = vand.u32 %v81, 4294901760
    %276 = vmatpush.msra.mxu0 %v275
    %v277 = vand.u32 %v91, 4294901760
    %278 = vmatmul.f32.gmra.mxu0 %v277
    %v279 = vpop.f32.mrf.mxu0
    %v280 = vadd.f32 %v253, %v279
    %v281 = vand.u32 %v94, 4294901760
    %282 = vmatmul.f32.gmra.mxu0 %v281
    %v283 = vpop.f32.mrf.mxu0
    %v284 = vadd.f32 %v257, %v283
    %285 = vdwg.mxu0
    %v287 = vsel %vm89, %v83, 0
    %v290 = vsel %vm89, %v84, 0
    %292 = vmatpush.msra.mxu0 0.0
    %293 = vmatpush.msra.mxu0 0.0
    %294 = vmatpush.msra.mxu0 0.0
    %295 = vmatpush.msra.mxu0 0.0
    %296 = vmatpush.msra.mxu0 0.0
    %297 = vmatpush.msra.mxu0 0.0
    %298 = vmatpush.msra.mxu0 0.0
    %299 = vmatpush.msra.mxu0 0.0
    %300 = vmatpush.msra.mxu0 0.0
    %301 = vmatpush.msra.mxu0 0.0
    %302 = vmatpush.msra.mxu0 0.0
    %303 = vmatpush.msra.mxu0 0.0
    %304 = vmatpush.msra.mxu0 0.0
    %305 = vmatpush.msra.mxu0 0.0
    %v306 = vand.u32 %v284, 4294901760
    %307 = vmatpush.msra.mxu0 %v306
    %v308 = vand.u32 %v280, 4294901760
    %309 = vmatpush.msra.mxu0 %v308
    %v310 = vand.u32 %v287, 4294901760
    %v311 = vsub.f32 %v287, %v310
    %v312 = vand.u32 %v311, 4294901760
    %v313 = vsub.f32 %v311, %v312
    %v314 = vand.u32 %v313, 4294901760
    %315 = vmatmul.f32.gmra.mxu0 %v314
    %v316 = vpop.f32.mrf.mxu0
    %v317 = vadd.f32 0.0, %v316
    %v318 = vand.u32 %v290, 4294901760
    %v319 = vsub.f32 %v290, %v318
    %v320 = vand.u32 %v319, 4294901760
    %v321 = vsub.f32 %v319, %v320
    %v322 = vand.u32 %v321, 4294901760
    %323 = vmatmul.f32.gmra.mxu0 %v322
    %v324 = vpop.f32.mrf.mxu0
    %v325 = vadd.f32 0.0, %v324
    %326 = vdwg.mxu0
    %327 = vmatpush.msra.mxu0 0.0
    %328 = vmatpush.msra.mxu0 0.0
    %329 = vmatpush.msra.mxu0 0.0
    %330 = vmatpush.msra.mxu0 0.0
    %331 = vmatpush.msra.mxu0 0.0
    %332 = vmatpush.msra.mxu0 0.0
    %333 = vmatpush.msra.mxu0 0.0
    %334 = vmatpush.msra.mxu0 0.0
    %335 = vmatpush.msra.mxu0 0.0
    %336 = vmatpush.msra.mxu0 0.0
    %337 = vmatpush.msra.mxu0 0.0
    %338 = vmatpush.msra.mxu0 0.0
    %339 = vmatpush.msra.mxu0 0.0
    %340 = vmatpush.msra.mxu0 0.0
    %v341 = vand.u32 %v284, 4294901760
    %v342 = vsub.f32 %v284, %v341
    %v343 = vand.u32 %v342, 4294901760
    %v344 = vsub.f32 %v342, %v343
    %v345 = vand.u32 %v344, 4294901760
    %346 = vmatpush.msra.mxu0 %v345
    %v347 = vand.u32 %v280, 4294901760
    %v348 = vsub.f32 %v280, %v347
    %v349 = vand.u32 %v348, 4294901760
    %v350 = vsub.f32 %v348, %v349
    %v351 = vand.u32 %v350, 4294901760
    %352 = vmatpush.msra.mxu0 %v351
    %v353 = vand.u32 %v287, 4294901760
    %354 = vmatmul.f32.gmra.mxu0 %v353
    %v355 = vpop.f32.mrf.mxu0
    %v356 = vadd.f32 %v317, %v355
    %v357 = vand.u32 %v290, 4294901760
    %358 = vmatmul.f32.gmra.mxu0 %v357
    %v359 = vpop.f32.mrf.mxu0
    %v360 = vadd.f32 %v325, %v359
    %361 = vdwg.mxu0
    %362 = vmatpush.msra.mxu0 0.0
    %363 = vmatpush.msra.mxu0 0.0
    %364 = vmatpush.msra.mxu0 0.0
    %365 = vmatpush.msra.mxu0 0.0
    %366 = vmatpush.msra.mxu0 0.0
    %367 = vmatpush.msra.mxu0 0.0
    %368 = vmatpush.msra.mxu0 0.0
    %369 = vmatpush.msra.mxu0 0.0
    %370 = vmatpush.msra.mxu0 0.0
    %371 = vmatpush.msra.mxu0 0.0
    %372 = vmatpush.msra.mxu0 0.0
    %373 = vmatpush.msra.mxu0 0.0
    %374 = vmatpush.msra.mxu0 0.0
    %375 = vmatpush.msra.mxu0 0.0
    %v376 = vand.u32 %v284, 4294901760
    %v377 = vsub.f32 %v284, %v376
    %378 = vmatpush.msra.mxu0 %v377
    %v379 = vand.u32 %v280, 4294901760
    %v380 = vsub.f32 %v280, %v379
    %381 = vmatpush.msra.mxu0 %v380
    %v382 = vand.u32 %v287, 4294901760
    %v383 = vsub.f32 %v287, %v382
    %384 = vmatmul.f32.gmra.mxu0 %v383
    %v385 = vpop.f32.mrf.mxu0
    %v386 = vadd.f32 %v356, %v385
    %v387 = vand.u32 %v290, 4294901760
    %v388 = vsub.f32 %v290, %v387
    %389 = vmatmul.f32.gmra.mxu0 %v388
    %v390 = vpop.f32.mrf.mxu0
    %v391 = vadd.f32 %v360, %v390
    %392 = vdwg.mxu0
    %393 = vmatpush.msra.mxu0 0.0
    %394 = vmatpush.msra.mxu0 0.0
    %395 = vmatpush.msra.mxu0 0.0
    %396 = vmatpush.msra.mxu0 0.0
    %397 = vmatpush.msra.mxu0 0.0
    %398 = vmatpush.msra.mxu0 0.0
    %399 = vmatpush.msra.mxu0 0.0
    %400 = vmatpush.msra.mxu0 0.0
    %401 = vmatpush.msra.mxu0 0.0
    %402 = vmatpush.msra.mxu0 0.0
    %403 = vmatpush.msra.mxu0 0.0
    %404 = vmatpush.msra.mxu0 0.0
    %405 = vmatpush.msra.mxu0 0.0
    %406 = vmatpush.msra.mxu0 0.0
    %v407 = vand.u32 %v284, 4294901760
    %408 = vmatpush.msra.mxu0 %v407
    %v409 = vand.u32 %v280, 4294901760
    %410 = vmatpush.msra.mxu0 %v409
    %v411 = vand.u32 %v287, 4294901760
    %v412 = vsub.f32 %v287, %v411
    %v413 = vand.u32 %v412, 4294901760
    %414 = vmatmul.f32.gmra.mxu0 %v413
    %v415 = vpop.f32.mrf.mxu0
    %v416 = vadd.f32 %v386, %v415
    %v417 = vand.u32 %v290, 4294901760
    %v418 = vsub.f32 %v290, %v417
    %v419 = vand.u32 %v418, 4294901760
    %420 = vmatmul.f32.gmra.mxu0 %v419
    %v421 = vpop.f32.mrf.mxu0
    %v422 = vadd.f32 %v391, %v421
    %423 = vdwg.mxu0
    %424 = vmatpush.msra.mxu0 0.0
    %425 = vmatpush.msra.mxu0 0.0
    %426 = vmatpush.msra.mxu0 0.0
    %427 = vmatpush.msra.mxu0 0.0
    %428 = vmatpush.msra.mxu0 0.0
    %429 = vmatpush.msra.mxu0 0.0
    %430 = vmatpush.msra.mxu0 0.0
    %431 = vmatpush.msra.mxu0 0.0
    %432 = vmatpush.msra.mxu0 0.0
    %433 = vmatpush.msra.mxu0 0.0
    %434 = vmatpush.msra.mxu0 0.0
    %435 = vmatpush.msra.mxu0 0.0
    %436 = vmatpush.msra.mxu0 0.0
    %437 = vmatpush.msra.mxu0 0.0
    %v438 = vand.u32 %v284, 4294901760
    %v439 = vsub.f32 %v284, %v438
    %v440 = vand.u32 %v439, 4294901760
    %441 = vmatpush.msra.mxu0 %v440
    %v442 = vand.u32 %v280, 4294901760
    %v443 = vsub.f32 %v280, %v442
    %v444 = vand.u32 %v443, 4294901760
    %445 = vmatpush.msra.mxu0 %v444
    %v446 = vand.u32 %v287, 4294901760
    %447 = vmatmul.f32.gmra.mxu0 %v446
    %v448 = vpop.f32.mrf.mxu0
    %v449 = vadd.f32 %v416, %v448
    %v450 = vand.u32 %v290, 4294901760
    %451 = vmatmul.f32.gmra.mxu0 %v450
    %v452 = vpop.f32.mrf.mxu0
    %v453 = vadd.f32 %v422, %v452
    %454 = vdwg.mxu0
    %455 = vmatpush.msra.mxu0 0.0
    %456 = vmatpush.msra.mxu0 0.0
    %457 = vmatpush.msra.mxu0 0.0
    %458 = vmatpush.msra.mxu0 0.0
    %459 = vmatpush.msra.mxu0 0.0
    %460 = vmatpush.msra.mxu0 0.0
    %461 = vmatpush.msra.mxu0 0.0
    %462 = vmatpush.msra.mxu0 0.0
    %463 = vmatpush.msra.mxu0 0.0
    %464 = vmatpush.msra.mxu0 0.0
    %465 = vmatpush.msra.mxu0 0.0
    %466 = vmatpush.msra.mxu0 0.0
    %467 = vmatpush.msra.mxu0 0.0
    %468 = vmatpush.msra.mxu0 0.0
    %v469 = vand.u32 %v284, 4294901760
    %470 = vmatpush.msra.mxu0 %v469
    %v471 = vand.u32 %v280, 4294901760
    %472 = vmatpush.msra.mxu0 %v471
    %v473 = vand.u32 %v287, 4294901760
    %474 = vmatmul.f32.gmra.mxu0 %v473
    %v475 = vpop.f32.mrf.mxu0
    %v476 = vadd.f32 %v449, %v475
    %v477 = vand.u32 %v290, 4294901760
    %478 = vmatmul.f32.gmra.mxu0 %v477
    %v479 = vpop.f32.mrf.mxu0
    %v480 = vadd.f32 %v453, %v479
    %481 = vdwg.mxu0
    %v483 = vsel %vm89, %v87, 0
    %v486 = vsel %vm89, %v88, 0
    %488 = vmatpush.msra.mxu0 0.0
    %489 = vmatpush.msra.mxu0 0.0
    %490 = vmatpush.msra.mxu0 0.0
    %491 = vmatpush.msra.mxu0 0.0
    %492 = vmatpush.msra.mxu0 0.0
    %493 = vmatpush.msra.mxu0 0.0
    %494 = vmatpush.msra.mxu0 0.0
    %495 = vmatpush.msra.mxu0 0.0
    %496 = vmatpush.msra.mxu0 0.0
    %497 = vmatpush.msra.mxu0 0.0
    %498 = vmatpush.msra.mxu0 0.0
    %499 = vmatpush.msra.mxu0 0.0
    %500 = vmatpush.msra.mxu0 0.0
    %501 = vmatpush.msra.mxu0 0.0
    %v502 = vand.u32 %v82, 4294901760
    %503 = vmatpush.msra.mxu0 %v502
    %v504 = vand.u32 %v81, 4294901760
    %505 = vmatpush.msra.mxu0 %v504
    %v506 = vand.u32 %v483, 4294901760
    %v507 = vsub.f32 %v483, %v506
    %v508 = vand.u32 %v507, 4294901760
    %v509 = vsub.f32 %v507, %v508
    %v510 = vand.u32 %v509, 4294901760
    %511 = vmatmul.f32.gmra.mxu0 %v510
    %v512 = vpop.f32.mrf.mxu0
    %v513 = vadd.f32 0.0, %v512
    %v514 = vand.u32 %v486, 4294901760
    %v515 = vsub.f32 %v486, %v514
    %v516 = vand.u32 %v515, 4294901760
    %v517 = vsub.f32 %v515, %v516
    %v518 = vand.u32 %v517, 4294901760
    %519 = vmatmul.f32.gmra.mxu0 %v518
    %v520 = vpop.f32.mrf.mxu0
    %v521 = vadd.f32 0.0, %v520
    %522 = vdwg.mxu0
    %523 = vmatpush.msra.mxu0 0.0
    %524 = vmatpush.msra.mxu0 0.0
    %525 = vmatpush.msra.mxu0 0.0
    %526 = vmatpush.msra.mxu0 0.0
    %527 = vmatpush.msra.mxu0 0.0
    %528 = vmatpush.msra.mxu0 0.0
    %529 = vmatpush.msra.mxu0 0.0
    %530 = vmatpush.msra.mxu0 0.0
    %531 = vmatpush.msra.mxu0 0.0
    %532 = vmatpush.msra.mxu0 0.0
    %533 = vmatpush.msra.mxu0 0.0
    %534 = vmatpush.msra.mxu0 0.0
    %535 = vmatpush.msra.mxu0 0.0
    %536 = vmatpush.msra.mxu0 0.0
    %v537 = vand.u32 %v82, 4294901760
    %v538 = vsub.f32 %v82, %v537
    %v539 = vand.u32 %v538, 4294901760
    %v540 = vsub.f32 %v538, %v539
    %v541 = vand.u32 %v540, 4294901760
    %542 = vmatpush.msra.mxu0 %v541
    %v543 = vand.u32 %v81, 4294901760
    %v544 = vsub.f32 %v81, %v543
    %v545 = vand.u32 %v544, 4294901760
    %v546 = vsub.f32 %v544, %v545
    %v547 = vand.u32 %v546, 4294901760
    %548 = vmatpush.msra.mxu0 %v547
    %v549 = vand.u32 %v483, 4294901760
    %550 = vmatmul.f32.gmra.mxu0 %v549
    %v551 = vpop.f32.mrf.mxu0
    %v552 = vadd.f32 %v513, %v551
    %v553 = vand.u32 %v486, 4294901760
    %554 = vmatmul.f32.gmra.mxu0 %v553
    %v555 = vpop.f32.mrf.mxu0
    %v556 = vadd.f32 %v521, %v555
    %557 = vdwg.mxu0
    %558 = vmatpush.msra.mxu0 0.0
    %559 = vmatpush.msra.mxu0 0.0
    %560 = vmatpush.msra.mxu0 0.0
    %561 = vmatpush.msra.mxu0 0.0
    %562 = vmatpush.msra.mxu0 0.0
    %563 = vmatpush.msra.mxu0 0.0
    %564 = vmatpush.msra.mxu0 0.0
    %565 = vmatpush.msra.mxu0 0.0
    %566 = vmatpush.msra.mxu0 0.0
    %567 = vmatpush.msra.mxu0 0.0
    %568 = vmatpush.msra.mxu0 0.0
    %569 = vmatpush.msra.mxu0 0.0
    %570 = vmatpush.msra.mxu0 0.0
    %571 = vmatpush.msra.mxu0 0.0
    %v572 = vand.u32 %v82, 4294901760
    %v573 = vsub.f32 %v82, %v572
    %574 = vmatpush.msra.mxu0 %v573
    %v575 = vand.u32 %v81, 4294901760
    %v576 = vsub.f32 %v81, %v575
    %577 = vmatpush.msra.mxu0 %v576
    %v578 = vand.u32 %v483, 4294901760
    %v579 = vsub.f32 %v483, %v578
    %580 = vmatmul.f32.gmra.mxu0 %v579
    %v581 = vpop.f32.mrf.mxu0
    %v582 = vadd.f32 %v552, %v581
    %v583 = vand.u32 %v486, 4294901760
    %v584 = vsub.f32 %v486, %v583
    %585 = vmatmul.f32.gmra.mxu0 %v584
    %v586 = vpop.f32.mrf.mxu0
    %v587 = vadd.f32 %v556, %v586
    %588 = vdwg.mxu0
    %589 = vmatpush.msra.mxu0 0.0
    %590 = vmatpush.msra.mxu0 0.0
    %591 = vmatpush.msra.mxu0 0.0
    %592 = vmatpush.msra.mxu0 0.0
    %593 = vmatpush.msra.mxu0 0.0
    %594 = vmatpush.msra.mxu0 0.0
    %595 = vmatpush.msra.mxu0 0.0
    %596 = vmatpush.msra.mxu0 0.0
    %597 = vmatpush.msra.mxu0 0.0
    %598 = vmatpush.msra.mxu0 0.0
    %599 = vmatpush.msra.mxu0 0.0
    %600 = vmatpush.msra.mxu0 0.0
    %601 = vmatpush.msra.mxu0 0.0
    %602 = vmatpush.msra.mxu0 0.0
    %v603 = vand.u32 %v82, 4294901760
    %604 = vmatpush.msra.mxu0 %v603
    %v605 = vand.u32 %v81, 4294901760
    %606 = vmatpush.msra.mxu0 %v605
    %v607 = vand.u32 %v483, 4294901760
    %v608 = vsub.f32 %v483, %v607
    %v609 = vand.u32 %v608, 4294901760
    %610 = vmatmul.f32.gmra.mxu0 %v609
    %v611 = vpop.f32.mrf.mxu0
    %v612 = vadd.f32 %v582, %v611
    %v613 = vand.u32 %v486, 4294901760
    %v614 = vsub.f32 %v486, %v613
    %v615 = vand.u32 %v614, 4294901760
    %616 = vmatmul.f32.gmra.mxu0 %v615
    %v617 = vpop.f32.mrf.mxu0
    %v618 = vadd.f32 %v587, %v617
    %619 = vdwg.mxu0
    %620 = vmatpush.msra.mxu0 0.0
    %621 = vmatpush.msra.mxu0 0.0
    %622 = vmatpush.msra.mxu0 0.0
    %623 = vmatpush.msra.mxu0 0.0
    %624 = vmatpush.msra.mxu0 0.0
    %625 = vmatpush.msra.mxu0 0.0
    %626 = vmatpush.msra.mxu0 0.0
    %627 = vmatpush.msra.mxu0 0.0
    %628 = vmatpush.msra.mxu0 0.0
    %629 = vmatpush.msra.mxu0 0.0
    %630 = vmatpush.msra.mxu0 0.0
    %631 = vmatpush.msra.mxu0 0.0
    %632 = vmatpush.msra.mxu0 0.0
    %633 = vmatpush.msra.mxu0 0.0
    %v634 = vand.u32 %v82, 4294901760
    %v635 = vsub.f32 %v82, %v634
    %v636 = vand.u32 %v635, 4294901760
    %637 = vmatpush.msra.mxu0 %v636
    %v638 = vand.u32 %v81, 4294901760
    %v639 = vsub.f32 %v81, %v638
    %v640 = vand.u32 %v639, 4294901760
    %641 = vmatpush.msra.mxu0 %v640
    %v642 = vand.u32 %v483, 4294901760
    %643 = vmatmul.f32.gmra.mxu0 %v642
    %v644 = vpop.f32.mrf.mxu0
    %v645 = vadd.f32 %v612, %v644
    %v646 = vand.u32 %v486, 4294901760
    %647 = vmatmul.f32.gmra.mxu0 %v646
    %v648 = vpop.f32.mrf.mxu0
    %v649 = vadd.f32 %v618, %v648
    %650 = vdwg.mxu0
    %651 = vmatpush.msra.mxu0 0.0
    %652 = vmatpush.msra.mxu0 0.0
    %653 = vmatpush.msra.mxu0 0.0
    %654 = vmatpush.msra.mxu0 0.0
    %655 = vmatpush.msra.mxu0 0.0
    %656 = vmatpush.msra.mxu0 0.0
    %657 = vmatpush.msra.mxu0 0.0
    %658 = vmatpush.msra.mxu0 0.0
    %659 = vmatpush.msra.mxu0 0.0
    %660 = vmatpush.msra.mxu0 0.0
    %661 = vmatpush.msra.mxu0 0.0
    %662 = vmatpush.msra.mxu0 0.0
    %663 = vmatpush.msra.mxu0 0.0
    %664 = vmatpush.msra.mxu0 0.0
    %v665 = vand.u32 %v82, 4294901760
    %666 = vmatpush.msra.mxu0 %v665
    %v667 = vand.u32 %v81, 4294901760
    %668 = vmatpush.msra.mxu0 %v667
    %v669 = vand.u32 %v483, 4294901760
    %670 = vmatmul.f32.gmra.mxu0 %v669
    %v671 = vpop.f32.mrf.mxu0
    %v672 = vadd.f32 %v645, %v671
    %v673 = vand.u32 %v486, 4294901760
    %674 = vmatmul.f32.gmra.mxu0 %v673
    %v675 = vpop.f32.mrf.mxu0
    %v676 = vadd.f32 %v649, %v675
    %677 = vdwg.mxu0
    %678 = vmatpush.msra.mxu0 0.0
    %679 = vmatpush.msra.mxu0 0.0
    %680 = vmatpush.msra.mxu0 0.0
    %681 = vmatpush.msra.mxu0 0.0
    %682 = vmatpush.msra.mxu0 0.0
    %683 = vmatpush.msra.mxu0 0.0
    %684 = vmatpush.msra.mxu0 0.0
    %685 = vmatpush.msra.mxu0 0.0
    %686 = vmatpush.msra.mxu0 0.0
    %687 = vmatpush.msra.mxu0 0.0
    %688 = vmatpush.msra.mxu0 0.0
    %689 = vmatpush.msra.mxu0 0.0
    %690 = vmatpush.msra.mxu0 0.0
    %691 = vmatpush.msra.mxu0 0.0
    %v692 = vand.u32 %v676, 4294901760
    %693 = vmatpush.msra.mxu0 %v692
    %v694 = vand.u32 %v672, 4294901760
    %695 = vmatpush.msra.mxu0 %v694
    %v696 = vand.u32 %v287, 4294901760
    %v697 = vsub.f32 %v287, %v696
    %v698 = vand.u32 %v697, 4294901760
    %v699 = vsub.f32 %v697, %v698
    %v700 = vand.u32 %v699, 4294901760
    %701 = vmatmul.f32.gmra.mxu0 %v700
    %v702 = vpop.f32.mrf.mxu0
    %v703 = vadd.f32 0.0, %v702
    %v704 = vand.u32 %v290, 4294901760
    %v705 = vsub.f32 %v290, %v704
    %v706 = vand.u32 %v705, 4294901760
    %v707 = vsub.f32 %v705, %v706
    %v708 = vand.u32 %v707, 4294901760
    %709 = vmatmul.f32.gmra.mxu0 %v708
    %v710 = vpop.f32.mrf.mxu0
    %v711 = vadd.f32 0.0, %v710
    %712 = vdwg.mxu0
    %713 = vmatpush.msra.mxu0 0.0
    %714 = vmatpush.msra.mxu0 0.0
    %715 = vmatpush.msra.mxu0 0.0
    %716 = vmatpush.msra.mxu0 0.0
    %717 = vmatpush.msra.mxu0 0.0
    %718 = vmatpush.msra.mxu0 0.0
    %719 = vmatpush.msra.mxu0 0.0
    %720 = vmatpush.msra.mxu0 0.0
    %721 = vmatpush.msra.mxu0 0.0
    %722 = vmatpush.msra.mxu0 0.0
    %723 = vmatpush.msra.mxu0 0.0
    %724 = vmatpush.msra.mxu0 0.0
    %725 = vmatpush.msra.mxu0 0.0
    %726 = vmatpush.msra.mxu0 0.0
    %v727 = vand.u32 %v676, 4294901760
    %v728 = vsub.f32 %v676, %v727
    %v729 = vand.u32 %v728, 4294901760
    %v730 = vsub.f32 %v728, %v729
    %v731 = vand.u32 %v730, 4294901760
    %732 = vmatpush.msra.mxu0 %v731
    %v733 = vand.u32 %v672, 4294901760
    %v734 = vsub.f32 %v672, %v733
    %v735 = vand.u32 %v734, 4294901760
    %v736 = vsub.f32 %v734, %v735
    %v737 = vand.u32 %v736, 4294901760
    %738 = vmatpush.msra.mxu0 %v737
    %v739 = vand.u32 %v287, 4294901760
    %740 = vmatmul.f32.gmra.mxu0 %v739
    %v741 = vpop.f32.mrf.mxu0
    %v742 = vadd.f32 %v703, %v741
    %v743 = vand.u32 %v290, 4294901760
    %744 = vmatmul.f32.gmra.mxu0 %v743
    %v745 = vpop.f32.mrf.mxu0
    %v746 = vadd.f32 %v711, %v745
    %747 = vdwg.mxu0
    %748 = vmatpush.msra.mxu0 0.0
    %749 = vmatpush.msra.mxu0 0.0
    %750 = vmatpush.msra.mxu0 0.0
    %751 = vmatpush.msra.mxu0 0.0
    %752 = vmatpush.msra.mxu0 0.0
    %753 = vmatpush.msra.mxu0 0.0
    %754 = vmatpush.msra.mxu0 0.0
    %755 = vmatpush.msra.mxu0 0.0
    %756 = vmatpush.msra.mxu0 0.0
    %757 = vmatpush.msra.mxu0 0.0
    %758 = vmatpush.msra.mxu0 0.0
    %759 = vmatpush.msra.mxu0 0.0
    %760 = vmatpush.msra.mxu0 0.0
    %761 = vmatpush.msra.mxu0 0.0
    %v762 = vand.u32 %v676, 4294901760
    %v763 = vsub.f32 %v676, %v762
    %764 = vmatpush.msra.mxu0 %v763
    %v765 = vand.u32 %v672, 4294901760
    %v766 = vsub.f32 %v672, %v765
    %767 = vmatpush.msra.mxu0 %v766
    %v768 = vand.u32 %v287, 4294901760
    %v769 = vsub.f32 %v287, %v768
    %770 = vmatmul.f32.gmra.mxu0 %v769
    %v771 = vpop.f32.mrf.mxu0
    %v772 = vadd.f32 %v742, %v771
    %v773 = vand.u32 %v290, 4294901760
    %v774 = vsub.f32 %v290, %v773
    %775 = vmatmul.f32.gmra.mxu0 %v774
    %v776 = vpop.f32.mrf.mxu0
    %v777 = vadd.f32 %v746, %v776
    %778 = vdwg.mxu0
    %779 = vmatpush.msra.mxu0 0.0
    %780 = vmatpush.msra.mxu0 0.0
    %781 = vmatpush.msra.mxu0 0.0
    %782 = vmatpush.msra.mxu0 0.0
    %783 = vmatpush.msra.mxu0 0.0
    %784 = vmatpush.msra.mxu0 0.0
    %785 = vmatpush.msra.mxu0 0.0
    %786 = vmatpush.msra.mxu0 0.0
    %787 = vmatpush.msra.mxu0 0.0
    %788 = vmatpush.msra.mxu0 0.0
    %789 = vmatpush.msra.mxu0 0.0
    %790 = vmatpush.msra.mxu0 0.0
    %791 = vmatpush.msra.mxu0 0.0
    %792 = vmatpush.msra.mxu0 0.0
    %v793 = vand.u32 %v676, 4294901760
    %794 = vmatpush.msra.mxu0 %v793
    %v795 = vand.u32 %v672, 4294901760
    %796 = vmatpush.msra.mxu0 %v795
    %v797 = vand.u32 %v287, 4294901760
    %v798 = vsub.f32 %v287, %v797
    %v799 = vand.u32 %v798, 4294901760
    %800 = vmatmul.f32.gmra.mxu0 %v799
    %v801 = vpop.f32.mrf.mxu0
    %v802 = vadd.f32 %v772, %v801
    %v803 = vand.u32 %v290, 4294901760
    %v804 = vsub.f32 %v290, %v803
    %v805 = vand.u32 %v804, 4294901760
    %806 = vmatmul.f32.gmra.mxu0 %v805
    %v807 = vpop.f32.mrf.mxu0
    %v808 = vadd.f32 %v777, %v807
    %809 = vdwg.mxu0
    %810 = vmatpush.msra.mxu0 0.0
    %811 = vmatpush.msra.mxu0 0.0
    %812 = vmatpush.msra.mxu0 0.0
    %813 = vmatpush.msra.mxu0 0.0
    %814 = vmatpush.msra.mxu0 0.0
    %815 = vmatpush.msra.mxu0 0.0
    %816 = vmatpush.msra.mxu0 0.0
    %817 = vmatpush.msra.mxu0 0.0
    %818 = vmatpush.msra.mxu0 0.0
    %819 = vmatpush.msra.mxu0 0.0
    %820 = vmatpush.msra.mxu0 0.0
    %821 = vmatpush.msra.mxu0 0.0
    %822 = vmatpush.msra.mxu0 0.0
    %823 = vmatpush.msra.mxu0 0.0
    %v824 = vand.u32 %v676, 4294901760
    %v825 = vsub.f32 %v676, %v824
    %v826 = vand.u32 %v825, 4294901760
    %827 = vmatpush.msra.mxu0 %v826
    %v828 = vand.u32 %v672, 4294901760
    %v829 = vsub.f32 %v672, %v828
    %v830 = vand.u32 %v829, 4294901760
    %831 = vmatpush.msra.mxu0 %v830
    %v832 = vand.u32 %v287, 4294901760
    %833 = vmatmul.f32.gmra.mxu0 %v832
    %v834 = vpop.f32.mrf.mxu0
    %v835 = vadd.f32 %v802, %v834
    %v836 = vand.u32 %v290, 4294901760
    %837 = vmatmul.f32.gmra.mxu0 %v836
    %v838 = vpop.f32.mrf.mxu0
    %v839 = vadd.f32 %v808, %v838
    %840 = vdwg.mxu0
    %841 = vmatpush.msra.mxu0 0.0
    %842 = vmatpush.msra.mxu0 0.0
    %843 = vmatpush.msra.mxu0 0.0
    %844 = vmatpush.msra.mxu0 0.0
    %845 = vmatpush.msra.mxu0 0.0
    %846 = vmatpush.msra.mxu0 0.0
    %847 = vmatpush.msra.mxu0 0.0
    %848 = vmatpush.msra.mxu0 0.0
    %849 = vmatpush.msra.mxu0 0.0
    %850 = vmatpush.msra.mxu0 0.0
    %851 = vmatpush.msra.mxu0 0.0
    %852 = vmatpush.msra.mxu0 0.0
    %853 = vmatpush.msra.mxu0 0.0
    %854 = vmatpush.msra.mxu0 0.0
    %v855 = vand.u32 %v676, 4294901760
    %856 = vmatpush.msra.mxu0 %v855
    %v857 = vand.u32 %v672, 4294901760
    %858 = vmatpush.msra.mxu0 %v857
    %v859 = vand.u32 %v287, 4294901760
    %860 = vmatmul.f32.gmra.mxu0 %v859
    %v861 = vpop.f32.mrf.mxu0
    %v862 = vadd.f32 %v835, %v861
    %v863 = vand.u32 %v290, 4294901760
    %864 = vmatmul.f32.gmra.mxu0 %v863
    %v865 = vpop.f32.mrf.mxu0
    %v866 = vadd.f32 %v839, %v865
    %867 = vdwg.mxu0
    %v868 = vmul.f32 %v476, %v476
    %v869 = vmul.f32 %v480, %v480
    %v870 = vmul.f32 %v862, %v862
    %v871 = vmul.f32 %v866, %v866
    %v872 = vmul.f32 %v476, %v862
    %v873 = vmul.f32 %v480, %v866
    %v874 = vmul.f32 %v85, %v85
    %v875 = vmul.f32 %v86, %v86
    %v877 = vsel %vm89, %v874, 0
    %v880 = vsel %vm89, %v875, 0
    %882 = vmatpush.msra.mxu0 0.0
    %883 = vmatpush.msra.mxu0 0.0
    %884 = vmatpush.msra.mxu0 0.0
    %885 = vmatpush.msra.mxu0 0.0
    %886 = vmatpush.msra.mxu0 0.0
    %887 = vmatpush.msra.mxu0 0.0
    %888 = vmatpush.msra.mxu0 0.0
    %889 = vmatpush.msra.mxu0 0.0
    %890 = vmatpush.msra.mxu0 0.0
    %891 = vmatpush.msra.mxu0 0.0
    %892 = vmatpush.msra.mxu0 0.0
    %893 = vmatpush.msra.mxu0 0.0
    %894 = vmatpush.msra.mxu0 0.0
    %895 = vmatpush.msra.mxu0 0.0
    %v896 = vand.u32 %v82, 4294901760
    %897 = vmatpush.msra.mxu0 %v896
    %v898 = vand.u32 %v81, 4294901760
    %899 = vmatpush.msra.mxu0 %v898
    %v900 = vand.u32 %v877, 4294901760
    %v901 = vsub.f32 %v877, %v900
    %v902 = vand.u32 %v901, 4294901760
    %v903 = vsub.f32 %v901, %v902
    %v904 = vand.u32 %v903, 4294901760
    %905 = vmatmul.f32.gmra.mxu0 %v904
    %v906 = vpop.f32.mrf.mxu0
    %v907 = vadd.f32 0.0, %v906
    %v908 = vand.u32 %v880, 4294901760
    %v909 = vsub.f32 %v880, %v908
    %v910 = vand.u32 %v909, 4294901760
    %v911 = vsub.f32 %v909, %v910
    %v912 = vand.u32 %v911, 4294901760
    %913 = vmatmul.f32.gmra.mxu0 %v912
    %v914 = vpop.f32.mrf.mxu0
    %v915 = vadd.f32 0.0, %v914
    %916 = vdwg.mxu0
    %917 = vmatpush.msra.mxu0 0.0
    %918 = vmatpush.msra.mxu0 0.0
    %919 = vmatpush.msra.mxu0 0.0
    %920 = vmatpush.msra.mxu0 0.0
    %921 = vmatpush.msra.mxu0 0.0
    %922 = vmatpush.msra.mxu0 0.0
    %923 = vmatpush.msra.mxu0 0.0
    %924 = vmatpush.msra.mxu0 0.0
    %925 = vmatpush.msra.mxu0 0.0
    %926 = vmatpush.msra.mxu0 0.0
    %927 = vmatpush.msra.mxu0 0.0
    %928 = vmatpush.msra.mxu0 0.0
    %929 = vmatpush.msra.mxu0 0.0
    %930 = vmatpush.msra.mxu0 0.0
    %v931 = vand.u32 %v82, 4294901760
    %v932 = vsub.f32 %v82, %v931
    %v933 = vand.u32 %v932, 4294901760
    %v934 = vsub.f32 %v932, %v933
    %v935 = vand.u32 %v934, 4294901760
    %936 = vmatpush.msra.mxu0 %v935
    %v937 = vand.u32 %v81, 4294901760
    %v938 = vsub.f32 %v81, %v937
    %v939 = vand.u32 %v938, 4294901760
    %v940 = vsub.f32 %v938, %v939
    %v941 = vand.u32 %v940, 4294901760
    %942 = vmatpush.msra.mxu0 %v941
    %v943 = vand.u32 %v877, 4294901760
    %944 = vmatmul.f32.gmra.mxu0 %v943
    %v945 = vpop.f32.mrf.mxu0
    %v946 = vadd.f32 %v907, %v945
    %v947 = vand.u32 %v880, 4294901760
    %948 = vmatmul.f32.gmra.mxu0 %v947
    %v949 = vpop.f32.mrf.mxu0
    %v950 = vadd.f32 %v915, %v949
    %951 = vdwg.mxu0
    %952 = vmatpush.msra.mxu0 0.0
    %953 = vmatpush.msra.mxu0 0.0
    %954 = vmatpush.msra.mxu0 0.0
    %955 = vmatpush.msra.mxu0 0.0
    %956 = vmatpush.msra.mxu0 0.0
    %957 = vmatpush.msra.mxu0 0.0
    %958 = vmatpush.msra.mxu0 0.0
    %959 = vmatpush.msra.mxu0 0.0
    %960 = vmatpush.msra.mxu0 0.0
    %961 = vmatpush.msra.mxu0 0.0
    %962 = vmatpush.msra.mxu0 0.0
    %963 = vmatpush.msra.mxu0 0.0
    %964 = vmatpush.msra.mxu0 0.0
    %965 = vmatpush.msra.mxu0 0.0
    %v966 = vand.u32 %v82, 4294901760
    %v967 = vsub.f32 %v82, %v966
    %968 = vmatpush.msra.mxu0 %v967
    %v969 = vand.u32 %v81, 4294901760
    %v970 = vsub.f32 %v81, %v969
    %971 = vmatpush.msra.mxu0 %v970
    %v972 = vand.u32 %v877, 4294901760
    %v973 = vsub.f32 %v877, %v972
    %974 = vmatmul.f32.gmra.mxu0 %v973
    %v975 = vpop.f32.mrf.mxu0
    %v976 = vadd.f32 %v946, %v975
    %v977 = vand.u32 %v880, 4294901760
    %v978 = vsub.f32 %v880, %v977
    %979 = vmatmul.f32.gmra.mxu0 %v978
    %v980 = vpop.f32.mrf.mxu0
    %v981 = vadd.f32 %v950, %v980
    %982 = vdwg.mxu0
    %983 = vmatpush.msra.mxu0 0.0
    %984 = vmatpush.msra.mxu0 0.0
    %985 = vmatpush.msra.mxu0 0.0
    %986 = vmatpush.msra.mxu0 0.0
    %987 = vmatpush.msra.mxu0 0.0
    %988 = vmatpush.msra.mxu0 0.0
    %989 = vmatpush.msra.mxu0 0.0
    %990 = vmatpush.msra.mxu0 0.0
    %991 = vmatpush.msra.mxu0 0.0
    %992 = vmatpush.msra.mxu0 0.0
    %993 = vmatpush.msra.mxu0 0.0
    %994 = vmatpush.msra.mxu0 0.0
    %995 = vmatpush.msra.mxu0 0.0
    %996 = vmatpush.msra.mxu0 0.0
    %v997 = vand.u32 %v82, 4294901760
    %998 = vmatpush.msra.mxu0 %v997
    %v999 = vand.u32 %v81, 4294901760
    %1000 = vmatpush.msra.mxu0 %v999
    %v1001 = vand.u32 %v877, 4294901760
    %v1002 = vsub.f32 %v877, %v1001
    %v1003 = vand.u32 %v1002, 4294901760
    %1004 = vmatmul.f32.gmra.mxu0 %v1003
    %v1005 = vpop.f32.mrf.mxu0
    %v1006 = vadd.f32 %v976, %v1005
    %v1007 = vand.u32 %v880, 4294901760
    %v1008 = vsub.f32 %v880, %v1007
    %v1009 = vand.u32 %v1008, 4294901760
    %1010 = vmatmul.f32.gmra.mxu0 %v1009
    %v1011 = vpop.f32.mrf.mxu0
    %v1012 = vadd.f32 %v981, %v1011
    %1013 = vdwg.mxu0
    %1014 = vmatpush.msra.mxu0 0.0
    %1015 = vmatpush.msra.mxu0 0.0
    %1016 = vmatpush.msra.mxu0 0.0
    %1017 = vmatpush.msra.mxu0 0.0
    %1018 = vmatpush.msra.mxu0 0.0
    %1019 = vmatpush.msra.mxu0 0.0
    %1020 = vmatpush.msra.mxu0 0.0
    %1021 = vmatpush.msra.mxu0 0.0
    %1022 = vmatpush.msra.mxu0 0.0
    %1023 = vmatpush.msra.mxu0 0.0
    %1024 = vmatpush.msra.mxu0 0.0
    %1025 = vmatpush.msra.mxu0 0.0
    %1026 = vmatpush.msra.mxu0 0.0
    %1027 = vmatpush.msra.mxu0 0.0
    %v1028 = vand.u32 %v82, 4294901760
    %v1029 = vsub.f32 %v82, %v1028
    %v1030 = vand.u32 %v1029, 4294901760
    %1031 = vmatpush.msra.mxu0 %v1030
    %v1032 = vand.u32 %v81, 4294901760
    %v1033 = vsub.f32 %v81, %v1032
    %v1034 = vand.u32 %v1033, 4294901760
    %1035 = vmatpush.msra.mxu0 %v1034
    %v1036 = vand.u32 %v877, 4294901760
    %1037 = vmatmul.f32.gmra.mxu0 %v1036
    %v1038 = vpop.f32.mrf.mxu0
    %v1039 = vadd.f32 %v1006, %v1038
    %v1040 = vand.u32 %v880, 4294901760
    %1041 = vmatmul.f32.gmra.mxu0 %v1040
    %v1042 = vpop.f32.mrf.mxu0
    %v1043 = vadd.f32 %v1012, %v1042
    %1044 = vdwg.mxu0
    %1045 = vmatpush.msra.mxu0 0.0
    %1046 = vmatpush.msra.mxu0 0.0
    %1047 = vmatpush.msra.mxu0 0.0
    %1048 = vmatpush.msra.mxu0 0.0
    %1049 = vmatpush.msra.mxu0 0.0
    %1050 = vmatpush.msra.mxu0 0.0
    %1051 = vmatpush.msra.mxu0 0.0
    %1052 = vmatpush.msra.mxu0 0.0
    %1053 = vmatpush.msra.mxu0 0.0
    %1054 = vmatpush.msra.mxu0 0.0
    %1055 = vmatpush.msra.mxu0 0.0
    %1056 = vmatpush.msra.mxu0 0.0
    %1057 = vmatpush.msra.mxu0 0.0
    %1058 = vmatpush.msra.mxu0 0.0
    %v1059 = vand.u32 %v82, 4294901760
    %1060 = vmatpush.msra.mxu0 %v1059
    %v1061 = vand.u32 %v81, 4294901760
    %1062 = vmatpush.msra.mxu0 %v1061
    %v1063 = vand.u32 %v877, 4294901760
    %1064 = vmatmul.f32.gmra.mxu0 %v1063
    %v1065 = vpop.f32.mrf.mxu0
    %v1066 = vadd.f32 %v1039, %v1065
    %v1067 = vand.u32 %v880, 4294901760
    %1068 = vmatmul.f32.gmra.mxu0 %v1067
    %v1069 = vpop.f32.mrf.mxu0
    %v1070 = vadd.f32 %v1043, %v1069
    %1071 = vdwg.mxu0
    %1072 = vmatpush.msra.mxu0 0.0
    %1073 = vmatpush.msra.mxu0 0.0
    %1074 = vmatpush.msra.mxu0 0.0
    %1075 = vmatpush.msra.mxu0 0.0
    %1076 = vmatpush.msra.mxu0 0.0
    %1077 = vmatpush.msra.mxu0 0.0
    %1078 = vmatpush.msra.mxu0 0.0
    %1079 = vmatpush.msra.mxu0 0.0
    %1080 = vmatpush.msra.mxu0 0.0
    %1081 = vmatpush.msra.mxu0 0.0
    %1082 = vmatpush.msra.mxu0 0.0
    %1083 = vmatpush.msra.mxu0 0.0
    %1084 = vmatpush.msra.mxu0 0.0
    %1085 = vmatpush.msra.mxu0 0.0
    %v1086 = vand.u32 %v1070, 4294901760
    %1087 = vmatpush.msra.mxu0 %v1086
    %v1088 = vand.u32 %v1066, 4294901760
    %1089 = vmatpush.msra.mxu0 %v1088
    %v1090 = vand.u32 %v287, 4294901760
    %v1091 = vsub.f32 %v287, %v1090
    %v1092 = vand.u32 %v1091, 4294901760
    %v1093 = vsub.f32 %v1091, %v1092
    %v1094 = vand.u32 %v1093, 4294901760
    %1095 = vmatmul.f32.gmra.mxu0 %v1094
    %v1096 = vpop.f32.mrf.mxu0
    %v1097 = vadd.f32 0.0, %v1096
    %v1098 = vand.u32 %v290, 4294901760
    %v1099 = vsub.f32 %v290, %v1098
    %v1100 = vand.u32 %v1099, 4294901760
    %v1101 = vsub.f32 %v1099, %v1100
    %v1102 = vand.u32 %v1101, 4294901760
    %1103 = vmatmul.f32.gmra.mxu0 %v1102
    %v1104 = vpop.f32.mrf.mxu0
    %v1105 = vadd.f32 0.0, %v1104
    %1106 = vdwg.mxu0
    %1107 = vmatpush.msra.mxu0 0.0
    %1108 = vmatpush.msra.mxu0 0.0
    %1109 = vmatpush.msra.mxu0 0.0
    %1110 = vmatpush.msra.mxu0 0.0
    %1111 = vmatpush.msra.mxu0 0.0
    %1112 = vmatpush.msra.mxu0 0.0
    %1113 = vmatpush.msra.mxu0 0.0
    %1114 = vmatpush.msra.mxu0 0.0
    %1115 = vmatpush.msra.mxu0 0.0
    %1116 = vmatpush.msra.mxu0 0.0
    %1117 = vmatpush.msra.mxu0 0.0
    %1118 = vmatpush.msra.mxu0 0.0
    %1119 = vmatpush.msra.mxu0 0.0
    %1120 = vmatpush.msra.mxu0 0.0
    %v1121 = vand.u32 %v1070, 4294901760
    %v1122 = vsub.f32 %v1070, %v1121
    %v1123 = vand.u32 %v1122, 4294901760
    %v1124 = vsub.f32 %v1122, %v1123
    %v1125 = vand.u32 %v1124, 4294901760
    %1126 = vmatpush.msra.mxu0 %v1125
    %v1127 = vand.u32 %v1066, 4294901760
    %v1128 = vsub.f32 %v1066, %v1127
    %v1129 = vand.u32 %v1128, 4294901760
    %v1130 = vsub.f32 %v1128, %v1129
    %v1131 = vand.u32 %v1130, 4294901760
    %1132 = vmatpush.msra.mxu0 %v1131
    %v1133 = vand.u32 %v287, 4294901760
    %1134 = vmatmul.f32.gmra.mxu0 %v1133
    %v1135 = vpop.f32.mrf.mxu0
    %v1136 = vadd.f32 %v1097, %v1135
    %v1137 = vand.u32 %v290, 4294901760
    %1138 = vmatmul.f32.gmra.mxu0 %v1137
    %v1139 = vpop.f32.mrf.mxu0
    %v1140 = vadd.f32 %v1105, %v1139
    %1141 = vdwg.mxu0
    %1142 = vmatpush.msra.mxu0 0.0
    %1143 = vmatpush.msra.mxu0 0.0
    %1144 = vmatpush.msra.mxu0 0.0
    %1145 = vmatpush.msra.mxu0 0.0
    %1146 = vmatpush.msra.mxu0 0.0
    %1147 = vmatpush.msra.mxu0 0.0
    %1148 = vmatpush.msra.mxu0 0.0
    %1149 = vmatpush.msra.mxu0 0.0
    %1150 = vmatpush.msra.mxu0 0.0
    %1151 = vmatpush.msra.mxu0 0.0
    %1152 = vmatpush.msra.mxu0 0.0
    %1153 = vmatpush.msra.mxu0 0.0
    %1154 = vmatpush.msra.mxu0 0.0
    %1155 = vmatpush.msra.mxu0 0.0
    %v1156 = vand.u32 %v1070, 4294901760
    %v1157 = vsub.f32 %v1070, %v1156
    %1158 = vmatpush.msra.mxu0 %v1157
    %v1159 = vand.u32 %v1066, 4294901760
    %v1160 = vsub.f32 %v1066, %v1159
    %1161 = vmatpush.msra.mxu0 %v1160
    %v1162 = vand.u32 %v287, 4294901760
    %v1163 = vsub.f32 %v287, %v1162
    %1164 = vmatmul.f32.gmra.mxu0 %v1163
    %v1165 = vpop.f32.mrf.mxu0
    %v1166 = vadd.f32 %v1136, %v1165
    %v1167 = vand.u32 %v290, 4294901760
    %v1168 = vsub.f32 %v290, %v1167
    %1169 = vmatmul.f32.gmra.mxu0 %v1168
    %v1170 = vpop.f32.mrf.mxu0
    %v1171 = vadd.f32 %v1140, %v1170
    %1172 = vdwg.mxu0
    %1173 = vmatpush.msra.mxu0 0.0
    %1174 = vmatpush.msra.mxu0 0.0
    %1175 = vmatpush.msra.mxu0 0.0
    %1176 = vmatpush.msra.mxu0 0.0
    %1177 = vmatpush.msra.mxu0 0.0
    %1178 = vmatpush.msra.mxu0 0.0
    %1179 = vmatpush.msra.mxu0 0.0
    %1180 = vmatpush.msra.mxu0 0.0
    %1181 = vmatpush.msra.mxu0 0.0
    %1182 = vmatpush.msra.mxu0 0.0
    %1183 = vmatpush.msra.mxu0 0.0
    %1184 = vmatpush.msra.mxu0 0.0
    %1185 = vmatpush.msra.mxu0 0.0
    %1186 = vmatpush.msra.mxu0 0.0
    %v1187 = vand.u32 %v1070, 4294901760
    %1188 = vmatpush.msra.mxu0 %v1187
    %v1189 = vand.u32 %v1066, 4294901760
    %1190 = vmatpush.msra.mxu0 %v1189
    %v1191 = vand.u32 %v287, 4294901760
    %v1192 = vsub.f32 %v287, %v1191
    %v1193 = vand.u32 %v1192, 4294901760
    %1194 = vmatmul.f32.gmra.mxu0 %v1193
    %v1195 = vpop.f32.mrf.mxu0
    %v1196 = vadd.f32 %v1166, %v1195
    %v1197 = vand.u32 %v290, 4294901760
    %v1198 = vsub.f32 %v290, %v1197
    %v1199 = vand.u32 %v1198, 4294901760
    %1200 = vmatmul.f32.gmra.mxu0 %v1199
    %v1201 = vpop.f32.mrf.mxu0
    %v1202 = vadd.f32 %v1171, %v1201
    %1203 = vdwg.mxu0
    %1204 = vmatpush.msra.mxu0 0.0
    %1205 = vmatpush.msra.mxu0 0.0
    %1206 = vmatpush.msra.mxu0 0.0
    %1207 = vmatpush.msra.mxu0 0.0
    %1208 = vmatpush.msra.mxu0 0.0
    %1209 = vmatpush.msra.mxu0 0.0
    %1210 = vmatpush.msra.mxu0 0.0
    %1211 = vmatpush.msra.mxu0 0.0
    %1212 = vmatpush.msra.mxu0 0.0
    %1213 = vmatpush.msra.mxu0 0.0
    %1214 = vmatpush.msra.mxu0 0.0
    %1215 = vmatpush.msra.mxu0 0.0
    %1216 = vmatpush.msra.mxu0 0.0
    %1217 = vmatpush.msra.mxu0 0.0
    %v1218 = vand.u32 %v1070, 4294901760
    %v1219 = vsub.f32 %v1070, %v1218
    %v1220 = vand.u32 %v1219, 4294901760
    %1221 = vmatpush.msra.mxu0 %v1220
    %v1222 = vand.u32 %v1066, 4294901760
    %v1223 = vsub.f32 %v1066, %v1222
    %v1224 = vand.u32 %v1223, 4294901760
    %1225 = vmatpush.msra.mxu0 %v1224
    %v1226 = vand.u32 %v287, 4294901760
    %1227 = vmatmul.f32.gmra.mxu0 %v1226
    %v1228 = vpop.f32.mrf.mxu0
    %v1229 = vadd.f32 %v1196, %v1228
    %v1230 = vand.u32 %v290, 4294901760
    %1231 = vmatmul.f32.gmra.mxu0 %v1230
    %v1232 = vpop.f32.mrf.mxu0
    %v1233 = vadd.f32 %v1202, %v1232
    %1234 = vdwg.mxu0
    %1235 = vmatpush.msra.mxu0 0.0
    %1236 = vmatpush.msra.mxu0 0.0
    %1237 = vmatpush.msra.mxu0 0.0
    %1238 = vmatpush.msra.mxu0 0.0
    %1239 = vmatpush.msra.mxu0 0.0
    %1240 = vmatpush.msra.mxu0 0.0
    %1241 = vmatpush.msra.mxu0 0.0
    %1242 = vmatpush.msra.mxu0 0.0
    %1243 = vmatpush.msra.mxu0 0.0
    %1244 = vmatpush.msra.mxu0 0.0
    %1245 = vmatpush.msra.mxu0 0.0
    %1246 = vmatpush.msra.mxu0 0.0
    %1247 = vmatpush.msra.mxu0 0.0
    %1248 = vmatpush.msra.mxu0 0.0
    %v1249 = vand.u32 %v1070, 4294901760
    %1250 = vmatpush.msra.mxu0 %v1249
    %v1251 = vand.u32 %v1066, 4294901760
    %1252 = vmatpush.msra.mxu0 %v1251
    %v1253 = vand.u32 %v287, 4294901760
    %1254 = vmatmul.f32.gmra.mxu0 %v1253
    %v1255 = vpop.f32.mrf.mxu0
    %v1256 = vadd.f32 %v1229, %v1255
    %v1257 = vand.u32 %v290, 4294901760
    %1258 = vmatmul.f32.gmra.mxu0 %v1257
    %v1259 = vpop.f32.mrf.mxu0
    %v1260 = vadd.f32 %v1233, %v1259
    %1261 = vdwg.mxu0
    %v1262 = vsub.f32 %v1256, %v868
    %v1263 = vsub.f32 %v1260, %v869
    %v1264 = vmul.f32 %v87, %v87
    %v1265 = vmul.f32 %v88, %v88
    %v1267 = vsel %vm89, %v1264, 0
    %v1270 = vsel %vm89, %v1265, 0
    %1272 = vmatpush.msra.mxu0 0.0
    %1273 = vmatpush.msra.mxu0 0.0
    %1274 = vmatpush.msra.mxu0 0.0
    %1275 = vmatpush.msra.mxu0 0.0
    %1276 = vmatpush.msra.mxu0 0.0
    %1277 = vmatpush.msra.mxu0 0.0
    %1278 = vmatpush.msra.mxu0 0.0
    %1279 = vmatpush.msra.mxu0 0.0
    %1280 = vmatpush.msra.mxu0 0.0
    %1281 = vmatpush.msra.mxu0 0.0
    %1282 = vmatpush.msra.mxu0 0.0
    %1283 = vmatpush.msra.mxu0 0.0
    %1284 = vmatpush.msra.mxu0 0.0
    %1285 = vmatpush.msra.mxu0 0.0
    %v1286 = vand.u32 %v82, 4294901760
    %1287 = vmatpush.msra.mxu0 %v1286
    %v1288 = vand.u32 %v81, 4294901760
    %1289 = vmatpush.msra.mxu0 %v1288
    %v1290 = vand.u32 %v1267, 4294901760
    %v1291 = vsub.f32 %v1267, %v1290
    %v1292 = vand.u32 %v1291, 4294901760
    %v1293 = vsub.f32 %v1291, %v1292
    %v1294 = vand.u32 %v1293, 4294901760
    %1295 = vmatmul.f32.gmra.mxu0 %v1294
    %v1296 = vpop.f32.mrf.mxu0
    %v1297 = vadd.f32 0.0, %v1296
    %v1298 = vand.u32 %v1270, 4294901760
    %v1299 = vsub.f32 %v1270, %v1298
    %v1300 = vand.u32 %v1299, 4294901760
    %v1301 = vsub.f32 %v1299, %v1300
    %v1302 = vand.u32 %v1301, 4294901760
    %1303 = vmatmul.f32.gmra.mxu0 %v1302
    %v1304 = vpop.f32.mrf.mxu0
    %v1305 = vadd.f32 0.0, %v1304
    %1306 = vdwg.mxu0
    %1307 = vmatpush.msra.mxu0 0.0
    %1308 = vmatpush.msra.mxu0 0.0
    %1309 = vmatpush.msra.mxu0 0.0
    %1310 = vmatpush.msra.mxu0 0.0
    %1311 = vmatpush.msra.mxu0 0.0
    %1312 = vmatpush.msra.mxu0 0.0
    %1313 = vmatpush.msra.mxu0 0.0
    %1314 = vmatpush.msra.mxu0 0.0
    %1315 = vmatpush.msra.mxu0 0.0
    %1316 = vmatpush.msra.mxu0 0.0
    %1317 = vmatpush.msra.mxu0 0.0
    %1318 = vmatpush.msra.mxu0 0.0
    %1319 = vmatpush.msra.mxu0 0.0
    %1320 = vmatpush.msra.mxu0 0.0
    %v1321 = vand.u32 %v82, 4294901760
    %v1322 = vsub.f32 %v82, %v1321
    %v1323 = vand.u32 %v1322, 4294901760
    %v1324 = vsub.f32 %v1322, %v1323
    %v1325 = vand.u32 %v1324, 4294901760
    %1326 = vmatpush.msra.mxu0 %v1325
    %v1327 = vand.u32 %v81, 4294901760
    %v1328 = vsub.f32 %v81, %v1327
    %v1329 = vand.u32 %v1328, 4294901760
    %v1330 = vsub.f32 %v1328, %v1329
    %v1331 = vand.u32 %v1330, 4294901760
    %1332 = vmatpush.msra.mxu0 %v1331
    %v1333 = vand.u32 %v1267, 4294901760
    %1334 = vmatmul.f32.gmra.mxu0 %v1333
    %v1335 = vpop.f32.mrf.mxu0
    %v1336 = vadd.f32 %v1297, %v1335
    %v1337 = vand.u32 %v1270, 4294901760
    %1338 = vmatmul.f32.gmra.mxu0 %v1337
    %v1339 = vpop.f32.mrf.mxu0
    %v1340 = vadd.f32 %v1305, %v1339
    %1341 = vdwg.mxu0
    %1342 = vmatpush.msra.mxu0 0.0
    %1343 = vmatpush.msra.mxu0 0.0
    %1344 = vmatpush.msra.mxu0 0.0
    %1345 = vmatpush.msra.mxu0 0.0
    %1346 = vmatpush.msra.mxu0 0.0
    %1347 = vmatpush.msra.mxu0 0.0
    %1348 = vmatpush.msra.mxu0 0.0
    %1349 = vmatpush.msra.mxu0 0.0
    %1350 = vmatpush.msra.mxu0 0.0
    %1351 = vmatpush.msra.mxu0 0.0
    %1352 = vmatpush.msra.mxu0 0.0
    %1353 = vmatpush.msra.mxu0 0.0
    %1354 = vmatpush.msra.mxu0 0.0
    %1355 = vmatpush.msra.mxu0 0.0
    %v1356 = vand.u32 %v82, 4294901760
    %v1357 = vsub.f32 %v82, %v1356
    %1358 = vmatpush.msra.mxu0 %v1357
    %v1359 = vand.u32 %v81, 4294901760
    %v1360 = vsub.f32 %v81, %v1359
    %1361 = vmatpush.msra.mxu0 %v1360
    %v1362 = vand.u32 %v1267, 4294901760
    %v1363 = vsub.f32 %v1267, %v1362
    %1364 = vmatmul.f32.gmra.mxu0 %v1363
    %v1365 = vpop.f32.mrf.mxu0
    %v1366 = vadd.f32 %v1336, %v1365
    %v1367 = vand.u32 %v1270, 4294901760
    %v1368 = vsub.f32 %v1270, %v1367
    %1369 = vmatmul.f32.gmra.mxu0 %v1368
    %v1370 = vpop.f32.mrf.mxu0
    %v1371 = vadd.f32 %v1340, %v1370
    %1372 = vdwg.mxu0
    %1373 = vmatpush.msra.mxu0 0.0
    %1374 = vmatpush.msra.mxu0 0.0
    %1375 = vmatpush.msra.mxu0 0.0
    %1376 = vmatpush.msra.mxu0 0.0
    %1377 = vmatpush.msra.mxu0 0.0
    %1378 = vmatpush.msra.mxu0 0.0
    %1379 = vmatpush.msra.mxu0 0.0
    %1380 = vmatpush.msra.mxu0 0.0
    %1381 = vmatpush.msra.mxu0 0.0
    %1382 = vmatpush.msra.mxu0 0.0
    %1383 = vmatpush.msra.mxu0 0.0
    %1384 = vmatpush.msra.mxu0 0.0
    %1385 = vmatpush.msra.mxu0 0.0
    %1386 = vmatpush.msra.mxu0 0.0
    %v1387 = vand.u32 %v82, 4294901760
    %1388 = vmatpush.msra.mxu0 %v1387
    %v1389 = vand.u32 %v81, 4294901760
    %1390 = vmatpush.msra.mxu0 %v1389
    %v1391 = vand.u32 %v1267, 4294901760
    %v1392 = vsub.f32 %v1267, %v1391
    %v1393 = vand.u32 %v1392, 4294901760
    %1394 = vmatmul.f32.gmra.mxu0 %v1393
    %v1395 = vpop.f32.mrf.mxu0
    %v1396 = vadd.f32 %v1366, %v1395
    %v1397 = vand.u32 %v1270, 4294901760
    %v1398 = vsub.f32 %v1270, %v1397
    %v1399 = vand.u32 %v1398, 4294901760
    %1400 = vmatmul.f32.gmra.mxu0 %v1399
    %v1401 = vpop.f32.mrf.mxu0
    %v1402 = vadd.f32 %v1371, %v1401
    %1403 = vdwg.mxu0
    %1404 = vmatpush.msra.mxu0 0.0
    %1405 = vmatpush.msra.mxu0 0.0
    %1406 = vmatpush.msra.mxu0 0.0
    %1407 = vmatpush.msra.mxu0 0.0
    %1408 = vmatpush.msra.mxu0 0.0
    %1409 = vmatpush.msra.mxu0 0.0
    %1410 = vmatpush.msra.mxu0 0.0
    %1411 = vmatpush.msra.mxu0 0.0
    %1412 = vmatpush.msra.mxu0 0.0
    %1413 = vmatpush.msra.mxu0 0.0
    %1414 = vmatpush.msra.mxu0 0.0
    %1415 = vmatpush.msra.mxu0 0.0
    %1416 = vmatpush.msra.mxu0 0.0
    %1417 = vmatpush.msra.mxu0 0.0
    %v1418 = vand.u32 %v82, 4294901760
    %v1419 = vsub.f32 %v82, %v1418
    %v1420 = vand.u32 %v1419, 4294901760
    %1421 = vmatpush.msra.mxu0 %v1420
    %v1422 = vand.u32 %v81, 4294901760
    %v1423 = vsub.f32 %v81, %v1422
    %v1424 = vand.u32 %v1423, 4294901760
    %1425 = vmatpush.msra.mxu0 %v1424
    %v1426 = vand.u32 %v1267, 4294901760
    %1427 = vmatmul.f32.gmra.mxu0 %v1426
    %v1428 = vpop.f32.mrf.mxu0
    %v1429 = vadd.f32 %v1396, %v1428
    %v1430 = vand.u32 %v1270, 4294901760
    %1431 = vmatmul.f32.gmra.mxu0 %v1430
    %v1432 = vpop.f32.mrf.mxu0
    %v1433 = vadd.f32 %v1402, %v1432
    %1434 = vdwg.mxu0
    %1435 = vmatpush.msra.mxu0 0.0
    %1436 = vmatpush.msra.mxu0 0.0
    %1437 = vmatpush.msra.mxu0 0.0
    %1438 = vmatpush.msra.mxu0 0.0
    %1439 = vmatpush.msra.mxu0 0.0
    %1440 = vmatpush.msra.mxu0 0.0
    %1441 = vmatpush.msra.mxu0 0.0
    %1442 = vmatpush.msra.mxu0 0.0
    %1443 = vmatpush.msra.mxu0 0.0
    %1444 = vmatpush.msra.mxu0 0.0
    %1445 = vmatpush.msra.mxu0 0.0
    %1446 = vmatpush.msra.mxu0 0.0
    %1447 = vmatpush.msra.mxu0 0.0
    %1448 = vmatpush.msra.mxu0 0.0
    %v1449 = vand.u32 %v82, 4294901760
    %1450 = vmatpush.msra.mxu0 %v1449
    %v1451 = vand.u32 %v81, 4294901760
    %1452 = vmatpush.msra.mxu0 %v1451
    %v1453 = vand.u32 %v1267, 4294901760
    %1454 = vmatmul.f32.gmra.mxu0 %v1453
    %v1455 = vpop.f32.mrf.mxu0
    %v1456 = vadd.f32 %v1429, %v1455
    %v1457 = vand.u32 %v1270, 4294901760
    %1458 = vmatmul.f32.gmra.mxu0 %v1457
    %v1459 = vpop.f32.mrf.mxu0
    %v1460 = vadd.f32 %v1433, %v1459
    %1461 = vdwg.mxu0
    %1462 = vmatpush.msra.mxu0 0.0
    %1463 = vmatpush.msra.mxu0 0.0
    %1464 = vmatpush.msra.mxu0 0.0
    %1465 = vmatpush.msra.mxu0 0.0
    %1466 = vmatpush.msra.mxu0 0.0
    %1467 = vmatpush.msra.mxu0 0.0
    %1468 = vmatpush.msra.mxu0 0.0
    %1469 = vmatpush.msra.mxu0 0.0
    %1470 = vmatpush.msra.mxu0 0.0
    %1471 = vmatpush.msra.mxu0 0.0
    %1472 = vmatpush.msra.mxu0 0.0
    %1473 = vmatpush.msra.mxu0 0.0
    %1474 = vmatpush.msra.mxu0 0.0
    %1475 = vmatpush.msra.mxu0 0.0
    %v1476 = vand.u32 %v1460, 4294901760
    %1477 = vmatpush.msra.mxu0 %v1476
    %v1478 = vand.u32 %v1456, 4294901760
    %1479 = vmatpush.msra.mxu0 %v1478
    %v1480 = vand.u32 %v287, 4294901760
    %v1481 = vsub.f32 %v287, %v1480
    %v1482 = vand.u32 %v1481, 4294901760
    %v1483 = vsub.f32 %v1481, %v1482
    %v1484 = vand.u32 %v1483, 4294901760
    %1485 = vmatmul.f32.gmra.mxu0 %v1484
    %v1486 = vpop.f32.mrf.mxu0
    %v1487 = vadd.f32 0.0, %v1486
    %v1488 = vand.u32 %v290, 4294901760
    %v1489 = vsub.f32 %v290, %v1488
    %v1490 = vand.u32 %v1489, 4294901760
    %v1491 = vsub.f32 %v1489, %v1490
    %v1492 = vand.u32 %v1491, 4294901760
    %1493 = vmatmul.f32.gmra.mxu0 %v1492
    %v1494 = vpop.f32.mrf.mxu0
    %v1495 = vadd.f32 0.0, %v1494
    %1496 = vdwg.mxu0
    %1497 = vmatpush.msra.mxu0 0.0
    %1498 = vmatpush.msra.mxu0 0.0
    %1499 = vmatpush.msra.mxu0 0.0
    %1500 = vmatpush.msra.mxu0 0.0
    %1501 = vmatpush.msra.mxu0 0.0
    %1502 = vmatpush.msra.mxu0 0.0
    %1503 = vmatpush.msra.mxu0 0.0
    %1504 = vmatpush.msra.mxu0 0.0
    %1505 = vmatpush.msra.mxu0 0.0
    %1506 = vmatpush.msra.mxu0 0.0
    %1507 = vmatpush.msra.mxu0 0.0
    %1508 = vmatpush.msra.mxu0 0.0
    %1509 = vmatpush.msra.mxu0 0.0
    %1510 = vmatpush.msra.mxu0 0.0
    %v1511 = vand.u32 %v1460, 4294901760
    %v1512 = vsub.f32 %v1460, %v1511
    %v1513 = vand.u32 %v1512, 4294901760
    %v1514 = vsub.f32 %v1512, %v1513
    %v1515 = vand.u32 %v1514, 4294901760
    %1516 = vmatpush.msra.mxu0 %v1515
    %v1517 = vand.u32 %v1456, 4294901760
    %v1518 = vsub.f32 %v1456, %v1517
    %v1519 = vand.u32 %v1518, 4294901760
    %v1520 = vsub.f32 %v1518, %v1519
    %v1521 = vand.u32 %v1520, 4294901760
    %1522 = vmatpush.msra.mxu0 %v1521
    %v1523 = vand.u32 %v287, 4294901760
    %1524 = vmatmul.f32.gmra.mxu0 %v1523
    %v1525 = vpop.f32.mrf.mxu0
    %v1526 = vadd.f32 %v1487, %v1525
    %v1527 = vand.u32 %v290, 4294901760
    %1528 = vmatmul.f32.gmra.mxu0 %v1527
    %v1529 = vpop.f32.mrf.mxu0
    %v1530 = vadd.f32 %v1495, %v1529
    %1531 = vdwg.mxu0
    %1532 = vmatpush.msra.mxu0 0.0
    %1533 = vmatpush.msra.mxu0 0.0
    %1534 = vmatpush.msra.mxu0 0.0
    %1535 = vmatpush.msra.mxu0 0.0
    %1536 = vmatpush.msra.mxu0 0.0
    %1537 = vmatpush.msra.mxu0 0.0
    %1538 = vmatpush.msra.mxu0 0.0
    %1539 = vmatpush.msra.mxu0 0.0
    %1540 = vmatpush.msra.mxu0 0.0
    %1541 = vmatpush.msra.mxu0 0.0
    %1542 = vmatpush.msra.mxu0 0.0
    %1543 = vmatpush.msra.mxu0 0.0
    %1544 = vmatpush.msra.mxu0 0.0
    %1545 = vmatpush.msra.mxu0 0.0
    %v1546 = vand.u32 %v1460, 4294901760
    %v1547 = vsub.f32 %v1460, %v1546
    %1548 = vmatpush.msra.mxu0 %v1547
    %v1549 = vand.u32 %v1456, 4294901760
    %v1550 = vsub.f32 %v1456, %v1549
    %1551 = vmatpush.msra.mxu0 %v1550
    %v1552 = vand.u32 %v287, 4294901760
    %v1553 = vsub.f32 %v287, %v1552
    %1554 = vmatmul.f32.gmra.mxu0 %v1553
    %v1555 = vpop.f32.mrf.mxu0
    %v1556 = vadd.f32 %v1526, %v1555
    %v1557 = vand.u32 %v290, 4294901760
    %v1558 = vsub.f32 %v290, %v1557
    %1559 = vmatmul.f32.gmra.mxu0 %v1558
    %v1560 = vpop.f32.mrf.mxu0
    %v1561 = vadd.f32 %v1530, %v1560
    %1562 = vdwg.mxu0
    %1563 = vmatpush.msra.mxu0 0.0
    %1564 = vmatpush.msra.mxu0 0.0
    %1565 = vmatpush.msra.mxu0 0.0
    %1566 = vmatpush.msra.mxu0 0.0
    %1567 = vmatpush.msra.mxu0 0.0
    %1568 = vmatpush.msra.mxu0 0.0
    %1569 = vmatpush.msra.mxu0 0.0
    %1570 = vmatpush.msra.mxu0 0.0
    %1571 = vmatpush.msra.mxu0 0.0
    %1572 = vmatpush.msra.mxu0 0.0
    %1573 = vmatpush.msra.mxu0 0.0
    %1574 = vmatpush.msra.mxu0 0.0
    %1575 = vmatpush.msra.mxu0 0.0
    %1576 = vmatpush.msra.mxu0 0.0
    %v1577 = vand.u32 %v1460, 4294901760
    %1578 = vmatpush.msra.mxu0 %v1577
    %v1579 = vand.u32 %v1456, 4294901760
    %1580 = vmatpush.msra.mxu0 %v1579
    %v1581 = vand.u32 %v287, 4294901760
    %v1582 = vsub.f32 %v287, %v1581
    %v1583 = vand.u32 %v1582, 4294901760
    %1584 = vmatmul.f32.gmra.mxu0 %v1583
    %v1585 = vpop.f32.mrf.mxu0
    %v1586 = vadd.f32 %v1556, %v1585
    %v1587 = vand.u32 %v290, 4294901760
    %v1588 = vsub.f32 %v290, %v1587
    %v1589 = vand.u32 %v1588, 4294901760
    %1590 = vmatmul.f32.gmra.mxu0 %v1589
    %v1591 = vpop.f32.mrf.mxu0
    %v1592 = vadd.f32 %v1561, %v1591
    %1593 = vdwg.mxu0
    %1594 = vmatpush.msra.mxu0 0.0
    %1595 = vmatpush.msra.mxu0 0.0
    %1596 = vmatpush.msra.mxu0 0.0
    %1597 = vmatpush.msra.mxu0 0.0
    %1598 = vmatpush.msra.mxu0 0.0
    %1599 = vmatpush.msra.mxu0 0.0
    %1600 = vmatpush.msra.mxu0 0.0
    %1601 = vmatpush.msra.mxu0 0.0
    %1602 = vmatpush.msra.mxu0 0.0
    %1603 = vmatpush.msra.mxu0 0.0
    %1604 = vmatpush.msra.mxu0 0.0
    %1605 = vmatpush.msra.mxu0 0.0
    %1606 = vmatpush.msra.mxu0 0.0
    %1607 = vmatpush.msra.mxu0 0.0
    %v1608 = vand.u32 %v1460, 4294901760
    %v1609 = vsub.f32 %v1460, %v1608
    %v1610 = vand.u32 %v1609, 4294901760
    %1611 = vmatpush.msra.mxu0 %v1610
    %v1612 = vand.u32 %v1456, 4294901760
    %v1613 = vsub.f32 %v1456, %v1612
    %v1614 = vand.u32 %v1613, 4294901760
    %1615 = vmatpush.msra.mxu0 %v1614
    %v1616 = vand.u32 %v287, 4294901760
    %1617 = vmatmul.f32.gmra.mxu0 %v1616
    %v1618 = vpop.f32.mrf.mxu0
    %v1619 = vadd.f32 %v1586, %v1618
    %v1620 = vand.u32 %v290, 4294901760
    %1621 = vmatmul.f32.gmra.mxu0 %v1620
    %v1622 = vpop.f32.mrf.mxu0
    %v1623 = vadd.f32 %v1592, %v1622
    %1624 = vdwg.mxu0
    %1625 = vmatpush.msra.mxu0 0.0
    %1626 = vmatpush.msra.mxu0 0.0
    %1627 = vmatpush.msra.mxu0 0.0
    %1628 = vmatpush.msra.mxu0 0.0
    %1629 = vmatpush.msra.mxu0 0.0
    %1630 = vmatpush.msra.mxu0 0.0
    %1631 = vmatpush.msra.mxu0 0.0
    %1632 = vmatpush.msra.mxu0 0.0
    %1633 = vmatpush.msra.mxu0 0.0
    %1634 = vmatpush.msra.mxu0 0.0
    %1635 = vmatpush.msra.mxu0 0.0
    %1636 = vmatpush.msra.mxu0 0.0
    %1637 = vmatpush.msra.mxu0 0.0
    %1638 = vmatpush.msra.mxu0 0.0
    %v1639 = vand.u32 %v1460, 4294901760
    %1640 = vmatpush.msra.mxu0 %v1639
    %v1641 = vand.u32 %v1456, 4294901760
    %1642 = vmatpush.msra.mxu0 %v1641
    %v1643 = vand.u32 %v287, 4294901760
    %1644 = vmatmul.f32.gmra.mxu0 %v1643
    %v1645 = vpop.f32.mrf.mxu0
    %v1646 = vadd.f32 %v1619, %v1645
    %v1647 = vand.u32 %v290, 4294901760
    %1648 = vmatmul.f32.gmra.mxu0 %v1647
    %v1649 = vpop.f32.mrf.mxu0
    %v1650 = vadd.f32 %v1623, %v1649
    %1651 = vdwg.mxu0
    %v1652 = vsub.f32 %v1646, %v870
    %v1653 = vsub.f32 %v1650, %v871
    %v1654 = vmul.f32 %v85, %v87
    %v1655 = vmul.f32 %v86, %v88
    %v1657 = vsel %vm89, %v1654, 0
    %v1660 = vsel %vm89, %v1655, 0
    %1662 = vmatpush.msra.mxu0 0.0
    %1663 = vmatpush.msra.mxu0 0.0
    %1664 = vmatpush.msra.mxu0 0.0
    %1665 = vmatpush.msra.mxu0 0.0
    %1666 = vmatpush.msra.mxu0 0.0
    %1667 = vmatpush.msra.mxu0 0.0
    %1668 = vmatpush.msra.mxu0 0.0
    %1669 = vmatpush.msra.mxu0 0.0
    %1670 = vmatpush.msra.mxu0 0.0
    %1671 = vmatpush.msra.mxu0 0.0
    %1672 = vmatpush.msra.mxu0 0.0
    %1673 = vmatpush.msra.mxu0 0.0
    %1674 = vmatpush.msra.mxu0 0.0
    %1675 = vmatpush.msra.mxu0 0.0
    %v1676 = vand.u32 %v82, 4294901760
    %1677 = vmatpush.msra.mxu0 %v1676
    %v1678 = vand.u32 %v81, 4294901760
    %1679 = vmatpush.msra.mxu0 %v1678
    %v1680 = vand.u32 %v1657, 4294901760
    %v1681 = vsub.f32 %v1657, %v1680
    %v1682 = vand.u32 %v1681, 4294901760
    %v1683 = vsub.f32 %v1681, %v1682
    %v1684 = vand.u32 %v1683, 4294901760
    %1685 = vmatmul.f32.gmra.mxu0 %v1684
    %v1686 = vpop.f32.mrf.mxu0
    %v1687 = vadd.f32 0.0, %v1686
    %v1688 = vand.u32 %v1660, 4294901760
    %v1689 = vsub.f32 %v1660, %v1688
    %v1690 = vand.u32 %v1689, 4294901760
    %v1691 = vsub.f32 %v1689, %v1690
    %v1692 = vand.u32 %v1691, 4294901760
    %1693 = vmatmul.f32.gmra.mxu0 %v1692
    %v1694 = vpop.f32.mrf.mxu0
    %v1695 = vadd.f32 0.0, %v1694
    %1696 = vdwg.mxu0
    %1697 = vmatpush.msra.mxu0 0.0
    %1698 = vmatpush.msra.mxu0 0.0
    %1699 = vmatpush.msra.mxu0 0.0
    %1700 = vmatpush.msra.mxu0 0.0
    %1701 = vmatpush.msra.mxu0 0.0
    %1702 = vmatpush.msra.mxu0 0.0
    %1703 = vmatpush.msra.mxu0 0.0
    %1704 = vmatpush.msra.mxu0 0.0
    %1705 = vmatpush.msra.mxu0 0.0
    %1706 = vmatpush.msra.mxu0 0.0
    %1707 = vmatpush.msra.mxu0 0.0
    %1708 = vmatpush.msra.mxu0 0.0
    %1709 = vmatpush.msra.mxu0 0.0
    %1710 = vmatpush.msra.mxu0 0.0
    %v1711 = vand.u32 %v82, 4294901760
    %v1712 = vsub.f32 %v82, %v1711
    %v1713 = vand.u32 %v1712, 4294901760
    %v1714 = vsub.f32 %v1712, %v1713
    %v1715 = vand.u32 %v1714, 4294901760
    %1716 = vmatpush.msra.mxu0 %v1715
    %v1717 = vand.u32 %v81, 4294901760
    %v1718 = vsub.f32 %v81, %v1717
    %v1719 = vand.u32 %v1718, 4294901760
    %v1720 = vsub.f32 %v1718, %v1719
    %v1721 = vand.u32 %v1720, 4294901760
    %1722 = vmatpush.msra.mxu0 %v1721
    %v1723 = vand.u32 %v1657, 4294901760
    %1724 = vmatmul.f32.gmra.mxu0 %v1723
    %v1725 = vpop.f32.mrf.mxu0
    %v1726 = vadd.f32 %v1687, %v1725
    %v1727 = vand.u32 %v1660, 4294901760
    %1728 = vmatmul.f32.gmra.mxu0 %v1727
    %v1729 = vpop.f32.mrf.mxu0
    %v1730 = vadd.f32 %v1695, %v1729
    %1731 = vdwg.mxu0
    %1732 = vmatpush.msra.mxu0 0.0
    %1733 = vmatpush.msra.mxu0 0.0
    %1734 = vmatpush.msra.mxu0 0.0
    %1735 = vmatpush.msra.mxu0 0.0
    %1736 = vmatpush.msra.mxu0 0.0
    %1737 = vmatpush.msra.mxu0 0.0
    %1738 = vmatpush.msra.mxu0 0.0
    %1739 = vmatpush.msra.mxu0 0.0
    %1740 = vmatpush.msra.mxu0 0.0
    %1741 = vmatpush.msra.mxu0 0.0
    %1742 = vmatpush.msra.mxu0 0.0
    %1743 = vmatpush.msra.mxu0 0.0
    %1744 = vmatpush.msra.mxu0 0.0
    %1745 = vmatpush.msra.mxu0 0.0
    %v1746 = vand.u32 %v82, 4294901760
    %v1747 = vsub.f32 %v82, %v1746
    %1748 = vmatpush.msra.mxu0 %v1747
    %v1749 = vand.u32 %v81, 4294901760
    %v1750 = vsub.f32 %v81, %v1749
    %1751 = vmatpush.msra.mxu0 %v1750
    %v1752 = vand.u32 %v1657, 4294901760
    %v1753 = vsub.f32 %v1657, %v1752
    %1754 = vmatmul.f32.gmra.mxu0 %v1753
    %v1755 = vpop.f32.mrf.mxu0
    %v1756 = vadd.f32 %v1726, %v1755
    %v1757 = vand.u32 %v1660, 4294901760
    %v1758 = vsub.f32 %v1660, %v1757
    %1759 = vmatmul.f32.gmra.mxu0 %v1758
    %v1760 = vpop.f32.mrf.mxu0
    %v1761 = vadd.f32 %v1730, %v1760
    %1762 = vdwg.mxu0
    %1763 = vmatpush.msra.mxu0 0.0
    %1764 = vmatpush.msra.mxu0 0.0
    %1765 = vmatpush.msra.mxu0 0.0
    %1766 = vmatpush.msra.mxu0 0.0
    %1767 = vmatpush.msra.mxu0 0.0
    %1768 = vmatpush.msra.mxu0 0.0
    %1769 = vmatpush.msra.mxu0 0.0
    %1770 = vmatpush.msra.mxu0 0.0
    %1771 = vmatpush.msra.mxu0 0.0
    %1772 = vmatpush.msra.mxu0 0.0
    %1773 = vmatpush.msra.mxu0 0.0
    %1774 = vmatpush.msra.mxu0 0.0
    %1775 = vmatpush.msra.mxu0 0.0
    %1776 = vmatpush.msra.mxu0 0.0
    %v1777 = vand.u32 %v82, 4294901760
    %1778 = vmatpush.msra.mxu0 %v1777
    %v1779 = vand.u32 %v81, 4294901760
    %1780 = vmatpush.msra.mxu0 %v1779
    %v1781 = vand.u32 %v1657, 4294901760
    %v1782 = vsub.f32 %v1657, %v1781
    %v1783 = vand.u32 %v1782, 4294901760
    %1784 = vmatmul.f32.gmra.mxu0 %v1783
    %v1785 = vpop.f32.mrf.mxu0
    %v1786 = vadd.f32 %v1756, %v1785
    %v1787 = vand.u32 %v1660, 4294901760
    %v1788 = vsub.f32 %v1660, %v1787
    %v1789 = vand.u32 %v1788, 4294901760
    %1790 = vmatmul.f32.gmra.mxu0 %v1789
    %v1791 = vpop.f32.mrf.mxu0
    %v1792 = vadd.f32 %v1761, %v1791
    %1793 = vdwg.mxu0
    %1794 = vmatpush.msra.mxu0 0.0
    %1795 = vmatpush.msra.mxu0 0.0
    %1796 = vmatpush.msra.mxu0 0.0
    %1797 = vmatpush.msra.mxu0 0.0
    %1798 = vmatpush.msra.mxu0 0.0
    %1799 = vmatpush.msra.mxu0 0.0
    %1800 = vmatpush.msra.mxu0 0.0
    %1801 = vmatpush.msra.mxu0 0.0
    %1802 = vmatpush.msra.mxu0 0.0
    %1803 = vmatpush.msra.mxu0 0.0
    %1804 = vmatpush.msra.mxu0 0.0
    %1805 = vmatpush.msra.mxu0 0.0
    %1806 = vmatpush.msra.mxu0 0.0
    %1807 = vmatpush.msra.mxu0 0.0
    %v1808 = vand.u32 %v82, 4294901760
    %v1809 = vsub.f32 %v82, %v1808
    %v1810 = vand.u32 %v1809, 4294901760
    %1811 = vmatpush.msra.mxu0 %v1810
    %v1812 = vand.u32 %v81, 4294901760
    %v1813 = vsub.f32 %v81, %v1812
    %v1814 = vand.u32 %v1813, 4294901760
    %1815 = vmatpush.msra.mxu0 %v1814
    %v1816 = vand.u32 %v1657, 4294901760
    %1817 = vmatmul.f32.gmra.mxu0 %v1816
    %v1818 = vpop.f32.mrf.mxu0
    %v1819 = vadd.f32 %v1786, %v1818
    %v1820 = vand.u32 %v1660, 4294901760
    %1821 = vmatmul.f32.gmra.mxu0 %v1820
    %v1822 = vpop.f32.mrf.mxu0
    %v1823 = vadd.f32 %v1792, %v1822
    %1824 = vdwg.mxu0
    %1825 = vmatpush.msra.mxu0 0.0
    %1826 = vmatpush.msra.mxu0 0.0
    %1827 = vmatpush.msra.mxu0 0.0
    %1828 = vmatpush.msra.mxu0 0.0
    %1829 = vmatpush.msra.mxu0 0.0
    %1830 = vmatpush.msra.mxu0 0.0
    %1831 = vmatpush.msra.mxu0 0.0
    %1832 = vmatpush.msra.mxu0 0.0
    %1833 = vmatpush.msra.mxu0 0.0
    %1834 = vmatpush.msra.mxu0 0.0
    %1835 = vmatpush.msra.mxu0 0.0
    %1836 = vmatpush.msra.mxu0 0.0
    %1837 = vmatpush.msra.mxu0 0.0
    %1838 = vmatpush.msra.mxu0 0.0
    %v1839 = vand.u32 %v82, 4294901760
    %1840 = vmatpush.msra.mxu0 %v1839
    %v1841 = vand.u32 %v81, 4294901760
    %1842 = vmatpush.msra.mxu0 %v1841
    %v1843 = vand.u32 %v1657, 4294901760
    %1844 = vmatmul.f32.gmra.mxu0 %v1843
    %v1845 = vpop.f32.mrf.mxu0
    %v1846 = vadd.f32 %v1819, %v1845
    %v1847 = vand.u32 %v1660, 4294901760
    %1848 = vmatmul.f32.gmra.mxu0 %v1847
    %v1849 = vpop.f32.mrf.mxu0
    %v1850 = vadd.f32 %v1823, %v1849
    %1851 = vdwg.mxu0
    %1852 = vmatpush.msra.mxu0 0.0
    %1853 = vmatpush.msra.mxu0 0.0
    %1854 = vmatpush.msra.mxu0 0.0
    %1855 = vmatpush.msra.mxu0 0.0
    %1856 = vmatpush.msra.mxu0 0.0
    %1857 = vmatpush.msra.mxu0 0.0
    %1858 = vmatpush.msra.mxu0 0.0
    %1859 = vmatpush.msra.mxu0 0.0
    %1860 = vmatpush.msra.mxu0 0.0
    %1861 = vmatpush.msra.mxu0 0.0
    %1862 = vmatpush.msra.mxu0 0.0
    %1863 = vmatpush.msra.mxu0 0.0
    %1864 = vmatpush.msra.mxu0 0.0
    %1865 = vmatpush.msra.mxu0 0.0
    %v1866 = vand.u32 %v1850, 4294901760
    %1867 = vmatpush.msra.mxu0 %v1866
    %v1868 = vand.u32 %v1846, 4294901760
    %1869 = vmatpush.msra.mxu0 %v1868
    %v1870 = vand.u32 %v287, 4294901760
    %v1871 = vsub.f32 %v287, %v1870
    %v1872 = vand.u32 %v1871, 4294901760
    %v1873 = vsub.f32 %v1871, %v1872
    %v1874 = vand.u32 %v1873, 4294901760
    %1875 = vmatmul.f32.gmra.mxu0 %v1874
    %v1876 = vpop.f32.mrf.mxu0
    %v1877 = vadd.f32 0.0, %v1876
    %v1878 = vand.u32 %v290, 4294901760
    %v1879 = vsub.f32 %v290, %v1878
    %v1880 = vand.u32 %v1879, 4294901760
    %v1881 = vsub.f32 %v1879, %v1880
    %v1882 = vand.u32 %v1881, 4294901760
    %1883 = vmatmul.f32.gmra.mxu0 %v1882
    %v1884 = vpop.f32.mrf.mxu0
    %v1885 = vadd.f32 0.0, %v1884
    %1886 = vdwg.mxu0
    %1887 = vmatpush.msra.mxu0 0.0
    %1888 = vmatpush.msra.mxu0 0.0
    %1889 = vmatpush.msra.mxu0 0.0
    %1890 = vmatpush.msra.mxu0 0.0
    %1891 = vmatpush.msra.mxu0 0.0
    %1892 = vmatpush.msra.mxu0 0.0
    %1893 = vmatpush.msra.mxu0 0.0
    %1894 = vmatpush.msra.mxu0 0.0
    %1895 = vmatpush.msra.mxu0 0.0
    %1896 = vmatpush.msra.mxu0 0.0
    %1897 = vmatpush.msra.mxu0 0.0
    %1898 = vmatpush.msra.mxu0 0.0
    %1899 = vmatpush.msra.mxu0 0.0
    %1900 = vmatpush.msra.mxu0 0.0
    %v1901 = vand.u32 %v1850, 4294901760
    %v1902 = vsub.f32 %v1850, %v1901
    %v1903 = vand.u32 %v1902, 4294901760
    %v1904 = vsub.f32 %v1902, %v1903
    %v1905 = vand.u32 %v1904, 4294901760
    %1906 = vmatpush.msra.mxu0 %v1905
    %v1907 = vand.u32 %v1846, 4294901760
    %v1908 = vsub.f32 %v1846, %v1907
    %v1909 = vand.u32 %v1908, 4294901760
    %v1910 = vsub.f32 %v1908, %v1909
    %v1911 = vand.u32 %v1910, 4294901760
    %1912 = vmatpush.msra.mxu0 %v1911
    %v1913 = vand.u32 %v287, 4294901760
    %1914 = vmatmul.f32.gmra.mxu0 %v1913
    %v1915 = vpop.f32.mrf.mxu0
    %v1916 = vadd.f32 %v1877, %v1915
    %v1917 = vand.u32 %v290, 4294901760
    %1918 = vmatmul.f32.gmra.mxu0 %v1917
    %v1919 = vpop.f32.mrf.mxu0
    %v1920 = vadd.f32 %v1885, %v1919
    %1921 = vdwg.mxu0
    %1922 = vmatpush.msra.mxu0 0.0
    %1923 = vmatpush.msra.mxu0 0.0
    %1924 = vmatpush.msra.mxu0 0.0
    %1925 = vmatpush.msra.mxu0 0.0
    %1926 = vmatpush.msra.mxu0 0.0
    %1927 = vmatpush.msra.mxu0 0.0
    %1928 = vmatpush.msra.mxu0 0.0
    %1929 = vmatpush.msra.mxu0 0.0
    %1930 = vmatpush.msra.mxu0 0.0
    %1931 = vmatpush.msra.mxu0 0.0
    %1932 = vmatpush.msra.mxu0 0.0
    %1933 = vmatpush.msra.mxu0 0.0
    %1934 = vmatpush.msra.mxu0 0.0
    %1935 = vmatpush.msra.mxu0 0.0
    %v1936 = vand.u32 %v1850, 4294901760
    %v1937 = vsub.f32 %v1850, %v1936
    %1938 = vmatpush.msra.mxu0 %v1937
    %v1939 = vand.u32 %v1846, 4294901760
    %v1940 = vsub.f32 %v1846, %v1939
    %1941 = vmatpush.msra.mxu0 %v1940
    %v1942 = vand.u32 %v287, 4294901760
    %v1943 = vsub.f32 %v287, %v1942
    %1944 = vmatmul.f32.gmra.mxu0 %v1943
    %v1945 = vpop.f32.mrf.mxu0
    %v1946 = vadd.f32 %v1916, %v1945
    %v1947 = vand.u32 %v290, 4294901760
    %v1948 = vsub.f32 %v290, %v1947
    %1949 = vmatmul.f32.gmra.mxu0 %v1948
    %v1950 = vpop.f32.mrf.mxu0
    %v1951 = vadd.f32 %v1920, %v1950
    %1952 = vdwg.mxu0
    %1953 = vmatpush.msra.mxu0 0.0
    %1954 = vmatpush.msra.mxu0 0.0
    %1955 = vmatpush.msra.mxu0 0.0
    %1956 = vmatpush.msra.mxu0 0.0
    %1957 = vmatpush.msra.mxu0 0.0
    %1958 = vmatpush.msra.mxu0 0.0
    %1959 = vmatpush.msra.mxu0 0.0
    %1960 = vmatpush.msra.mxu0 0.0
    %1961 = vmatpush.msra.mxu0 0.0
    %1962 = vmatpush.msra.mxu0 0.0
    %1963 = vmatpush.msra.mxu0 0.0
    %1964 = vmatpush.msra.mxu0 0.0
    %1965 = vmatpush.msra.mxu0 0.0
    %1966 = vmatpush.msra.mxu0 0.0
    %v1967 = vand.u32 %v1850, 4294901760
    %1968 = vmatpush.msra.mxu0 %v1967
    %v1969 = vand.u32 %v1846, 4294901760
    %1970 = vmatpush.msra.mxu0 %v1969
    %v1971 = vand.u32 %v287, 4294901760
    %v1972 = vsub.f32 %v287, %v1971
    %v1973 = vand.u32 %v1972, 4294901760
    %1974 = vmatmul.f32.gmra.mxu0 %v1973
    %v1975 = vpop.f32.mrf.mxu0
    %v1976 = vadd.f32 %v1946, %v1975
    %v1977 = vand.u32 %v290, 4294901760
    %v1978 = vsub.f32 %v290, %v1977
    %v1979 = vand.u32 %v1978, 4294901760
    %1980 = vmatmul.f32.gmra.mxu0 %v1979
    %v1981 = vpop.f32.mrf.mxu0
    %v1982 = vadd.f32 %v1951, %v1981
    %1983 = vdwg.mxu0
    %1984 = vmatpush.msra.mxu0 0.0
    %1985 = vmatpush.msra.mxu0 0.0
    %1986 = vmatpush.msra.mxu0 0.0
    %1987 = vmatpush.msra.mxu0 0.0
    %1988 = vmatpush.msra.mxu0 0.0
    %1989 = vmatpush.msra.mxu0 0.0
    %1990 = vmatpush.msra.mxu0 0.0
    %1991 = vmatpush.msra.mxu0 0.0
    %1992 = vmatpush.msra.mxu0 0.0
    %1993 = vmatpush.msra.mxu0 0.0
    %1994 = vmatpush.msra.mxu0 0.0
    %1995 = vmatpush.msra.mxu0 0.0
    %1996 = vmatpush.msra.mxu0 0.0
    %1997 = vmatpush.msra.mxu0 0.0
    %v1998 = vand.u32 %v1850, 4294901760
    %v1999 = vsub.f32 %v1850, %v1998
    %v2000 = vand.u32 %v1999, 4294901760
    %2001 = vmatpush.msra.mxu0 %v2000
    %v2002 = vand.u32 %v1846, 4294901760
    %v2003 = vsub.f32 %v1846, %v2002
    %v2004 = vand.u32 %v2003, 4294901760
    %2005 = vmatpush.msra.mxu0 %v2004
    %v2006 = vand.u32 %v287, 4294901760
    %2007 = vmatmul.f32.gmra.mxu0 %v2006
    %v2008 = vpop.f32.mrf.mxu0
    %v2009 = vadd.f32 %v1976, %v2008
    %v2010 = vand.u32 %v290, 4294901760
    %2011 = vmatmul.f32.gmra.mxu0 %v2010
    %v2012 = vpop.f32.mrf.mxu0
    %v2013 = vadd.f32 %v1982, %v2012
    %2014 = vdwg.mxu0
    %2015 = vmatpush.msra.mxu0 0.0
    %2016 = vmatpush.msra.mxu0 0.0
    %2017 = vmatpush.msra.mxu0 0.0
    %2018 = vmatpush.msra.mxu0 0.0
    %2019 = vmatpush.msra.mxu0 0.0
    %2020 = vmatpush.msra.mxu0 0.0
    %2021 = vmatpush.msra.mxu0 0.0
    %2022 = vmatpush.msra.mxu0 0.0
    %2023 = vmatpush.msra.mxu0 0.0
    %2024 = vmatpush.msra.mxu0 0.0
    %2025 = vmatpush.msra.mxu0 0.0
    %2026 = vmatpush.msra.mxu0 0.0
    %2027 = vmatpush.msra.mxu0 0.0
    %2028 = vmatpush.msra.mxu0 0.0
    %v2029 = vand.u32 %v1850, 4294901760
    %2030 = vmatpush.msra.mxu0 %v2029
    %v2031 = vand.u32 %v1846, 4294901760
    %2032 = vmatpush.msra.mxu0 %v2031
    %v2033 = vand.u32 %v287, 4294901760
    %2034 = vmatmul.f32.gmra.mxu0 %v2033
    %v2035 = vpop.f32.mrf.mxu0
    %v2036 = vadd.f32 %v2009, %v2035
    %v2037 = vand.u32 %v290, 4294901760
    %2038 = vmatmul.f32.gmra.mxu0 %v2037
    %v2039 = vpop.f32.mrf.mxu0
    %v2040 = vadd.f32 %v2013, %v2039
    %2041 = vdwg.mxu0
    %v2042 = vsub.f32 %v2036, %v872
    %v2043 = vsub.f32 %v2040, %v873
    %v2044 = vmul.f32 %v872, 2.0
    %v2045 = vmul.f32 %v873, 2.0
    %v2046 = vadd.f32 %v2044, 0.0001
    %v2047 = vadd.f32 %v2045, 0.0001
    %v2048 = vmul.f32 %v2042, 2.0
    %v2049 = vmul.f32 %v2043, 2.0
    %v2050 = vadd.f32 %v2048, 0.0009
    %v2051 = vadd.f32 %v2049, 0.0009
    %v2052 = vmul.f32 %v2046, %v2050
    %v2053 = vmul.f32 %v2047, %v2051
    %v2054 = vadd.f32 %v868, %v870
    %v2055 = vadd.f32 %v869, %v871
    %v2056 = vadd.f32 %v2054, 0.0001
    %v2057 = vadd.f32 %v2055, 0.0001
    %v2058 = vadd.f32 %v1262, %v1652
    %v2059 = vadd.f32 %v1263, %v1653
    %v2060 = vadd.f32 %v2058, 0.0009
    %v2061 = vadd.f32 %v2059, 0.0009
    %v2062 = vmul.f32 %v2056, %v2060
    %v2063 = vmul.f32 %v2057, %v2061
    %v2064 = vadd.f32 %v2062, 1e-12
    %v2065 = vadd.f32 %v2063, 1e-12
    %v2066 = vrcp.pop %v2064
    %v2067 = vmul.f32 %v2064, %v2066
    %v2068 = vsub.f32 1.0, %v2067
    %v2069 = vmul.f32 %v2066, %v2068
    %v2070 = vadd.f32 %v2066, %v2069
    %vm2071 = vweird.f32 %v2064
    %vm2072 = vweird.f32 %v2066
    %vm2073 = vmor %vm2071, %vm2072
    %v2074 = vsel %vm2073, %v2066, %v2070
    %v2075 = vand.u32 2147483647, %v2064
    %vm2076 = vcmp.eq.f32.partialorder %v2075, 8.507059e+37
    %v2077 = vand.u32 %v2064, 2147483648
    %v2078 = vor.u32 1.1754944e-38, %v2077
    %v2079 = vsel %vm2076, %v2078, %v2074
    %v2080 = vrcp.pop %v2065
    %v2081 = vmul.f32 %v2065, %v2080
    %v2082 = vsub.f32 1.0, %v2081
    %v2083 = vmul.f32 %v2080, %v2082
    %v2084 = vadd.f32 %v2080, %v2083
    %vm2085 = vweird.f32 %v2065
    %vm2086 = vweird.f32 %v2080
    %vm2087 = vmor %vm2085, %vm2086
    %v2088 = vsel %vm2087, %v2080, %v2084
    %v2089 = vand.u32 2147483647, %v2065
    %vm2090 = vcmp.eq.f32.partialorder %v2089, 8.507059e+37
    %v2091 = vand.u32 %v2065, 2147483648
    %v2092 = vor.u32 1.1754944e-38, %v2091
    %v2093 = vsel %vm2090, %v2092, %v2088
    %v2094 = vmul.f32 %v2052, %v2079
    %v2095 = vmul.f32 %v2053, %v2093
    %v2096 = vsel %vm89, %v2094, 0.0
    %v2097 = vsel %vm89, %v2095, 0.0
    %v2098 = vadd.f32 %v2096, %v2097
    %2099 = vadd.xlane.f32.xlu0 %v2098
    %v2100 = vpop.xlane.xlu0 %2099
    %v2101 = vrot.slane %v2100, 4
    %v2102 = vadd.f32 %v2100, %v2101
    %v2103 = vrot.slane %v2102, 2
    %v2104 = vadd.f32 %v2102, %v2103
    %v2105 = vrot.slane %v2104, 1
    %v2106 = vadd.f32 %v2104, %v2105
    %s2107 = vtos %v2106
    %v2108 = vstv %s2107
    %v2109 = vadd.f32 %v2108, 0.0
    %s2110 = scalar_lea.vmem [#allocation2], 16
    %v2111 = vld [vmem:[%s2110] sm:$0xff]
    %v2112 = vld [vmem:[%s2110 + $0x8] sm:$0xff]
    %s2113 = scalar_lea.vmem [#allocation5], 16
    %v2114 = vld [vmem:[%s2113] sm:$0xff]
    %v2115 = vld [vmem:[%s2113 + $0x8] sm:$0xff]
    %v2117 = vsel %vm89, %v2111, 0
    %v2120 = vsel %vm89, %v2112, 0
    %2122 = vmatpush.msra.mxu0 0.0
    %2123 = vmatpush.msra.mxu0 0.0
    %2124 = vmatpush.msra.mxu0 0.0
    %2125 = vmatpush.msra.mxu0 0.0
    %2126 = vmatpush.msra.mxu0 0.0
    %2127 = vmatpush.msra.mxu0 0.0
    %2128 = vmatpush.msra.mxu0 0.0
    %2129 = vmatpush.msra.mxu0 0.0
    %2130 = vmatpush.msra.mxu0 0.0
    %2131 = vmatpush.msra.mxu0 0.0
    %2132 = vmatpush.msra.mxu0 0.0
    %2133 = vmatpush.msra.mxu0 0.0
    %2134 = vmatpush.msra.mxu0 0.0
    %2135 = vmatpush.msra.mxu0 0.0
    %v2136 = vand.u32 %v82, 4294901760
    %2137 = vmatpush.msra.mxu0 %v2136
    %v2138 = vand.u32 %v81, 4294901760
    %2139 = vmatpush.msra.mxu0 %v2138
    %v2140 = vand.u32 %v2117, 4294901760
    %v2141 = vsub.f32 %v2117, %v2140
    %v2142 = vand.u32 %v2141, 4294901760
    %v2143 = vsub.f32 %v2141, %v2142
    %v2144 = vand.u32 %v2143, 4294901760
    %2145 = vmatmul.f32.gmra.mxu0 %v2144
    %v2146 = vpop.f32.mrf.mxu0
    %v2147 = vadd.f32 0.0, %v2146
    %v2148 = vand.u32 %v2120, 4294901760
    %v2149 = vsub.f32 %v2120, %v2148
    %v2150 = vand.u32 %v2149, 4294901760
    %v2151 = vsub.f32 %v2149, %v2150
    %v2152 = vand.u32 %v2151, 4294901760
    %2153 = vmatmul.f32.gmra.mxu0 %v2152
    %v2154 = vpop.f32.mrf.mxu0
    %v2155 = vadd.f32 0.0, %v2154
    %2156 = vdwg.mxu0
    %2157 = vmatpush.msra.mxu0 0.0
    %2158 = vmatpush.msra.mxu0 0.0
    %2159 = vmatpush.msra.mxu0 0.0
    %2160 = vmatpush.msra.mxu0 0.0
    %2161 = vmatpush.msra.mxu0 0.0
    %2162 = vmatpush.msra.mxu0 0.0
    %2163 = vmatpush.msra.mxu0 0.0
    %2164 = vmatpush.msra.mxu0 0.0
    %2165 = vmatpush.msra.mxu0 0.0
    %2166 = vmatpush.msra.mxu0 0.0
    %2167 = vmatpush.msra.mxu0 0.0
    %2168 = vmatpush.msra.mxu0 0.0
    %2169 = vmatpush.msra.mxu0 0.0
    %2170 = vmatpush.msra.mxu0 0.0
    %v2171 = vand.u32 %v82, 4294901760
    %v2172 = vsub.f32 %v82, %v2171
    %v2173 = vand.u32 %v2172, 4294901760
    %v2174 = vsub.f32 %v2172, %v2173
    %v2175 = vand.u32 %v2174, 4294901760
    %2176 = vmatpush.msra.mxu0 %v2175
    %v2177 = vand.u32 %v81, 4294901760
    %v2178 = vsub.f32 %v81, %v2177
    %v2179 = vand.u32 %v2178, 4294901760
    %v2180 = vsub.f32 %v2178, %v2179
    %v2181 = vand.u32 %v2180, 4294901760
    %2182 = vmatpush.msra.mxu0 %v2181
    %v2183 = vand.u32 %v2117, 4294901760
    %2184 = vmatmul.f32.gmra.mxu0 %v2183
    %v2185 = vpop.f32.mrf.mxu0
    %v2186 = vadd.f32 %v2147, %v2185
    %v2187 = vand.u32 %v2120, 4294901760
    %2188 = vmatmul.f32.gmra.mxu0 %v2187
    %v2189 = vpop.f32.mrf.mxu0
    %v2190 = vadd.f32 %v2155, %v2189
    %2191 = vdwg.mxu0
    %2192 = vmatpush.msra.mxu0 0.0
    %2193 = vmatpush.msra.mxu0 0.0
    %2194 = vmatpush.msra.mxu0 0.0
    %2195 = vmatpush.msra.mxu0 0.0
    %2196 = vmatpush.msra.mxu0 0.0
    %2197 = vmatpush.msra.mxu0 0.0
    %2198 = vmatpush.msra.mxu0 0.0
    %2199 = vmatpush.msra.mxu0 0.0
    %2200 = vmatpush.msra.mxu0 0.0
    %2201 = vmatpush.msra.mxu0 0.0
    %2202 = vmatpush.msra.mxu0 0.0
    %2203 = vmatpush.msra.mxu0 0.0
    %2204 = vmatpush.msra.mxu0 0.0
    %2205 = vmatpush.msra.mxu0 0.0
    %v2206 = vand.u32 %v82, 4294901760
    %v2207 = vsub.f32 %v82, %v2206
    %2208 = vmatpush.msra.mxu0 %v2207
    %v2209 = vand.u32 %v81, 4294901760
    %v2210 = vsub.f32 %v81, %v2209
    %2211 = vmatpush.msra.mxu0 %v2210
    %v2212 = vand.u32 %v2117, 4294901760
    %v2213 = vsub.f32 %v2117, %v2212
    %2214 = vmatmul.f32.gmra.mxu0 %v2213
    %v2215 = vpop.f32.mrf.mxu0
    %v2216 = vadd.f32 %v2186, %v2215
    %v2217 = vand.u32 %v2120, 4294901760
    %v2218 = vsub.f32 %v2120, %v2217
    %2219 = vmatmul.f32.gmra.mxu0 %v2218
    %v2220 = vpop.f32.mrf.mxu0
    %v2221 = vadd.f32 %v2190, %v2220
    %2222 = vdwg.mxu0
    %2223 = vmatpush.msra.mxu0 0.0
    %2224 = vmatpush.msra.mxu0 0.0
    %2225 = vmatpush.msra.mxu0 0.0
    %2226 = vmatpush.msra.mxu0 0.0
    %2227 = vmatpush.msra.mxu0 0.0
    %2228 = vmatpush.msra.mxu0 0.0
    %2229 = vmatpush.msra.mxu0 0.0
    %2230 = vmatpush.msra.mxu0 0.0
    %2231 = vmatpush.msra.mxu0 0.0
    %2232 = vmatpush.msra.mxu0 0.0
    %2233 = vmatpush.msra.mxu0 0.0
    %2234 = vmatpush.msra.mxu0 0.0
    %2235 = vmatpush.msra.mxu0 0.0
    %2236 = vmatpush.msra.mxu0 0.0
    %v2237 = vand.u32 %v82, 4294901760
    %2238 = vmatpush.msra.mxu0 %v2237
    %v2239 = vand.u32 %v81, 4294901760
    %2240 = vmatpush.msra.mxu0 %v2239
    %v2241 = vand.u32 %v2117, 4294901760
    %v2242 = vsub.f32 %v2117, %v2241
    %v2243 = vand.u32 %v2242, 4294901760
    %2244 = vmatmul.f32.gmra.mxu0 %v2243
    %v2245 = vpop.f32.mrf.mxu0
    %v2246 = vadd.f32 %v2216, %v2245
    %v2247 = vand.u32 %v2120, 4294901760
    %v2248 = vsub.f32 %v2120, %v2247
    %v2249 = vand.u32 %v2248, 4294901760
    %2250 = vmatmul.f32.gmra.mxu0 %v2249
    %v2251 = vpop.f32.mrf.mxu0
    %v2252 = vadd.f32 %v2221, %v2251
    %2253 = vdwg.mxu0
    %2254 = vmatpush.msra.mxu0 0.0
    %2255 = vmatpush.msra.mxu0 0.0
    %2256 = vmatpush.msra.mxu0 0.0
    %2257 = vmatpush.msra.mxu0 0.0
    %2258 = vmatpush.msra.mxu0 0.0
    %2259 = vmatpush.msra.mxu0 0.0
    %2260 = vmatpush.msra.mxu0 0.0
    %2261 = vmatpush.msra.mxu0 0.0
    %2262 = vmatpush.msra.mxu0 0.0
    %2263 = vmatpush.msra.mxu0 0.0
    %2264 = vmatpush.msra.mxu0 0.0
    %2265 = vmatpush.msra.mxu0 0.0
    %2266 = vmatpush.msra.mxu0 0.0
    %2267 = vmatpush.msra.mxu0 0.0
    %v2268 = vand.u32 %v82, 4294901760
    %v2269 = vsub.f32 %v82, %v2268
    %v2270 = vand.u32 %v2269, 4294901760
    %2271 = vmatpush.msra.mxu0 %v2270
    %v2272 = vand.u32 %v81, 4294901760
    %v2273 = vsub.f32 %v81, %v2272
    %v2274 = vand.u32 %v2273, 4294901760
    %2275 = vmatpush.msra.mxu0 %v2274
    %v2276 = vand.u32 %v2117, 4294901760
    %2277 = vmatmul.f32.gmra.mxu0 %v2276
    %v2278 = vpop.f32.mrf.mxu0
    %v2279 = vadd.f32 %v2246, %v2278
    %v2280 = vand.u32 %v2120, 4294901760
    %2281 = vmatmul.f32.gmra.mxu0 %v2280
    %v2282 = vpop.f32.mrf.mxu0
    %v2283 = vadd.f32 %v2252, %v2282
    %2284 = vdwg.mxu0
    %2285 = vmatpush.msra.mxu0 0.0
    %2286 = vmatpush.msra.mxu0 0.0
    %2287 = vmatpush.msra.mxu0 0.0
    %2288 = vmatpush.msra.mxu0 0.0
    %2289 = vmatpush.msra.mxu0 0.0
    %2290 = vmatpush.msra.mxu0 0.0
    %2291 = vmatpush.msra.mxu0 0.0
    %2292 = vmatpush.msra.mxu0 0.0
    %2293 = vmatpush.msra.mxu0 0.0
    %2294 = vmatpush.msra.mxu0 0.0
    %2295 = vmatpush.msra.mxu0 0.0
    %2296 = vmatpush.msra.mxu0 0.0
    %2297 = vmatpush.msra.mxu0 0.0
    %2298 = vmatpush.msra.mxu0 0.0
    %v2299 = vand.u32 %v82, 4294901760
    %2300 = vmatpush.msra.mxu0 %v2299
    %v2301 = vand.u32 %v81, 4294901760
    %2302 = vmatpush.msra.mxu0 %v2301
    %v2303 = vand.u32 %v2117, 4294901760
    %2304 = vmatmul.f32.gmra.mxu0 %v2303
    %v2305 = vpop.f32.mrf.mxu0
    %v2306 = vadd.f32 %v2279, %v2305
    %v2307 = vand.u32 %v2120, 4294901760
    %2308 = vmatmul.f32.gmra.mxu0 %v2307
    %v2309 = vpop.f32.mrf.mxu0
    %v2310 = vadd.f32 %v2283, %v2309
    %2311 = vdwg.mxu0
    %2312 = vmatpush.msra.mxu0 0.0
    %2313 = vmatpush.msra.mxu0 0.0
    %2314 = vmatpush.msra.mxu0 0.0
    %2315 = vmatpush.msra.mxu0 0.0
    %2316 = vmatpush.msra.mxu0 0.0
    %2317 = vmatpush.msra.mxu0 0.0
    %2318 = vmatpush.msra.mxu0 0.0
    %2319 = vmatpush.msra.mxu0 0.0
    %2320 = vmatpush.msra.mxu0 0.0
    %2321 = vmatpush.msra.mxu0 0.0
    %2322 = vmatpush.msra.mxu0 0.0
    %2323 = vmatpush.msra.mxu0 0.0
    %2324 = vmatpush.msra.mxu0 0.0
    %2325 = vmatpush.msra.mxu0 0.0
    %v2326 = vand.u32 %v2310, 4294901760
    %2327 = vmatpush.msra.mxu0 %v2326
    %v2328 = vand.u32 %v2306, 4294901760
    %2329 = vmatpush.msra.mxu0 %v2328
    %v2330 = vand.u32 %v287, 4294901760
    %v2331 = vsub.f32 %v287, %v2330
    %v2332 = vand.u32 %v2331, 4294901760
    %v2333 = vsub.f32 %v2331, %v2332
    %v2334 = vand.u32 %v2333, 4294901760
    %2335 = vmatmul.f32.gmra.mxu0 %v2334
    %v2336 = vpop.f32.mrf.mxu0
    %v2337 = vadd.f32 0.0, %v2336
    %v2338 = vand.u32 %v290, 4294901760
    %v2339 = vsub.f32 %v290, %v2338
    %v2340 = vand.u32 %v2339, 4294901760
    %v2341 = vsub.f32 %v2339, %v2340
    %v2342 = vand.u32 %v2341, 4294901760
    %2343 = vmatmul.f32.gmra.mxu0 %v2342
    %v2344 = vpop.f32.mrf.mxu0
    %v2345 = vadd.f32 0.0, %v2344
    %2346 = vdwg.mxu0
    %2347 = vmatpush.msra.mxu0 0.0
    %2348 = vmatpush.msra.mxu0 0.0
    %2349 = vmatpush.msra.mxu0 0.0
    %2350 = vmatpush.msra.mxu0 0.0
    %2351 = vmatpush.msra.mxu0 0.0
    %2352 = vmatpush.msra.mxu0 0.0
    %2353 = vmatpush.msra.mxu0 0.0
    %2354 = vmatpush.msra.mxu0 0.0
    %2355 = vmatpush.msra.mxu0 0.0
    %2356 = vmatpush.msra.mxu0 0.0
    %2357 = vmatpush.msra.mxu0 0.0
    %2358 = vmatpush.msra.mxu0 0.0
    %2359 = vmatpush.msra.mxu0 0.0
    %2360 = vmatpush.msra.mxu0 0.0
    %v2361 = vand.u32 %v2310, 4294901760
    %v2362 = vsub.f32 %v2310, %v2361
    %v2363 = vand.u32 %v2362, 4294901760
    %v2364 = vsub.f32 %v2362, %v2363
    %v2365 = vand.u32 %v2364, 4294901760
    %2366 = vmatpush.msra.mxu0 %v2365
    %v2367 = vand.u32 %v2306, 4294901760
    %v2368 = vsub.f32 %v2306, %v2367
    %v2369 = vand.u32 %v2368, 4294901760
    %v2370 = vsub.f32 %v2368, %v2369
    %v2371 = vand.u32 %v2370, 4294901760
    %2372 = vmatpush.msra.mxu0 %v2371
    %v2373 = vand.u32 %v287, 4294901760
    %2374 = vmatmul.f32.gmra.mxu0 %v2373
    %v2375 = vpop.f32.mrf.mxu0
    %v2376 = vadd.f32 %v2337, %v2375
    %v2377 = vand.u32 %v290, 4294901760
    %2378 = vmatmul.f32.gmra.mxu0 %v2377
    %v2379 = vpop.f32.mrf.mxu0
    %v2380 = vadd.f32 %v2345, %v2379
    %2381 = vdwg.mxu0
    %2382 = vmatpush.msra.mxu0 0.0
    %2383 = vmatpush.msra.mxu0 0.0
    %2384 = vmatpush.msra.mxu0 0.0
    %2385 = vmatpush.msra.mxu0 0.0
    %2386 = vmatpush.msra.mxu0 0.0
    %2387 = vmatpush.msra.mxu0 0.0
    %2388 = vmatpush.msra.mxu0 0.0
    %2389 = vmatpush.msra.mxu0 0.0
    %2390 = vmatpush.msra.mxu0 0.0
    %2391 = vmatpush.msra.mxu0 0.0
    %2392 = vmatpush.msra.mxu0 0.0
    %2393 = vmatpush.msra.mxu0 0.0
    %2394 = vmatpush.msra.mxu0 0.0
    %2395 = vmatpush.msra.mxu0 0.0
    %v2396 = vand.u32 %v2310, 4294901760
    %v2397 = vsub.f32 %v2310, %v2396
    %2398 = vmatpush.msra.mxu0 %v2397
    %v2399 = vand.u32 %v2306, 4294901760
    %v2400 = vsub.f32 %v2306, %v2399
    %2401 = vmatpush.msra.mxu0 %v2400
    %v2402 = vand.u32 %v287, 4294901760
    %v2403 = vsub.f32 %v287, %v2402
    %2404 = vmatmul.f32.gmra.mxu0 %v2403
    %v2405 = vpop.f32.mrf.mxu0
    %v2406 = vadd.f32 %v2376, %v2405
    %v2407 = vand.u32 %v290, 4294901760
    %v2408 = vsub.f32 %v290, %v2407
    %2409 = vmatmul.f32.gmra.mxu0 %v2408
    %v2410 = vpop.f32.mrf.mxu0
    %v2411 = vadd.f32 %v2380, %v2410
    %2412 = vdwg.mxu0
    %2413 = vmatpush.msra.mxu0 0.0
    %2414 = vmatpush.msra.mxu0 0.0
    %2415 = vmatpush.msra.mxu0 0.0
    %2416 = vmatpush.msra.mxu0 0.0
    %2417 = vmatpush.msra.mxu0 0.0
    %2418 = vmatpush.msra.mxu0 0.0
    %2419 = vmatpush.msra.mxu0 0.0
    %2420 = vmatpush.msra.mxu0 0.0
    %2421 = vmatpush.msra.mxu0 0.0
    %2422 = vmatpush.msra.mxu0 0.0
    %2423 = vmatpush.msra.mxu0 0.0
    %2424 = vmatpush.msra.mxu0 0.0
    %2425 = vmatpush.msra.mxu0 0.0
    %2426 = vmatpush.msra.mxu0 0.0
    %v2427 = vand.u32 %v2310, 4294901760
    %2428 = vmatpush.msra.mxu0 %v2427
    %v2429 = vand.u32 %v2306, 4294901760
    %2430 = vmatpush.msra.mxu0 %v2429
    %v2431 = vand.u32 %v287, 4294901760
    %v2432 = vsub.f32 %v287, %v2431
    %v2433 = vand.u32 %v2432, 4294901760
    %2434 = vmatmul.f32.gmra.mxu0 %v2433
    %v2435 = vpop.f32.mrf.mxu0
    %v2436 = vadd.f32 %v2406, %v2435
    %v2437 = vand.u32 %v290, 4294901760
    %v2438 = vsub.f32 %v290, %v2437
    %v2439 = vand.u32 %v2438, 4294901760
    %2440 = vmatmul.f32.gmra.mxu0 %v2439
    %v2441 = vpop.f32.mrf.mxu0
    %v2442 = vadd.f32 %v2411, %v2441
    %2443 = vdwg.mxu0
    %2444 = vmatpush.msra.mxu0 0.0
    %2445 = vmatpush.msra.mxu0 0.0
    %2446 = vmatpush.msra.mxu0 0.0
    %2447 = vmatpush.msra.mxu0 0.0
    %2448 = vmatpush.msra.mxu0 0.0
    %2449 = vmatpush.msra.mxu0 0.0
    %2450 = vmatpush.msra.mxu0 0.0
    %2451 = vmatpush.msra.mxu0 0.0
    %2452 = vmatpush.msra.mxu0 0.0
    %2453 = vmatpush.msra.mxu0 0.0
    %2454 = vmatpush.msra.mxu0 0.0
    %2455 = vmatpush.msra.mxu0 0.0
    %2456 = vmatpush.msra.mxu0 0.0
    %2457 = vmatpush.msra.mxu0 0.0
    %v2458 = vand.u32 %v2310, 4294901760
    %v2459 = vsub.f32 %v2310, %v2458
    %v2460 = vand.u32 %v2459, 4294901760
    %2461 = vmatpush.msra.mxu0 %v2460
    %v2462 = vand.u32 %v2306, 4294901760
    %v2463 = vsub.f32 %v2306, %v2462
    %v2464 = vand.u32 %v2463, 4294901760
    %2465 = vmatpush.msra.mxu0 %v2464
    %v2466 = vand.u32 %v287, 4294901760
    %2467 = vmatmul.f32.gmra.mxu0 %v2466
    %v2468 = vpop.f32.mrf.mxu0
    %v2469 = vadd.f32 %v2436, %v2468
    %v2470 = vand.u32 %v290, 4294901760
    %2471 = vmatmul.f32.gmra.mxu0 %v2470
    %v2472 = vpop.f32.mrf.mxu0
    %v2473 = vadd.f32 %v2442, %v2472
    %2474 = vdwg.mxu0
    %2475 = vmatpush.msra.mxu0 0.0
    %2476 = vmatpush.msra.mxu0 0.0
    %2477 = vmatpush.msra.mxu0 0.0
    %2478 = vmatpush.msra.mxu0 0.0
    %2479 = vmatpush.msra.mxu0 0.0
    %2480 = vmatpush.msra.mxu0 0.0
    %2481 = vmatpush.msra.mxu0 0.0
    %2482 = vmatpush.msra.mxu0 0.0
    %2483 = vmatpush.msra.mxu0 0.0
    %2484 = vmatpush.msra.mxu0 0.0
    %2485 = vmatpush.msra.mxu0 0.0
    %2486 = vmatpush.msra.mxu0 0.0
    %2487 = vmatpush.msra.mxu0 0.0
    %2488 = vmatpush.msra.mxu0 0.0
    %v2489 = vand.u32 %v2310, 4294901760
    %2490 = vmatpush.msra.mxu0 %v2489
    %v2491 = vand.u32 %v2306, 4294901760
    %2492 = vmatpush.msra.mxu0 %v2491
    %v2493 = vand.u32 %v287, 4294901760
    %2494 = vmatmul.f32.gmra.mxu0 %v2493
    %v2495 = vpop.f32.mrf.mxu0
    %v2496 = vadd.f32 %v2469, %v2495
    %v2497 = vand.u32 %v290, 4294901760
    %2498 = vmatmul.f32.gmra.mxu0 %v2497
    %v2499 = vpop.f32.mrf.mxu0
    %v2500 = vadd.f32 %v2473, %v2499
    %2501 = vdwg.mxu0
    %v2503 = vsel %vm89, %v2114, 0
    %v2506 = vsel %vm89, %v2115, 0
    %2508 = vmatpush.msra.mxu0 0.0
    %2509 = vmatpush.msra.mxu0 0.0
    %2510 = vmatpush.msra.mxu0 0.0
    %2511 = vmatpush.msra.mxu0 0.0
    %2512 = vmatpush.msra.mxu0 0.0
    %2513 = vmatpush.msra.mxu0 0.0
    %2514 = vmatpush.msra.mxu0 0.0
    %2515 = vmatpush.msra.mxu0 0.0
    %2516 = vmatpush.msra.mxu0 0.0
    %2517 = vmatpush.msra.mxu0 0.0
    %2518 = vmatpush.msra.mxu0 0.0
    %2519 = vmatpush.msra.mxu0 0.0
    %2520 = vmatpush.msra.mxu0 0.0
    %2521 = vmatpush.msra.mxu0 0.0
    %v2522 = vand.u32 %v82, 4294901760
    %2523 = vmatpush.msra.mxu0 %v2522
    %v2524 = vand.u32 %v81, 4294901760
    %2525 = vmatpush.msra.mxu0 %v2524
    %v2526 = vand.u32 %v2503, 4294901760
    %v2527 = vsub.f32 %v2503, %v2526
    %v2528 = vand.u32 %v2527, 4294901760
    %v2529 = vsub.f32 %v2527, %v2528
    %v2530 = vand.u32 %v2529, 4294901760
    %2531 = vmatmul.f32.gmra.mxu0 %v2530
    %v2532 = vpop.f32.mrf.mxu0
    %v2533 = vadd.f32 0.0, %v2532
    %v2534 = vand.u32 %v2506, 4294901760
    %v2535 = vsub.f32 %v2506, %v2534
    %v2536 = vand.u32 %v2535, 4294901760
    %v2537 = vsub.f32 %v2535, %v2536
    %v2538 = vand.u32 %v2537, 4294901760
    %2539 = vmatmul.f32.gmra.mxu0 %v2538
    %v2540 = vpop.f32.mrf.mxu0
    %v2541 = vadd.f32 0.0, %v2540
    %2542 = vdwg.mxu0
    %2543 = vmatpush.msra.mxu0 0.0
    %2544 = vmatpush.msra.mxu0 0.0
    %2545 = vmatpush.msra.mxu0 0.0
    %2546 = vmatpush.msra.mxu0 0.0
    %2547 = vmatpush.msra.mxu0 0.0
    %2548 = vmatpush.msra.mxu0 0.0
    %2549 = vmatpush.msra.mxu0 0.0
    %2550 = vmatpush.msra.mxu0 0.0
    %2551 = vmatpush.msra.mxu0 0.0
    %2552 = vmatpush.msra.mxu0 0.0
    %2553 = vmatpush.msra.mxu0 0.0
    %2554 = vmatpush.msra.mxu0 0.0
    %2555 = vmatpush.msra.mxu0 0.0
    %2556 = vmatpush.msra.mxu0 0.0
    %v2557 = vand.u32 %v82, 4294901760
    %v2558 = vsub.f32 %v82, %v2557
    %v2559 = vand.u32 %v2558, 4294901760
    %v2560 = vsub.f32 %v2558, %v2559
    %v2561 = vand.u32 %v2560, 4294901760
    %2562 = vmatpush.msra.mxu0 %v2561
    %v2563 = vand.u32 %v81, 4294901760
    %v2564 = vsub.f32 %v81, %v2563
    %v2565 = vand.u32 %v2564, 4294901760
    %v2566 = vsub.f32 %v2564, %v2565
    %v2567 = vand.u32 %v2566, 4294901760
    %2568 = vmatpush.msra.mxu0 %v2567
    %v2569 = vand.u32 %v2503, 4294901760
    %2570 = vmatmul.f32.gmra.mxu0 %v2569
    %v2571 = vpop.f32.mrf.mxu0
    %v2572 = vadd.f32 %v2533, %v2571
    %v2573 = vand.u32 %v2506, 4294901760
    %2574 = vmatmul.f32.gmra.mxu0 %v2573
    %v2575 = vpop.f32.mrf.mxu0
    %v2576 = vadd.f32 %v2541, %v2575
    %2577 = vdwg.mxu0
    %2578 = vmatpush.msra.mxu0 0.0
    %2579 = vmatpush.msra.mxu0 0.0
    %2580 = vmatpush.msra.mxu0 0.0
    %2581 = vmatpush.msra.mxu0 0.0
    %2582 = vmatpush.msra.mxu0 0.0
    %2583 = vmatpush.msra.mxu0 0.0
    %2584 = vmatpush.msra.mxu0 0.0
    %2585 = vmatpush.msra.mxu0 0.0
    %2586 = vmatpush.msra.mxu0 0.0
    %2587 = vmatpush.msra.mxu0 0.0
    %2588 = vmatpush.msra.mxu0 0.0
    %2589 = vmatpush.msra.mxu0 0.0
    %2590 = vmatpush.msra.mxu0 0.0
    %2591 = vmatpush.msra.mxu0 0.0
    %v2592 = vand.u32 %v82, 4294901760
    %v2593 = vsub.f32 %v82, %v2592
    %2594 = vmatpush.msra.mxu0 %v2593
    %v2595 = vand.u32 %v81, 4294901760
    %v2596 = vsub.f32 %v81, %v2595
    %2597 = vmatpush.msra.mxu0 %v2596
    %v2598 = vand.u32 %v2503, 4294901760
    %v2599 = vsub.f32 %v2503, %v2598
    %2600 = vmatmul.f32.gmra.mxu0 %v2599
    %v2601 = vpop.f32.mrf.mxu0
    %v2602 = vadd.f32 %v2572, %v2601
    %v2603 = vand.u32 %v2506, 4294901760
    %v2604 = vsub.f32 %v2506, %v2603
    %2605 = vmatmul.f32.gmra.mxu0 %v2604
    %v2606 = vpop.f32.mrf.mxu0
    %v2607 = vadd.f32 %v2576, %v2606
    %2608 = vdwg.mxu0
    %2609 = vmatpush.msra.mxu0 0.0
    %2610 = vmatpush.msra.mxu0 0.0
    %2611 = vmatpush.msra.mxu0 0.0
    %2612 = vmatpush.msra.mxu0 0.0
    %2613 = vmatpush.msra.mxu0 0.0
    %2614 = vmatpush.msra.mxu0 0.0
    %2615 = vmatpush.msra.mxu0 0.0
    %2616 = vmatpush.msra.mxu0 0.0
    %2617 = vmatpush.msra.mxu0 0.0
    %2618 = vmatpush.msra.mxu0 0.0
    %2619 = vmatpush.msra.mxu0 0.0
    %2620 = vmatpush.msra.mxu0 0.0
    %2621 = vmatpush.msra.mxu0 0.0
    %2622 = vmatpush.msra.mxu0 0.0
    %v2623 = vand.u32 %v82, 4294901760
    %2624 = vmatpush.msra.mxu0 %v2623
    %v2625 = vand.u32 %v81, 4294901760
    %2626 = vmatpush.msra.mxu0 %v2625
    %v2627 = vand.u32 %v2503, 4294901760
    %v2628 = vsub.f32 %v2503, %v2627
    %v2629 = vand.u32 %v2628, 4294901760
    %2630 = vmatmul.f32.gmra.mxu0 %v2629
    %v2631 = vpop.f32.mrf.mxu0
    %v2632 = vadd.f32 %v2602, %v2631
    %v2633 = vand.u32 %v2506, 4294901760
    %v2634 = vsub.f32 %v2506, %v2633
    %v2635 = vand.u32 %v2634, 4294901760
    %2636 = vmatmul.f32.gmra.mxu0 %v2635
    %v2637 = vpop.f32.mrf.mxu0
    %v2638 = vadd.f32 %v2607, %v2637
    %2639 = vdwg.mxu0
    %2640 = vmatpush.msra.mxu0 0.0
    %2641 = vmatpush.msra.mxu0 0.0
    %2642 = vmatpush.msra.mxu0 0.0
    %2643 = vmatpush.msra.mxu0 0.0
    %2644 = vmatpush.msra.mxu0 0.0
    %2645 = vmatpush.msra.mxu0 0.0
    %2646 = vmatpush.msra.mxu0 0.0
    %2647 = vmatpush.msra.mxu0 0.0
    %2648 = vmatpush.msra.mxu0 0.0
    %2649 = vmatpush.msra.mxu0 0.0
    %2650 = vmatpush.msra.mxu0 0.0
    %2651 = vmatpush.msra.mxu0 0.0
    %2652 = vmatpush.msra.mxu0 0.0
    %2653 = vmatpush.msra.mxu0 0.0
    %v2654 = vand.u32 %v82, 4294901760
    %v2655 = vsub.f32 %v82, %v2654
    %v2656 = vand.u32 %v2655, 4294901760
    %2657 = vmatpush.msra.mxu0 %v2656
    %v2658 = vand.u32 %v81, 4294901760
    %v2659 = vsub.f32 %v81, %v2658
    %v2660 = vand.u32 %v2659, 4294901760
    %2661 = vmatpush.msra.mxu0 %v2660
    %v2662 = vand.u32 %v2503, 4294901760
    %2663 = vmatmul.f32.gmra.mxu0 %v2662
    %v2664 = vpop.f32.mrf.mxu0
    %v2665 = vadd.f32 %v2632, %v2664
    %v2666 = vand.u32 %v2506, 4294901760
    %2667 = vmatmul.f32.gmra.mxu0 %v2666
    %v2668 = vpop.f32.mrf.mxu0
    %v2669 = vadd.f32 %v2638, %v2668
    %2670 = vdwg.mxu0
    %2671 = vmatpush.msra.mxu0 0.0
    %2672 = vmatpush.msra.mxu0 0.0
    %2673 = vmatpush.msra.mxu0 0.0
    %2674 = vmatpush.msra.mxu0 0.0
    %2675 = vmatpush.msra.mxu0 0.0
    %2676 = vmatpush.msra.mxu0 0.0
    %2677 = vmatpush.msra.mxu0 0.0
    %2678 = vmatpush.msra.mxu0 0.0
    %2679 = vmatpush.msra.mxu0 0.0
    %2680 = vmatpush.msra.mxu0 0.0
    %2681 = vmatpush.msra.mxu0 0.0
    %2682 = vmatpush.msra.mxu0 0.0
    %2683 = vmatpush.msra.mxu0 0.0
    %2684 = vmatpush.msra.mxu0 0.0
    %v2685 = vand.u32 %v82, 4294901760
    %2686 = vmatpush.msra.mxu0 %v2685
    %v2687 = vand.u32 %v81, 4294901760
    %2688 = vmatpush.msra.mxu0 %v2687
    %v2689 = vand.u32 %v2503, 4294901760
    %2690 = vmatmul.f32.gmra.mxu0 %v2689
    %v2691 = vpop.f32.mrf.mxu0
    %v2692 = vadd.f32 %v2665, %v2691
    %v2693 = vand.u32 %v2506, 4294901760
    %2694 = vmatmul.f32.gmra.mxu0 %v2693
    %v2695 = vpop.f32.mrf.mxu0
    %v2696 = vadd.f32 %v2669, %v2695
    %2697 = vdwg.mxu0
    %2698 = vmatpush.msra.mxu0 0.0
    %2699 = vmatpush.msra.mxu0 0.0
    %2700 = vmatpush.msra.mxu0 0.0
    %2701 = vmatpush.msra.mxu0 0.0
    %2702 = vmatpush.msra.mxu0 0.0
    %2703 = vmatpush.msra.mxu0 0.0
    %2704 = vmatpush.msra.mxu0 0.0
    %2705 = vmatpush.msra.mxu0 0.0
    %2706 = vmatpush.msra.mxu0 0.0
    %2707 = vmatpush.msra.mxu0 0.0
    %2708 = vmatpush.msra.mxu0 0.0
    %2709 = vmatpush.msra.mxu0 0.0
    %2710 = vmatpush.msra.mxu0 0.0
    %2711 = vmatpush.msra.mxu0 0.0
    %v2712 = vand.u32 %v2696, 4294901760
    %2713 = vmatpush.msra.mxu0 %v2712
    %v2714 = vand.u32 %v2692, 4294901760
    %2715 = vmatpush.msra.mxu0 %v2714
    %v2716 = vand.u32 %v287, 4294901760
    %v2717 = vsub.f32 %v287, %v2716
    %v2718 = vand.u32 %v2717, 4294901760
    %v2719 = vsub.f32 %v2717, %v2718
    %v2720 = vand.u32 %v2719, 4294901760
    %2721 = vmatmul.f32.gmra.mxu0 %v2720
    %v2722 = vpop.f32.mrf.mxu0
    %v2723 = vadd.f32 0.0, %v2722
    %v2724 = vand.u32 %v290, 4294901760
    %v2725 = vsub.f32 %v290, %v2724
    %v2726 = vand.u32 %v2725, 4294901760
    %v2727 = vsub.f32 %v2725, %v2726
    %v2728 = vand.u32 %v2727, 4294901760
    %2729 = vmatmul.f32.gmra.mxu0 %v2728
    %v2730 = vpop.f32.mrf.mxu0
    %v2731 = vadd.f32 0.0, %v2730
    %2732 = vdwg.mxu0
    %2733 = vmatpush.msra.mxu0 0.0
    %2734 = vmatpush.msra.mxu0 0.0
    %2735 = vmatpush.msra.mxu0 0.0
    %2736 = vmatpush.msra.mxu0 0.0
    %2737 = vmatpush.msra.mxu0 0.0
    %2738 = vmatpush.msra.mxu0 0.0
    %2739 = vmatpush.msra.mxu0 0.0
    %2740 = vmatpush.msra.mxu0 0.0
    %2741 = vmatpush.msra.mxu0 0.0
    %2742 = vmatpush.msra.mxu0 0.0
    %2743 = vmatpush.msra.mxu0 0.0
    %2744 = vmatpush.msra.mxu0 0.0
    %2745 = vmatpush.msra.mxu0 0.0
    %2746 = vmatpush.msra.mxu0 0.0
    %v2747 = vand.u32 %v2696, 4294901760
    %v2748 = vsub.f32 %v2696, %v2747
    %v2749 = vand.u32 %v2748, 4294901760
    %v2750 = vsub.f32 %v2748, %v2749
    %v2751 = vand.u32 %v2750, 4294901760
    %2752 = vmatpush.msra.mxu0 %v2751
    %v2753 = vand.u32 %v2692, 4294901760
    %v2754 = vsub.f32 %v2692, %v2753
    %v2755 = vand.u32 %v2754, 4294901760
    %v2756 = vsub.f32 %v2754, %v2755
    %v2757 = vand.u32 %v2756, 4294901760
    %2758 = vmatpush.msra.mxu0 %v2757
    %v2759 = vand.u32 %v287, 4294901760
    %2760 = vmatmul.f32.gmra.mxu0 %v2759
    %v2761 = vpop.f32.mrf.mxu0
    %v2762 = vadd.f32 %v2723, %v2761
    %v2763 = vand.u32 %v290, 4294901760
    %2764 = vmatmul.f32.gmra.mxu0 %v2763
    %v2765 = vpop.f32.mrf.mxu0
    %v2766 = vadd.f32 %v2731, %v2765
    %2767 = vdwg.mxu0
    %2768 = vmatpush.msra.mxu0 0.0
    %2769 = vmatpush.msra.mxu0 0.0
    %2770 = vmatpush.msra.mxu0 0.0
    %2771 = vmatpush.msra.mxu0 0.0
    %2772 = vmatpush.msra.mxu0 0.0
    %2773 = vmatpush.msra.mxu0 0.0
    %2774 = vmatpush.msra.mxu0 0.0
    %2775 = vmatpush.msra.mxu0 0.0
    %2776 = vmatpush.msra.mxu0 0.0
    %2777 = vmatpush.msra.mxu0 0.0
    %2778 = vmatpush.msra.mxu0 0.0
    %2779 = vmatpush.msra.mxu0 0.0
    %2780 = vmatpush.msra.mxu0 0.0
    %2781 = vmatpush.msra.mxu0 0.0
    %v2782 = vand.u32 %v2696, 4294901760
    %v2783 = vsub.f32 %v2696, %v2782
    %2784 = vmatpush.msra.mxu0 %v2783
    %v2785 = vand.u32 %v2692, 4294901760
    %v2786 = vsub.f32 %v2692, %v2785
    %2787 = vmatpush.msra.mxu0 %v2786
    %v2788 = vand.u32 %v287, 4294901760
    %v2789 = vsub.f32 %v287, %v2788
    %2790 = vmatmul.f32.gmra.mxu0 %v2789
    %v2791 = vpop.f32.mrf.mxu0
    %v2792 = vadd.f32 %v2762, %v2791
    %v2793 = vand.u32 %v290, 4294901760
    %v2794 = vsub.f32 %v290, %v2793
    %2795 = vmatmul.f32.gmra.mxu0 %v2794
    %v2796 = vpop.f32.mrf.mxu0
    %v2797 = vadd.f32 %v2766, %v2796
    %2798 = vdwg.mxu0
    %2799 = vmatpush.msra.mxu0 0.0
    %2800 = vmatpush.msra.mxu0 0.0
    %2801 = vmatpush.msra.mxu0 0.0
    %2802 = vmatpush.msra.mxu0 0.0
    %2803 = vmatpush.msra.mxu0 0.0
    %2804 = vmatpush.msra.mxu0 0.0
    %2805 = vmatpush.msra.mxu0 0.0
    %2806 = vmatpush.msra.mxu0 0.0
    %2807 = vmatpush.msra.mxu0 0.0
    %2808 = vmatpush.msra.mxu0 0.0
    %2809 = vmatpush.msra.mxu0 0.0
    %2810 = vmatpush.msra.mxu0 0.0
    %2811 = vmatpush.msra.mxu0 0.0
    %2812 = vmatpush.msra.mxu0 0.0
    %v2813 = vand.u32 %v2696, 4294901760
    %2814 = vmatpush.msra.mxu0 %v2813
    %v2815 = vand.u32 %v2692, 4294901760
    %2816 = vmatpush.msra.mxu0 %v2815
    %v2817 = vand.u32 %v287, 4294901760
    %v2818 = vsub.f32 %v287, %v2817
    %v2819 = vand.u32 %v2818, 4294901760
    %2820 = vmatmul.f32.gmra.mxu0 %v2819
    %v2821 = vpop.f32.mrf.mxu0
    %v2822 = vadd.f32 %v2792, %v2821
    %v2823 = vand.u32 %v290, 4294901760
    %v2824 = vsub.f32 %v290, %v2823
    %v2825 = vand.u32 %v2824, 4294901760
    %2826 = vmatmul.f32.gmra.mxu0 %v2825
    %v2827 = vpop.f32.mrf.mxu0
    %v2828 = vadd.f32 %v2797, %v2827
    %2829 = vdwg.mxu0
    %2830 = vmatpush.msra.mxu0 0.0
    %2831 = vmatpush.msra.mxu0 0.0
    %2832 = vmatpush.msra.mxu0 0.0
    %2833 = vmatpush.msra.mxu0 0.0
    %2834 = vmatpush.msra.mxu0 0.0
    %2835 = vmatpush.msra.mxu0 0.0
    %2836 = vmatpush.msra.mxu0 0.0
    %2837 = vmatpush.msra.mxu0 0.0
    %2838 = vmatpush.msra.mxu0 0.0
    %2839 = vmatpush.msra.mxu0 0.0
    %2840 = vmatpush.msra.mxu0 0.0
    %2841 = vmatpush.msra.mxu0 0.0
    %2842 = vmatpush.msra.mxu0 0.0
    %2843 = vmatpush.msra.mxu0 0.0
    %v2844 = vand.u32 %v2696, 4294901760
    %v2845 = vsub.f32 %v2696, %v2844
    %v2846 = vand.u32 %v2845, 4294901760
    %2847 = vmatpush.msra.mxu0 %v2846
    %v2848 = vand.u32 %v2692, 4294901760
    %v2849 = vsub.f32 %v2692, %v2848
    %v2850 = vand.u32 %v2849, 4294901760
    %2851 = vmatpush.msra.mxu0 %v2850
    %v2852 = vand.u32 %v287, 4294901760
    %2853 = vmatmul.f32.gmra.mxu0 %v2852
    %v2854 = vpop.f32.mrf.mxu0
    %v2855 = vadd.f32 %v2822, %v2854
    %v2856 = vand.u32 %v290, 4294901760
    %2857 = vmatmul.f32.gmra.mxu0 %v2856
    %v2858 = vpop.f32.mrf.mxu0
    %v2859 = vadd.f32 %v2828, %v2858
    %2860 = vdwg.mxu0
    %2861 = vmatpush.msra.mxu0 0.0
    %2862 = vmatpush.msra.mxu0 0.0
    %2863 = vmatpush.msra.mxu0 0.0
    %2864 = vmatpush.msra.mxu0 0.0
    %2865 = vmatpush.msra.mxu0 0.0
    %2866 = vmatpush.msra.mxu0 0.0
    %2867 = vmatpush.msra.mxu0 0.0
    %2868 = vmatpush.msra.mxu0 0.0
    %2869 = vmatpush.msra.mxu0 0.0
    %2870 = vmatpush.msra.mxu0 0.0
    %2871 = vmatpush.msra.mxu0 0.0
    %2872 = vmatpush.msra.mxu0 0.0
    %2873 = vmatpush.msra.mxu0 0.0
    %2874 = vmatpush.msra.mxu0 0.0
    %v2875 = vand.u32 %v2696, 4294901760
    %2876 = vmatpush.msra.mxu0 %v2875
    %v2877 = vand.u32 %v2692, 4294901760
    %2878 = vmatpush.msra.mxu0 %v2877
    %v2879 = vand.u32 %v287, 4294901760
    %2880 = vmatmul.f32.gmra.mxu0 %v2879
    %v2881 = vpop.f32.mrf.mxu0
    %v2882 = vadd.f32 %v2855, %v2881
    %v2883 = vand.u32 %v290, 4294901760
    %2884 = vmatmul.f32.gmra.mxu0 %v2883
    %v2885 = vpop.f32.mrf.mxu0
    %v2886 = vadd.f32 %v2859, %v2885
    %2887 = vdwg.mxu0
    %v2888 = vmul.f32 %v2496, %v2496
    %v2889 = vmul.f32 %v2500, %v2500
    %v2890 = vmul.f32 %v2882, %v2882
    %v2891 = vmul.f32 %v2886, %v2886
    %v2892 = vmul.f32 %v2496, %v2882
    %v2893 = vmul.f32 %v2500, %v2886
    %v2894 = vmul.f32 %v2111, %v2111
    %v2895 = vmul.f32 %v2112, %v2112
    %v2897 = vsel %vm89, %v2894, 0
    %v2900 = vsel %vm89, %v2895, 0
    %2902 = vmatpush.msra.mxu0 0.0
    %2903 = vmatpush.msra.mxu0 0.0
    %2904 = vmatpush.msra.mxu0 0.0
    %2905 = vmatpush.msra.mxu0 0.0
    %2906 = vmatpush.msra.mxu0 0.0
    %2907 = vmatpush.msra.mxu0 0.0
    %2908 = vmatpush.msra.mxu0 0.0
    %2909 = vmatpush.msra.mxu0 0.0
    %2910 = vmatpush.msra.mxu0 0.0
    %2911 = vmatpush.msra.mxu0 0.0
    %2912 = vmatpush.msra.mxu0 0.0
    %2913 = vmatpush.msra.mxu0 0.0
    %2914 = vmatpush.msra.mxu0 0.0
    %2915 = vmatpush.msra.mxu0 0.0
    %v2916 = vand.u32 %v82, 4294901760
    %2917 = vmatpush.msra.mxu0 %v2916
    %v2918 = vand.u32 %v81, 4294901760
    %2919 = vmatpush.msra.mxu0 %v2918
    %v2920 = vand.u32 %v2897, 4294901760
    %v2921 = vsub.f32 %v2897, %v2920
    %v2922 = vand.u32 %v2921, 4294901760
    %v2923 = vsub.f32 %v2921, %v2922
    %v2924 = vand.u32 %v2923, 4294901760
    %2925 = vmatmul.f32.gmra.mxu0 %v2924
    %v2926 = vpop.f32.mrf.mxu0
    %v2927 = vadd.f32 0.0, %v2926
    %v2928 = vand.u32 %v2900, 4294901760
    %v2929 = vsub.f32 %v2900, %v2928
    %v2930 = vand.u32 %v2929, 4294901760
    %v2931 = vsub.f32 %v2929, %v2930
    %v2932 = vand.u32 %v2931, 4294901760
    %2933 = vmatmul.f32.gmra.mxu0 %v2932
    %v2934 = vpop.f32.mrf.mxu0
    %v2935 = vadd.f32 0.0, %v2934
    %2936 = vdwg.mxu0
    %2937 = vmatpush.msra.mxu0 0.0
    %2938 = vmatpush.msra.mxu0 0.0
    %2939 = vmatpush.msra.mxu0 0.0
    %2940 = vmatpush.msra.mxu0 0.0
    %2941 = vmatpush.msra.mxu0 0.0
    %2942 = vmatpush.msra.mxu0 0.0
    %2943 = vmatpush.msra.mxu0 0.0
    %2944 = vmatpush.msra.mxu0 0.0
    %2945 = vmatpush.msra.mxu0 0.0
    %2946 = vmatpush.msra.mxu0 0.0
    %2947 = vmatpush.msra.mxu0 0.0
    %2948 = vmatpush.msra.mxu0 0.0
    %2949 = vmatpush.msra.mxu0 0.0
    %2950 = vmatpush.msra.mxu0 0.0
    %v2951 = vand.u32 %v82, 4294901760
    %v2952 = vsub.f32 %v82, %v2951
    %v2953 = vand.u32 %v2952, 4294901760
    %v2954 = vsub.f32 %v2952, %v2953
    %v2955 = vand.u32 %v2954, 4294901760
    %2956 = vmatpush.msra.mxu0 %v2955
    %v2957 = vand.u32 %v81, 4294901760
    %v2958 = vsub.f32 %v81, %v2957
    %v2959 = vand.u32 %v2958, 4294901760
    %v2960 = vsub.f32 %v2958, %v2959
    %v2961 = vand.u32 %v2960, 4294901760
    %2962 = vmatpush.msra.mxu0 %v2961
    %v2963 = vand.u32 %v2897, 4294901760
    %2964 = vmatmul.f32.gmra.mxu0 %v2963
    %v2965 = vpop.f32.mrf.mxu0
    %v2966 = vadd.f32 %v2927, %v2965
    %v2967 = vand.u32 %v2900, 4294901760
    %2968 = vmatmul.f32.gmra.mxu0 %v2967
    %v2969 = vpop.f32.mrf.mxu0
    %v2970 = vadd.f32 %v2935, %v2969
    %2971 = vdwg.mxu0
    %2972 = vmatpush.msra.mxu0 0.0
    %2973 = vmatpush.msra.mxu0 0.0
    %2974 = vmatpush.msra.mxu0 0.0
    %2975 = vmatpush.msra.mxu0 0.0
    %2976 = vmatpush.msra.mxu0 0.0
    %2977 = vmatpush.msra.mxu0 0.0
    %2978 = vmatpush.msra.mxu0 0.0
    %2979 = vmatpush.msra.mxu0 0.0
    %2980 = vmatpush.msra.mxu0 0.0
    %2981 = vmatpush.msra.mxu0 0.0
    %2982 = vmatpush.msra.mxu0 0.0
    %2983 = vmatpush.msra.mxu0 0.0
    %2984 = vmatpush.msra.mxu0 0.0
    %2985 = vmatpush.msra.mxu0 0.0
    %v2986 = vand.u32 %v82, 4294901760
    %v2987 = vsub.f32 %v82, %v2986
    %2988 = vmatpush.msra.mxu0 %v2987
    %v2989 = vand.u32 %v81, 4294901760
    %v2990 = vsub.f32 %v81, %v2989
    %2991 = vmatpush.msra.mxu0 %v2990
    %v2992 = vand.u32 %v2897, 4294901760
    %v2993 = vsub.f32 %v2897, %v2992
    %2994 = vmatmul.f32.gmra.mxu0 %v2993
    %v2995 = vpop.f32.mrf.mxu0
    %v2996 = vadd.f32 %v2966, %v2995
    %v2997 = vand.u32 %v2900, 4294901760
    %v2998 = vsub.f32 %v2900, %v2997
    %2999 = vmatmul.f32.gmra.mxu0 %v2998
    %v3000 = vpop.f32.mrf.mxu0
    %v3001 = vadd.f32 %v2970, %v3000
    %3002 = vdwg.mxu0
    %3003 = vmatpush.msra.mxu0 0.0
    %3004 = vmatpush.msra.mxu0 0.0
    %3005 = vmatpush.msra.mxu0 0.0
    %3006 = vmatpush.msra.mxu0 0.0
    %3007 = vmatpush.msra.mxu0 0.0
    %3008 = vmatpush.msra.mxu0 0.0
    %3009 = vmatpush.msra.mxu0 0.0
    %3010 = vmatpush.msra.mxu0 0.0
    %3011 = vmatpush.msra.mxu0 0.0
    %3012 = vmatpush.msra.mxu0 0.0
    %3013 = vmatpush.msra.mxu0 0.0
    %3014 = vmatpush.msra.mxu0 0.0
    %3015 = vmatpush.msra.mxu0 0.0
    %3016 = vmatpush.msra.mxu0 0.0
    %v3017 = vand.u32 %v82, 4294901760
    %3018 = vmatpush.msra.mxu0 %v3017
    %v3019 = vand.u32 %v81, 4294901760
    %3020 = vmatpush.msra.mxu0 %v3019
    %v3021 = vand.u32 %v2897, 4294901760
    %v3022 = vsub.f32 %v2897, %v3021
    %v3023 = vand.u32 %v3022, 4294901760
    %3024 = vmatmul.f32.gmra.mxu0 %v3023
    %v3025 = vpop.f32.mrf.mxu0
    %v3026 = vadd.f32 %v2996, %v3025
    %v3027 = vand.u32 %v2900, 4294901760
    %v3028 = vsub.f32 %v2900, %v3027
    %v3029 = vand.u32 %v3028, 4294901760
    %3030 = vmatmul.f32.gmra.mxu0 %v3029
    %v3031 = vpop.f32.mrf.mxu0
    %v3032 = vadd.f32 %v3001, %v3031
    %3033 = vdwg.mxu0
    %3034 = vmatpush.msra.mxu0 0.0
    %3035 = vmatpush.msra.mxu0 0.0
    %3036 = vmatpush.msra.mxu0 0.0
    %3037 = vmatpush.msra.mxu0 0.0
    %3038 = vmatpush.msra.mxu0 0.0
    %3039 = vmatpush.msra.mxu0 0.0
    %3040 = vmatpush.msra.mxu0 0.0
    %3041 = vmatpush.msra.mxu0 0.0
    %3042 = vmatpush.msra.mxu0 0.0
    %3043 = vmatpush.msra.mxu0 0.0
    %3044 = vmatpush.msra.mxu0 0.0
    %3045 = vmatpush.msra.mxu0 0.0
    %3046 = vmatpush.msra.mxu0 0.0
    %3047 = vmatpush.msra.mxu0 0.0
    %v3048 = vand.u32 %v82, 4294901760
    %v3049 = vsub.f32 %v82, %v3048
    %v3050 = vand.u32 %v3049, 4294901760
    %3051 = vmatpush.msra.mxu0 %v3050
    %v3052 = vand.u32 %v81, 4294901760
    %v3053 = vsub.f32 %v81, %v3052
    %v3054 = vand.u32 %v3053, 4294901760
    %3055 = vmatpush.msra.mxu0 %v3054
    %v3056 = vand.u32 %v2897, 4294901760
    %3057 = vmatmul.f32.gmra.mxu0 %v3056
    %v3058 = vpop.f32.mrf.mxu0
    %v3059 = vadd.f32 %v3026, %v3058
    %v3060 = vand.u32 %v2900, 4294901760
    %3061 = vmatmul.f32.gmra.mxu0 %v3060
    %v3062 = vpop.f32.mrf.mxu0
    %v3063 = vadd.f32 %v3032, %v3062
    %3064 = vdwg.mxu0
    %3065 = vmatpush.msra.mxu0 0.0
    %3066 = vmatpush.msra.mxu0 0.0
    %3067 = vmatpush.msra.mxu0 0.0
    %3068 = vmatpush.msra.mxu0 0.0
    %3069 = vmatpush.msra.mxu0 0.0
    %3070 = vmatpush.msra.mxu0 0.0
    %3071 = vmatpush.msra.mxu0 0.0
    %3072 = vmatpush.msra.mxu0 0.0
    %3073 = vmatpush.msra.mxu0 0.0
    %3074 = vmatpush.msra.mxu0 0.0
    %3075 = vmatpush.msra.mxu0 0.0
    %3076 = vmatpush.msra.mxu0 0.0
    %3077 = vmatpush.msra.mxu0 0.0
    %3078 = vmatpush.msra.mxu0 0.0
    %v3079 = vand.u32 %v82, 4294901760
    %3080 = vmatpush.msra.mxu0 %v3079
    %v3081 = vand.u32 %v81, 4294901760
    %3082 = vmatpush.msra.mxu0 %v3081
    %v3083 = vand.u32 %v2897, 4294901760
    %3084 = vmatmul.f32.gmra.mxu0 %v3083
    %v3085 = vpop.f32.mrf.mxu0
    %v3086 = vadd.f32 %v3059, %v3085
    %v3087 = vand.u32 %v2900, 4294901760
    %3088 = vmatmul.f32.gmra.mxu0 %v3087
    %v3089 = vpop.f32.mrf.mxu0
    %v3090 = vadd.f32 %v3063, %v3089
    %3091 = vdwg.mxu0
    %3092 = vmatpush.msra.mxu0 0.0
    %3093 = vmatpush.msra.mxu0 0.0
    %3094 = vmatpush.msra.mxu0 0.0
    %3095 = vmatpush.msra.mxu0 0.0
    %3096 = vmatpush.msra.mxu0 0.0
    %3097 = vmatpush.msra.mxu0 0.0
    %3098 = vmatpush.msra.mxu0 0.0
    %3099 = vmatpush.msra.mxu0 0.0
    %3100 = vmatpush.msra.mxu0 0.0
    %3101 = vmatpush.msra.mxu0 0.0
    %3102 = vmatpush.msra.mxu0 0.0
    %3103 = vmatpush.msra.mxu0 0.0
    %3104 = vmatpush.msra.mxu0 0.0
    %3105 = vmatpush.msra.mxu0 0.0
    %v3106 = vand.u32 %v3090, 4294901760
    %3107 = vmatpush.msra.mxu0 %v3106
    %v3108 = vand.u32 %v3086, 4294901760
    %3109 = vmatpush.msra.mxu0 %v3108
    %v3110 = vand.u32 %v287, 4294901760
    %v3111 = vsub.f32 %v287, %v3110
    %v3112 = vand.u32 %v3111, 4294901760
    %v3113 = vsub.f32 %v3111, %v3112
    %v3114 = vand.u32 %v3113, 4294901760
    %3115 = vmatmul.f32.gmra.mxu0 %v3114
    %v3116 = vpop.f32.mrf.mxu0
    %v3117 = vadd.f32 0.0, %v3116
    %v3118 = vand.u32 %v290, 4294901760
    %v3119 = vsub.f32 %v290, %v3118
    %v3120 = vand.u32 %v3119, 4294901760
    %v3121 = vsub.f32 %v3119, %v3120
    %v3122 = vand.u32 %v3121, 4294901760
    %3123 = vmatmul.f32.gmra.mxu0 %v3122
    %v3124 = vpop.f32.mrf.mxu0
    %v3125 = vadd.f32 0.0, %v3124
    %3126 = vdwg.mxu0
    %3127 = vmatpush.msra.mxu0 0.0
    %3128 = vmatpush.msra.mxu0 0.0
    %3129 = vmatpush.msra.mxu0 0.0
    %3130 = vmatpush.msra.mxu0 0.0
    %3131 = vmatpush.msra.mxu0 0.0
    %3132 = vmatpush.msra.mxu0 0.0
    %3133 = vmatpush.msra.mxu0 0.0
    %3134 = vmatpush.msra.mxu0 0.0
    %3135 = vmatpush.msra.mxu0 0.0
    %3136 = vmatpush.msra.mxu0 0.0
    %3137 = vmatpush.msra.mxu0 0.0
    %3138 = vmatpush.msra.mxu0 0.0
    %3139 = vmatpush.msra.mxu0 0.0
    %3140 = vmatpush.msra.mxu0 0.0
    %v3141 = vand.u32 %v3090, 4294901760
    %v3142 = vsub.f32 %v3090, %v3141
    %v3143 = vand.u32 %v3142, 4294901760
    %v3144 = vsub.f32 %v3142, %v3143
    %v3145 = vand.u32 %v3144, 4294901760
    %3146 = vmatpush.msra.mxu0 %v3145
    %v3147 = vand.u32 %v3086, 4294901760
    %v3148 = vsub.f32 %v3086, %v3147
    %v3149 = vand.u32 %v3148, 4294901760
    %v3150 = vsub.f32 %v3148, %v3149
    %v3151 = vand.u32 %v3150, 4294901760
    %3152 = vmatpush.msra.mxu0 %v3151
    %v3153 = vand.u32 %v287, 4294901760
    %3154 = vmatmul.f32.gmra.mxu0 %v3153
    %v3155 = vpop.f32.mrf.mxu0
    %v3156 = vadd.f32 %v3117, %v3155
    %v3157 = vand.u32 %v290, 4294901760
    %3158 = vmatmul.f32.gmra.mxu0 %v3157
    %v3159 = vpop.f32.mrf.mxu0
    %v3160 = vadd.f32 %v3125, %v3159
    %3161 = vdwg.mxu0
    %3162 = vmatpush.msra.mxu0 0.0
    %3163 = vmatpush.msra.mxu0 0.0
    %3164 = vmatpush.msra.mxu0 0.0
    %3165 = vmatpush.msra.mxu0 0.0
    %3166 = vmatpush.msra.mxu0 0.0
    %3167 = vmatpush.msra.mxu0 0.0
    %3168 = vmatpush.msra.mxu0 0.0
    %3169 = vmatpush.msra.mxu0 0.0
    %3170 = vmatpush.msra.mxu0 0.0
    %3171 = vmatpush.msra.mxu0 0.0
    %3172 = vmatpush.msra.mxu0 0.0
    %3173 = vmatpush.msra.mxu0 0.0
    %3174 = vmatpush.msra.mxu0 0.0
    %3175 = vmatpush.msra.mxu0 0.0
    %v3176 = vand.u32 %v3090, 4294901760
    %v3177 = vsub.f32 %v3090, %v3176
    %3178 = vmatpush.msra.mxu0 %v3177
    %v3179 = vand.u32 %v3086, 4294901760
    %v3180 = vsub.f32 %v3086, %v3179
    %3181 = vmatpush.msra.mxu0 %v3180
    %v3182 = vand.u32 %v287, 4294901760
    %v3183 = vsub.f32 %v287, %v3182
    %3184 = vmatmul.f32.gmra.mxu0 %v3183
    %v3185 = vpop.f32.mrf.mxu0
    %v3186 = vadd.f32 %v3156, %v3185
    %v3187 = vand.u32 %v290, 4294901760
    %v3188 = vsub.f32 %v290, %v3187
    %3189 = vmatmul.f32.gmra.mxu0 %v3188
    %v3190 = vpop.f32.mrf.mxu0
    %v3191 = vadd.f32 %v3160, %v3190
    %3192 = vdwg.mxu0
    %3193 = vmatpush.msra.mxu0 0.0
    %3194 = vmatpush.msra.mxu0 0.0
    %3195 = vmatpush.msra.mxu0 0.0
    %3196 = vmatpush.msra.mxu0 0.0
    %3197 = vmatpush.msra.mxu0 0.0
    %3198 = vmatpush.msra.mxu0 0.0
    %3199 = vmatpush.msra.mxu0 0.0
    %3200 = vmatpush.msra.mxu0 0.0
    %3201 = vmatpush.msra.mxu0 0.0
    %3202 = vmatpush.msra.mxu0 0.0
    %3203 = vmatpush.msra.mxu0 0.0
    %3204 = vmatpush.msra.mxu0 0.0
    %3205 = vmatpush.msra.mxu0 0.0
    %3206 = vmatpush.msra.mxu0 0.0
    %v3207 = vand.u32 %v3090, 4294901760
    %3208 = vmatpush.msra.mxu0 %v3207
    %v3209 = vand.u32 %v3086, 4294901760
    %3210 = vmatpush.msra.mxu0 %v3209
    %v3211 = vand.u32 %v287, 4294901760
    %v3212 = vsub.f32 %v287, %v3211
    %v3213 = vand.u32 %v3212, 4294901760
    %3214 = vmatmul.f32.gmra.mxu0 %v3213
    %v3215 = vpop.f32.mrf.mxu0
    %v3216 = vadd.f32 %v3186, %v3215
    %v3217 = vand.u32 %v290, 4294901760
    %v3218 = vsub.f32 %v290, %v3217
    %v3219 = vand.u32 %v3218, 4294901760
    %3220 = vmatmul.f32.gmra.mxu0 %v3219
    %v3221 = vpop.f32.mrf.mxu0
    %v3222 = vadd.f32 %v3191, %v3221
    %3223 = vdwg.mxu0
    %3224 = vmatpush.msra.mxu0 0.0
    %3225 = vmatpush.msra.mxu0 0.0
    %3226 = vmatpush.msra.mxu0 0.0
    %3227 = vmatpush.msra.mxu0 0.0
    %3228 = vmatpush.msra.mxu0 0.0
    %3229 = vmatpush.msra.mxu0 0.0
    %3230 = vmatpush.msra.mxu0 0.0
    %3231 = vmatpush.msra.mxu0 0.0
    %3232 = vmatpush.msra.mxu0 0.0
    %3233 = vmatpush.msra.mxu0 0.0
    %3234 = vmatpush.msra.mxu0 0.0
    %3235 = vmatpush.msra.mxu0 0.0
    %3236 = vmatpush.msra.mxu0 0.0
    %3237 = vmatpush.msra.mxu0 0.0
    %v3238 = vand.u32 %v3090, 4294901760
    %v3239 = vsub.f32 %v3090, %v3238
    %v3240 = vand.u32 %v3239, 4294901760
    %3241 = vmatpush.msra.mxu0 %v3240
    %v3242 = vand.u32 %v3086, 4294901760
    %v3243 = vsub.f32 %v3086, %v3242
    %v3244 = vand.u32 %v3243, 4294901760
    %3245 = vmatpush.msra.mxu0 %v3244
    %v3246 = vand.u32 %v287, 4294901760
    %3247 = vmatmul.f32.gmra.mxu0 %v3246
    %v3248 = vpop.f32.mrf.mxu0
    %v3249 = vadd.f32 %v3216, %v3248
    %v3250 = vand.u32 %v290, 4294901760
    %3251 = vmatmul.f32.gmra.mxu0 %v3250
    %v3252 = vpop.f32.mrf.mxu0
    %v3253 = vadd.f32 %v3222, %v3252
    %3254 = vdwg.mxu0
    %3255 = vmatpush.msra.mxu0 0.0
    %3256 = vmatpush.msra.mxu0 0.0
    %3257 = vmatpush.msra.mxu0 0.0
    %3258 = vmatpush.msra.mxu0 0.0
    %3259 = vmatpush.msra.mxu0 0.0
    %3260 = vmatpush.msra.mxu0 0.0
    %3261 = vmatpush.msra.mxu0 0.0
    %3262 = vmatpush.msra.mxu0 0.0
    %3263 = vmatpush.msra.mxu0 0.0
    %3264 = vmatpush.msra.mxu0 0.0
    %3265 = vmatpush.msra.mxu0 0.0
    %3266 = vmatpush.msra.mxu0 0.0
    %3267 = vmatpush.msra.mxu0 0.0
    %3268 = vmatpush.msra.mxu0 0.0
    %v3269 = vand.u32 %v3090, 4294901760
    %3270 = vmatpush.msra.mxu0 %v3269
    %v3271 = vand.u32 %v3086, 4294901760
    %3272 = vmatpush.msra.mxu0 %v3271
    %v3273 = vand.u32 %v287, 4294901760
    %3274 = vmatmul.f32.gmra.mxu0 %v3273
    %v3275 = vpop.f32.mrf.mxu0
    %v3276 = vadd.f32 %v3249, %v3275
    %v3277 = vand.u32 %v290, 4294901760
    %3278 = vmatmul.f32.gmra.mxu0 %v3277
    %v3279 = vpop.f32.mrf.mxu0
    %v3280 = vadd.f32 %v3253, %v3279
    %3281 = vdwg.mxu0
    %v3282 = vsub.f32 %v3276, %v2888
    %v3283 = vsub.f32 %v3280, %v2889
    %v3284 = vmul.f32 %v2114, %v2114
    %v3285 = vmul.f32 %v2115, %v2115
    %v3287 = vsel %vm89, %v3284, 0
    %v3290 = vsel %vm89, %v3285, 0
    %3292 = vmatpush.msra.mxu0 0.0
    %3293 = vmatpush.msra.mxu0 0.0
    %3294 = vmatpush.msra.mxu0 0.0
    %3295 = vmatpush.msra.mxu0 0.0
    %3296 = vmatpush.msra.mxu0 0.0
    %3297 = vmatpush.msra.mxu0 0.0
    %3298 = vmatpush.msra.mxu0 0.0
    %3299 = vmatpush.msra.mxu0 0.0
    %3300 = vmatpush.msra.mxu0 0.0
    %3301 = vmatpush.msra.mxu0 0.0
    %3302 = vmatpush.msra.mxu0 0.0
    %3303 = vmatpush.msra.mxu0 0.0
    %3304 = vmatpush.msra.mxu0 0.0
    %3305 = vmatpush.msra.mxu0 0.0
    %v3306 = vand.u32 %v82, 4294901760
    %3307 = vmatpush.msra.mxu0 %v3306
    %v3308 = vand.u32 %v81, 4294901760
    %3309 = vmatpush.msra.mxu0 %v3308
    %v3310 = vand.u32 %v3287, 4294901760
    %v3311 = vsub.f32 %v3287, %v3310
    %v3312 = vand.u32 %v3311, 4294901760
    %v3313 = vsub.f32 %v3311, %v3312
    %v3314 = vand.u32 %v3313, 4294901760
    %3315 = vmatmul.f32.gmra.mxu0 %v3314
    %v3316 = vpop.f32.mrf.mxu0
    %v3317 = vadd.f32 0.0, %v3316
    %v3318 = vand.u32 %v3290, 4294901760
    %v3319 = vsub.f32 %v3290, %v3318
    %v3320 = vand.u32 %v3319, 4294901760
    %v3321 = vsub.f32 %v3319, %v3320
    %v3322 = vand.u32 %v3321, 4294901760
    %3323 = vmatmul.f32.gmra.mxu0 %v3322
    %v3324 = vpop.f32.mrf.mxu0
    %v3325 = vadd.f32 0.0, %v3324
    %3326 = vdwg.mxu0
    %3327 = vmatpush.msra.mxu0 0.0
    %3328 = vmatpush.msra.mxu0 0.0
    %3329 = vmatpush.msra.mxu0 0.0
    %3330 = vmatpush.msra.mxu0 0.0
    %3331 = vmatpush.msra.mxu0 0.0
    %3332 = vmatpush.msra.mxu0 0.0
    %3333 = vmatpush.msra.mxu0 0.0
    %3334 = vmatpush.msra.mxu0 0.0
    %3335 = vmatpush.msra.mxu0 0.0
    %3336 = vmatpush.msra.mxu0 0.0
    %3337 = vmatpush.msra.mxu0 0.0
    %3338 = vmatpush.msra.mxu0 0.0
    %3339 = vmatpush.msra.mxu0 0.0
    %3340 = vmatpush.msra.mxu0 0.0
    %v3341 = vand.u32 %v82, 4294901760
    %v3342 = vsub.f32 %v82, %v3341
    %v3343 = vand.u32 %v3342, 4294901760
    %v3344 = vsub.f32 %v3342, %v3343
    %v3345 = vand.u32 %v3344, 4294901760
    %3346 = vmatpush.msra.mxu0 %v3345
    %v3347 = vand.u32 %v81, 4294901760
    %v3348 = vsub.f32 %v81, %v3347
    %v3349 = vand.u32 %v3348, 4294901760
    %v3350 = vsub.f32 %v3348, %v3349
    %v3351 = vand.u32 %v3350, 4294901760
    %3352 = vmatpush.msra.mxu0 %v3351
    %v3353 = vand.u32 %v3287, 4294901760
    %3354 = vmatmul.f32.gmra.mxu0 %v3353
    %v3355 = vpop.f32.mrf.mxu0
    %v3356 = vadd.f32 %v3317, %v3355
    %v3357 = vand.u32 %v3290, 4294901760
    %3358 = vmatmul.f32.gmra.mxu0 %v3357
    %v3359 = vpop.f32.mrf.mxu0
    %v3360 = vadd.f32 %v3325, %v3359
    %3361 = vdwg.mxu0
    %3362 = vmatpush.msra.mxu0 0.0
    %3363 = vmatpush.msra.mxu0 0.0
    %3364 = vmatpush.msra.mxu0 0.0
    %3365 = vmatpush.msra.mxu0 0.0
    %3366 = vmatpush.msra.mxu0 0.0
    %3367 = vmatpush.msra.mxu0 0.0
    %3368 = vmatpush.msra.mxu0 0.0
    %3369 = vmatpush.msra.mxu0 0.0
    %3370 = vmatpush.msra.mxu0 0.0
    %3371 = vmatpush.msra.mxu0 0.0
    %3372 = vmatpush.msra.mxu0 0.0
    %3373 = vmatpush.msra.mxu0 0.0
    %3374 = vmatpush.msra.mxu0 0.0
    %3375 = vmatpush.msra.mxu0 0.0
    %v3376 = vand.u32 %v82, 4294901760
    %v3377 = vsub.f32 %v82, %v3376
    %3378 = vmatpush.msra.mxu0 %v3377
    %v3379 = vand.u32 %v81, 4294901760
    %v3380 = vsub.f32 %v81, %v3379
    %3381 = vmatpush.msra.mxu0 %v3380
    %v3382 = vand.u32 %v3287, 4294901760
    %v3383 = vsub.f32 %v3287, %v3382
    %3384 = vmatmul.f32.gmra.mxu0 %v3383
    %v3385 = vpop.f32.mrf.mxu0
    %v3386 = vadd.f32 %v3356, %v3385
    %v3387 = vand.u32 %v3290, 4294901760
    %v3388 = vsub.f32 %v3290, %v3387
    %3389 = vmatmul.f32.gmra.mxu0 %v3388
    %v3390 = vpop.f32.mrf.mxu0
    %v3391 = vadd.f32 %v3360, %v3390
    %3392 = vdwg.mxu0
    %3393 = vmatpush.msra.mxu0 0.0
    %3394 = vmatpush.msra.mxu0 0.0
    %3395 = vmatpush.msra.mxu0 0.0
    %3396 = vmatpush.msra.mxu0 0.0
    %3397 = vmatpush.msra.mxu0 0.0
    %3398 = vmatpush.msra.mxu0 0.0
    %3399 = vmatpush.msra.mxu0 0.0
    %3400 = vmatpush.msra.mxu0 0.0
    %3401 = vmatpush.msra.mxu0 0.0
    %3402 = vmatpush.msra.mxu0 0.0
    %3403 = vmatpush.msra.mxu0 0.0
    %3404 = vmatpush.msra.mxu0 0.0
    %3405 = vmatpush.msra.mxu0 0.0
    %3406 = vmatpush.msra.mxu0 0.0
    %v3407 = vand.u32 %v82, 4294901760
    %3408 = vmatpush.msra.mxu0 %v3407
    %v3409 = vand.u32 %v81, 4294901760
    %3410 = vmatpush.msra.mxu0 %v3409
    %v3411 = vand.u32 %v3287, 4294901760
    %v3412 = vsub.f32 %v3287, %v3411
    %v3413 = vand.u32 %v3412, 4294901760
    %3414 = vmatmul.f32.gmra.mxu0 %v3413
    %v3415 = vpop.f32.mrf.mxu0
    %v3416 = vadd.f32 %v3386, %v3415
    %v3417 = vand.u32 %v3290, 4294901760
    %v3418 = vsub.f32 %v3290, %v3417
    %v3419 = vand.u32 %v3418, 4294901760
    %3420 = vmatmul.f32.gmra.mxu0 %v3419
    %v3421 = vpop.f32.mrf.mxu0
    %v3422 = vadd.f32 %v3391, %v3421
    %3423 = vdwg.mxu0
    %3424 = vmatpush.msra.mxu0 0.0
    %3425 = vmatpush.msra.mxu0 0.0
    %3426 = vmatpush.msra.mxu0 0.0
    %3427 = vmatpush.msra.mxu0 0.0
    %3428 = vmatpush.msra.mxu0 0.0
    %3429 = vmatpush.msra.mxu0 0.0
    %3430 = vmatpush.msra.mxu0 0.0
    %3431 = vmatpush.msra.mxu0 0.0
    %3432 = vmatpush.msra.mxu0 0.0
    %3433 = vmatpush.msra.mxu0 0.0
    %3434 = vmatpush.msra.mxu0 0.0
    %3435 = vmatpush.msra.mxu0 0.0
    %3436 = vmatpush.msra.mxu0 0.0
    %3437 = vmatpush.msra.mxu0 0.0
    %v3438 = vand.u32 %v82, 4294901760
    %v3439 = vsub.f32 %v82, %v3438
    %v3440 = vand.u32 %v3439, 4294901760
    %3441 = vmatpush.msra.mxu0 %v3440
    %v3442 = vand.u32 %v81, 4294901760
    %v3443 = vsub.f32 %v81, %v3442
    %v3444 = vand.u32 %v3443, 4294901760
    %3445 = vmatpush.msra.mxu0 %v3444
    %v3446 = vand.u32 %v3287, 4294901760
    %3447 = vmatmul.f32.gmra.mxu0 %v3446
    %v3448 = vpop.f32.mrf.mxu0
    %v3449 = vadd.f32 %v3416, %v3448
    %v3450 = vand.u32 %v3290, 4294901760
    %3451 = vmatmul.f32.gmra.mxu0 %v3450
    %v3452 = vpop.f32.mrf.mxu0
    %v3453 = vadd.f32 %v3422, %v3452
    %3454 = vdwg.mxu0
    %3455 = vmatpush.msra.mxu0 0.0
    %3456 = vmatpush.msra.mxu0 0.0
    %3457 = vmatpush.msra.mxu0 0.0
    %3458 = vmatpush.msra.mxu0 0.0
    %3459 = vmatpush.msra.mxu0 0.0
    %3460 = vmatpush.msra.mxu0 0.0
    %3461 = vmatpush.msra.mxu0 0.0
    %3462 = vmatpush.msra.mxu0 0.0
    %3463 = vmatpush.msra.mxu0 0.0
    %3464 = vmatpush.msra.mxu0 0.0
    %3465 = vmatpush.msra.mxu0 0.0
    %3466 = vmatpush.msra.mxu0 0.0
    %3467 = vmatpush.msra.mxu0 0.0
    %3468 = vmatpush.msra.mxu0 0.0
    %v3469 = vand.u32 %v82, 4294901760
    %3470 = vmatpush.msra.mxu0 %v3469
    %v3471 = vand.u32 %v81, 4294901760
    %3472 = vmatpush.msra.mxu0 %v3471
    %v3473 = vand.u32 %v3287, 4294901760
    %3474 = vmatmul.f32.gmra.mxu0 %v3473
    %v3475 = vpop.f32.mrf.mxu0
    %v3476 = vadd.f32 %v3449, %v3475
    %v3477 = vand.u32 %v3290, 4294901760
    %3478 = vmatmul.f32.gmra.mxu0 %v3477
    %v3479 = vpop.f32.mrf.mxu0
    %v3480 = vadd.f32 %v3453, %v3479
    %3481 = vdwg.mxu0
    %3482 = vmatpush.msra.mxu0 0.0
    %3483 = vmatpush.msra.mxu0 0.0
    %3484 = vmatpush.msra.mxu0 0.0
    %3485 = vmatpush.msra.mxu0 0.0
    %3486 = vmatpush.msra.mxu0 0.0
    %3487 = vmatpush.msra.mxu0 0.0
    %3488 = vmatpush.msra.mxu0 0.0
    %3489 = vmatpush.msra.mxu0 0.0
    %3490 = vmatpush.msra.mxu0 0.0
    %3491 = vmatpush.msra.mxu0 0.0
    %3492 = vmatpush.msra.mxu0 0.0
    %3493 = vmatpush.msra.mxu0 0.0
    %3494 = vmatpush.msra.mxu0 0.0
    %3495 = vmatpush.msra.mxu0 0.0
    %v3496 = vand.u32 %v3480, 4294901760
    %3497 = vmatpush.msra.mxu0 %v3496
    %v3498 = vand.u32 %v3476, 4294901760
    %3499 = vmatpush.msra.mxu0 %v3498
    %v3500 = vand.u32 %v287, 4294901760
    %v3501 = vsub.f32 %v287, %v3500
    %v3502 = vand.u32 %v3501, 4294901760
    %v3503 = vsub.f32 %v3501, %v3502
    %v3504 = vand.u32 %v3503, 4294901760
    %3505 = vmatmul.f32.gmra.mxu0 %v3504
    %v3506 = vpop.f32.mrf.mxu0
    %v3507 = vadd.f32 0.0, %v3506
    %v3508 = vand.u32 %v290, 4294901760
    %v3509 = vsub.f32 %v290, %v3508
    %v3510 = vand.u32 %v3509, 4294901760
    %v3511 = vsub.f32 %v3509, %v3510
    %v3512 = vand.u32 %v3511, 4294901760
    %3513 = vmatmul.f32.gmra.mxu0 %v3512
    %v3514 = vpop.f32.mrf.mxu0
    %v3515 = vadd.f32 0.0, %v3514
    %3516 = vdwg.mxu0
    %3517 = vmatpush.msra.mxu0 0.0
    %3518 = vmatpush.msra.mxu0 0.0
    %3519 = vmatpush.msra.mxu0 0.0
    %3520 = vmatpush.msra.mxu0 0.0
    %3521 = vmatpush.msra.mxu0 0.0
    %3522 = vmatpush.msra.mxu0 0.0
    %3523 = vmatpush.msra.mxu0 0.0
    %3524 = vmatpush.msra.mxu0 0.0
    %3525 = vmatpush.msra.mxu0 0.0
    %3526 = vmatpush.msra.mxu0 0.0
    %3527 = vmatpush.msra.mxu0 0.0
    %3528 = vmatpush.msra.mxu0 0.0
    %3529 = vmatpush.msra.mxu0 0.0
    %3530 = vmatpush.msra.mxu0 0.0
    %v3531 = vand.u32 %v3480, 4294901760
    %v3532 = vsub.f32 %v3480, %v3531
    %v3533 = vand.u32 %v3532, 4294901760
    %v3534 = vsub.f32 %v3532, %v3533
    %v3535 = vand.u32 %v3534, 4294901760
    %3536 = vmatpush.msra.mxu0 %v3535
    %v3537 = vand.u32 %v3476, 4294901760
    %v3538 = vsub.f32 %v3476, %v3537
    %v3539 = vand.u32 %v3538, 4294901760
    %v3540 = vsub.f32 %v3538, %v3539
    %v3541 = vand.u32 %v3540, 4294901760
    %3542 = vmatpush.msra.mxu0 %v3541
    %v3543 = vand.u32 %v287, 4294901760
    %3544 = vmatmul.f32.gmra.mxu0 %v3543
    %v3545 = vpop.f32.mrf.mxu0
    %v3546 = vadd.f32 %v3507, %v3545
    %v3547 = vand.u32 %v290, 4294901760
    %3548 = vmatmul.f32.gmra.mxu0 %v3547
    %v3549 = vpop.f32.mrf.mxu0
    %v3550 = vadd.f32 %v3515, %v3549
    %3551 = vdwg.mxu0
    %3552 = vmatpush.msra.mxu0 0.0
    %3553 = vmatpush.msra.mxu0 0.0
    %3554 = vmatpush.msra.mxu0 0.0
    %3555 = vmatpush.msra.mxu0 0.0
    %3556 = vmatpush.msra.mxu0 0.0
    %3557 = vmatpush.msra.mxu0 0.0
    %3558 = vmatpush.msra.mxu0 0.0
    %3559 = vmatpush.msra.mxu0 0.0
    %3560 = vmatpush.msra.mxu0 0.0
    %3561 = vmatpush.msra.mxu0 0.0
    %3562 = vmatpush.msra.mxu0 0.0
    %3563 = vmatpush.msra.mxu0 0.0
    %3564 = vmatpush.msra.mxu0 0.0
    %3565 = vmatpush.msra.mxu0 0.0
    %v3566 = vand.u32 %v3480, 4294901760
    %v3567 = vsub.f32 %v3480, %v3566
    %3568 = vmatpush.msra.mxu0 %v3567
    %v3569 = vand.u32 %v3476, 4294901760
    %v3570 = vsub.f32 %v3476, %v3569
    %3571 = vmatpush.msra.mxu0 %v3570
    %v3572 = vand.u32 %v287, 4294901760
    %v3573 = vsub.f32 %v287, %v3572
    %3574 = vmatmul.f32.gmra.mxu0 %v3573
    %v3575 = vpop.f32.mrf.mxu0
    %v3576 = vadd.f32 %v3546, %v3575
    %v3577 = vand.u32 %v290, 4294901760
    %v3578 = vsub.f32 %v290, %v3577
    %3579 = vmatmul.f32.gmra.mxu0 %v3578
    %v3580 = vpop.f32.mrf.mxu0
    %v3581 = vadd.f32 %v3550, %v3580
    %3582 = vdwg.mxu0
    %3583 = vmatpush.msra.mxu0 0.0
    %3584 = vmatpush.msra.mxu0 0.0
    %3585 = vmatpush.msra.mxu0 0.0
    %3586 = vmatpush.msra.mxu0 0.0
    %3587 = vmatpush.msra.mxu0 0.0
    %3588 = vmatpush.msra.mxu0 0.0
    %3589 = vmatpush.msra.mxu0 0.0
    %3590 = vmatpush.msra.mxu0 0.0
    %3591 = vmatpush.msra.mxu0 0.0
    %3592 = vmatpush.msra.mxu0 0.0
    %3593 = vmatpush.msra.mxu0 0.0
    %3594 = vmatpush.msra.mxu0 0.0
    %3595 = vmatpush.msra.mxu0 0.0
    %3596 = vmatpush.msra.mxu0 0.0
    %v3597 = vand.u32 %v3480, 4294901760
    %3598 = vmatpush.msra.mxu0 %v3597
    %v3599 = vand.u32 %v3476, 4294901760
    %3600 = vmatpush.msra.mxu0 %v3599
    %v3601 = vand.u32 %v287, 4294901760
    %v3602 = vsub.f32 %v287, %v3601
    %v3603 = vand.u32 %v3602, 4294901760
    %3604 = vmatmul.f32.gmra.mxu0 %v3603
    %v3605 = vpop.f32.mrf.mxu0
    %v3606 = vadd.f32 %v3576, %v3605
    %v3607 = vand.u32 %v290, 4294901760
    %v3608 = vsub.f32 %v290, %v3607
    %v3609 = vand.u32 %v3608, 4294901760
    %3610 = vmatmul.f32.gmra.mxu0 %v3609
    %v3611 = vpop.f32.mrf.mxu0
    %v3612 = vadd.f32 %v3581, %v3611
    %3613 = vdwg.mxu0
    %3614 = vmatpush.msra.mxu0 0.0
    %3615 = vmatpush.msra.mxu0 0.0
    %3616 = vmatpush.msra.mxu0 0.0
    %3617 = vmatpush.msra.mxu0 0.0
    %3618 = vmatpush.msra.mxu0 0.0
    %3619 = vmatpush.msra.mxu0 0.0
    %3620 = vmatpush.msra.mxu0 0.0
    %3621 = vmatpush.msra.mxu0 0.0
    %3622 = vmatpush.msra.mxu0 0.0
    %3623 = vmatpush.msra.mxu0 0.0
    %3624 = vmatpush.msra.mxu0 0.0
    %3625 = vmatpush.msra.mxu0 0.0
    %3626 = vmatpush.msra.mxu0 0.0
    %3627 = vmatpush.msra.mxu0 0.0
    %v3628 = vand.u32 %v3480, 4294901760
    %v3629 = vsub.f32 %v3480, %v3628
    %v3630 = vand.u32 %v3629, 4294901760
    %3631 = vmatpush.msra.mxu0 %v3630
    %v3632 = vand.u32 %v3476, 4294901760
    %v3633 = vsub.f32 %v3476, %v3632
    %v3634 = vand.u32 %v3633, 4294901760
    %3635 = vmatpush.msra.mxu0 %v3634
    %v3636 = vand.u32 %v287, 4294901760
    %3637 = vmatmul.f32.gmra.mxu0 %v3636
    %v3638 = vpop.f32.mrf.mxu0
    %v3639 = vadd.f32 %v3606, %v3638
    %v3640 = vand.u32 %v290, 4294901760
    %3641 = vmatmul.f32.gmra.mxu0 %v3640
    %v3642 = vpop.f32.mrf.mxu0
    %v3643 = vadd.f32 %v3612, %v3642
    %3644 = vdwg.mxu0
    %3645 = vmatpush.msra.mxu0 0.0
    %3646 = vmatpush.msra.mxu0 0.0
    %3647 = vmatpush.msra.mxu0 0.0
    %3648 = vmatpush.msra.mxu0 0.0
    %3649 = vmatpush.msra.mxu0 0.0
    %3650 = vmatpush.msra.mxu0 0.0
    %3651 = vmatpush.msra.mxu0 0.0
    %3652 = vmatpush.msra.mxu0 0.0
    %3653 = vmatpush.msra.mxu0 0.0
    %3654 = vmatpush.msra.mxu0 0.0
    %3655 = vmatpush.msra.mxu0 0.0
    %3656 = vmatpush.msra.mxu0 0.0
    %3657 = vmatpush.msra.mxu0 0.0
    %3658 = vmatpush.msra.mxu0 0.0
    %v3659 = vand.u32 %v3480, 4294901760
    %3660 = vmatpush.msra.mxu0 %v3659
    %v3661 = vand.u32 %v3476, 4294901760
    %3662 = vmatpush.msra.mxu0 %v3661
    %v3663 = vand.u32 %v287, 4294901760
    %3664 = vmatmul.f32.gmra.mxu0 %v3663
    %v3665 = vpop.f32.mrf.mxu0
    %v3666 = vadd.f32 %v3639, %v3665
    %v3667 = vand.u32 %v290, 4294901760
    %3668 = vmatmul.f32.gmra.mxu0 %v3667
    %v3669 = vpop.f32.mrf.mxu0
    %v3670 = vadd.f32 %v3643, %v3669
    %3671 = vdwg.mxu0
    %v3672 = vsub.f32 %v3666, %v2890
    %v3673 = vsub.f32 %v3670, %v2891
    %v3674 = vmul.f32 %v2111, %v2114
    %v3675 = vmul.f32 %v2112, %v2115
    %v3677 = vsel %vm89, %v3674, 0
    %v3680 = vsel %vm89, %v3675, 0
    %3682 = vmatpush.msra.mxu0 0.0
    %3683 = vmatpush.msra.mxu0 0.0
    %3684 = vmatpush.msra.mxu0 0.0
    %3685 = vmatpush.msra.mxu0 0.0
    %3686 = vmatpush.msra.mxu0 0.0
    %3687 = vmatpush.msra.mxu0 0.0
    %3688 = vmatpush.msra.mxu0 0.0
    %3689 = vmatpush.msra.mxu0 0.0
    %3690 = vmatpush.msra.mxu0 0.0
    %3691 = vmatpush.msra.mxu0 0.0
    %3692 = vmatpush.msra.mxu0 0.0
    %3693 = vmatpush.msra.mxu0 0.0
    %3694 = vmatpush.msra.mxu0 0.0
    %3695 = vmatpush.msra.mxu0 0.0
    %v3696 = vand.u32 %v82, 4294901760
    %3697 = vmatpush.msra.mxu0 %v3696
    %v3698 = vand.u32 %v81, 4294901760
    %3699 = vmatpush.msra.mxu0 %v3698
    %v3700 = vand.u32 %v3677, 4294901760
    %v3701 = vsub.f32 %v3677, %v3700
    %v3702 = vand.u32 %v3701, 4294901760
    %v3703 = vsub.f32 %v3701, %v3702
    %v3704 = vand.u32 %v3703, 4294901760
    %3705 = vmatmul.f32.gmra.mxu0 %v3704
    %v3706 = vpop.f32.mrf.mxu0
    %v3707 = vadd.f32 0.0, %v3706
    %v3708 = vand.u32 %v3680, 4294901760
    %v3709 = vsub.f32 %v3680, %v3708
    %v3710 = vand.u32 %v3709, 4294901760
    %v3711 = vsub.f32 %v3709, %v3710
    %v3712 = vand.u32 %v3711, 4294901760
    %3713 = vmatmul.f32.gmra.mxu0 %v3712
    %v3714 = vpop.f32.mrf.mxu0
    %v3715 = vadd.f32 0.0, %v3714
    %3716 = vdwg.mxu0
    %3717 = vmatpush.msra.mxu0 0.0
    %3718 = vmatpush.msra.mxu0 0.0
    %3719 = vmatpush.msra.mxu0 0.0
    %3720 = vmatpush.msra.mxu0 0.0
    %3721 = vmatpush.msra.mxu0 0.0
    %3722 = vmatpush.msra.mxu0 0.0
    %3723 = vmatpush.msra.mxu0 0.0
    %3724 = vmatpush.msra.mxu0 0.0
    %3725 = vmatpush.msra.mxu0 0.0
    %3726 = vmatpush.msra.mxu0 0.0
    %3727 = vmatpush.msra.mxu0 0.0
    %3728 = vmatpush.msra.mxu0 0.0
    %3729 = vmatpush.msra.mxu0 0.0
    %3730 = vmatpush.msra.mxu0 0.0
    %v3731 = vand.u32 %v82, 4294901760
    %v3732 = vsub.f32 %v82, %v3731
    %v3733 = vand.u32 %v3732, 4294901760
    %v3734 = vsub.f32 %v3732, %v3733
    %v3735 = vand.u32 %v3734, 4294901760
    %3736 = vmatpush.msra.mxu0 %v3735
    %v3737 = vand.u32 %v81, 4294901760
    %v3738 = vsub.f32 %v81, %v3737
    %v3739 = vand.u32 %v3738, 4294901760
    %v3740 = vsub.f32 %v3738, %v3739
    %v3741 = vand.u32 %v3740, 4294901760
    %3742 = vmatpush.msra.mxu0 %v3741
    %v3743 = vand.u32 %v3677, 4294901760
    %3744 = vmatmul.f32.gmra.mxu0 %v3743
    %v3745 = vpop.f32.mrf.mxu0
    %v3746 = vadd.f32 %v3707, %v3745
    %v3747 = vand.u32 %v3680, 4294901760
    %3748 = vmatmul.f32.gmra.mxu0 %v3747
    %v3749 = vpop.f32.mrf.mxu0
    %v3750 = vadd.f32 %v3715, %v3749
    %3751 = vdwg.mxu0
    %3752 = vmatpush.msra.mxu0 0.0
    %3753 = vmatpush.msra.mxu0 0.0
    %3754 = vmatpush.msra.mxu0 0.0
    %3755 = vmatpush.msra.mxu0 0.0
    %3756 = vmatpush.msra.mxu0 0.0
    %3757 = vmatpush.msra.mxu0 0.0
    %3758 = vmatpush.msra.mxu0 0.0
    %3759 = vmatpush.msra.mxu0 0.0
    %3760 = vmatpush.msra.mxu0 0.0
    %3761 = vmatpush.msra.mxu0 0.0
    %3762 = vmatpush.msra.mxu0 0.0
    %3763 = vmatpush.msra.mxu0 0.0
    %3764 = vmatpush.msra.mxu0 0.0
    %3765 = vmatpush.msra.mxu0 0.0
    %v3766 = vand.u32 %v82, 4294901760
    %v3767 = vsub.f32 %v82, %v3766
    %3768 = vmatpush.msra.mxu0 %v3767
    %v3769 = vand.u32 %v81, 4294901760
    %v3770 = vsub.f32 %v81, %v3769
    %3771 = vmatpush.msra.mxu0 %v3770
    %v3772 = vand.u32 %v3677, 4294901760
    %v3773 = vsub.f32 %v3677, %v3772
    %3774 = vmatmul.f32.gmra.mxu0 %v3773
    %v3775 = vpop.f32.mrf.mxu0
    %v3776 = vadd.f32 %v3746, %v3775
    %v3777 = vand.u32 %v3680, 4294901760
    %v3778 = vsub.f32 %v3680, %v3777
    %3779 = vmatmul.f32.gmra.mxu0 %v3778
    %v3780 = vpop.f32.mrf.mxu0
    %v3781 = vadd.f32 %v3750, %v3780
    %3782 = vdwg.mxu0
    %3783 = vmatpush.msra.mxu0 0.0
    %3784 = vmatpush.msra.mxu0 0.0
    %3785 = vmatpush.msra.mxu0 0.0
    %3786 = vmatpush.msra.mxu0 0.0
    %3787 = vmatpush.msra.mxu0 0.0
    %3788 = vmatpush.msra.mxu0 0.0
    %3789 = vmatpush.msra.mxu0 0.0
    %3790 = vmatpush.msra.mxu0 0.0
    %3791 = vmatpush.msra.mxu0 0.0
    %3792 = vmatpush.msra.mxu0 0.0
    %3793 = vmatpush.msra.mxu0 0.0
    %3794 = vmatpush.msra.mxu0 0.0
    %3795 = vmatpush.msra.mxu0 0.0
    %3796 = vmatpush.msra.mxu0 0.0
    %v3797 = vand.u32 %v82, 4294901760
    %3798 = vmatpush.msra.mxu0 %v3797
    %v3799 = vand.u32 %v81, 4294901760
    %3800 = vmatpush.msra.mxu0 %v3799
    %v3801 = vand.u32 %v3677, 4294901760
    %v3802 = vsub.f32 %v3677, %v3801
    %v3803 = vand.u32 %v3802, 4294901760
    %3804 = vmatmul.f32.gmra.mxu0 %v3803
    %v3805 = vpop.f32.mrf.mxu0
    %v3806 = vadd.f32 %v3776, %v3805
    %v3807 = vand.u32 %v3680, 4294901760
    %v3808 = vsub.f32 %v3680, %v3807
    %v3809 = vand.u32 %v3808, 4294901760
    %3810 = vmatmul.f32.gmra.mxu0 %v3809
    %v3811 = vpop.f32.mrf.mxu0
    %v3812 = vadd.f32 %v3781, %v3811
    %3813 = vdwg.mxu0
    %3814 = vmatpush.msra.mxu0 0.0
    %3815 = vmatpush.msra.mxu0 0.0
    %3816 = vmatpush.msra.mxu0 0.0
    %3817 = vmatpush.msra.mxu0 0.0
    %3818 = vmatpush.msra.mxu0 0.0
    %3819 = vmatpush.msra.mxu0 0.0
    %3820 = vmatpush.msra.mxu0 0.0
    %3821 = vmatpush.msra.mxu0 0.0
    %3822 = vmatpush.msra.mxu0 0.0
    %3823 = vmatpush.msra.mxu0 0.0
    %3824 = vmatpush.msra.mxu0 0.0
    %3825 = vmatpush.msra.mxu0 0.0
    %3826 = vmatpush.msra.mxu0 0.0
    %3827 = vmatpush.msra.mxu0 0.0
    %v3828 = vand.u32 %v82, 4294901760
    %v3829 = vsub.f32 %v82, %v3828
    %v3830 = vand.u32 %v3829, 4294901760
    %3831 = vmatpush.msra.mxu0 %v3830
    %v3832 = vand.u32 %v81, 4294901760
    %v3833 = vsub.f32 %v81, %v3832
    %v3834 = vand.u32 %v3833, 4294901760
    %3835 = vmatpush.msra.mxu0 %v3834
    %v3836 = vand.u32 %v3677, 4294901760
    %3837 = vmatmul.f32.gmra.mxu0 %v3836
    %v3838 = vpop.f32.mrf.mxu0
    %v3839 = vadd.f32 %v3806, %v3838
    %v3840 = vand.u32 %v3680, 4294901760
    %3841 = vmatmul.f32.gmra.mxu0 %v3840
    %v3842 = vpop.f32.mrf.mxu0
    %v3843 = vadd.f32 %v3812, %v3842
    %3844 = vdwg.mxu0
    %3845 = vmatpush.msra.mxu0 0.0
    %3846 = vmatpush.msra.mxu0 0.0
    %3847 = vmatpush.msra.mxu0 0.0
    %3848 = vmatpush.msra.mxu0 0.0
    %3849 = vmatpush.msra.mxu0 0.0
    %3850 = vmatpush.msra.mxu0 0.0
    %3851 = vmatpush.msra.mxu0 0.0
    %3852 = vmatpush.msra.mxu0 0.0
    %3853 = vmatpush.msra.mxu0 0.0
    %3854 = vmatpush.msra.mxu0 0.0
    %3855 = vmatpush.msra.mxu0 0.0
    %3856 = vmatpush.msra.mxu0 0.0
    %3857 = vmatpush.msra.mxu0 0.0
    %3858 = vmatpush.msra.mxu0 0.0
    %v3859 = vand.u32 %v82, 4294901760
    %3860 = vmatpush.msra.mxu0 %v3859
    %v3861 = vand.u32 %v81, 4294901760
    %3862 = vmatpush.msra.mxu0 %v3861
    %v3863 = vand.u32 %v3677, 4294901760
    %3864 = vmatmul.f32.gmra.mxu0 %v3863
    %v3865 = vpop.f32.mrf.mxu0
    %v3866 = vadd.f32 %v3839, %v3865
    %v3867 = vand.u32 %v3680, 4294901760
    %3868 = vmatmul.f32.gmra.mxu0 %v3867
    %v3869 = vpop.f32.mrf.mxu0
    %v3870 = vadd.f32 %v3843, %v3869
    %3871 = vdwg.mxu0
    %3872 = vmatpush.msra.mxu0 0.0
    %3873 = vmatpush.msra.mxu0 0.0
    %3874 = vmatpush.msra.mxu0 0.0
    %3875 = vmatpush.msra.mxu0 0.0
    %3876 = vmatpush.msra.mxu0 0.0
    %3877 = vmatpush.msra.mxu0 0.0
    %3878 = vmatpush.msra.mxu0 0.0
    %3879 = vmatpush.msra.mxu0 0.0
    %3880 = vmatpush.msra.mxu0 0.0
    %3881 = vmatpush.msra.mxu0 0.0
    %3882 = vmatpush.msra.mxu0 0.0
    %3883 = vmatpush.msra.mxu0 0.0
    %3884 = vmatpush.msra.mxu0 0.0
    %3885 = vmatpush.msra.mxu0 0.0
    %v3886 = vand.u32 %v3870, 4294901760
    %3887 = vmatpush.msra.mxu0 %v3886
    %v3888 = vand.u32 %v3866, 4294901760
    %3889 = vmatpush.msra.mxu0 %v3888
    %v3890 = vand.u32 %v287, 4294901760
    %v3891 = vsub.f32 %v287, %v3890
    %v3892 = vand.u32 %v3891, 4294901760
    %v3893 = vsub.f32 %v3891, %v3892
    %v3894 = vand.u32 %v3893, 4294901760
    %3895 = vmatmul.f32.gmra.mxu0 %v3894
    %v3896 = vpop.f32.mrf.mxu0
    %v3897 = vadd.f32 0.0, %v3896
    %v3898 = vand.u32 %v290, 4294901760
    %v3899 = vsub.f32 %v290, %v3898
    %v3900 = vand.u32 %v3899, 4294901760
    %v3901 = vsub.f32 %v3899, %v3900
    %v3902 = vand.u32 %v3901, 4294901760
    %3903 = vmatmul.f32.gmra.mxu0 %v3902
    %v3904 = vpop.f32.mrf.mxu0
    %v3905 = vadd.f32 0.0, %v3904
    %3906 = vdwg.mxu0
    %3907 = vmatpush.msra.mxu0 0.0
    %3908 = vmatpush.msra.mxu0 0.0
    %3909 = vmatpush.msra.mxu0 0.0
    %3910 = vmatpush.msra.mxu0 0.0
    %3911 = vmatpush.msra.mxu0 0.0
    %3912 = vmatpush.msra.mxu0 0.0
    %3913 = vmatpush.msra.mxu0 0.0
    %3914 = vmatpush.msra.mxu0 0.0
    %3915 = vmatpush.msra.mxu0 0.0
    %3916 = vmatpush.msra.mxu0 0.0
    %3917 = vmatpush.msra.mxu0 0.0
    %3918 = vmatpush.msra.mxu0 0.0
    %3919 = vmatpush.msra.mxu0 0.0
    %3920 = vmatpush.msra.mxu0 0.0
    %v3921 = vand.u32 %v3870, 4294901760
    %v3922 = vsub.f32 %v3870, %v3921
    %v3923 = vand.u32 %v3922, 4294901760
    %v3924 = vsub.f32 %v3922, %v3923
    %v3925 = vand.u32 %v3924, 4294901760
    %3926 = vmatpush.msra.mxu0 %v3925
    %v3927 = vand.u32 %v3866, 4294901760
    %v3928 = vsub.f32 %v3866, %v3927
    %v3929 = vand.u32 %v3928, 4294901760
    %v3930 = vsub.f32 %v3928, %v3929
    %v3931 = vand.u32 %v3930, 4294901760
    %3932 = vmatpush.msra.mxu0 %v3931
    %v3933 = vand.u32 %v287, 4294901760
    %3934 = vmatmul.f32.gmra.mxu0 %v3933
    %v3935 = vpop.f32.mrf.mxu0
    %v3936 = vadd.f32 %v3897, %v3935
    %v3937 = vand.u32 %v290, 4294901760
    %3938 = vmatmul.f32.gmra.mxu0 %v3937
    %v3939 = vpop.f32.mrf.mxu0
    %v3940 = vadd.f32 %v3905, %v3939
    %3941 = vdwg.mxu0
    %3942 = vmatpush.msra.mxu0 0.0
    %3943 = vmatpush.msra.mxu0 0.0
    %3944 = vmatpush.msra.mxu0 0.0
    %3945 = vmatpush.msra.mxu0 0.0
    %3946 = vmatpush.msra.mxu0 0.0
    %3947 = vmatpush.msra.mxu0 0.0
    %3948 = vmatpush.msra.mxu0 0.0
    %3949 = vmatpush.msra.mxu0 0.0
    %3950 = vmatpush.msra.mxu0 0.0
    %3951 = vmatpush.msra.mxu0 0.0
    %3952 = vmatpush.msra.mxu0 0.0
    %3953 = vmatpush.msra.mxu0 0.0
    %3954 = vmatpush.msra.mxu0 0.0
    %3955 = vmatpush.msra.mxu0 0.0
    %v3956 = vand.u32 %v3870, 4294901760
    %v3957 = vsub.f32 %v3870, %v3956
    %3958 = vmatpush.msra.mxu0 %v3957
    %v3959 = vand.u32 %v3866, 4294901760
    %v3960 = vsub.f32 %v3866, %v3959
    %3961 = vmatpush.msra.mxu0 %v3960
    %v3962 = vand.u32 %v287, 4294901760
    %v3963 = vsub.f32 %v287, %v3962
    %3964 = vmatmul.f32.gmra.mxu0 %v3963
    %v3965 = vpop.f32.mrf.mxu0
    %v3966 = vadd.f32 %v3936, %v3965
    %v3967 = vand.u32 %v290, 4294901760
    %v3968 = vsub.f32 %v290, %v3967
    %3969 = vmatmul.f32.gmra.mxu0 %v3968
    %v3970 = vpop.f32.mrf.mxu0
    %v3971 = vadd.f32 %v3940, %v3970
    %3972 = vdwg.mxu0
    %3973 = vmatpush.msra.mxu0 0.0
    %3974 = vmatpush.msra.mxu0 0.0
    %3975 = vmatpush.msra.mxu0 0.0
    %3976 = vmatpush.msra.mxu0 0.0
    %3977 = vmatpush.msra.mxu0 0.0
    %3978 = vmatpush.msra.mxu0 0.0
    %3979 = vmatpush.msra.mxu0 0.0
    %3980 = vmatpush.msra.mxu0 0.0
    %3981 = vmatpush.msra.mxu0 0.0
    %3982 = vmatpush.msra.mxu0 0.0
    %3983 = vmatpush.msra.mxu0 0.0
    %3984 = vmatpush.msra.mxu0 0.0
    %3985 = vmatpush.msra.mxu0 0.0
    %3986 = vmatpush.msra.mxu0 0.0
    %v3987 = vand.u32 %v3870, 4294901760
    %3988 = vmatpush.msra.mxu0 %v3987
    %v3989 = vand.u32 %v3866, 4294901760
    %3990 = vmatpush.msra.mxu0 %v3989
    %v3991 = vand.u32 %v287, 4294901760
    %v3992 = vsub.f32 %v287, %v3991
    %v3993 = vand.u32 %v3992, 4294901760
    %3994 = vmatmul.f32.gmra.mxu0 %v3993
    %v3995 = vpop.f32.mrf.mxu0
    %v3996 = vadd.f32 %v3966, %v3995
    %v3997 = vand.u32 %v290, 4294901760
    %v3998 = vsub.f32 %v290, %v3997
    %v3999 = vand.u32 %v3998, 4294901760
    %4000 = vmatmul.f32.gmra.mxu0 %v3999
    %v4001 = vpop.f32.mrf.mxu0
    %v4002 = vadd.f32 %v3971, %v4001
    %4003 = vdwg.mxu0
    %4004 = vmatpush.msra.mxu0 0.0
    %4005 = vmatpush.msra.mxu0 0.0
    %4006 = vmatpush.msra.mxu0 0.0
    %4007 = vmatpush.msra.mxu0 0.0
    %4008 = vmatpush.msra.mxu0 0.0
    %4009 = vmatpush.msra.mxu0 0.0
    %4010 = vmatpush.msra.mxu0 0.0
    %4011 = vmatpush.msra.mxu0 0.0
    %4012 = vmatpush.msra.mxu0 0.0
    %4013 = vmatpush.msra.mxu0 0.0
    %4014 = vmatpush.msra.mxu0 0.0
    %4015 = vmatpush.msra.mxu0 0.0
    %4016 = vmatpush.msra.mxu0 0.0
    %4017 = vmatpush.msra.mxu0 0.0
    %v4018 = vand.u32 %v3870, 4294901760
    %v4019 = vsub.f32 %v3870, %v4018
    %v4020 = vand.u32 %v4019, 4294901760
    %4021 = vmatpush.msra.mxu0 %v4020
    %v4022 = vand.u32 %v3866, 4294901760
    %v4023 = vsub.f32 %v3866, %v4022
    %v4024 = vand.u32 %v4023, 4294901760
    %4025 = vmatpush.msra.mxu0 %v4024
    %v4026 = vand.u32 %v287, 4294901760
    %4027 = vmatmul.f32.gmra.mxu0 %v4026
    %v4028 = vpop.f32.mrf.mxu0
    %v4029 = vadd.f32 %v3996, %v4028
    %v4030 = vand.u32 %v290, 4294901760
    %4031 = vmatmul.f32.gmra.mxu0 %v4030
    %v4032 = vpop.f32.mrf.mxu0
    %v4033 = vadd.f32 %v4002, %v4032
    %4034 = vdwg.mxu0
    %4035 = vmatpush.msra.mxu0 0.0
    %4036 = vmatpush.msra.mxu0 0.0
    %4037 = vmatpush.msra.mxu0 0.0
    %4038 = vmatpush.msra.mxu0 0.0
    %4039 = vmatpush.msra.mxu0 0.0
    %4040 = vmatpush.msra.mxu0 0.0
    %4041 = vmatpush.msra.mxu0 0.0
    %4042 = vmatpush.msra.mxu0 0.0
    %4043 = vmatpush.msra.mxu0 0.0
    %4044 = vmatpush.msra.mxu0 0.0
    %4045 = vmatpush.msra.mxu0 0.0
    %4046 = vmatpush.msra.mxu0 0.0
    %4047 = vmatpush.msra.mxu0 0.0
    %4048 = vmatpush.msra.mxu0 0.0
    %v4049 = vand.u32 %v3870, 4294901760
    %4050 = vmatpush.msra.mxu0 %v4049
    %v4051 = vand.u32 %v3866, 4294901760
    %4052 = vmatpush.msra.mxu0 %v4051
    %v4053 = vand.u32 %v287, 4294901760
    %4054 = vmatmul.f32.gmra.mxu0 %v4053
    %v4055 = vpop.f32.mrf.mxu0
    %v4056 = vadd.f32 %v4029, %v4055
    %v4057 = vand.u32 %v290, 4294901760
    %4058 = vmatmul.f32.gmra.mxu0 %v4057
    %v4059 = vpop.f32.mrf.mxu0
    %v4060 = vadd.f32 %v4033, %v4059
    %4061 = vdwg.mxu0
    %v4062 = vsub.f32 %v4056, %v2892
    %v4063 = vsub.f32 %v4060, %v2893
    %v4064 = vmul.f32 %v2892, 2.0
    %v4065 = vmul.f32 %v2893, 2.0
    %v4066 = vadd.f32 %v4064, 0.0001
    %v4067 = vadd.f32 %v4065, 0.0001
    %v4068 = vmul.f32 %v4062, 2.0
    %v4069 = vmul.f32 %v4063, 2.0
    %v4070 = vadd.f32 %v4068, 0.0009
    %v4071 = vadd.f32 %v4069, 0.0009
    %v4072 = vmul.f32 %v4066, %v4070
    %v4073 = vmul.f32 %v4067, %v4071
    %v4074 = vadd.f32 %v2888, %v2890
    %v4075 = vadd.f32 %v2889, %v2891
    %v4076 = vadd.f32 %v4074, 0.0001
    %v4077 = vadd.f32 %v4075, 0.0001
    %v4078 = vadd.f32 %v3282, %v3672
    %v4079 = vadd.f32 %v3283, %v3673
    %v4080 = vadd.f32 %v4078, 0.0009
    %v4081 = vadd.f32 %v4079, 0.0009
    %v4082 = vmul.f32 %v4076, %v4080
    %v4083 = vmul.f32 %v4077, %v4081
    %v4084 = vadd.f32 %v4082, 1e-12
    %v4085 = vadd.f32 %v4083, 1e-12
    %v4086 = vrcp.pop %v4084
    %v4087 = vmul.f32 %v4084, %v4086
    %v4088 = vsub.f32 1.0, %v4087
    %v4089 = vmul.f32 %v4086, %v4088
    %v4090 = vadd.f32 %v4086, %v4089
    %vm4091 = vweird.f32 %v4084
    %vm4092 = vweird.f32 %v4086
    %vm4093 = vmor %vm4091, %vm4092
    %v4094 = vsel %vm4093, %v4086, %v4090
    %v4095 = vand.u32 2147483647, %v4084
    %vm4096 = vcmp.eq.f32.partialorder %v4095, 8.507059e+37
    %v4097 = vand.u32 %v4084, 2147483648
    %v4098 = vor.u32 1.1754944e-38, %v4097
    %v4099 = vsel %vm4096, %v4098, %v4094
    %v4100 = vrcp.pop %v4085
    %v4101 = vmul.f32 %v4085, %v4100
    %v4102 = vsub.f32 1.0, %v4101
    %v4103 = vmul.f32 %v4100, %v4102
    %v4104 = vadd.f32 %v4100, %v4103
    %vm4105 = vweird.f32 %v4085
    %vm4106 = vweird.f32 %v4100
    %vm4107 = vmor %vm4105, %vm4106
    %v4108 = vsel %vm4107, %v4100, %v4104
    %v4109 = vand.u32 2147483647, %v4085
    %vm4110 = vcmp.eq.f32.partialorder %v4109, 8.507059e+37
    %v4111 = vand.u32 %v4085, 2147483648
    %v4112 = vor.u32 1.1754944e-38, %v4111
    %v4113 = vsel %vm4110, %v4112, %v4108
    %v4114 = vmul.f32 %v4072, %v4099
    %v4115 = vmul.f32 %v4073, %v4113
    %v4116 = vsel %vm89, %v4114, 0.0
    %v4117 = vsel %vm89, %v4115, 0.0
    %v4118 = vadd.f32 %v4116, %v4117
    %4119 = vadd.xlane.f32.xlu0 %v4118
    %v4120 = vpop.xlane.xlu0 %4119
    %v4121 = vrot.slane %v4120, 4
    %v4122 = vadd.f32 %v4120, %v4121
    %v4123 = vrot.slane %v4122, 2
    %v4124 = vadd.f32 %v4122, %v4123
    %v4125 = vrot.slane %v4124, 1
    %v4126 = vadd.f32 %v4124, %v4125
    %s4127 = vtos %v4126
    %v4128 = vstv %s4127
    %v4129 = vadd.f32 %v2109, %v4128
    %s4130 = scalar_lea.vmem [#allocation2], 32
    %v4131 = vld [vmem:[%s4130] sm:$0xff]
    %v4132 = vld [vmem:[%s4130 + $0x8] sm:$0xff]
    %s4133 = scalar_lea.vmem [#allocation5], 32
    %v4134 = vld [vmem:[%s4133] sm:$0xff]
    %v4135 = vld [vmem:[%s4133 + $0x8] sm:$0xff]
    %v4137 = vsel %vm89, %v4131, 0
    %v4140 = vsel %vm89, %v4132, 0
    %4142 = vmatpush.msra.mxu0 0.0
    %4143 = vmatpush.msra.mxu0 0.0
    %4144 = vmatpush.msra.mxu0 0.0
    %4145 = vmatpush.msra.mxu0 0.0
    %4146 = vmatpush.msra.mxu0 0.0
    %4147 = vmatpush.msra.mxu0 0.0
    %4148 = vmatpush.msra.mxu0 0.0
    %4149 = vmatpush.msra.mxu0 0.0
    %4150 = vmatpush.msra.mxu0 0.0
    %4151 = vmatpush.msra.mxu0 0.0
    %4152 = vmatpush.msra.mxu0 0.0
    %4153 = vmatpush.msra.mxu0 0.0
    %4154 = vmatpush.msra.mxu0 0.0
    %4155 = vmatpush.msra.mxu0 0.0
    %v4156 = vand.u32 %v82, 4294901760
    %4157 = vmatpush.msra.mxu0 %v4156
    %v4158 = vand.u32 %v81, 4294901760
    %4159 = vmatpush.msra.mxu0 %v4158
    %v4160 = vand.u32 %v4137, 4294901760
    %v4161 = vsub.f32 %v4137, %v4160
    %v4162 = vand.u32 %v4161, 4294901760
    %v4163 = vsub.f32 %v4161, %v4162
    %v4164 = vand.u32 %v4163, 4294901760
    %4165 = vmatmul.f32.gmra.mxu0 %v4164
    %v4166 = vpop.f32.mrf.mxu0
    %v4167 = vadd.f32 0.0, %v4166
    %v4168 = vand.u32 %v4140, 4294901760
    %v4169 = vsub.f32 %v4140, %v4168
    %v4170 = vand.u32 %v4169, 4294901760
    %v4171 = vsub.f32 %v4169, %v4170
    %v4172 = vand.u32 %v4171, 4294901760
    %4173 = vmatmul.f32.gmra.mxu0 %v4172
    %v4174 = vpop.f32.mrf.mxu0
    %v4175 = vadd.f32 0.0, %v4174
    %4176 = vdwg.mxu0
    %4177 = vmatpush.msra.mxu0 0.0
    %4178 = vmatpush.msra.mxu0 0.0
    %4179 = vmatpush.msra.mxu0 0.0
    %4180 = vmatpush.msra.mxu0 0.0
    %4181 = vmatpush.msra.mxu0 0.0
    %4182 = vmatpush.msra.mxu0 0.0
    %4183 = vmatpush.msra.mxu0 0.0
    %4184 = vmatpush.msra.mxu0 0.0
    %4185 = vmatpush.msra.mxu0 0.0
    %4186 = vmatpush.msra.mxu0 0.0
    %4187 = vmatpush.msra.mxu0 0.0
    %4188 = vmatpush.msra.mxu0 0.0
    %4189 = vmatpush.msra.mxu0 0.0
    %4190 = vmatpush.msra.mxu0 0.0
    %v4191 = vand.u32 %v82, 4294901760
    %v4192 = vsub.f32 %v82, %v4191
    %v4193 = vand.u32 %v4192, 4294901760
    %v4194 = vsub.f32 %v4192, %v4193
    %v4195 = vand.u32 %v4194, 4294901760
    %4196 = vmatpush.msra.mxu0 %v4195
    %v4197 = vand.u32 %v81, 4294901760
    %v4198 = vsub.f32 %v81, %v4197
    %v4199 = vand.u32 %v4198, 4294901760
    %v4200 = vsub.f32 %v4198, %v4199
    %v4201 = vand.u32 %v4200, 4294901760
    %4202 = vmatpush.msra.mxu0 %v4201
    %v4203 = vand.u32 %v4137, 4294901760
    %4204 = vmatmul.f32.gmra.mxu0 %v4203
    %v4205 = vpop.f32.mrf.mxu0
    %v4206 = vadd.f32 %v4167, %v4205
    %v4207 = vand.u32 %v4140, 4294901760
    %4208 = vmatmul.f32.gmra.mxu0 %v4207
    %v4209 = vpop.f32.mrf.mxu0
    %v4210 = vadd.f32 %v4175, %v4209
    %4211 = vdwg.mxu0
    %4212 = vmatpush.msra.mxu0 0.0
    %4213 = vmatpush.msra.mxu0 0.0
    %4214 = vmatpush.msra.mxu0 0.0
    %4215 = vmatpush.msra.mxu0 0.0
    %4216 = vmatpush.msra.mxu0 0.0
    %4217 = vmatpush.msra.mxu0 0.0
    %4218 = vmatpush.msra.mxu0 0.0
    %4219 = vmatpush.msra.mxu0 0.0
    %4220 = vmatpush.msra.mxu0 0.0
    %4221 = vmatpush.msra.mxu0 0.0
    %4222 = vmatpush.msra.mxu0 0.0
    %4223 = vmatpush.msra.mxu0 0.0
    %4224 = vmatpush.msra.mxu0 0.0
    %4225 = vmatpush.msra.mxu0 0.0
    %v4226 = vand.u32 %v82, 4294901760
    %v4227 = vsub.f32 %v82, %v4226
    %4228 = vmatpush.msra.mxu0 %v4227
    %v4229 = vand.u32 %v81, 4294901760
    %v4230 = vsub.f32 %v81, %v4229
    %4231 = vmatpush.msra.mxu0 %v4230
    %v4232 = vand.u32 %v4137, 4294901760
    %v4233 = vsub.f32 %v4137, %v4232
    %4234 = vmatmul.f32.gmra.mxu0 %v4233
    %v4235 = vpop.f32.mrf.mxu0
    %v4236 = vadd.f32 %v4206, %v4235
    %v4237 = vand.u32 %v4140, 4294901760
    %v4238 = vsub.f32 %v4140, %v4237
    %4239 = vmatmul.f32.gmra.mxu0 %v4238
    %v4240 = vpop.f32.mrf.mxu0
    %v4241 = vadd.f32 %v4210, %v4240
    %4242 = vdwg.mxu0
    %4243 = vmatpush.msra.mxu0 0.0
    %4244 = vmatpush.msra.mxu0 0.0
    %4245 = vmatpush.msra.mxu0 0.0
    %4246 = vmatpush.msra.mxu0 0.0
    %4247 = vmatpush.msra.mxu0 0.0
    %4248 = vmatpush.msra.mxu0 0.0
    %4249 = vmatpush.msra.mxu0 0.0
    %4250 = vmatpush.msra.mxu0 0.0
    %4251 = vmatpush.msra.mxu0 0.0
    %4252 = vmatpush.msra.mxu0 0.0
    %4253 = vmatpush.msra.mxu0 0.0
    %4254 = vmatpush.msra.mxu0 0.0
    %4255 = vmatpush.msra.mxu0 0.0
    %4256 = vmatpush.msra.mxu0 0.0
    %v4257 = vand.u32 %v82, 4294901760
    %4258 = vmatpush.msra.mxu0 %v4257
    %v4259 = vand.u32 %v81, 4294901760
    %4260 = vmatpush.msra.mxu0 %v4259
    %v4261 = vand.u32 %v4137, 4294901760
    %v4262 = vsub.f32 %v4137, %v4261
    %v4263 = vand.u32 %v4262, 4294901760
    %4264 = vmatmul.f32.gmra.mxu0 %v4263
    %v4265 = vpop.f32.mrf.mxu0
    %v4266 = vadd.f32 %v4236, %v4265
    %v4267 = vand.u32 %v4140, 4294901760
    %v4268 = vsub.f32 %v4140, %v4267
    %v4269 = vand.u32 %v4268, 4294901760
    %4270 = vmatmul.f32.gmra.mxu0 %v4269
    %v4271 = vpop.f32.mrf.mxu0
    %v4272 = vadd.f32 %v4241, %v4271
    %4273 = vdwg.mxu0
    %4274 = vmatpush.msra.mxu0 0.0
    %4275 = vmatpush.msra.mxu0 0.0
    %4276 = vmatpush.msra.mxu0 0.0
    %4277 = vmatpush.msra.mxu0 0.0
    %4278 = vmatpush.msra.mxu0 0.0
    %4279 = vmatpush.msra.mxu0 0.0
    %4280 = vmatpush.msra.mxu0 0.0
    %4281 = vmatpush.msra.mxu0 0.0
    %4282 = vmatpush.msra.mxu0 0.0
    %4283 = vmatpush.msra.mxu0 0.0
    %4284 = vmatpush.msra.mxu0 0.0
    %4285 = vmatpush.msra.mxu0 0.0
    %4286 = vmatpush.msra.mxu0 0.0
    %4287 = vmatpush.msra.mxu0 0.0
    %v4288 = vand.u32 %v82, 4294901760
    %v4289 = vsub.f32 %v82, %v4288
    %v4290 = vand.u32 %v4289, 4294901760
    %4291 = vmatpush.msra.mxu0 %v4290
    %v4292 = vand.u32 %v81, 4294901760
    %v4293 = vsub.f32 %v81, %v4292
    %v4294 = vand.u32 %v4293, 4294901760
    %4295 = vmatpush.msra.mxu0 %v4294
    %v4296 = vand.u32 %v4137, 4294901760
    %4297 = vmatmul.f32.gmra.mxu0 %v4296
    %v4298 = vpop.f32.mrf.mxu0
    %v4299 = vadd.f32 %v4266, %v4298
    %v4300 = vand.u32 %v4140, 4294901760
    %4301 = vmatmul.f32.gmra.mxu0 %v4300
    %v4302 = vpop.f32.mrf.mxu0
    %v4303 = vadd.f32 %v4272, %v4302
    %4304 = vdwg.mxu0
    %4305 = vmatpush.msra.mxu0 0.0
    %4306 = vmatpush.msra.mxu0 0.0
    %4307 = vmatpush.msra.mxu0 0.0
    %4308 = vmatpush.msra.mxu0 0.0
    %4309 = vmatpush.msra.mxu0 0.0
    %4310 = vmatpush.msra.mxu0 0.0
    %4311 = vmatpush.msra.mxu0 0.0
    %4312 = vmatpush.msra.mxu0 0.0
    %4313 = vmatpush.msra.mxu0 0.0
    %4314 = vmatpush.msra.mxu0 0.0
    %4315 = vmatpush.msra.mxu0 0.0
    %4316 = vmatpush.msra.mxu0 0.0
    %4317 = vmatpush.msra.mxu0 0.0
    %4318 = vmatpush.msra.mxu0 0.0
    %v4319 = vand.u32 %v82, 4294901760
    %4320 = vmatpush.msra.mxu0 %v4319
    %v4321 = vand.u32 %v81, 4294901760
    %4322 = vmatpush.msra.mxu0 %v4321
    %v4323 = vand.u32 %v4137, 4294901760
    %4324 = vmatmul.f32.gmra.mxu0 %v4323
    %v4325 = vpop.f32.mrf.mxu0
    %v4326 = vadd.f32 %v4299, %v4325
    %v4327 = vand.u32 %v4140, 4294901760
    %4328 = vmatmul.f32.gmra.mxu0 %v4327
    %v4329 = vpop.f32.mrf.mxu0
    %v4330 = vadd.f32 %v4303, %v4329
    %4331 = vdwg.mxu0
    %4332 = vmatpush.msra.mxu0 0.0
    %4333 = vmatpush.msra.mxu0 0.0
    %4334 = vmatpush.msra.mxu0 0.0
    %4335 = vmatpush.msra.mxu0 0.0
    %4336 = vmatpush.msra.mxu0 0.0
    %4337 = vmatpush.msra.mxu0 0.0
    %4338 = vmatpush.msra.mxu0 0.0
    %4339 = vmatpush.msra.mxu0 0.0
    %4340 = vmatpush.msra.mxu0 0.0
    %4341 = vmatpush.msra.mxu0 0.0
    %4342 = vmatpush.msra.mxu0 0.0
    %4343 = vmatpush.msra.mxu0 0.0
    %4344 = vmatpush.msra.mxu0 0.0
    %4345 = vmatpush.msra.mxu0 0.0
    %v4346 = vand.u32 %v4330, 4294901760
    %4347 = vmatpush.msra.mxu0 %v4346
    %v4348 = vand.u32 %v4326, 4294901760
    %4349 = vmatpush.msra.mxu0 %v4348
    %v4350 = vand.u32 %v287, 4294901760
    %v4351 = vsub.f32 %v287, %v4350
    %v4352 = vand.u32 %v4351, 4294901760
    %v4353 = vsub.f32 %v4351, %v4352
    %v4354 = vand.u32 %v4353, 4294901760
    %4355 = vmatmul.f32.gmra.mxu0 %v4354
    %v4356 = vpop.f32.mrf.mxu0
    %v4357 = vadd.f32 0.0, %v4356
    %v4358 = vand.u32 %v290, 4294901760
    %v4359 = vsub.f32 %v290, %v4358
    %v4360 = vand.u32 %v4359, 4294901760
    %v4361 = vsub.f32 %v4359, %v4360
    %v4362 = vand.u32 %v4361, 4294901760
    %4363 = vmatmul.f32.gmra.mxu0 %v4362
    %v4364 = vpop.f32.mrf.mxu0
    %v4365 = vadd.f32 0.0, %v4364
    %4366 = vdwg.mxu0
    %4367 = vmatpush.msra.mxu0 0.0
    %4368 = vmatpush.msra.mxu0 0.0
    %4369 = vmatpush.msra.mxu0 0.0
    %4370 = vmatpush.msra.mxu0 0.0
    %4371 = vmatpush.msra.mxu0 0.0
    %4372 = vmatpush.msra.mxu0 0.0
    %4373 = vmatpush.msra.mxu0 0.0
    %4374 = vmatpush.msra.mxu0 0.0
    %4375 = vmatpush.msra.mxu0 0.0
    %4376 = vmatpush.msra.mxu0 0.0
    %4377 = vmatpush.msra.mxu0 0.0
    %4378 = vmatpush.msra.mxu0 0.0
    %4379 = vmatpush.msra.mxu0 0.0
    %4380 = vmatpush.msra.mxu0 0.0
    %v4381 = vand.u32 %v4330, 4294901760
    %v4382 = vsub.f32 %v4330, %v4381
    %v4383 = vand.u32 %v4382, 4294901760
    %v4384 = vsub.f32 %v4382, %v4383
    %v4385 = vand.u32 %v4384, 4294901760
    %4386 = vmatpush.msra.mxu0 %v4385
    %v4387 = vand.u32 %v4326, 4294901760
    %v4388 = vsub.f32 %v4326, %v4387
    %v4389 = vand.u32 %v4388, 4294901760
    %v4390 = vsub.f32 %v4388, %v4389
    %v4391 = vand.u32 %v4390, 4294901760
    %4392 = vmatpush.msra.mxu0 %v4391
    %v4393 = vand.u32 %v287, 4294901760
    %4394 = vmatmul.f32.gmra.mxu0 %v4393
    %v4395 = vpop.f32.mrf.mxu0
    %v4396 = vadd.f32 %v4357, %v4395
    %v4397 = vand.u32 %v290, 4294901760
    %4398 = vmatmul.f32.gmra.mxu0 %v4397
    %v4399 = vpop.f32.mrf.mxu0
    %v4400 = vadd.f32 %v4365, %v4399
    %4401 = vdwg.mxu0
    %4402 = vmatpush.msra.mxu0 0.0
    %4403 = vmatpush.msra.mxu0 0.0
    %4404 = vmatpush.msra.mxu0 0.0
    %4405 = vmatpush.msra.mxu0 0.0
    %4406 = vmatpush.msra.mxu0 0.0
    %4407 = vmatpush.msra.mxu0 0.0
    %4408 = vmatpush.msra.mxu0 0.0
    %4409 = vmatpush.msra.mxu0 0.0
    %4410 = vmatpush.msra.mxu0 0.0
    %4411 = vmatpush.msra.mxu0 0.0
    %4412 = vmatpush.msra.mxu0 0.0
    %4413 = vmatpush.msra.mxu0 0.0
    %4414 = vmatpush.msra.mxu0 0.0
    %4415 = vmatpush.msra.mxu0 0.0
    %v4416 = vand.u32 %v4330, 4294901760
    %v4417 = vsub.f32 %v4330, %v4416
    %4418 = vmatpush.msra.mxu0 %v4417
    %v4419 = vand.u32 %v4326, 4294901760
    %v4420 = vsub.f32 %v4326, %v4419
    %4421 = vmatpush.msra.mxu0 %v4420
    %v4422 = vand.u32 %v287, 4294901760
    %v4423 = vsub.f32 %v287, %v4422
    %4424 = vmatmul.f32.gmra.mxu0 %v4423
    %v4425 = vpop.f32.mrf.mxu0
    %v4426 = vadd.f32 %v4396, %v4425
    %v4427 = vand.u32 %v290, 4294901760
    %v4428 = vsub.f32 %v290, %v4427
    %4429 = vmatmul.f32.gmra.mxu0 %v4428
    %v4430 = vpop.f32.mrf.mxu0
    %v4431 = vadd.f32 %v4400, %v4430
    %4432 = vdwg.mxu0
    %4433 = vmatpush.msra.mxu0 0.0
    %4434 = vmatpush.msra.mxu0 0.0
    %4435 = vmatpush.msra.mxu0 0.0
    %4436 = vmatpush.msra.mxu0 0.0
    %4437 = vmatpush.msra.mxu0 0.0
    %4438 = vmatpush.msra.mxu0 0.0
    %4439 = vmatpush.msra.mxu0 0.0
    %4440 = vmatpush.msra.mxu0 0.0
    %4441 = vmatpush.msra.mxu0 0.0
    %4442 = vmatpush.msra.mxu0 0.0
    %4443 = vmatpush.msra.mxu0 0.0
    %4444 = vmatpush.msra.mxu0 0.0
    %4445 = vmatpush.msra.mxu0 0.0
    %4446 = vmatpush.msra.mxu0 0.0
    %v4447 = vand.u32 %v4330, 4294901760
    %4448 = vmatpush.msra.mxu0 %v4447
    %v4449 = vand.u32 %v4326, 4294901760
    %4450 = vmatpush.msra.mxu0 %v4449
    %v4451 = vand.u32 %v287, 4294901760
    %v4452 = vsub.f32 %v287, %v4451
    %v4453 = vand.u32 %v4452, 4294901760
    %4454 = vmatmul.f32.gmra.mxu0 %v4453
    %v4455 = vpop.f32.mrf.mxu0
    %v4456 = vadd.f32 %v4426, %v4455
    %v4457 = vand.u32 %v290, 4294901760
    %v4458 = vsub.f32 %v290, %v4457
    %v4459 = vand.u32 %v4458, 4294901760
    %4460 = vmatmul.f32.gmra.mxu0 %v4459
    %v4461 = vpop.f32.mrf.mxu0
    %v4462 = vadd.f32 %v4431, %v4461
    %4463 = vdwg.mxu0
    %4464 = vmatpush.msra.mxu0 0.0
    %4465 = vmatpush.msra.mxu0 0.0
    %4466 = vmatpush.msra.mxu0 0.0
    %4467 = vmatpush.msra.mxu0 0.0
    %4468 = vmatpush.msra.mxu0 0.0
    %4469 = vmatpush.msra.mxu0 0.0
    %4470 = vmatpush.msra.mxu0 0.0
    %4471 = vmatpush.msra.mxu0 0.0
    %4472 = vmatpush.msra.mxu0 0.0
    %4473 = vmatpush.msra.mxu0 0.0
    %4474 = vmatpush.msra.mxu0 0.0
    %4475 = vmatpush.msra.mxu0 0.0
    %4476 = vmatpush.msra.mxu0 0.0
    %4477 = vmatpush.msra.mxu0 0.0
    %v4478 = vand.u32 %v4330, 4294901760
    %v4479 = vsub.f32 %v4330, %v4478
    %v4480 = vand.u32 %v4479, 4294901760
    %4481 = vmatpush.msra.mxu0 %v4480
    %v4482 = vand.u32 %v4326, 4294901760
    %v4483 = vsub.f32 %v4326, %v4482
    %v4484 = vand.u32 %v4483, 4294901760
    %4485 = vmatpush.msra.mxu0 %v4484
    %v4486 = vand.u32 %v287, 4294901760
    %4487 = vmatmul.f32.gmra.mxu0 %v4486
    %v4488 = vpop.f32.mrf.mxu0
    %v4489 = vadd.f32 %v4456, %v4488
    %v4490 = vand.u32 %v290, 4294901760
    %4491 = vmatmul.f32.gmra.mxu0 %v4490
    %v4492 = vpop.f32.mrf.mxu0
    %v4493 = vadd.f32 %v4462, %v4492
    %4494 = vdwg.mxu0
    %4495 = vmatpush.msra.mxu0 0.0
    %4496 = vmatpush.msra.mxu0 0.0
    %4497 = vmatpush.msra.mxu0 0.0
    %4498 = vmatpush.msra.mxu0 0.0
    %4499 = vmatpush.msra.mxu0 0.0
    %4500 = vmatpush.msra.mxu0 0.0
    %4501 = vmatpush.msra.mxu0 0.0
    %4502 = vmatpush.msra.mxu0 0.0
    %4503 = vmatpush.msra.mxu0 0.0
    %4504 = vmatpush.msra.mxu0 0.0
    %4505 = vmatpush.msra.mxu0 0.0
    %4506 = vmatpush.msra.mxu0 0.0
    %4507 = vmatpush.msra.mxu0 0.0
    %4508 = vmatpush.msra.mxu0 0.0
    %v4509 = vand.u32 %v4330, 4294901760
    %4510 = vmatpush.msra.mxu0 %v4509
    %v4511 = vand.u32 %v4326, 4294901760
    %4512 = vmatpush.msra.mxu0 %v4511
    %v4513 = vand.u32 %v287, 4294901760
    %4514 = vmatmul.f32.gmra.mxu0 %v4513
    %v4515 = vpop.f32.mrf.mxu0
    %v4516 = vadd.f32 %v4489, %v4515
    %v4517 = vand.u32 %v290, 4294901760
    %4518 = vmatmul.f32.gmra.mxu0 %v4517
    %v4519 = vpop.f32.mrf.mxu0
    %v4520 = vadd.f32 %v4493, %v4519
    %4521 = vdwg.mxu0
    %v4523 = vsel %vm89, %v4134, 0
    %v4526 = vsel %vm89, %v4135, 0
    %4528 = vmatpush.msra.mxu0 0.0
    %4529 = vmatpush.msra.mxu0 0.0
    %4530 = vmatpush.msra.mxu0 0.0
    %4531 = vmatpush.msra.mxu0 0.0
    %4532 = vmatpush.msra.mxu0 0.0
    %4533 = vmatpush.msra.mxu0 0.0
    %4534 = vmatpush.msra.mxu0 0.0
    %4535 = vmatpush.msra.mxu0 0.0
    %4536 = vmatpush.msra.mxu0 0.0
    %4537 = vmatpush.msra.mxu0 0.0
    %4538 = vmatpush.msra.mxu0 0.0
    %4539 = vmatpush.msra.mxu0 0.0
    %4540 = vmatpush.msra.mxu0 0.0
    %4541 = vmatpush.msra.mxu0 0.0
    %v4542 = vand.u32 %v82, 4294901760
    %4543 = vmatpush.msra.mxu0 %v4542
    %v4544 = vand.u32 %v81, 4294901760
    %4545 = vmatpush.msra.mxu0 %v4544
    %v4546 = vand.u32 %v4523, 4294901760
    %v4547 = vsub.f32 %v4523, %v4546
    %v4548 = vand.u32 %v4547, 4294901760
    %v4549 = vsub.f32 %v4547, %v4548
    %v4550 = vand.u32 %v4549, 4294901760
    %4551 = vmatmul.f32.gmra.mxu0 %v4550
    %v4552 = vpop.f32.mrf.mxu0
    %v4553 = vadd.f32 0.0, %v4552
    %v4554 = vand.u32 %v4526, 4294901760
    %v4555 = vsub.f32 %v4526, %v4554
    %v4556 = vand.u32 %v4555, 4294901760
    %v4557 = vsub.f32 %v4555, %v4556
    %v4558 = vand.u32 %v4557, 4294901760
    %4559 = vmatmul.f32.gmra.mxu0 %v4558
    %v4560 = vpop.f32.mrf.mxu0
    %v4561 = vadd.f32 0.0, %v4560
    %4562 = vdwg.mxu0
    %4563 = vmatpush.msra.mxu0 0.0
    %4564 = vmatpush.msra.mxu0 0.0
    %4565 = vmatpush.msra.mxu0 0.0
    %4566 = vmatpush.msra.mxu0 0.0
    %4567 = vmatpush.msra.mxu0 0.0
    %4568 = vmatpush.msra.mxu0 0.0
    %4569 = vmatpush.msra.mxu0 0.0
    %4570 = vmatpush.msra.mxu0 0.0
    %4571 = vmatpush.msra.mxu0 0.0
    %4572 = vmatpush.msra.mxu0 0.0
    %4573 = vmatpush.msra.mxu0 0.0
    %4574 = vmatpush.msra.mxu0 0.0
    %4575 = vmatpush.msra.mxu0 0.0
    %4576 = vmatpush.msra.mxu0 0.0
    %v4577 = vand.u32 %v82, 4294901760
    %v4578 = vsub.f32 %v82, %v4577
    %v4579 = vand.u32 %v4578, 4294901760
    %v4580 = vsub.f32 %v4578, %v4579
    %v4581 = vand.u32 %v4580, 4294901760
    %4582 = vmatpush.msra.mxu0 %v4581
    %v4583 = vand.u32 %v81, 4294901760
    %v4584 = vsub.f32 %v81, %v4583
    %v4585 = vand.u32 %v4584, 4294901760
    %v4586 = vsub.f32 %v4584, %v4585
    %v4587 = vand.u32 %v4586, 4294901760
    %4588 = vmatpush.msra.mxu0 %v4587
    %v4589 = vand.u32 %v4523, 4294901760
    %4590 = vmatmul.f32.gmra.mxu0 %v4589
    %v4591 = vpop.f32.mrf.mxu0
    %v4592 = vadd.f32 %v4553, %v4591
    %v4593 = vand.u32 %v4526, 4294901760
    %4594 = vmatmul.f32.gmra.mxu0 %v4593
    %v4595 = vpop.f32.mrf.mxu0
    %v4596 = vadd.f32 %v4561, %v4595
    %4597 = vdwg.mxu0
    %4598 = vmatpush.msra.mxu0 0.0
    %4599 = vmatpush.msra.mxu0 0.0
    %4600 = vmatpush.msra.mxu0 0.0
    %4601 = vmatpush.msra.mxu0 0.0
    %4602 = vmatpush.msra.mxu0 0.0
    %4603 = vmatpush.msra.mxu0 0.0
    %4604 = vmatpush.msra.mxu0 0.0
    %4605 = vmatpush.msra.mxu0 0.0
    %4606 = vmatpush.msra.mxu0 0.0
    %4607 = vmatpush.msra.mxu0 0.0
    %4608 = vmatpush.msra.mxu0 0.0
    %4609 = vmatpush.msra.mxu0 0.0
    %4610 = vmatpush.msra.mxu0 0.0
    %4611 = vmatpush.msra.mxu0 0.0
    %v4612 = vand.u32 %v82, 4294901760
    %v4613 = vsub.f32 %v82, %v4612
    %4614 = vmatpush.msra.mxu0 %v4613
    %v4615 = vand.u32 %v81, 4294901760
    %v4616 = vsub.f32 %v81, %v4615
    %4617 = vmatpush.msra.mxu0 %v4616
    %v4618 = vand.u32 %v4523, 4294901760
    %v4619 = vsub.f32 %v4523, %v4618
    %4620 = vmatmul.f32.gmra.mxu0 %v4619
    %v4621 = vpop.f32.mrf.mxu0
    %v4622 = vadd.f32 %v4592, %v4621
    %v4623 = vand.u32 %v4526, 4294901760
    %v4624 = vsub.f32 %v4526, %v4623
    %4625 = vmatmul.f32.gmra.mxu0 %v4624
    %v4626 = vpop.f32.mrf.mxu0
    %v4627 = vadd.f32 %v4596, %v4626
    %4628 = vdwg.mxu0
    %4629 = vmatpush.msra.mxu0 0.0
    %4630 = vmatpush.msra.mxu0 0.0
    %4631 = vmatpush.msra.mxu0 0.0
    %4632 = vmatpush.msra.mxu0 0.0
    %4633 = vmatpush.msra.mxu0 0.0
    %4634 = vmatpush.msra.mxu0 0.0
    %4635 = vmatpush.msra.mxu0 0.0
    %4636 = vmatpush.msra.mxu0 0.0
    %4637 = vmatpush.msra.mxu0 0.0
    %4638 = vmatpush.msra.mxu0 0.0
    %4639 = vmatpush.msra.mxu0 0.0
    %4640 = vmatpush.msra.mxu0 0.0
    %4641 = vmatpush.msra.mxu0 0.0
    %4642 = vmatpush.msra.mxu0 0.0
    %v4643 = vand.u32 %v82, 4294901760
    %4644 = vmatpush.msra.mxu0 %v4643
    %v4645 = vand.u32 %v81, 4294901760
    %4646 = vmatpush.msra.mxu0 %v4645
    %v4647 = vand.u32 %v4523, 4294901760
    %v4648 = vsub.f32 %v4523, %v4647
    %v4649 = vand.u32 %v4648, 4294901760
    %4650 = vmatmul.f32.gmra.mxu0 %v4649
    %v4651 = vpop.f32.mrf.mxu0
    %v4652 = vadd.f32 %v4622, %v4651
    %v4653 = vand.u32 %v4526, 4294901760
    %v4654 = vsub.f32 %v4526, %v4653
    %v4655 = vand.u32 %v4654, 4294901760
    %4656 = vmatmul.f32.gmra.mxu0 %v4655
    %v4657 = vpop.f32.mrf.mxu0
    %v4658 = vadd.f32 %v4627, %v4657
    %4659 = vdwg.mxu0
    %4660 = vmatpush.msra.mxu0 0.0
    %4661 = vmatpush.msra.mxu0 0.0
    %4662 = vmatpush.msra.mxu0 0.0
    %4663 = vmatpush.msra.mxu0 0.0
    %4664 = vmatpush.msra.mxu0 0.0
    %4665 = vmatpush.msra.mxu0 0.0
    %4666 = vmatpush.msra.mxu0 0.0
    %4667 = vmatpush.msra.mxu0 0.0
    %4668 = vmatpush.msra.mxu0 0.0
    %4669 = vmatpush.msra.mxu0 0.0
    %4670 = vmatpush.msra.mxu0 0.0
    %4671 = vmatpush.msra.mxu0 0.0
    %4672 = vmatpush.msra.mxu0 0.0
    %4673 = vmatpush.msra.mxu0 0.0
    %v4674 = vand.u32 %v82, 4294901760
    %v4675 = vsub.f32 %v82, %v4674
    %v4676 = vand.u32 %v4675, 4294901760
    %4677 = vmatpush.msra.mxu0 %v4676
    %v4678 = vand.u32 %v81, 4294901760
    %v4679 = vsub.f32 %v81, %v4678
    %v4680 = vand.u32 %v4679, 4294901760
    %4681 = vmatpush.msra.mxu0 %v4680
    %v4682 = vand.u32 %v4523, 4294901760
    %4683 = vmatmul.f32.gmra.mxu0 %v4682
    %v4684 = vpop.f32.mrf.mxu0
    %v4685 = vadd.f32 %v4652, %v4684
    %v4686 = vand.u32 %v4526, 4294901760
    %4687 = vmatmul.f32.gmra.mxu0 %v4686
    %v4688 = vpop.f32.mrf.mxu0
    %v4689 = vadd.f32 %v4658, %v4688
    %4690 = vdwg.mxu0
    %4691 = vmatpush.msra.mxu0 0.0
    %4692 = vmatpush.msra.mxu0 0.0
    %4693 = vmatpush.msra.mxu0 0.0
    %4694 = vmatpush.msra.mxu0 0.0
    %4695 = vmatpush.msra.mxu0 0.0
    %4696 = vmatpush.msra.mxu0 0.0
    %4697 = vmatpush.msra.mxu0 0.0
    %4698 = vmatpush.msra.mxu0 0.0
    %4699 = vmatpush.msra.mxu0 0.0
    %4700 = vmatpush.msra.mxu0 0.0
    %4701 = vmatpush.msra.mxu0 0.0
    %4702 = vmatpush.msra.mxu0 0.0
    %4703 = vmatpush.msra.mxu0 0.0
    %4704 = vmatpush.msra.mxu0 0.0
    %v4705 = vand.u32 %v82, 4294901760
    %4706 = vmatpush.msra.mxu0 %v4705
    %v4707 = vand.u32 %v81, 4294901760
    %4708 = vmatpush.msra.mxu0 %v4707
    %v4709 = vand.u32 %v4523, 4294901760
    %4710 = vmatmul.f32.gmra.mxu0 %v4709
    %v4711 = vpop.f32.mrf.mxu0
    %v4712 = vadd.f32 %v4685, %v4711
    %v4713 = vand.u32 %v4526, 4294901760
    %4714 = vmatmul.f32.gmra.mxu0 %v4713
    %v4715 = vpop.f32.mrf.mxu0
    %v4716 = vadd.f32 %v4689, %v4715
    %4717 = vdwg.mxu0
    %4718 = vmatpush.msra.mxu0 0.0
    %4719 = vmatpush.msra.mxu0 0.0
    %4720 = vmatpush.msra.mxu0 0.0
    %4721 = vmatpush.msra.mxu0 0.0
    %4722 = vmatpush.msra.mxu0 0.0
    %4723 = vmatpush.msra.mxu0 0.0
    %4724 = vmatpush.msra.mxu0 0.0
    %4725 = vmatpush.msra.mxu0 0.0
    %4726 = vmatpush.msra.mxu0 0.0
    %4727 = vmatpush.msra.mxu0 0.0
    %4728 = vmatpush.msra.mxu0 0.0
    %4729 = vmatpush.msra.mxu0 0.0
    %4730 = vmatpush.msra.mxu0 0.0
    %4731 = vmatpush.msra.mxu0 0.0
    %v4732 = vand.u32 %v4716, 4294901760
    %4733 = vmatpush.msra.mxu0 %v4732
    %v4734 = vand.u32 %v4712, 4294901760
    %4735 = vmatpush.msra.mxu0 %v4734
    %v4736 = vand.u32 %v287, 4294901760
    %v4737 = vsub.f32 %v287, %v4736
    %v4738 = vand.u32 %v4737, 4294901760
    %v4739 = vsub.f32 %v4737, %v4738
    %v4740 = vand.u32 %v4739, 4294901760
    %4741 = vmatmul.f32.gmra.mxu0 %v4740
    %v4742 = vpop.f32.mrf.mxu0
    %v4743 = vadd.f32 0.0, %v4742
    %v4744 = vand.u32 %v290, 4294901760
    %v4745 = vsub.f32 %v290, %v4744
    %v4746 = vand.u32 %v4745, 4294901760
    %v4747 = vsub.f32 %v4745, %v4746
    %v4748 = vand.u32 %v4747, 4294901760
    %4749 = vmatmul.f32.gmra.mxu0 %v4748
    %v4750 = vpop.f32.mrf.mxu0
    %v4751 = vadd.f32 0.0, %v4750
    %4752 = vdwg.mxu0
    %4753 = vmatpush.msra.mxu0 0.0
    %4754 = vmatpush.msra.mxu0 0.0
    %4755 = vmatpush.msra.mxu0 0.0
    %4756 = vmatpush.msra.mxu0 0.0
    %4757 = vmatpush.msra.mxu0 0.0
    %4758 = vmatpush.msra.mxu0 0.0
    %4759 = vmatpush.msra.mxu0 0.0
    %4760 = vmatpush.msra.mxu0 0.0
    %4761 = vmatpush.msra.mxu0 0.0
    %4762 = vmatpush.msra.mxu0 0.0
    %4763 = vmatpush.msra.mxu0 0.0
    %4764 = vmatpush.msra.mxu0 0.0
    %4765 = vmatpush.msra.mxu0 0.0
    %4766 = vmatpush.msra.mxu0 0.0
    %v4767 = vand.u32 %v4716, 4294901760
    %v4768 = vsub.f32 %v4716, %v4767
    %v4769 = vand.u32 %v4768, 4294901760
    %v4770 = vsub.f32 %v4768, %v4769
    %v4771 = vand.u32 %v4770, 4294901760
    %4772 = vmatpush.msra.mxu0 %v4771
    %v4773 = vand.u32 %v4712, 4294901760
    %v4774 = vsub.f32 %v4712, %v4773
    %v4775 = vand.u32 %v4774, 4294901760
    %v4776 = vsub.f32 %v4774, %v4775
    %v4777 = vand.u32 %v4776, 4294901760
    %4778 = vmatpush.msra.mxu0 %v4777
    %v4779 = vand.u32 %v287, 4294901760
    %4780 = vmatmul.f32.gmra.mxu0 %v4779
    %v4781 = vpop.f32.mrf.mxu0
    %v4782 = vadd.f32 %v4743, %v4781
    %v4783 = vand.u32 %v290, 4294901760
    %4784 = vmatmul.f32.gmra.mxu0 %v4783
    %v4785 = vpop.f32.mrf.mxu0
    %v4786 = vadd.f32 %v4751, %v4785
    %4787 = vdwg.mxu0
    %4788 = vmatpush.msra.mxu0 0.0
    %4789 = vmatpush.msra.mxu0 0.0
    %4790 = vmatpush.msra.mxu0 0.0
    %4791 = vmatpush.msra.mxu0 0.0
    %4792 = vmatpush.msra.mxu0 0.0
    %4793 = vmatpush.msra.mxu0 0.0
    %4794 = vmatpush.msra.mxu0 0.0
    %4795 = vmatpush.msra.mxu0 0.0
    %4796 = vmatpush.msra.mxu0 0.0
    %4797 = vmatpush.msra.mxu0 0.0
    %4798 = vmatpush.msra.mxu0 0.0
    %4799 = vmatpush.msra.mxu0 0.0
    %4800 = vmatpush.msra.mxu0 0.0
    %4801 = vmatpush.msra.mxu0 0.0
    %v4802 = vand.u32 %v4716, 4294901760
    %v4803 = vsub.f32 %v4716, %v4802
    %4804 = vmatpush.msra.mxu0 %v4803
    %v4805 = vand.u32 %v4712, 4294901760
    %v4806 = vsub.f32 %v4712, %v4805
    %4807 = vmatpush.msra.mxu0 %v4806
    %v4808 = vand.u32 %v287, 4294901760
    %v4809 = vsub.f32 %v287, %v4808
    %4810 = vmatmul.f32.gmra.mxu0 %v4809
    %v4811 = vpop.f32.mrf.mxu0
    %v4812 = vadd.f32 %v4782, %v4811
    %v4813 = vand.u32 %v290, 4294901760
    %v4814 = vsub.f32 %v290, %v4813
    %4815 = vmatmul.f32.gmra.mxu0 %v4814
    %v4816 = vpop.f32.mrf.mxu0
    %v4817 = vadd.f32 %v4786, %v4816
    %4818 = vdwg.mxu0
    %4819 = vmatpush.msra.mxu0 0.0
    %4820 = vmatpush.msra.mxu0 0.0
    %4821 = vmatpush.msra.mxu0 0.0
    %4822 = vmatpush.msra.mxu0 0.0
    %4823 = vmatpush.msra.mxu0 0.0
    %4824 = vmatpush.msra.mxu0 0.0
    %4825 = vmatpush.msra.mxu0 0.0
    %4826 = vmatpush.msra.mxu0 0.0
    %4827 = vmatpush.msra.mxu0 0.0
    %4828 = vmatpush.msra.mxu0 0.0
    %4829 = vmatpush.msra.mxu0 0.0
    %4830 = vmatpush.msra.mxu0 0.0
    %4831 = vmatpush.msra.mxu0 0.0
    %4832 = vmatpush.msra.mxu0 0.0
    %v4833 = vand.u32 %v4716, 4294901760
    %4834 = vmatpush.msra.mxu0 %v4833
    %v4835 = vand.u32 %v4712, 4294901760
    %4836 = vmatpush.msra.mxu0 %v4835
    %v4837 = vand.u32 %v287, 4294901760
    %v4838 = vsub.f32 %v287, %v4837
    %v4839 = vand.u32 %v4838, 4294901760
    %4840 = vmatmul.f32.gmra.mxu0 %v4839
    %v4841 = vpop.f32.mrf.mxu0
    %v4842 = vadd.f32 %v4812, %v4841
    %v4843 = vand.u32 %v290, 4294901760
    %v4844 = vsub.f32 %v290, %v4843
    %v4845 = vand.u32 %v4844, 4294901760
    %4846 = vmatmul.f32.gmra.mxu0 %v4845
    %v4847 = vpop.f32.mrf.mxu0
    %v4848 = vadd.f32 %v4817, %v4847
    %4849 = vdwg.mxu0
    %4850 = vmatpush.msra.mxu0 0.0
    %4851 = vmatpush.msra.mxu0 0.0
    %4852 = vmatpush.msra.mxu0 0.0
    %4853 = vmatpush.msra.mxu0 0.0
    %4854 = vmatpush.msra.mxu0 0.0
    %4855 = vmatpush.msra.mxu0 0.0
    %4856 = vmatpush.msra.mxu0 0.0
    %4857 = vmatpush.msra.mxu0 0.0
    %4858 = vmatpush.msra.mxu0 0.0
    %4859 = vmatpush.msra.mxu0 0.0
    %4860 = vmatpush.msra.mxu0 0.0
    %4861 = vmatpush.msra.mxu0 0.0
    %4862 = vmatpush.msra.mxu0 0.0
    %4863 = vmatpush.msra.mxu0 0.0
    %v4864 = vand.u32 %v4716, 4294901760
    %v4865 = vsub.f32 %v4716, %v4864
    %v4866 = vand.u32 %v4865, 4294901760
    %4867 = vmatpush.msra.mxu0 %v4866
    %v4868 = vand.u32 %v4712, 4294901760
    %v4869 = vsub.f32 %v4712, %v4868
    %v4870 = vand.u32 %v4869, 4294901760
    %4871 = vmatpush.msra.mxu0 %v4870
    %v4872 = vand.u32 %v287, 4294901760
    %4873 = vmatmul.f32.gmra.mxu0 %v4872
    %v4874 = vpop.f32.mrf.mxu0
    %v4875 = vadd.f32 %v4842, %v4874
    %v4876 = vand.u32 %v290, 4294901760
    %4877 = vmatmul.f32.gmra.mxu0 %v4876
    %v4878 = vpop.f32.mrf.mxu0
    %v4879 = vadd.f32 %v4848, %v4878
    %4880 = vdwg.mxu0
    %4881 = vmatpush.msra.mxu0 0.0
    %4882 = vmatpush.msra.mxu0 0.0
    %4883 = vmatpush.msra.mxu0 0.0
    %4884 = vmatpush.msra.mxu0 0.0
    %4885 = vmatpush.msra.mxu0 0.0
    %4886 = vmatpush.msra.mxu0 0.0
    %4887 = vmatpush.msra.mxu0 0.0
    %4888 = vmatpush.msra.mxu0 0.0
    %4889 = vmatpush.msra.mxu0 0.0
    %4890 = vmatpush.msra.mxu0 0.0
    %4891 = vmatpush.msra.mxu0 0.0
    %4892 = vmatpush.msra.mxu0 0.0
    %4893 = vmatpush.msra.mxu0 0.0
    %4894 = vmatpush.msra.mxu0 0.0
    %v4895 = vand.u32 %v4716, 4294901760
    %4896 = vmatpush.msra.mxu0 %v4895
    %v4897 = vand.u32 %v4712, 4294901760
    %4898 = vmatpush.msra.mxu0 %v4897
    %v4899 = vand.u32 %v287, 4294901760
    %4900 = vmatmul.f32.gmra.mxu0 %v4899
    %v4901 = vpop.f32.mrf.mxu0
    %v4902 = vadd.f32 %v4875, %v4901
    %v4903 = vand.u32 %v290, 4294901760
    %4904 = vmatmul.f32.gmra.mxu0 %v4903
    %v4905 = vpop.f32.mrf.mxu0
    %v4906 = vadd.f32 %v4879, %v4905
    %4907 = vdwg.mxu0
    %v4908 = vmul.f32 %v4516, %v4516
    %v4909 = vmul.f32 %v4520, %v4520
    %v4910 = vmul.f32 %v4902, %v4902
    %v4911 = vmul.f32 %v4906, %v4906
    %v4912 = vmul.f32 %v4516, %v4902
    %v4913 = vmul.f32 %v4520, %v4906
    %v4914 = vmul.f32 %v4131, %v4131
    %v4915 = vmul.f32 %v4132, %v4132
    %v4917 = vsel %vm89, %v4914, 0
    %v4920 = vsel %vm89, %v4915, 0
    %4922 = vmatpush.msra.mxu0 0.0
    %4923 = vmatpush.msra.mxu0 0.0
    %4924 = vmatpush.msra.mxu0 0.0
    %4925 = vmatpush.msra.mxu0 0.0
    %4926 = vmatpush.msra.mxu0 0.0
    %4927 = vmatpush.msra.mxu0 0.0
    %4928 = vmatpush.msra.mxu0 0.0
    %4929 = vmatpush.msra.mxu0 0.0
    %4930 = vmatpush.msra.mxu0 0.0
    %4931 = vmatpush.msra.mxu0 0.0
    %4932 = vmatpush.msra.mxu0 0.0
    %4933 = vmatpush.msra.mxu0 0.0
    %4934 = vmatpush.msra.mxu0 0.0
    %4935 = vmatpush.msra.mxu0 0.0
    %v4936 = vand.u32 %v82, 4294901760
    %4937 = vmatpush.msra.mxu0 %v4936
    %v4938 = vand.u32 %v81, 4294901760
    %4939 = vmatpush.msra.mxu0 %v4938
    %v4940 = vand.u32 %v4917, 4294901760
    %v4941 = vsub.f32 %v4917, %v4940
    %v4942 = vand.u32 %v4941, 4294901760
    %v4943 = vsub.f32 %v4941, %v4942
    %v4944 = vand.u32 %v4943, 4294901760
    %4945 = vmatmul.f32.gmra.mxu0 %v4944
    %v4946 = vpop.f32.mrf.mxu0
    %v4947 = vadd.f32 0.0, %v4946
    %v4948 = vand.u32 %v4920, 4294901760
    %v4949 = vsub.f32 %v4920, %v4948
    %v4950 = vand.u32 %v4949, 4294901760
    %v4951 = vsub.f32 %v4949, %v4950
    %v4952 = vand.u32 %v4951, 4294901760
    %4953 = vmatmul.f32.gmra.mxu0 %v4952
    %v4954 = vpop.f32.mrf.mxu0
    %v4955 = vadd.f32 0.0, %v4954
    %4956 = vdwg.mxu0
    %4957 = vmatpush.msra.mxu0 0.0
    %4958 = vmatpush.msra.mxu0 0.0
    %4959 = vmatpush.msra.mxu0 0.0
    %4960 = vmatpush.msra.mxu0 0.0
    %4961 = vmatpush.msra.mxu0 0.0
    %4962 = vmatpush.msra.mxu0 0.0
    %4963 = vmatpush.msra.mxu0 0.0
    %4964 = vmatpush.msra.mxu0 0.0
    %4965 = vmatpush.msra.mxu0 0.0
    %4966 = vmatpush.msra.mxu0 0.0
    %4967 = vmatpush.msra.mxu0 0.0
    %4968 = vmatpush.msra.mxu0 0.0
    %4969 = vmatpush.msra.mxu0 0.0
    %4970 = vmatpush.msra.mxu0 0.0
    %v4971 = vand.u32 %v82, 4294901760
    %v4972 = vsub.f32 %v82, %v4971
    %v4973 = vand.u32 %v4972, 4294901760
    %v4974 = vsub.f32 %v4972, %v4973
    %v4975 = vand.u32 %v4974, 4294901760
    %4976 = vmatpush.msra.mxu0 %v4975
    %v4977 = vand.u32 %v81, 4294901760
    %v4978 = vsub.f32 %v81, %v4977
    %v4979 = vand.u32 %v4978, 4294901760
    %v4980 = vsub.f32 %v4978, %v4979
    %v4981 = vand.u32 %v4980, 4294901760
    %4982 = vmatpush.msra.mxu0 %v4981
    %v4983 = vand.u32 %v4917, 4294901760
    %4984 = vmatmul.f32.gmra.mxu0 %v4983
    %v4985 = vpop.f32.mrf.mxu0
    %v4986 = vadd.f32 %v4947, %v4985
    %v4987 = vand.u32 %v4920, 4294901760
    %4988 = vmatmul.f32.gmra.mxu0 %v4987
    %v4989 = vpop.f32.mrf.mxu0
    %v4990 = vadd.f32 %v4955, %v4989
    %4991 = vdwg.mxu0
    %4992 = vmatpush.msra.mxu0 0.0
    %4993 = vmatpush.msra.mxu0 0.0
    %4994 = vmatpush.msra.mxu0 0.0
    %4995 = vmatpush.msra.mxu0 0.0
    %4996 = vmatpush.msra.mxu0 0.0
    %4997 = vmatpush.msra.mxu0 0.0
    %4998 = vmatpush.msra.mxu0 0.0
    %4999 = vmatpush.msra.mxu0 0.0
    %5000 = vmatpush.msra.mxu0 0.0
    %5001 = vmatpush.msra.mxu0 0.0
    %5002 = vmatpush.msra.mxu0 0.0
    %5003 = vmatpush.msra.mxu0 0.0
    %5004 = vmatpush.msra.mxu0 0.0
    %5005 = vmatpush.msra.mxu0 0.0
    %v5006 = vand.u32 %v82, 4294901760
    %v5007 = vsub.f32 %v82, %v5006
    %5008 = vmatpush.msra.mxu0 %v5007
    %v5009 = vand.u32 %v81, 4294901760
    %v5010 = vsub.f32 %v81, %v5009
    %5011 = vmatpush.msra.mxu0 %v5010
    %v5012 = vand.u32 %v4917, 4294901760
    %v5013 = vsub.f32 %v4917, %v5012
    %5014 = vmatmul.f32.gmra.mxu0 %v5013
    %v5015 = vpop.f32.mrf.mxu0
    %v5016 = vadd.f32 %v4986, %v5015
    %v5017 = vand.u32 %v4920, 4294901760
    %v5018 = vsub.f32 %v4920, %v5017
    %5019 = vmatmul.f32.gmra.mxu0 %v5018
    %v5020 = vpop.f32.mrf.mxu0
    %v5021 = vadd.f32 %v4990, %v5020
    %5022 = vdwg.mxu0
    %5023 = vmatpush.msra.mxu0 0.0
    %5024 = vmatpush.msra.mxu0 0.0
    %5025 = vmatpush.msra.mxu0 0.0
    %5026 = vmatpush.msra.mxu0 0.0
    %5027 = vmatpush.msra.mxu0 0.0
    %5028 = vmatpush.msra.mxu0 0.0
    %5029 = vmatpush.msra.mxu0 0.0
    %5030 = vmatpush.msra.mxu0 0.0
    %5031 = vmatpush.msra.mxu0 0.0
    %5032 = vmatpush.msra.mxu0 0.0
    %5033 = vmatpush.msra.mxu0 0.0
    %5034 = vmatpush.msra.mxu0 0.0
    %5035 = vmatpush.msra.mxu0 0.0
    %5036 = vmatpush.msra.mxu0 0.0
    %v5037 = vand.u32 %v82, 4294901760
    %5038 = vmatpush.msra.mxu0 %v5037
    %v5039 = vand.u32 %v81, 4294901760
    %5040 = vmatpush.msra.mxu0 %v5039
    %v5041 = vand.u32 %v4917, 4294901760
    %v5042 = vsub.f32 %v4917, %v5041
    %v5043 = vand.u32 %v5042, 4294901760
    %5044 = vmatmul.f32.gmra.mxu0 %v5043
    %v5045 = vpop.f32.mrf.mxu0
    %v5046 = vadd.f32 %v5016, %v5045
    %v5047 = vand.u32 %v4920, 4294901760
    %v5048 = vsub.f32 %v4920, %v5047
    %v5049 = vand.u32 %v5048, 4294901760
    %5050 = vmatmul.f32.gmra.mxu0 %v5049
    %v5051 = vpop.f32.mrf.mxu0
    %v5052 = vadd.f32 %v5021, %v5051
    %5053 = vdwg.mxu0
    %5054 = vmatpush.msra.mxu0 0.0
    %5055 = vmatpush.msra.mxu0 0.0
    %5056 = vmatpush.msra.mxu0 0.0
    %5057 = vmatpush.msra.mxu0 0.0
    %5058 = vmatpush.msra.mxu0 0.0
    %5059 = vmatpush.msra.mxu0 0.0
    %5060 = vmatpush.msra.mxu0 0.0
    %5061 = vmatpush.msra.mxu0 0.0
    %5062 = vmatpush.msra.mxu0 0.0
    %5063 = vmatpush.msra.mxu0 0.0
    %5064 = vmatpush.msra.mxu0 0.0
    %5065 = vmatpush.msra.mxu0 0.0
    %5066 = vmatpush.msra.mxu0 0.0
    %5067 = vmatpush.msra.mxu0 0.0
    %v5068 = vand.u32 %v82, 4294901760
    %v5069 = vsub.f32 %v82, %v5068
    %v5070 = vand.u32 %v5069, 4294901760
    %5071 = vmatpush.msra.mxu0 %v5070
    %v5072 = vand.u32 %v81, 4294901760
    %v5073 = vsub.f32 %v81, %v5072
    %v5074 = vand.u32 %v5073, 4294901760
    %5075 = vmatpush.msra.mxu0 %v5074
    %v5076 = vand.u32 %v4917, 4294901760
    %5077 = vmatmul.f32.gmra.mxu0 %v5076
    %v5078 = vpop.f32.mrf.mxu0
    %v5079 = vadd.f32 %v5046, %v5078
    %v5080 = vand.u32 %v4920, 4294901760
    %5081 = vmatmul.f32.gmra.mxu0 %v5080
    %v5082 = vpop.f32.mrf.mxu0
    %v5083 = vadd.f32 %v5052, %v5082
    %5084 = vdwg.mxu0
    %5085 = vmatpush.msra.mxu0 0.0
    %5086 = vmatpush.msra.mxu0 0.0
    %5087 = vmatpush.msra.mxu0 0.0
    %5088 = vmatpush.msra.mxu0 0.0
    %5089 = vmatpush.msra.mxu0 0.0
    %5090 = vmatpush.msra.mxu0 0.0
    %5091 = vmatpush.msra.mxu0 0.0
    %5092 = vmatpush.msra.mxu0 0.0
    %5093 = vmatpush.msra.mxu0 0.0
    %5094 = vmatpush.msra.mxu0 0.0
    %5095 = vmatpush.msra.mxu0 0.0
    %5096 = vmatpush.msra.mxu0 0.0
    %5097 = vmatpush.msra.mxu0 0.0
    %5098 = vmatpush.msra.mxu0 0.0
    %v5099 = vand.u32 %v82, 4294901760
    %5100 = vmatpush.msra.mxu0 %v5099
    %v5101 = vand.u32 %v81, 4294901760
    %5102 = vmatpush.msra.mxu0 %v5101
    %v5103 = vand.u32 %v4917, 4294901760
    %5104 = vmatmul.f32.gmra.mxu0 %v5103
    %v5105 = vpop.f32.mrf.mxu0
    %v5106 = vadd.f32 %v5079, %v5105
    %v5107 = vand.u32 %v4920, 4294901760
    %5108 = vmatmul.f32.gmra.mxu0 %v5107
    %v5109 = vpop.f32.mrf.mxu0
    %v5110 = vadd.f32 %v5083, %v5109
    %5111 = vdwg.mxu0
    %5112 = vmatpush.msra.mxu0 0.0
    %5113 = vmatpush.msra.mxu0 0.0
    %5114 = vmatpush.msra.mxu0 0.0
    %5115 = vmatpush.msra.mxu0 0.0
    %5116 = vmatpush.msra.mxu0 0.0
    %5117 = vmatpush.msra.mxu0 0.0
    %5118 = vmatpush.msra.mxu0 0.0
    %5119 = vmatpush.msra.mxu0 0.0
    %5120 = vmatpush.msra.mxu0 0.0
    %5121 = vmatpush.msra.mxu0 0.0
    %5122 = vmatpush.msra.mxu0 0.0
    %5123 = vmatpush.msra.mxu0 0.0
    %5124 = vmatpush.msra.mxu0 0.0
    %5125 = vmatpush.msra.mxu0 0.0
    %v5126 = vand.u32 %v5110, 4294901760
    %5127 = vmatpush.msra.mxu0 %v5126
    %v5128 = vand.u32 %v5106, 4294901760
    %5129 = vmatpush.msra.mxu0 %v5128
    %v5130 = vand.u32 %v287, 4294901760
    %v5131 = vsub.f32 %v287, %v5130
    %v5132 = vand.u32 %v5131, 4294901760
    %v5133 = vsub.f32 %v5131, %v5132
    %v5134 = vand.u32 %v5133, 4294901760
    %5135 = vmatmul.f32.gmra.mxu0 %v5134
    %v5136 = vpop.f32.mrf.mxu0
    %v5137 = vadd.f32 0.0, %v5136
    %v5138 = vand.u32 %v290, 4294901760
    %v5139 = vsub.f32 %v290, %v5138
    %v5140 = vand.u32 %v5139, 4294901760
    %v5141 = vsub.f32 %v5139, %v5140
    %v5142 = vand.u32 %v5141, 4294901760
    %5143 = vmatmul.f32.gmra.mxu0 %v5142
    %v5144 = vpop.f32.mrf.mxu0
    %v5145 = vadd.f32 0.0, %v5144
    %5146 = vdwg.mxu0
    %5147 = vmatpush.msra.mxu0 0.0
    %5148 = vmatpush.msra.mxu0 0.0
    %5149 = vmatpush.msra.mxu0 0.0
    %5150 = vmatpush.msra.mxu0 0.0
    %5151 = vmatpush.msra.mxu0 0.0
    %5152 = vmatpush.msra.mxu0 0.0
    %5153 = vmatpush.msra.mxu0 0.0
    %5154 = vmatpush.msra.mxu0 0.0
    %5155 = vmatpush.msra.mxu0 0.0
    %5156 = vmatpush.msra.mxu0 0.0
    %5157 = vmatpush.msra.mxu0 0.0
    %5158 = vmatpush.msra.mxu0 0.0
    %5159 = vmatpush.msra.mxu0 0.0
    %5160 = vmatpush.msra.mxu0 0.0
    %v5161 = vand.u32 %v5110, 4294901760
    %v5162 = vsub.f32 %v5110, %v5161
    %v5163 = vand.u32 %v5162, 4294901760
    %v5164 = vsub.f32 %v5162, %v5163
    %v5165 = vand.u32 %v5164, 4294901760
    %5166 = vmatpush.msra.mxu0 %v5165
    %v5167 = vand.u32 %v5106, 4294901760
    %v5168 = vsub.f32 %v5106, %v5167
    %v5169 = vand.u32 %v5168, 4294901760
    %v5170 = vsub.f32 %v5168, %v5169
    %v5171 = vand.u32 %v5170, 4294901760
    %5172 = vmatpush.msra.mxu0 %v5171
    %v5173 = vand.u32 %v287, 4294901760
    %5174 = vmatmul.f32.gmra.mxu0 %v5173
    %v5175 = vpop.f32.mrf.mxu0
    %v5176 = vadd.f32 %v5137, %v5175
    %v5177 = vand.u32 %v290, 4294901760
    %5178 = vmatmul.f32.gmra.mxu0 %v5177
    %v5179 = vpop.f32.mrf.mxu0
    %v5180 = vadd.f32 %v5145, %v5179
    %5181 = vdwg.mxu0
    %5182 = vmatpush.msra.mxu0 0.0
    %5183 = vmatpush.msra.mxu0 0.0
    %5184 = vmatpush.msra.mxu0 0.0
    %5185 = vmatpush.msra.mxu0 0.0
    %5186 = vmatpush.msra.mxu0 0.0
    %5187 = vmatpush.msra.mxu0 0.0
    %5188 = vmatpush.msra.mxu0 0.0
    %5189 = vmatpush.msra.mxu0 0.0
    %5190 = vmatpush.msra.mxu0 0.0
    %5191 = vmatpush.msra.mxu0 0.0
    %5192 = vmatpush.msra.mxu0 0.0
    %5193 = vmatpush.msra.mxu0 0.0
    %5194 = vmatpush.msra.mxu0 0.0
    %5195 = vmatpush.msra.mxu0 0.0
    %v5196 = vand.u32 %v5110, 4294901760
    %v5197 = vsub.f32 %v5110, %v5196
    %5198 = vmatpush.msra.mxu0 %v5197
    %v5199 = vand.u32 %v5106, 4294901760
    %v5200 = vsub.f32 %v5106, %v5199
    %5201 = vmatpush.msra.mxu0 %v5200
    %v5202 = vand.u32 %v287, 4294901760
    %v5203 = vsub.f32 %v287, %v5202
    %5204 = vmatmul.f32.gmra.mxu0 %v5203
    %v5205 = vpop.f32.mrf.mxu0
    %v5206 = vadd.f32 %v5176, %v5205
    %v5207 = vand.u32 %v290, 4294901760
    %v5208 = vsub.f32 %v290, %v5207
    %5209 = vmatmul.f32.gmra.mxu0 %v5208
    %v5210 = vpop.f32.mrf.mxu0
    %v5211 = vadd.f32 %v5180, %v5210
    %5212 = vdwg.mxu0
    %5213 = vmatpush.msra.mxu0 0.0
    %5214 = vmatpush.msra.mxu0 0.0
    %5215 = vmatpush.msra.mxu0 0.0
    %5216 = vmatpush.msra.mxu0 0.0
    %5217 = vmatpush.msra.mxu0 0.0
    %5218 = vmatpush.msra.mxu0 0.0
    %5219 = vmatpush.msra.mxu0 0.0
    %5220 = vmatpush.msra.mxu0 0.0
    %5221 = vmatpush.msra.mxu0 0.0
    %5222 = vmatpush.msra.mxu0 0.0
    %5223 = vmatpush.msra.mxu0 0.0
    %5224 = vmatpush.msra.mxu0 0.0
    %5225 = vmatpush.msra.mxu0 0.0
    %5226 = vmatpush.msra.mxu0 0.0
    %v5227 = vand.u32 %v5110, 4294901760
    %5228 = vmatpush.msra.mxu0 %v5227
    %v5229 = vand.u32 %v5106, 4294901760
    %5230 = vmatpush.msra.mxu0 %v5229
    %v5231 = vand.u32 %v287, 4294901760
    %v5232 = vsub.f32 %v287, %v5231
    %v5233 = vand.u32 %v5232, 4294901760
    %5234 = vmatmul.f32.gmra.mxu0 %v5233
    %v5235 = vpop.f32.mrf.mxu0
    %v5236 = vadd.f32 %v5206, %v5235
    %v5237 = vand.u32 %v290, 4294901760
    %v5238 = vsub.f32 %v290, %v5237
    %v5239 = vand.u32 %v5238, 4294901760
    %5240 = vmatmul.f32.gmra.mxu0 %v5239
    %v5241 = vpop.f32.mrf.mxu0
    %v5242 = vadd.f32 %v5211, %v5241
    %5243 = vdwg.mxu0
    %5244 = vmatpush.msra.mxu0 0.0
    %5245 = vmatpush.msra.mxu0 0.0
    %5246 = vmatpush.msra.mxu0 0.0
    %5247 = vmatpush.msra.mxu0 0.0
    %5248 = vmatpush.msra.mxu0 0.0
    %5249 = vmatpush.msra.mxu0 0.0
    %5250 = vmatpush.msra.mxu0 0.0
    %5251 = vmatpush.msra.mxu0 0.0
    %5252 = vmatpush.msra.mxu0 0.0
    %5253 = vmatpush.msra.mxu0 0.0
    %5254 = vmatpush.msra.mxu0 0.0
    %5255 = vmatpush.msra.mxu0 0.0
    %5256 = vmatpush.msra.mxu0 0.0
    %5257 = vmatpush.msra.mxu0 0.0
    %v5258 = vand.u32 %v5110, 4294901760
    %v5259 = vsub.f32 %v5110, %v5258
    %v5260 = vand.u32 %v5259, 4294901760
    %5261 = vmatpush.msra.mxu0 %v5260
    %v5262 = vand.u32 %v5106, 4294901760
    %v5263 = vsub.f32 %v5106, %v5262
    %v5264 = vand.u32 %v5263, 4294901760
    %5265 = vmatpush.msra.mxu0 %v5264
    %v5266 = vand.u32 %v287, 4294901760
    %5267 = vmatmul.f32.gmra.mxu0 %v5266
    %v5268 = vpop.f32.mrf.mxu0
    %v5269 = vadd.f32 %v5236, %v5268
    %v5270 = vand.u32 %v290, 4294901760
    %5271 = vmatmul.f32.gmra.mxu0 %v5270
    %v5272 = vpop.f32.mrf.mxu0
    %v5273 = vadd.f32 %v5242, %v5272
    %5274 = vdwg.mxu0
    %5275 = vmatpush.msra.mxu0 0.0
    %5276 = vmatpush.msra.mxu0 0.0
    %5277 = vmatpush.msra.mxu0 0.0
    %5278 = vmatpush.msra.mxu0 0.0
    %5279 = vmatpush.msra.mxu0 0.0
    %5280 = vmatpush.msra.mxu0 0.0
    %5281 = vmatpush.msra.mxu0 0.0
    %5282 = vmatpush.msra.mxu0 0.0
    %5283 = vmatpush.msra.mxu0 0.0
    %5284 = vmatpush.msra.mxu0 0.0
    %5285 = vmatpush.msra.mxu0 0.0
    %5286 = vmatpush.msra.mxu0 0.0
    %5287 = vmatpush.msra.mxu0 0.0
    %5288 = vmatpush.msra.mxu0 0.0
    %v5289 = vand.u32 %v5110, 4294901760
    %5290 = vmatpush.msra.mxu0 %v5289
    %v5291 = vand.u32 %v5106, 4294901760
    %5292 = vmatpush.msra.mxu0 %v5291
    %v5293 = vand.u32 %v287, 4294901760
    %5294 = vmatmul.f32.gmra.mxu0 %v5293
    %v5295 = vpop.f32.mrf.mxu0
    %v5296 = vadd.f32 %v5269, %v5295
    %v5297 = vand.u32 %v290, 4294901760
    %5298 = vmatmul.f32.gmra.mxu0 %v5297
    %v5299 = vpop.f32.mrf.mxu0
    %v5300 = vadd.f32 %v5273, %v5299
    %5301 = vdwg.mxu0
    %v5302 = vsub.f32 %v5296, %v4908
    %v5303 = vsub.f32 %v5300, %v4909
    %v5304 = vmul.f32 %v4134, %v4134
    %v5305 = vmul.f32 %v4135, %v4135
    %v5307 = vsel %vm89, %v5304, 0
    %v5310 = vsel %vm89, %v5305, 0
    %5312 = vmatpush.msra.mxu0 0.0
    %5313 = vmatpush.msra.mxu0 0.0
    %5314 = vmatpush.msra.mxu0 0.0
    %5315 = vmatpush.msra.mxu0 0.0
    %5316 = vmatpush.msra.mxu0 0.0
    %5317 = vmatpush.msra.mxu0 0.0
    %5318 = vmatpush.msra.mxu0 0.0
    %5319 = vmatpush.msra.mxu0 0.0
    %5320 = vmatpush.msra.mxu0 0.0
    %5321 = vmatpush.msra.mxu0 0.0
    %5322 = vmatpush.msra.mxu0 0.0
    %5323 = vmatpush.msra.mxu0 0.0
    %5324 = vmatpush.msra.mxu0 0.0
    %5325 = vmatpush.msra.mxu0 0.0
    %v5326 = vand.u32 %v82, 4294901760
    %5327 = vmatpush.msra.mxu0 %v5326
    %v5328 = vand.u32 %v81, 4294901760
    %5329 = vmatpush.msra.mxu0 %v5328
    %v5330 = vand.u32 %v5307, 4294901760
    %v5331 = vsub.f32 %v5307, %v5330
    %v5332 = vand.u32 %v5331, 4294901760
    %v5333 = vsub.f32 %v5331, %v5332
    %v5334 = vand.u32 %v5333, 4294901760
    %5335 = vmatmul.f32.gmra.mxu0 %v5334
    %v5336 = vpop.f32.mrf.mxu0
    %v5337 = vadd.f32 0.0, %v5336
    %v5338 = vand.u32 %v5310, 4294901760
    %v5339 = vsub.f32 %v5310, %v5338
    %v5340 = vand.u32 %v5339, 4294901760
    %v5341 = vsub.f32 %v5339, %v5340
    %v5342 = vand.u32 %v5341, 4294901760
    %5343 = vmatmul.f32.gmra.mxu0 %v5342
    %v5344 = vpop.f32.mrf.mxu0
    %v5345 = vadd.f32 0.0, %v5344
    %5346 = vdwg.mxu0
    %5347 = vmatpush.msra.mxu0 0.0
    %5348 = vmatpush.msra.mxu0 0.0
    %5349 = vmatpush.msra.mxu0 0.0
    %5350 = vmatpush.msra.mxu0 0.0
    %5351 = vmatpush.msra.mxu0 0.0
    %5352 = vmatpush.msra.mxu0 0.0
    %5353 = vmatpush.msra.mxu0 0.0
    %5354 = vmatpush.msra.mxu0 0.0
    %5355 = vmatpush.msra.mxu0 0.0
    %5356 = vmatpush.msra.mxu0 0.0
    %5357 = vmatpush.msra.mxu0 0.0
    %5358 = vmatpush.msra.mxu0 0.0
    %5359 = vmatpush.msra.mxu0 0.0
    %5360 = vmatpush.msra.mxu0 0.0
    %v5361 = vand.u32 %v82, 4294901760
    %v5362 = vsub.f32 %v82, %v5361
    %v5363 = vand.u32 %v5362, 4294901760
    %v5364 = vsub.f32 %v5362, %v5363
    %v5365 = vand.u32 %v5364, 4294901760
    %5366 = vmatpush.msra.mxu0 %v5365
    %v5367 = vand.u32 %v81, 4294901760
    %v5368 = vsub.f32 %v81, %v5367
    %v5369 = vand.u32 %v5368, 4294901760
    %v5370 = vsub.f32 %v5368, %v5369
    %v5371 = vand.u32 %v5370, 4294901760
    %5372 = vmatpush.msra.mxu0 %v5371
    %v5373 = vand.u32 %v5307, 4294901760
    %5374 = vmatmul.f32.gmra.mxu0 %v5373
    %v5375 = vpop.f32.mrf.mxu0
    %v5376 = vadd.f32 %v5337, %v5375
    %v5377 = vand.u32 %v5310, 4294901760
    %5378 = vmatmul.f32.gmra.mxu0 %v5377
    %v5379 = vpop.f32.mrf.mxu0
    %v5380 = vadd.f32 %v5345, %v5379
    %5381 = vdwg.mxu0
    %5382 = vmatpush.msra.mxu0 0.0
    %5383 = vmatpush.msra.mxu0 0.0
    %5384 = vmatpush.msra.mxu0 0.0
    %5385 = vmatpush.msra.mxu0 0.0
    %5386 = vmatpush.msra.mxu0 0.0
    %5387 = vmatpush.msra.mxu0 0.0
    %5388 = vmatpush.msra.mxu0 0.0
    %5389 = vmatpush.msra.mxu0 0.0
    %5390 = vmatpush.msra.mxu0 0.0
    %5391 = vmatpush.msra.mxu0 0.0
    %5392 = vmatpush.msra.mxu0 0.0
    %5393 = vmatpush.msra.mxu0 0.0
    %5394 = vmatpush.msra.mxu0 0.0
    %5395 = vmatpush.msra.mxu0 0.0
    %v5396 = vand.u32 %v82, 4294901760
    %v5397 = vsub.f32 %v82, %v5396
    %5398 = vmatpush.msra.mxu0 %v5397
    %v5399 = vand.u32 %v81, 4294901760
    %v5400 = vsub.f32 %v81, %v5399
    %5401 = vmatpush.msra.mxu0 %v5400
    %v5402 = vand.u32 %v5307, 4294901760
    %v5403 = vsub.f32 %v5307, %v5402
    %5404 = vmatmul.f32.gmra.mxu0 %v5403
    %v5405 = vpop.f32.mrf.mxu0
    %v5406 = vadd.f32 %v5376, %v5405
    %v5407 = vand.u32 %v5310, 4294901760
    %v5408 = vsub.f32 %v5310, %v5407
    %5409 = vmatmul.f32.gmra.mxu0 %v5408
    %v5410 = vpop.f32.mrf.mxu0
    %v5411 = vadd.f32 %v5380, %v5410
    %5412 = vdwg.mxu0
    %5413 = vmatpush.msra.mxu0 0.0
    %5414 = vmatpush.msra.mxu0 0.0
    %5415 = vmatpush.msra.mxu0 0.0
    %5416 = vmatpush.msra.mxu0 0.0
    %5417 = vmatpush.msra.mxu0 0.0
    %5418 = vmatpush.msra.mxu0 0.0
    %5419 = vmatpush.msra.mxu0 0.0
    %5420 = vmatpush.msra.mxu0 0.0
    %5421 = vmatpush.msra.mxu0 0.0
    %5422 = vmatpush.msra.mxu0 0.0
    %5423 = vmatpush.msra.mxu0 0.0
    %5424 = vmatpush.msra.mxu0 0.0
    %5425 = vmatpush.msra.mxu0 0.0
    %5426 = vmatpush.msra.mxu0 0.0
    %v5427 = vand.u32 %v82, 4294901760
    %5428 = vmatpush.msra.mxu0 %v5427
    %v5429 = vand.u32 %v81, 4294901760
    %5430 = vmatpush.msra.mxu0 %v5429
    %v5431 = vand.u32 %v5307, 4294901760
    %v5432 = vsub.f32 %v5307, %v5431
    %v5433 = vand.u32 %v5432, 4294901760
    %5434 = vmatmul.f32.gmra.mxu0 %v5433
    %v5435 = vpop.f32.mrf.mxu0
    %v5436 = vadd.f32 %v5406, %v5435
    %v5437 = vand.u32 %v5310, 4294901760
    %v5438 = vsub.f32 %v5310, %v5437
    %v5439 = vand.u32 %v5438, 4294901760
    %5440 = vmatmul.f32.gmra.mxu0 %v5439
    %v5441 = vpop.f32.mrf.mxu0
    %v5442 = vadd.f32 %v5411, %v5441
    %5443 = vdwg.mxu0
    %5444 = vmatpush.msra.mxu0 0.0
    %5445 = vmatpush.msra.mxu0 0.0
    %5446 = vmatpush.msra.mxu0 0.0
    %5447 = vmatpush.msra.mxu0 0.0
    %5448 = vmatpush.msra.mxu0 0.0
    %5449 = vmatpush.msra.mxu0 0.0
    %5450 = vmatpush.msra.mxu0 0.0
    %5451 = vmatpush.msra.mxu0 0.0
    %5452 = vmatpush.msra.mxu0 0.0
    %5453 = vmatpush.msra.mxu0 0.0
    %5454 = vmatpush.msra.mxu0 0.0
    %5455 = vmatpush.msra.mxu0 0.0
    %5456 = vmatpush.msra.mxu0 0.0
    %5457 = vmatpush.msra.mxu0 0.0
    %v5458 = vand.u32 %v82, 4294901760
    %v5459 = vsub.f32 %v82, %v5458
    %v5460 = vand.u32 %v5459, 4294901760
    %5461 = vmatpush.msra.mxu0 %v5460
    %v5462 = vand.u32 %v81, 4294901760
    %v5463 = vsub.f32 %v81, %v5462
    %v5464 = vand.u32 %v5463, 4294901760
    %5465 = vmatpush.msra.mxu0 %v5464
    %v5466 = vand.u32 %v5307, 4294901760
    %5467 = vmatmul.f32.gmra.mxu0 %v5466
    %v5468 = vpop.f32.mrf.mxu0
    %v5469 = vadd.f32 %v5436, %v5468
    %v5470 = vand.u32 %v5310, 4294901760
    %5471 = vmatmul.f32.gmra.mxu0 %v5470
    %v5472 = vpop.f32.mrf.mxu0
    %v5473 = vadd.f32 %v5442, %v5472
    %5474 = vdwg.mxu0
    %5475 = vmatpush.msra.mxu0 0.0
    %5476 = vmatpush.msra.mxu0 0.0
    %5477 = vmatpush.msra.mxu0 0.0
    %5478 = vmatpush.msra.mxu0 0.0
    %5479 = vmatpush.msra.mxu0 0.0
    %5480 = vmatpush.msra.mxu0 0.0
    %5481 = vmatpush.msra.mxu0 0.0
    %5482 = vmatpush.msra.mxu0 0.0
    %5483 = vmatpush.msra.mxu0 0.0
    %5484 = vmatpush.msra.mxu0 0.0
    %5485 = vmatpush.msra.mxu0 0.0
    %5486 = vmatpush.msra.mxu0 0.0
    %5487 = vmatpush.msra.mxu0 0.0
    %5488 = vmatpush.msra.mxu0 0.0
    %v5489 = vand.u32 %v82, 4294901760
    %5490 = vmatpush.msra.mxu0 %v5489
    %v5491 = vand.u32 %v81, 4294901760
    %5492 = vmatpush.msra.mxu0 %v5491
    %v5493 = vand.u32 %v5307, 4294901760
    %5494 = vmatmul.f32.gmra.mxu0 %v5493
    %v5495 = vpop.f32.mrf.mxu0
    %v5496 = vadd.f32 %v5469, %v5495
    %v5497 = vand.u32 %v5310, 4294901760
    %5498 = vmatmul.f32.gmra.mxu0 %v5497
    %v5499 = vpop.f32.mrf.mxu0
    %v5500 = vadd.f32 %v5473, %v5499
    %5501 = vdwg.mxu0
    %5502 = vmatpush.msra.mxu0 0.0
    %5503 = vmatpush.msra.mxu0 0.0
    %5504 = vmatpush.msra.mxu0 0.0
    %5505 = vmatpush.msra.mxu0 0.0
    %5506 = vmatpush.msra.mxu0 0.0
    %5507 = vmatpush.msra.mxu0 0.0
    %5508 = vmatpush.msra.mxu0 0.0
    %5509 = vmatpush.msra.mxu0 0.0
    %5510 = vmatpush.msra.mxu0 0.0
    %5511 = vmatpush.msra.mxu0 0.0
    %5512 = vmatpush.msra.mxu0 0.0
    %5513 = vmatpush.msra.mxu0 0.0
    %5514 = vmatpush.msra.mxu0 0.0
    %5515 = vmatpush.msra.mxu0 0.0
    %v5516 = vand.u32 %v5500, 4294901760
    %5517 = vmatpush.msra.mxu0 %v5516
    %v5518 = vand.u32 %v5496, 4294901760
    %5519 = vmatpush.msra.mxu0 %v5518
    %v5520 = vand.u32 %v287, 4294901760
    %v5521 = vsub.f32 %v287, %v5520
    %v5522 = vand.u32 %v5521, 4294901760
    %v5523 = vsub.f32 %v5521, %v5522
    %v5524 = vand.u32 %v5523, 4294901760
    %5525 = vmatmul.f32.gmra.mxu0 %v5524
    %v5526 = vpop.f32.mrf.mxu0
    %v5527 = vadd.f32 0.0, %v5526
    %v5528 = vand.u32 %v290, 4294901760
    %v5529 = vsub.f32 %v290, %v5528
    %v5530 = vand.u32 %v5529, 4294901760
    %v5531 = vsub.f32 %v5529, %v5530
    %v5532 = vand.u32 %v5531, 4294901760
    %5533 = vmatmul.f32.gmra.mxu0 %v5532
    %v5534 = vpop.f32.mrf.mxu0
    %v5535 = vadd.f32 0.0, %v5534
    %5536 = vdwg.mxu0
    %5537 = vmatpush.msra.mxu0 0.0
    %5538 = vmatpush.msra.mxu0 0.0
    %5539 = vmatpush.msra.mxu0 0.0
    %5540 = vmatpush.msra.mxu0 0.0
    %5541 = vmatpush.msra.mxu0 0.0
    %5542 = vmatpush.msra.mxu0 0.0
    %5543 = vmatpush.msra.mxu0 0.0
    %5544 = vmatpush.msra.mxu0 0.0
    %5545 = vmatpush.msra.mxu0 0.0
    %5546 = vmatpush.msra.mxu0 0.0
    %5547 = vmatpush.msra.mxu0 0.0
    %5548 = vmatpush.msra.mxu0 0.0
    %5549 = vmatpush.msra.mxu0 0.0
    %5550 = vmatpush.msra.mxu0 0.0
    %v5551 = vand.u32 %v5500, 4294901760
    %v5552 = vsub.f32 %v5500, %v5551
    %v5553 = vand.u32 %v5552, 4294901760
    %v5554 = vsub.f32 %v5552, %v5553
    %v5555 = vand.u32 %v5554, 4294901760
    %5556 = vmatpush.msra.mxu0 %v5555
    %v5557 = vand.u32 %v5496, 4294901760
    %v5558 = vsub.f32 %v5496, %v5557
    %v5559 = vand.u32 %v5558, 4294901760
    %v5560 = vsub.f32 %v5558, %v5559
    %v5561 = vand.u32 %v5560, 4294901760
    %5562 = vmatpush.msra.mxu0 %v5561
    %v5563 = vand.u32 %v287, 4294901760
    %5564 = vmatmul.f32.gmra.mxu0 %v5563
    %v5565 = vpop.f32.mrf.mxu0
    %v5566 = vadd.f32 %v5527, %v5565
    %v5567 = vand.u32 %v290, 4294901760
    %5568 = vmatmul.f32.gmra.mxu0 %v5567
    %v5569 = vpop.f32.mrf.mxu0
    %v5570 = vadd.f32 %v5535, %v5569
    %5571 = vdwg.mxu0
    %5572 = vmatpush.msra.mxu0 0.0
    %5573 = vmatpush.msra.mxu0 0.0
    %5574 = vmatpush.msra.mxu0 0.0
    %5575 = vmatpush.msra.mxu0 0.0
    %5576 = vmatpush.msra.mxu0 0.0
    %5577 = vmatpush.msra.mxu0 0.0
    %5578 = vmatpush.msra.mxu0 0.0
    %5579 = vmatpush.msra.mxu0 0.0
    %5580 = vmatpush.msra.mxu0 0.0
    %5581 = vmatpush.msra.mxu0 0.0
    %5582 = vmatpush.msra.mxu0 0.0
    %5583 = vmatpush.msra.mxu0 0.0
    %5584 = vmatpush.msra.mxu0 0.0
    %5585 = vmatpush.msra.mxu0 0.0
    %v5586 = vand.u32 %v5500, 4294901760
    %v5587 = vsub.f32 %v5500, %v5586
    %5588 = vmatpush.msra.mxu0 %v5587
    %v5589 = vand.u32 %v5496, 4294901760
    %v5590 = vsub.f32 %v5496, %v5589
    %5591 = vmatpush.msra.mxu0 %v5590
    %v5592 = vand.u32 %v287, 4294901760
    %v5593 = vsub.f32 %v287, %v5592
    %5594 = vmatmul.f32.gmra.mxu0 %v5593
    %v5595 = vpop.f32.mrf.mxu0
    %v5596 = vadd.f32 %v5566, %v5595
    %v5597 = vand.u32 %v290, 4294901760
    %v5598 = vsub.f32 %v290, %v5597
    %5599 = vmatmul.f32.gmra.mxu0 %v5598
    %v5600 = vpop.f32.mrf.mxu0
    %v5601 = vadd.f32 %v5570, %v5600
    %5602 = vdwg.mxu0
    %5603 = vmatpush.msra.mxu0 0.0
    %5604 = vmatpush.msra.mxu0 0.0
    %5605 = vmatpush.msra.mxu0 0.0
    %5606 = vmatpush.msra.mxu0 0.0
    %5607 = vmatpush.msra.mxu0 0.0
    %5608 = vmatpush.msra.mxu0 0.0
    %5609 = vmatpush.msra.mxu0 0.0
    %5610 = vmatpush.msra.mxu0 0.0
    %5611 = vmatpush.msra.mxu0 0.0
    %5612 = vmatpush.msra.mxu0 0.0
    %5613 = vmatpush.msra.mxu0 0.0
    %5614 = vmatpush.msra.mxu0 0.0
    %5615 = vmatpush.msra.mxu0 0.0
    %5616 = vmatpush.msra.mxu0 0.0
    %v5617 = vand.u32 %v5500, 4294901760
    %5618 = vmatpush.msra.mxu0 %v5617
    %v5619 = vand.u32 %v5496, 4294901760
    %5620 = vmatpush.msra.mxu0 %v5619
    %v5621 = vand.u32 %v287, 4294901760
    %v5622 = vsub.f32 %v287, %v5621
    %v5623 = vand.u32 %v5622, 4294901760
    %5624 = vmatmul.f32.gmra.mxu0 %v5623
    %v5625 = vpop.f32.mrf.mxu0
    %v5626 = vadd.f32 %v5596, %v5625
    %v5627 = vand.u32 %v290, 4294901760
    %v5628 = vsub.f32 %v290, %v5627
    %v5629 = vand.u32 %v5628, 4294901760
    %5630 = vmatmul.f32.gmra.mxu0 %v5629
    %v5631 = vpop.f32.mrf.mxu0
    %v5632 = vadd.f32 %v5601, %v5631
    %5633 = vdwg.mxu0
    %5634 = vmatpush.msra.mxu0 0.0
    %5635 = vmatpush.msra.mxu0 0.0
    %5636 = vmatpush.msra.mxu0 0.0
    %5637 = vmatpush.msra.mxu0 0.0
    %5638 = vmatpush.msra.mxu0 0.0
    %5639 = vmatpush.msra.mxu0 0.0
    %5640 = vmatpush.msra.mxu0 0.0
    %5641 = vmatpush.msra.mxu0 0.0
    %5642 = vmatpush.msra.mxu0 0.0
    %5643 = vmatpush.msra.mxu0 0.0
    %5644 = vmatpush.msra.mxu0 0.0
    %5645 = vmatpush.msra.mxu0 0.0
    %5646 = vmatpush.msra.mxu0 0.0
    %5647 = vmatpush.msra.mxu0 0.0
    %v5648 = vand.u32 %v5500, 4294901760
    %v5649 = vsub.f32 %v5500, %v5648
    %v5650 = vand.u32 %v5649, 4294901760
    %5651 = vmatpush.msra.mxu0 %v5650
    %v5652 = vand.u32 %v5496, 4294901760
    %v5653 = vsub.f32 %v5496, %v5652
    %v5654 = vand.u32 %v5653, 4294901760
    %5655 = vmatpush.msra.mxu0 %v5654
    %v5656 = vand.u32 %v287, 4294901760
    %5657 = vmatmul.f32.gmra.mxu0 %v5656
    %v5658 = vpop.f32.mrf.mxu0
    %v5659 = vadd.f32 %v5626, %v5658
    %v5660 = vand.u32 %v290, 4294901760
    %5661 = vmatmul.f32.gmra.mxu0 %v5660
    %v5662 = vpop.f32.mrf.mxu0
    %v5663 = vadd.f32 %v5632, %v5662
    %5664 = vdwg.mxu0
    %5665 = vmatpush.msra.mxu0 0.0
    %5666 = vmatpush.msra.mxu0 0.0
    %5667 = vmatpush.msra.mxu0 0.0
    %5668 = vmatpush.msra.mxu0 0.0
    %5669 = vmatpush.msra.mxu0 0.0
    %5670 = vmatpush.msra.mxu0 0.0
    %5671 = vmatpush.msra.mxu0 0.0
    %5672 = vmatpush.msra.mxu0 0.0
    %5673 = vmatpush.msra.mxu0 0.0
    %5674 = vmatpush.msra.mxu0 0.0
    %5675 = vmatpush.msra.mxu0 0.0
    %5676 = vmatpush.msra.mxu0 0.0
    %5677 = vmatpush.msra.mxu0 0.0
    %5678 = vmatpush.msra.mxu0 0.0
    %v5679 = vand.u32 %v5500, 4294901760
    %5680 = vmatpush.msra.mxu0 %v5679
    %v5681 = vand.u32 %v5496, 4294901760
    %5682 = vmatpush.msra.mxu0 %v5681
    %v5683 = vand.u32 %v287, 4294901760
    %5684 = vmatmul.f32.gmra.mxu0 %v5683
    %v5685 = vpop.f32.mrf.mxu0
    %v5686 = vadd.f32 %v5659, %v5685
    %v5687 = vand.u32 %v290, 4294901760
    %5688 = vmatmul.f32.gmra.mxu0 %v5687
    %v5689 = vpop.f32.mrf.mxu0
    %v5690 = vadd.f32 %v5663, %v5689
    %5691 = vdwg.mxu0
    %v5692 = vsub.f32 %v5686, %v4910
    %v5693 = vsub.f32 %v5690, %v4911
    %v5694 = vmul.f32 %v4131, %v4134
    %v5695 = vmul.f32 %v4132, %v4135
    %v5697 = vsel %vm89, %v5694, 0
    %v5700 = vsel %vm89, %v5695, 0
    %5702 = vmatpush.msra.mxu0 0.0
    %5703 = vmatpush.msra.mxu0 0.0
    %5704 = vmatpush.msra.mxu0 0.0
    %5705 = vmatpush.msra.mxu0 0.0
    %5706 = vmatpush.msra.mxu0 0.0
    %5707 = vmatpush.msra.mxu0 0.0
    %5708 = vmatpush.msra.mxu0 0.0
    %5709 = vmatpush.msra.mxu0 0.0
    %5710 = vmatpush.msra.mxu0 0.0
    %5711 = vmatpush.msra.mxu0 0.0
    %5712 = vmatpush.msra.mxu0 0.0
    %5713 = vmatpush.msra.mxu0 0.0
    %5714 = vmatpush.msra.mxu0 0.0
    %5715 = vmatpush.msra.mxu0 0.0
    %v5716 = vand.u32 %v82, 4294901760
    %5717 = vmatpush.msra.mxu0 %v5716
    %v5718 = vand.u32 %v81, 4294901760
    %5719 = vmatpush.msra.mxu0 %v5718
    %v5720 = vand.u32 %v5697, 4294901760
    %v5721 = vsub.f32 %v5697, %v5720
    %v5722 = vand.u32 %v5721, 4294901760
    %v5723 = vsub.f32 %v5721, %v5722
    %v5724 = vand.u32 %v5723, 4294901760
    %5725 = vmatmul.f32.gmra.mxu0 %v5724
    %v5726 = vpop.f32.mrf.mxu0
    %v5727 = vadd.f32 0.0, %v5726
    %v5728 = vand.u32 %v5700, 4294901760
    %v5729 = vsub.f32 %v5700, %v5728
    %v5730 = vand.u32 %v5729, 4294901760
    %v5731 = vsub.f32 %v5729, %v5730
    %v5732 = vand.u32 %v5731, 4294901760
    %5733 = vmatmul.f32.gmra.mxu0 %v5732
    %v5734 = vpop.f32.mrf.mxu0
    %v5735 = vadd.f32 0.0, %v5734
    %5736 = vdwg.mxu0
    %5737 = vmatpush.msra.mxu0 0.0
    %5738 = vmatpush.msra.mxu0 0.0
    %5739 = vmatpush.msra.mxu0 0.0
    %5740 = vmatpush.msra.mxu0 0.0
    %5741 = vmatpush.msra.mxu0 0.0
    %5742 = vmatpush.msra.mxu0 0.0
    %5743 = vmatpush.msra.mxu0 0.0
    %5744 = vmatpush.msra.mxu0 0.0
    %5745 = vmatpush.msra.mxu0 0.0
    %5746 = vmatpush.msra.mxu0 0.0
    %5747 = vmatpush.msra.mxu0 0.0
    %5748 = vmatpush.msra.mxu0 0.0
    %5749 = vmatpush.msra.mxu0 0.0
    %5750 = vmatpush.msra.mxu0 0.0
    %v5751 = vand.u32 %v82, 4294901760
    %v5752 = vsub.f32 %v82, %v5751
    %v5753 = vand.u32 %v5752, 4294901760
    %v5754 = vsub.f32 %v5752, %v5753
    %v5755 = vand.u32 %v5754, 4294901760
    %5756 = vmatpush.msra.mxu0 %v5755
    %v5757 = vand.u32 %v81, 4294901760
    %v5758 = vsub.f32 %v81, %v5757
    %v5759 = vand.u32 %v5758, 4294901760
    %v5760 = vsub.f32 %v5758, %v5759
    %v5761 = vand.u32 %v5760, 4294901760
    %5762 = vmatpush.msra.mxu0 %v5761
    %v5763 = vand.u32 %v5697, 4294901760
    %5764 = vmatmul.f32.gmra.mxu0 %v5763
    %v5765 = vpop.f32.mrf.mxu0
    %v5766 = vadd.f32 %v5727, %v5765
    %v5767 = vand.u32 %v5700, 4294901760
    %5768 = vmatmul.f32.gmra.mxu0 %v5767
    %v5769 = vpop.f32.mrf.mxu0
    %v5770 = vadd.f32 %v5735, %v5769
    %5771 = vdwg.mxu0
    %5772 = vmatpush.msra.mxu0 0.0
    %5773 = vmatpush.msra.mxu0 0.0
    %5774 = vmatpush.msra.mxu0 0.0
    %5775 = vmatpush.msra.mxu0 0.0
    %5776 = vmatpush.msra.mxu0 0.0
    %5777 = vmatpush.msra.mxu0 0.0
    %5778 = vmatpush.msra.mxu0 0.0
    %5779 = vmatpush.msra.mxu0 0.0
    %5780 = vmatpush.msra.mxu0 0.0
    %5781 = vmatpush.msra.mxu0 0.0
    %5782 = vmatpush.msra.mxu0 0.0
    %5783 = vmatpush.msra.mxu0 0.0
    %5784 = vmatpush.msra.mxu0 0.0
    %5785 = vmatpush.msra.mxu0 0.0
    %v5786 = vand.u32 %v82, 4294901760
    %v5787 = vsub.f32 %v82, %v5786
    %5788 = vmatpush.msra.mxu0 %v5787
    %v5789 = vand.u32 %v81, 4294901760
    %v5790 = vsub.f32 %v81, %v5789
    %5791 = vmatpush.msra.mxu0 %v5790
    %v5792 = vand.u32 %v5697, 4294901760
    %v5793 = vsub.f32 %v5697, %v5792
    %5794 = vmatmul.f32.gmra.mxu0 %v5793
    %v5795 = vpop.f32.mrf.mxu0
    %v5796 = vadd.f32 %v5766, %v5795
    %v5797 = vand.u32 %v5700, 4294901760
    %v5798 = vsub.f32 %v5700, %v5797
    %5799 = vmatmul.f32.gmra.mxu0 %v5798
    %v5800 = vpop.f32.mrf.mxu0
    %v5801 = vadd.f32 %v5770, %v5800
    %5802 = vdwg.mxu0
    %5803 = vmatpush.msra.mxu0 0.0
    %5804 = vmatpush.msra.mxu0 0.0
    %5805 = vmatpush.msra.mxu0 0.0
    %5806 = vmatpush.msra.mxu0 0.0
    %5807 = vmatpush.msra.mxu0 0.0
    %5808 = vmatpush.msra.mxu0 0.0
    %5809 = vmatpush.msra.mxu0 0.0
    %5810 = vmatpush.msra.mxu0 0.0
    %5811 = vmatpush.msra.mxu0 0.0
    %5812 = vmatpush.msra.mxu0 0.0
    %5813 = vmatpush.msra.mxu0 0.0
    %5814 = vmatpush.msra.mxu0 0.0
    %5815 = vmatpush.msra.mxu0 0.0
    %5816 = vmatpush.msra.mxu0 0.0
    %v5817 = vand.u32 %v82, 4294901760
    %5818 = vmatpush.msra.mxu0 %v5817
    %v5819 = vand.u32 %v81, 4294901760
    %5820 = vmatpush.msra.mxu0 %v5819
    %v5821 = vand.u32 %v5697, 4294901760
    %v5822 = vsub.f32 %v5697, %v5821
    %v5823 = vand.u32 %v5822, 4294901760
    %5824 = vmatmul.f32.gmra.mxu0 %v5823
    %v5825 = vpop.f32.mrf.mxu0
    %v5826 = vadd.f32 %v5796, %v5825
    %v5827 = vand.u32 %v5700, 4294901760
    %v5828 = vsub.f32 %v5700, %v5827
    %v5829 = vand.u32 %v5828, 4294901760
    %5830 = vmatmul.f32.gmra.mxu0 %v5829
    %v5831 = vpop.f32.mrf.mxu0
    %v5832 = vadd.f32 %v5801, %v5831
    %5833 = vdwg.mxu0
    %5834 = vmatpush.msra.mxu0 0.0
    %5835 = vmatpush.msra.mxu0 0.0
    %5836 = vmatpush.msra.mxu0 0.0
    %5837 = vmatpush.msra.mxu0 0.0
    %5838 = vmatpush.msra.mxu0 0.0
    %5839 = vmatpush.msra.mxu0 0.0
    %5840 = vmatpush.msra.mxu0 0.0
    %5841 = vmatpush.msra.mxu0 0.0
    %5842 = vmatpush.msra.mxu0 0.0
    %5843 = vmatpush.msra.mxu0 0.0
    %5844 = vmatpush.msra.mxu0 0.0
    %5845 = vmatpush.msra.mxu0 0.0
    %5846 = vmatpush.msra.mxu0 0.0
    %5847 = vmatpush.msra.mxu0 0.0
    %v5848 = vand.u32 %v82, 4294901760
    %v5849 = vsub.f32 %v82, %v5848
    %v5850 = vand.u32 %v5849, 4294901760
    %5851 = vmatpush.msra.mxu0 %v5850
    %v5852 = vand.u32 %v81, 4294901760
    %v5853 = vsub.f32 %v81, %v5852
    %v5854 = vand.u32 %v5853, 4294901760
    %5855 = vmatpush.msra.mxu0 %v5854
    %v5856 = vand.u32 %v5697, 4294901760
    %5857 = vmatmul.f32.gmra.mxu0 %v5856
    %v5858 = vpop.f32.mrf.mxu0
    %v5859 = vadd.f32 %v5826, %v5858
    %v5860 = vand.u32 %v5700, 4294901760
    %5861 = vmatmul.f32.gmra.mxu0 %v5860
    %v5862 = vpop.f32.mrf.mxu0
    %v5863 = vadd.f32 %v5832, %v5862
    %5864 = vdwg.mxu0
    %5865 = vmatpush.msra.mxu0 0.0
    %5866 = vmatpush.msra.mxu0 0.0
    %5867 = vmatpush.msra.mxu0 0.0
    %5868 = vmatpush.msra.mxu0 0.0
    %5869 = vmatpush.msra.mxu0 0.0
    %5870 = vmatpush.msra.mxu0 0.0
    %5871 = vmatpush.msra.mxu0 0.0
    %5872 = vmatpush.msra.mxu0 0.0
    %5873 = vmatpush.msra.mxu0 0.0
    %5874 = vmatpush.msra.mxu0 0.0
    %5875 = vmatpush.msra.mxu0 0.0
    %5876 = vmatpush.msra.mxu0 0.0
    %5877 = vmatpush.msra.mxu0 0.0
    %5878 = vmatpush.msra.mxu0 0.0
    %v5879 = vand.u32 %v82, 4294901760
    %5880 = vmatpush.msra.mxu0 %v5879
    %v5881 = vand.u32 %v81, 4294901760
    %5882 = vmatpush.msra.mxu0 %v5881
    %v5883 = vand.u32 %v5697, 4294901760
    %5884 = vmatmul.f32.gmra.mxu0 %v5883
    %v5885 = vpop.f32.mrf.mxu0
    %v5886 = vadd.f32 %v5859, %v5885
    %v5887 = vand.u32 %v5700, 4294901760
    %5888 = vmatmul.f32.gmra.mxu0 %v5887
    %v5889 = vpop.f32.mrf.mxu0
    %v5890 = vadd.f32 %v5863, %v5889
    %5891 = vdwg.mxu0
    %5892 = vmatpush.msra.mxu0 0.0
    %5893 = vmatpush.msra.mxu0 0.0
    %5894 = vmatpush.msra.mxu0 0.0
    %5895 = vmatpush.msra.mxu0 0.0
    %5896 = vmatpush.msra.mxu0 0.0
    %5897 = vmatpush.msra.mxu0 0.0
    %5898 = vmatpush.msra.mxu0 0.0
    %5899 = vmatpush.msra.mxu0 0.0
    %5900 = vmatpush.msra.mxu0 0.0
    %5901 = vmatpush.msra.mxu0 0.0
    %5902 = vmatpush.msra.mxu0 0.0
    %5903 = vmatpush.msra.mxu0 0.0
    %5904 = vmatpush.msra.mxu0 0.0
    %5905 = vmatpush.msra.mxu0 0.0
    %v5906 = vand.u32 %v5890, 4294901760
    %5907 = vmatpush.msra.mxu0 %v5906
    %v5908 = vand.u32 %v5886, 4294901760
    %5909 = vmatpush.msra.mxu0 %v5908
    %v5910 = vand.u32 %v287, 4294901760
    %v5911 = vsub.f32 %v287, %v5910
    %v5912 = vand.u32 %v5911, 4294901760
    %v5913 = vsub.f32 %v5911, %v5912
    %v5914 = vand.u32 %v5913, 4294901760
    %5915 = vmatmul.f32.gmra.mxu0 %v5914
    %v5916 = vpop.f32.mrf.mxu0
    %v5917 = vadd.f32 0.0, %v5916
    %v5918 = vand.u32 %v290, 4294901760
    %v5919 = vsub.f32 %v290, %v5918
    %v5920 = vand.u32 %v5919, 4294901760
    %v5921 = vsub.f32 %v5919, %v5920
    %v5922 = vand.u32 %v5921, 4294901760
    %5923 = vmatmul.f32.gmra.mxu0 %v5922
    %v5924 = vpop.f32.mrf.mxu0
    %v5925 = vadd.f32 0.0, %v5924
    %5926 = vdwg.mxu0
    %5927 = vmatpush.msra.mxu0 0.0
    %5928 = vmatpush.msra.mxu0 0.0
    %5929 = vmatpush.msra.mxu0 0.0
    %5930 = vmatpush.msra.mxu0 0.0
    %5931 = vmatpush.msra.mxu0 0.0
    %5932 = vmatpush.msra.mxu0 0.0
    %5933 = vmatpush.msra.mxu0 0.0
    %5934 = vmatpush.msra.mxu0 0.0
    %5935 = vmatpush.msra.mxu0 0.0
    %5936 = vmatpush.msra.mxu0 0.0
    %5937 = vmatpush.msra.mxu0 0.0
    %5938 = vmatpush.msra.mxu0 0.0
    %5939 = vmatpush.msra.mxu0 0.0
    %5940 = vmatpush.msra.mxu0 0.0
    %v5941 = vand.u32 %v5890, 4294901760
    %v5942 = vsub.f32 %v5890, %v5941
    %v5943 = vand.u32 %v5942, 4294901760
    %v5944 = vsub.f32 %v5942, %v5943
    %v5945 = vand.u32 %v5944, 4294901760
    %5946 = vmatpush.msra.mxu0 %v5945
    %v5947 = vand.u32 %v5886, 4294901760
    %v5948 = vsub.f32 %v5886, %v5947
    %v5949 = vand.u32 %v5948, 4294901760
    %v5950 = vsub.f32 %v5948, %v5949
    %v5951 = vand.u32 %v5950, 4294901760
    %5952 = vmatpush.msra.mxu0 %v5951
    %v5953 = vand.u32 %v287, 4294901760
    %5954 = vmatmul.f32.gmra.mxu0 %v5953
    %v5955 = vpop.f32.mrf.mxu0
    %v5956 = vadd.f32 %v5917, %v5955
    %v5957 = vand.u32 %v290, 4294901760
    %5958 = vmatmul.f32.gmra.mxu0 %v5957
    %v5959 = vpop.f32.mrf.mxu0
    %v5960 = vadd.f32 %v5925, %v5959
    %5961 = vdwg.mxu0
    %5962 = vmatpush.msra.mxu0 0.0
    %5963 = vmatpush.msra.mxu0 0.0
    %5964 = vmatpush.msra.mxu0 0.0
    %5965 = vmatpush.msra.mxu0 0.0
    %5966 = vmatpush.msra.mxu0 0.0
    %5967 = vmatpush.msra.mxu0 0.0
    %5968 = vmatpush.msra.mxu0 0.0
    %5969 = vmatpush.msra.mxu0 0.0
    %5970 = vmatpush.msra.mxu0 0.0
    %5971 = vmatpush.msra.mxu0 0.0
    %5972 = vmatpush.msra.mxu0 0.0
    %5973 = vmatpush.msra.mxu0 0.0
    %5974 = vmatpush.msra.mxu0 0.0
    %5975 = vmatpush.msra.mxu0 0.0
    %v5976 = vand.u32 %v5890, 4294901760
    %v5977 = vsub.f32 %v5890, %v5976
    %5978 = vmatpush.msra.mxu0 %v5977
    %v5979 = vand.u32 %v5886, 4294901760
    %v5980 = vsub.f32 %v5886, %v5979
    %5981 = vmatpush.msra.mxu0 %v5980
    %v5982 = vand.u32 %v287, 4294901760
    %v5983 = vsub.f32 %v287, %v5982
    %5984 = vmatmul.f32.gmra.mxu0 %v5983
    %v5985 = vpop.f32.mrf.mxu0
    %v5986 = vadd.f32 %v5956, %v5985
    %v5987 = vand.u32 %v290, 4294901760
    %v5988 = vsub.f32 %v290, %v5987
    %5989 = vmatmul.f32.gmra.mxu0 %v5988
    %v5990 = vpop.f32.mrf.mxu0
    %v5991 = vadd.f32 %v5960, %v5990
    %5992 = vdwg.mxu0
    %5993 = vmatpush.msra.mxu0 0.0
    %5994 = vmatpush.msra.mxu0 0.0
    %5995 = vmatpush.msra.mxu0 0.0
    %5996 = vmatpush.msra.mxu0 0.0
    %5997 = vmatpush.msra.mxu0 0.0
    %5998 = vmatpush.msra.mxu0 0.0
    %5999 = vmatpush.msra.mxu0 0.0
    %6000 = vmatpush.msra.mxu0 0.0
    %6001 = vmatpush.msra.mxu0 0.0
    %6002 = vmatpush.msra.mxu0 0.0
    %6003 = vmatpush.msra.mxu0 0.0
    %6004 = vmatpush.msra.mxu0 0.0
    %6005 = vmatpush.msra.mxu0 0.0
    %6006 = vmatpush.msra.mxu0 0.0
    %v6007 = vand.u32 %v5890, 4294901760
    %6008 = vmatpush.msra.mxu0 %v6007
    %v6009 = vand.u32 %v5886, 4294901760
    %6010 = vmatpush.msra.mxu0 %v6009
    %v6011 = vand.u32 %v287, 4294901760
    %v6012 = vsub.f32 %v287, %v6011
    %v6013 = vand.u32 %v6012, 4294901760
    %6014 = vmatmul.f32.gmra.mxu0 %v6013
    %v6015 = vpop.f32.mrf.mxu0
    %v6016 = vadd.f32 %v5986, %v6015
    %v6017 = vand.u32 %v290, 4294901760
    %v6018 = vsub.f32 %v290, %v6017
    %v6019 = vand.u32 %v6018, 4294901760
    %6020 = vmatmul.f32.gmra.mxu0 %v6019
    %v6021 = vpop.f32.mrf.mxu0
    %v6022 = vadd.f32 %v5991, %v6021
    %6023 = vdwg.mxu0
    %6024 = vmatpush.msra.mxu0 0.0
    %6025 = vmatpush.msra.mxu0 0.0
    %6026 = vmatpush.msra.mxu0 0.0
    %6027 = vmatpush.msra.mxu0 0.0
    %6028 = vmatpush.msra.mxu0 0.0
    %6029 = vmatpush.msra.mxu0 0.0
    %6030 = vmatpush.msra.mxu0 0.0
    %6031 = vmatpush.msra.mxu0 0.0
    %6032 = vmatpush.msra.mxu0 0.0
    %6033 = vmatpush.msra.mxu0 0.0
    %6034 = vmatpush.msra.mxu0 0.0
    %6035 = vmatpush.msra.mxu0 0.0
    %6036 = vmatpush.msra.mxu0 0.0
    %6037 = vmatpush.msra.mxu0 0.0
    %v6038 = vand.u32 %v5890, 4294901760
    %v6039 = vsub.f32 %v5890, %v6038
    %v6040 = vand.u32 %v6039, 4294901760
    %6041 = vmatpush.msra.mxu0 %v6040
    %v6042 = vand.u32 %v5886, 4294901760
    %v6043 = vsub.f32 %v5886, %v6042
    %v6044 = vand.u32 %v6043, 4294901760
    %6045 = vmatpush.msra.mxu0 %v6044
    %v6046 = vand.u32 %v287, 4294901760
    %6047 = vmatmul.f32.gmra.mxu0 %v6046
    %v6048 = vpop.f32.mrf.mxu0
    %v6049 = vadd.f32 %v6016, %v6048
    %v6050 = vand.u32 %v290, 4294901760
    %6051 = vmatmul.f32.gmra.mxu0 %v6050
    %v6052 = vpop.f32.mrf.mxu0
    %v6053 = vadd.f32 %v6022, %v6052
    %6054 = vdwg.mxu0
    %6055 = vmatpush.msra.mxu0 0.0
    %6056 = vmatpush.msra.mxu0 0.0
    %6057 = vmatpush.msra.mxu0 0.0
    %6058 = vmatpush.msra.mxu0 0.0
    %6059 = vmatpush.msra.mxu0 0.0
    %6060 = vmatpush.msra.mxu0 0.0
    %6061 = vmatpush.msra.mxu0 0.0
    %6062 = vmatpush.msra.mxu0 0.0
    %6063 = vmatpush.msra.mxu0 0.0
    %6064 = vmatpush.msra.mxu0 0.0
    %6065 = vmatpush.msra.mxu0 0.0
    %6066 = vmatpush.msra.mxu0 0.0
    %6067 = vmatpush.msra.mxu0 0.0
    %6068 = vmatpush.msra.mxu0 0.0
    %v6069 = vand.u32 %v5890, 4294901760
    %6070 = vmatpush.msra.mxu0 %v6069
    %v6071 = vand.u32 %v5886, 4294901760
    %6072 = vmatpush.msra.mxu0 %v6071
    %v6073 = vand.u32 %v287, 4294901760
    %6074 = vmatmul.f32.gmra.mxu0 %v6073
    %v6075 = vpop.f32.mrf.mxu0
    %v6076 = vadd.f32 %v6049, %v6075
    %v6077 = vand.u32 %v290, 4294901760
    %6078 = vmatmul.f32.gmra.mxu0 %v6077
    %v6079 = vpop.f32.mrf.mxu0
    %v6080 = vadd.f32 %v6053, %v6079
    %6081 = vdwg.mxu0
    %v6082 = vsub.f32 %v6076, %v4912
    %v6083 = vsub.f32 %v6080, %v4913
    %v6084 = vmul.f32 %v4912, 2.0
    %v6085 = vmul.f32 %v4913, 2.0
    %v6086 = vadd.f32 %v6084, 0.0001
    %v6087 = vadd.f32 %v6085, 0.0001
    %v6088 = vmul.f32 %v6082, 2.0
    %v6089 = vmul.f32 %v6083, 2.0
    %v6090 = vadd.f32 %v6088, 0.0009
    %v6091 = vadd.f32 %v6089, 0.0009
    %v6092 = vmul.f32 %v6086, %v6090
    %v6093 = vmul.f32 %v6087, %v6091
    %v6094 = vadd.f32 %v4908, %v4910
    %v6095 = vadd.f32 %v4909, %v4911
    %v6096 = vadd.f32 %v6094, 0.0001
    %v6097 = vadd.f32 %v6095, 0.0001
    %v6098 = vadd.f32 %v5302, %v5692
    %v6099 = vadd.f32 %v5303, %v5693
    %v6100 = vadd.f32 %v6098, 0.0009
    %v6101 = vadd.f32 %v6099, 0.0009
    %v6102 = vmul.f32 %v6096, %v6100
    %v6103 = vmul.f32 %v6097, %v6101
    %v6104 = vadd.f32 %v6102, 1e-12
    %v6105 = vadd.f32 %v6103, 1e-12
    %v6106 = vrcp.pop %v6104
    %v6107 = vmul.f32 %v6104, %v6106
    %v6108 = vsub.f32 1.0, %v6107
    %v6109 = vmul.f32 %v6106, %v6108
    %v6110 = vadd.f32 %v6106, %v6109
    %vm6111 = vweird.f32 %v6104
    %vm6112 = vweird.f32 %v6106
    %vm6113 = vmor %vm6111, %vm6112
    %v6114 = vsel %vm6113, %v6106, %v6110
    %v6115 = vand.u32 2147483647, %v6104
    %vm6116 = vcmp.eq.f32.partialorder %v6115, 8.507059e+37
    %v6117 = vand.u32 %v6104, 2147483648
    %v6118 = vor.u32 1.1754944e-38, %v6117
    %v6119 = vsel %vm6116, %v6118, %v6114
    %v6120 = vrcp.pop %v6105
    %v6121 = vmul.f32 %v6105, %v6120
    %v6122 = vsub.f32 1.0, %v6121
    %v6123 = vmul.f32 %v6120, %v6122
    %v6124 = vadd.f32 %v6120, %v6123
    %vm6125 = vweird.f32 %v6105
    %vm6126 = vweird.f32 %v6120
    %vm6127 = vmor %vm6125, %vm6126
    %v6128 = vsel %vm6127, %v6120, %v6124
    %v6129 = vand.u32 2147483647, %v6105
    %vm6130 = vcmp.eq.f32.partialorder %v6129, 8.507059e+37
    %v6131 = vand.u32 %v6105, 2147483648
    %v6132 = vor.u32 1.1754944e-38, %v6131
    %v6133 = vsel %vm6130, %v6132, %v6128
    %v6134 = vmul.f32 %v6092, %v6119
    %v6135 = vmul.f32 %v6093, %v6133
    %v6136 = vsel %vm89, %v6134, 0.0
    %v6137 = vsel %vm89, %v6135, 0.0
    %v6138 = vadd.f32 %v6136, %v6137
    %6139 = vadd.xlane.f32.xlu0 %v6138
    %v6140 = vpop.xlane.xlu0 %6139
    %v6141 = vrot.slane %v6140, 4
    %v6142 = vadd.f32 %v6140, %v6141
    %v6143 = vrot.slane %v6142, 2
    %v6144 = vadd.f32 %v6142, %v6143
    %v6145 = vrot.slane %v6144, 1
    %v6146 = vadd.f32 %v6144, %v6145
    %s6147 = vtos %v6146
    %v6148 = vstv %s6147
    %v6149 = vadd.f32 %v4129, %v6148
    %s6150 = scalar_lea.vmem [#allocation2], 48
    %v6151 = vld [vmem:[%s6150] sm:$0xff]
    %v6152 = vld [vmem:[%s6150 + $0x8] sm:$0xff]
    %s6153 = scalar_lea.vmem [#allocation5], 48
    %v6154 = vld [vmem:[%s6153] sm:$0xff]
    %v6155 = vld [vmem:[%s6153 + $0x8] sm:$0xff]
    %v6157 = vsel %vm89, %v6151, 0
    %v6160 = vsel %vm89, %v6152, 0
    %6162 = vmatpush.msra.mxu0 0.0
    %6163 = vmatpush.msra.mxu0 0.0
    %6164 = vmatpush.msra.mxu0 0.0
    %6165 = vmatpush.msra.mxu0 0.0
    %6166 = vmatpush.msra.mxu0 0.0
    %6167 = vmatpush.msra.mxu0 0.0
    %6168 = vmatpush.msra.mxu0 0.0
    %6169 = vmatpush.msra.mxu0 0.0
    %6170 = vmatpush.msra.mxu0 0.0
    %6171 = vmatpush.msra.mxu0 0.0
    %6172 = vmatpush.msra.mxu0 0.0
    %6173 = vmatpush.msra.mxu0 0.0
    %6174 = vmatpush.msra.mxu0 0.0
    %6175 = vmatpush.msra.mxu0 0.0
    %v6176 = vand.u32 %v82, 4294901760
    %6177 = vmatpush.msra.mxu0 %v6176
    %v6178 = vand.u32 %v81, 4294901760
    %6179 = vmatpush.msra.mxu0 %v6178
    %v6180 = vand.u32 %v6157, 4294901760
    %v6181 = vsub.f32 %v6157, %v6180
    %v6182 = vand.u32 %v6181, 4294901760
    %v6183 = vsub.f32 %v6181, %v6182
    %v6184 = vand.u32 %v6183, 4294901760
    %6185 = vmatmul.f32.gmra.mxu0 %v6184
    %v6186 = vpop.f32.mrf.mxu0
    %v6187 = vadd.f32 0.0, %v6186
    %v6188 = vand.u32 %v6160, 4294901760
    %v6189 = vsub.f32 %v6160, %v6188
    %v6190 = vand.u32 %v6189, 4294901760
    %v6191 = vsub.f32 %v6189, %v6190
    %v6192 = vand.u32 %v6191, 4294901760
    %6193 = vmatmul.f32.gmra.mxu0 %v6192
    %v6194 = vpop.f32.mrf.mxu0
    %v6195 = vadd.f32 0.0, %v6194
    %6196 = vdwg.mxu0
    %6197 = vmatpush.msra.mxu0 0.0
    %6198 = vmatpush.msra.mxu0 0.0
    %6199 = vmatpush.msra.mxu0 0.0
    %6200 = vmatpush.msra.mxu0 0.0
    %6201 = vmatpush.msra.mxu0 0.0
    %6202 = vmatpush.msra.mxu0 0.0
    %6203 = vmatpush.msra.mxu0 0.0
    %6204 = vmatpush.msra.mxu0 0.0
    %6205 = vmatpush.msra.mxu0 0.0
    %6206 = vmatpush.msra.mxu0 0.0
    %6207 = vmatpush.msra.mxu0 0.0
    %6208 = vmatpush.msra.mxu0 0.0
    %6209 = vmatpush.msra.mxu0 0.0
    %6210 = vmatpush.msra.mxu0 0.0
    %v6211 = vand.u32 %v82, 4294901760
    %v6212 = vsub.f32 %v82, %v6211
    %v6213 = vand.u32 %v6212, 4294901760
    %v6214 = vsub.f32 %v6212, %v6213
    %v6215 = vand.u32 %v6214, 4294901760
    %6216 = vmatpush.msra.mxu0 %v6215
    %v6217 = vand.u32 %v81, 4294901760
    %v6218 = vsub.f32 %v81, %v6217
    %v6219 = vand.u32 %v6218, 4294901760
    %v6220 = vsub.f32 %v6218, %v6219
    %v6221 = vand.u32 %v6220, 4294901760
    %6222 = vmatpush.msra.mxu0 %v6221
    %v6223 = vand.u32 %v6157, 4294901760
    %6224 = vmatmul.f32.gmra.mxu0 %v6223
    %v6225 = vpop.f32.mrf.mxu0
    %v6226 = vadd.f32 %v6187, %v6225
    %v6227 = vand.u32 %v6160, 4294901760
    %6228 = vmatmul.f32.gmra.mxu0 %v6227
    %v6229 = vpop.f32.mrf.mxu0
    %v6230 = vadd.f32 %v6195, %v6229
    %6231 = vdwg.mxu0
    %6232 = vmatpush.msra.mxu0 0.0
    %6233 = vmatpush.msra.mxu0 0.0
    %6234 = vmatpush.msra.mxu0 0.0
    %6235 = vmatpush.msra.mxu0 0.0
    %6236 = vmatpush.msra.mxu0 0.0
    %6237 = vmatpush.msra.mxu0 0.0
    %6238 = vmatpush.msra.mxu0 0.0
    %6239 = vmatpush.msra.mxu0 0.0
    %6240 = vmatpush.msra.mxu0 0.0
    %6241 = vmatpush.msra.mxu0 0.0
    %6242 = vmatpush.msra.mxu0 0.0
    %6243 = vmatpush.msra.mxu0 0.0
    %6244 = vmatpush.msra.mxu0 0.0
    %6245 = vmatpush.msra.mxu0 0.0
    %v6246 = vand.u32 %v82, 4294901760
    %v6247 = vsub.f32 %v82, %v6246
    %6248 = vmatpush.msra.mxu0 %v6247
    %v6249 = vand.u32 %v81, 4294901760
    %v6250 = vsub.f32 %v81, %v6249
    %6251 = vmatpush.msra.mxu0 %v6250
    %v6252 = vand.u32 %v6157, 4294901760
    %v6253 = vsub.f32 %v6157, %v6252
    %6254 = vmatmul.f32.gmra.mxu0 %v6253
    %v6255 = vpop.f32.mrf.mxu0
    %v6256 = vadd.f32 %v6226, %v6255
    %v6257 = vand.u32 %v6160, 4294901760
    %v6258 = vsub.f32 %v6160, %v6257
    %6259 = vmatmul.f32.gmra.mxu0 %v6258
    %v6260 = vpop.f32.mrf.mxu0
    %v6261 = vadd.f32 %v6230, %v6260
    %6262 = vdwg.mxu0
    %6263 = vmatpush.msra.mxu0 0.0
    %6264 = vmatpush.msra.mxu0 0.0
    %6265 = vmatpush.msra.mxu0 0.0
    %6266 = vmatpush.msra.mxu0 0.0
    %6267 = vmatpush.msra.mxu0 0.0
    %6268 = vmatpush.msra.mxu0 0.0
    %6269 = vmatpush.msra.mxu0 0.0
    %6270 = vmatpush.msra.mxu0 0.0
    %6271 = vmatpush.msra.mxu0 0.0
    %6272 = vmatpush.msra.mxu0 0.0
    %6273 = vmatpush.msra.mxu0 0.0
    %6274 = vmatpush.msra.mxu0 0.0
    %6275 = vmatpush.msra.mxu0 0.0
    %6276 = vmatpush.msra.mxu0 0.0
    %v6277 = vand.u32 %v82, 4294901760
    %6278 = vmatpush.msra.mxu0 %v6277
    %v6279 = vand.u32 %v81, 4294901760
    %6280 = vmatpush.msra.mxu0 %v6279
    %v6281 = vand.u32 %v6157, 4294901760
    %v6282 = vsub.f32 %v6157, %v6281
    %v6283 = vand.u32 %v6282, 4294901760
    %6284 = vmatmul.f32.gmra.mxu0 %v6283
    %v6285 = vpop.f32.mrf.mxu0
    %v6286 = vadd.f32 %v6256, %v6285
    %v6287 = vand.u32 %v6160, 4294901760
    %v6288 = vsub.f32 %v6160, %v6287
    %v6289 = vand.u32 %v6288, 4294901760
    %6290 = vmatmul.f32.gmra.mxu0 %v6289
    %v6291 = vpop.f32.mrf.mxu0
    %v6292 = vadd.f32 %v6261, %v6291
    %6293 = vdwg.mxu0
    %6294 = vmatpush.msra.mxu0 0.0
    %6295 = vmatpush.msra.mxu0 0.0
    %6296 = vmatpush.msra.mxu0 0.0
    %6297 = vmatpush.msra.mxu0 0.0
    %6298 = vmatpush.msra.mxu0 0.0
    %6299 = vmatpush.msra.mxu0 0.0
    %6300 = vmatpush.msra.mxu0 0.0
    %6301 = vmatpush.msra.mxu0 0.0
    %6302 = vmatpush.msra.mxu0 0.0
    %6303 = vmatpush.msra.mxu0 0.0
    %6304 = vmatpush.msra.mxu0 0.0
    %6305 = vmatpush.msra.mxu0 0.0
    %6306 = vmatpush.msra.mxu0 0.0
    %6307 = vmatpush.msra.mxu0 0.0
    %v6308 = vand.u32 %v82, 4294901760
    %v6309 = vsub.f32 %v82, %v6308
    %v6310 = vand.u32 %v6309, 4294901760
    %6311 = vmatpush.msra.mxu0 %v6310
    %v6312 = vand.u32 %v81, 4294901760
    %v6313 = vsub.f32 %v81, %v6312
    %v6314 = vand.u32 %v6313, 4294901760
    %6315 = vmatpush.msra.mxu0 %v6314
    %v6316 = vand.u32 %v6157, 4294901760
    %6317 = vmatmul.f32.gmra.mxu0 %v6316
    %v6318 = vpop.f32.mrf.mxu0
    %v6319 = vadd.f32 %v6286, %v6318
    %v6320 = vand.u32 %v6160, 4294901760
    %6321 = vmatmul.f32.gmra.mxu0 %v6320
    %v6322 = vpop.f32.mrf.mxu0
    %v6323 = vadd.f32 %v6292, %v6322
    %6324 = vdwg.mxu0
    %6325 = vmatpush.msra.mxu0 0.0
    %6326 = vmatpush.msra.mxu0 0.0
    %6327 = vmatpush.msra.mxu0 0.0
    %6328 = vmatpush.msra.mxu0 0.0
    %6329 = vmatpush.msra.mxu0 0.0
    %6330 = vmatpush.msra.mxu0 0.0
    %6331 = vmatpush.msra.mxu0 0.0
    %6332 = vmatpush.msra.mxu0 0.0
    %6333 = vmatpush.msra.mxu0 0.0
    %6334 = vmatpush.msra.mxu0 0.0
    %6335 = vmatpush.msra.mxu0 0.0
    %6336 = vmatpush.msra.mxu0 0.0
    %6337 = vmatpush.msra.mxu0 0.0
    %6338 = vmatpush.msra.mxu0 0.0
    %v6339 = vand.u32 %v82, 4294901760
    %6340 = vmatpush.msra.mxu0 %v6339
    %v6341 = vand.u32 %v81, 4294901760
    %6342 = vmatpush.msra.mxu0 %v6341
    %v6343 = vand.u32 %v6157, 4294901760
    %6344 = vmatmul.f32.gmra.mxu0 %v6343
    %v6345 = vpop.f32.mrf.mxu0
    %v6346 = vadd.f32 %v6319, %v6345
    %v6347 = vand.u32 %v6160, 4294901760
    %6348 = vmatmul.f32.gmra.mxu0 %v6347
    %v6349 = vpop.f32.mrf.mxu0
    %v6350 = vadd.f32 %v6323, %v6349
    %6351 = vdwg.mxu0
    %6352 = vmatpush.msra.mxu0 0.0
    %6353 = vmatpush.msra.mxu0 0.0
    %6354 = vmatpush.msra.mxu0 0.0
    %6355 = vmatpush.msra.mxu0 0.0
    %6356 = vmatpush.msra.mxu0 0.0
    %6357 = vmatpush.msra.mxu0 0.0
    %6358 = vmatpush.msra.mxu0 0.0
    %6359 = vmatpush.msra.mxu0 0.0
    %6360 = vmatpush.msra.mxu0 0.0
    %6361 = vmatpush.msra.mxu0 0.0
    %6362 = vmatpush.msra.mxu0 0.0
    %6363 = vmatpush.msra.mxu0 0.0
    %6364 = vmatpush.msra.mxu0 0.0
    %6365 = vmatpush.msra.mxu0 0.0
    %v6366 = vand.u32 %v6350, 4294901760
    %6367 = vmatpush.msra.mxu0 %v6366
    %v6368 = vand.u32 %v6346, 4294901760
    %6369 = vmatpush.msra.mxu0 %v6368
    %v6370 = vand.u32 %v287, 4294901760
    %v6371 = vsub.f32 %v287, %v6370
    %v6372 = vand.u32 %v6371, 4294901760
    %v6373 = vsub.f32 %v6371, %v6372
    %v6374 = vand.u32 %v6373, 4294901760
    %6375 = vmatmul.f32.gmra.mxu0 %v6374
    %v6376 = vpop.f32.mrf.mxu0
    %v6377 = vadd.f32 0.0, %v6376
    %v6378 = vand.u32 %v290, 4294901760
    %v6379 = vsub.f32 %v290, %v6378
    %v6380 = vand.u32 %v6379, 4294901760
    %v6381 = vsub.f32 %v6379, %v6380
    %v6382 = vand.u32 %v6381, 4294901760
    %6383 = vmatmul.f32.gmra.mxu0 %v6382
    %v6384 = vpop.f32.mrf.mxu0
    %v6385 = vadd.f32 0.0, %v6384
    %6386 = vdwg.mxu0
    %6387 = vmatpush.msra.mxu0 0.0
    %6388 = vmatpush.msra.mxu0 0.0
    %6389 = vmatpush.msra.mxu0 0.0
    %6390 = vmatpush.msra.mxu0 0.0
    %6391 = vmatpush.msra.mxu0 0.0
    %6392 = vmatpush.msra.mxu0 0.0
    %6393 = vmatpush.msra.mxu0 0.0
    %6394 = vmatpush.msra.mxu0 0.0
    %6395 = vmatpush.msra.mxu0 0.0
    %6396 = vmatpush.msra.mxu0 0.0
    %6397 = vmatpush.msra.mxu0 0.0
    %6398 = vmatpush.msra.mxu0 0.0
    %6399 = vmatpush.msra.mxu0 0.0
    %6400 = vmatpush.msra.mxu0 0.0
    %v6401 = vand.u32 %v6350, 4294901760
    %v6402 = vsub.f32 %v6350, %v6401
    %v6403 = vand.u32 %v6402, 4294901760
    %v6404 = vsub.f32 %v6402, %v6403
    %v6405 = vand.u32 %v6404, 4294901760
    %6406 = vmatpush.msra.mxu0 %v6405
    %v6407 = vand.u32 %v6346, 4294901760
    %v6408 = vsub.f32 %v6346, %v6407
    %v6409 = vand.u32 %v6408, 4294901760
    %v6410 = vsub.f32 %v6408, %v6409
    %v6411 = vand.u32 %v6410, 4294901760
    %6412 = vmatpush.msra.mxu0 %v6411
    %v6413 = vand.u32 %v287, 4294901760
    %6414 = vmatmul.f32.gmra.mxu0 %v6413
    %v6415 = vpop.f32.mrf.mxu0
    %v6416 = vadd.f32 %v6377, %v6415
    %v6417 = vand.u32 %v290, 4294901760
    %6418 = vmatmul.f32.gmra.mxu0 %v6417
    %v6419 = vpop.f32.mrf.mxu0
    %v6420 = vadd.f32 %v6385, %v6419
    %6421 = vdwg.mxu0
    %6422 = vmatpush.msra.mxu0 0.0
    %6423 = vmatpush.msra.mxu0 0.0
    %6424 = vmatpush.msra.mxu0 0.0
    %6425 = vmatpush.msra.mxu0 0.0
    %6426 = vmatpush.msra.mxu0 0.0
    %6427 = vmatpush.msra.mxu0 0.0
    %6428 = vmatpush.msra.mxu0 0.0
    %6429 = vmatpush.msra.mxu0 0.0
    %6430 = vmatpush.msra.mxu0 0.0
    %6431 = vmatpush.msra.mxu0 0.0
    %6432 = vmatpush.msra.mxu0 0.0
    %6433 = vmatpush.msra.mxu0 0.0
    %6434 = vmatpush.msra.mxu0 0.0
    %6435 = vmatpush.msra.mxu0 0.0
    %v6436 = vand.u32 %v6350, 4294901760
    %v6437 = vsub.f32 %v6350, %v6436
    %6438 = vmatpush.msra.mxu0 %v6437
    %v6439 = vand.u32 %v6346, 4294901760
    %v6440 = vsub.f32 %v6346, %v6439
    %6441 = vmatpush.msra.mxu0 %v6440
    %v6442 = vand.u32 %v287, 4294901760
    %v6443 = vsub.f32 %v287, %v6442
    %6444 = vmatmul.f32.gmra.mxu0 %v6443
    %v6445 = vpop.f32.mrf.mxu0
    %v6446 = vadd.f32 %v6416, %v6445
    %v6447 = vand.u32 %v290, 4294901760
    %v6448 = vsub.f32 %v290, %v6447
    %6449 = vmatmul.f32.gmra.mxu0 %v6448
    %v6450 = vpop.f32.mrf.mxu0
    %v6451 = vadd.f32 %v6420, %v6450
    %6452 = vdwg.mxu0
    %6453 = vmatpush.msra.mxu0 0.0
    %6454 = vmatpush.msra.mxu0 0.0
    %6455 = vmatpush.msra.mxu0 0.0
    %6456 = vmatpush.msra.mxu0 0.0
    %6457 = vmatpush.msra.mxu0 0.0
    %6458 = vmatpush.msra.mxu0 0.0
    %6459 = vmatpush.msra.mxu0 0.0
    %6460 = vmatpush.msra.mxu0 0.0
    %6461 = vmatpush.msra.mxu0 0.0
    %6462 = vmatpush.msra.mxu0 0.0
    %6463 = vmatpush.msra.mxu0 0.0
    %6464 = vmatpush.msra.mxu0 0.0
    %6465 = vmatpush.msra.mxu0 0.0
    %6466 = vmatpush.msra.mxu0 0.0
    %v6467 = vand.u32 %v6350, 4294901760
    %6468 = vmatpush.msra.mxu0 %v6467
    %v6469 = vand.u32 %v6346, 4294901760
    %6470 = vmatpush.msra.mxu0 %v6469
    %v6471 = vand.u32 %v287, 4294901760
    %v6472 = vsub.f32 %v287, %v6471
    %v6473 = vand.u32 %v6472, 4294901760
    %6474 = vmatmul.f32.gmra.mxu0 %v6473
    %v6475 = vpop.f32.mrf.mxu0
    %v6476 = vadd.f32 %v6446, %v6475
    %v6477 = vand.u32 %v290, 4294901760
    %v6478 = vsub.f32 %v290, %v6477
    %v6479 = vand.u32 %v6478, 4294901760
    %6480 = vmatmul.f32.gmra.mxu0 %v6479
    %v6481 = vpop.f32.mrf.mxu0
    %v6482 = vadd.f32 %v6451, %v6481
    %6483 = vdwg.mxu0
    %6484 = vmatpush.msra.mxu0 0.0
    %6485 = vmatpush.msra.mxu0 0.0
    %6486 = vmatpush.msra.mxu0 0.0
    %6487 = vmatpush.msra.mxu0 0.0
    %6488 = vmatpush.msra.mxu0 0.0
    %6489 = vmatpush.msra.mxu0 0.0
    %6490 = vmatpush.msra.mxu0 0.0
    %6491 = vmatpush.msra.mxu0 0.0
    %6492 = vmatpush.msra.mxu0 0.0
    %6493 = vmatpush.msra.mxu0 0.0
    %6494 = vmatpush.msra.mxu0 0.0
    %6495 = vmatpush.msra.mxu0 0.0
    %6496 = vmatpush.msra.mxu0 0.0
    %6497 = vmatpush.msra.mxu0 0.0
    %v6498 = vand.u32 %v6350, 4294901760
    %v6499 = vsub.f32 %v6350, %v6498
    %v6500 = vand.u32 %v6499, 4294901760
    %6501 = vmatpush.msra.mxu0 %v6500
    %v6502 = vand.u32 %v6346, 4294901760
    %v6503 = vsub.f32 %v6346, %v6502
    %v6504 = vand.u32 %v6503, 4294901760
    %6505 = vmatpush.msra.mxu0 %v6504
    %v6506 = vand.u32 %v287, 4294901760
    %6507 = vmatmul.f32.gmra.mxu0 %v6506
    %v6508 = vpop.f32.mrf.mxu0
    %v6509 = vadd.f32 %v6476, %v6508
    %v6510 = vand.u32 %v290, 4294901760
    %6511 = vmatmul.f32.gmra.mxu0 %v6510
    %v6512 = vpop.f32.mrf.mxu0
    %v6513 = vadd.f32 %v6482, %v6512
    %6514 = vdwg.mxu0
    %6515 = vmatpush.msra.mxu0 0.0
    %6516 = vmatpush.msra.mxu0 0.0
    %6517 = vmatpush.msra.mxu0 0.0
    %6518 = vmatpush.msra.mxu0 0.0
    %6519 = vmatpush.msra.mxu0 0.0
    %6520 = vmatpush.msra.mxu0 0.0
    %6521 = vmatpush.msra.mxu0 0.0
    %6522 = vmatpush.msra.mxu0 0.0
    %6523 = vmatpush.msra.mxu0 0.0
    %6524 = vmatpush.msra.mxu0 0.0
    %6525 = vmatpush.msra.mxu0 0.0
    %6526 = vmatpush.msra.mxu0 0.0
    %6527 = vmatpush.msra.mxu0 0.0
    %6528 = vmatpush.msra.mxu0 0.0
    %v6529 = vand.u32 %v6350, 4294901760
    %6530 = vmatpush.msra.mxu0 %v6529
    %v6531 = vand.u32 %v6346, 4294901760
    %6532 = vmatpush.msra.mxu0 %v6531
    %v6533 = vand.u32 %v287, 4294901760
    %6534 = vmatmul.f32.gmra.mxu0 %v6533
    %v6535 = vpop.f32.mrf.mxu0
    %v6536 = vadd.f32 %v6509, %v6535
    %v6537 = vand.u32 %v290, 4294901760
    %6538 = vmatmul.f32.gmra.mxu0 %v6537
    %v6539 = vpop.f32.mrf.mxu0
    %v6540 = vadd.f32 %v6513, %v6539
    %6541 = vdwg.mxu0
    %v6543 = vsel %vm89, %v6154, 0
    %v6546 = vsel %vm89, %v6155, 0
    %6548 = vmatpush.msra.mxu0 0.0
    %6549 = vmatpush.msra.mxu0 0.0
    %6550 = vmatpush.msra.mxu0 0.0
    %6551 = vmatpush.msra.mxu0 0.0
    %6552 = vmatpush.msra.mxu0 0.0
    %6553 = vmatpush.msra.mxu0 0.0
    %6554 = vmatpush.msra.mxu0 0.0
    %6555 = vmatpush.msra.mxu0 0.0
    %6556 = vmatpush.msra.mxu0 0.0
    %6557 = vmatpush.msra.mxu0 0.0
    %6558 = vmatpush.msra.mxu0 0.0
    %6559 = vmatpush.msra.mxu0 0.0
    %6560 = vmatpush.msra.mxu0 0.0
    %6561 = vmatpush.msra.mxu0 0.0
    %v6562 = vand.u32 %v82, 4294901760
    %6563 = vmatpush.msra.mxu0 %v6562
    %v6564 = vand.u32 %v81, 4294901760
    %6565 = vmatpush.msra.mxu0 %v6564
    %v6566 = vand.u32 %v6543, 4294901760
    %v6567 = vsub.f32 %v6543, %v6566
    %v6568 = vand.u32 %v6567, 4294901760
    %v6569 = vsub.f32 %v6567, %v6568
    %v6570 = vand.u32 %v6569, 4294901760
    %6571 = vmatmul.f32.gmra.mxu0 %v6570
    %v6572 = vpop.f32.mrf.mxu0
    %v6573 = vadd.f32 0.0, %v6572
    %v6574 = vand.u32 %v6546, 4294901760
    %v6575 = vsub.f32 %v6546, %v6574
    %v6576 = vand.u32 %v6575, 4294901760
    %v6577 = vsub.f32 %v6575, %v6576
    %v6578 = vand.u32 %v6577, 4294901760
    %6579 = vmatmul.f32.gmra.mxu0 %v6578
    %v6580 = vpop.f32.mrf.mxu0
    %v6581 = vadd.f32 0.0, %v6580
    %6582 = vdwg.mxu0
    %6583 = vmatpush.msra.mxu0 0.0
    %6584 = vmatpush.msra.mxu0 0.0
    %6585 = vmatpush.msra.mxu0 0.0
    %6586 = vmatpush.msra.mxu0 0.0
    %6587 = vmatpush.msra.mxu0 0.0
    %6588 = vmatpush.msra.mxu0 0.0
    %6589 = vmatpush.msra.mxu0 0.0
    %6590 = vmatpush.msra.mxu0 0.0
    %6591 = vmatpush.msra.mxu0 0.0
    %6592 = vmatpush.msra.mxu0 0.0
    %6593 = vmatpush.msra.mxu0 0.0
    %6594 = vmatpush.msra.mxu0 0.0
    %6595 = vmatpush.msra.mxu0 0.0
    %6596 = vmatpush.msra.mxu0 0.0
    %v6597 = vand.u32 %v82, 4294901760
    %v6598 = vsub.f32 %v82, %v6597
    %v6599 = vand.u32 %v6598, 4294901760
    %v6600 = vsub.f32 %v6598, %v6599
    %v6601 = vand.u32 %v6600, 4294901760
    %6602 = vmatpush.msra.mxu0 %v6601
    %v6603 = vand.u32 %v81, 4294901760
    %v6604 = vsub.f32 %v81, %v6603
    %v6605 = vand.u32 %v6604, 4294901760
    %v6606 = vsub.f32 %v6604, %v6605
    %v6607 = vand.u32 %v6606, 4294901760
    %6608 = vmatpush.msra.mxu0 %v6607
    %v6609 = vand.u32 %v6543, 4294901760
    %6610 = vmatmul.f32.gmra.mxu0 %v6609
    %v6611 = vpop.f32.mrf.mxu0
    %v6612 = vadd.f32 %v6573, %v6611
    %v6613 = vand.u32 %v6546, 4294901760
    %6614 = vmatmul.f32.gmra.mxu0 %v6613
    %v6615 = vpop.f32.mrf.mxu0
    %v6616 = vadd.f32 %v6581, %v6615
    %6617 = vdwg.mxu0
    %6618 = vmatpush.msra.mxu0 0.0
    %6619 = vmatpush.msra.mxu0 0.0
    %6620 = vmatpush.msra.mxu0 0.0
    %6621 = vmatpush.msra.mxu0 0.0
    %6622 = vmatpush.msra.mxu0 0.0
    %6623 = vmatpush.msra.mxu0 0.0
    %6624 = vmatpush.msra.mxu0 0.0
    %6625 = vmatpush.msra.mxu0 0.0
    %6626 = vmatpush.msra.mxu0 0.0
    %6627 = vmatpush.msra.mxu0 0.0
    %6628 = vmatpush.msra.mxu0 0.0
    %6629 = vmatpush.msra.mxu0 0.0
    %6630 = vmatpush.msra.mxu0 0.0
    %6631 = vmatpush.msra.mxu0 0.0
    %v6632 = vand.u32 %v82, 4294901760
    %v6633 = vsub.f32 %v82, %v6632
    %6634 = vmatpush.msra.mxu0 %v6633
    %v6635 = vand.u32 %v81, 4294901760
    %v6636 = vsub.f32 %v81, %v6635
    %6637 = vmatpush.msra.mxu0 %v6636
    %v6638 = vand.u32 %v6543, 4294901760
    %v6639 = vsub.f32 %v6543, %v6638
    %6640 = vmatmul.f32.gmra.mxu0 %v6639
    %v6641 = vpop.f32.mrf.mxu0
    %v6642 = vadd.f32 %v6612, %v6641
    %v6643 = vand.u32 %v6546, 4294901760
    %v6644 = vsub.f32 %v6546, %v6643
    %6645 = vmatmul.f32.gmra.mxu0 %v6644
    %v6646 = vpop.f32.mrf.mxu0
    %v6647 = vadd.f32 %v6616, %v6646
    %6648 = vdwg.mxu0
    %6649 = vmatpush.msra.mxu0 0.0
    %6650 = vmatpush.msra.mxu0 0.0
    %6651 = vmatpush.msra.mxu0 0.0
    %6652 = vmatpush.msra.mxu0 0.0
    %6653 = vmatpush.msra.mxu0 0.0
    %6654 = vmatpush.msra.mxu0 0.0
    %6655 = vmatpush.msra.mxu0 0.0
    %6656 = vmatpush.msra.mxu0 0.0
    %6657 = vmatpush.msra.mxu0 0.0
    %6658 = vmatpush.msra.mxu0 0.0
    %6659 = vmatpush.msra.mxu0 0.0
    %6660 = vmatpush.msra.mxu0 0.0
    %6661 = vmatpush.msra.mxu0 0.0
    %6662 = vmatpush.msra.mxu0 0.0
    %v6663 = vand.u32 %v82, 4294901760
    %6664 = vmatpush.msra.mxu0 %v6663
    %v6665 = vand.u32 %v81, 4294901760
    %6666 = vmatpush.msra.mxu0 %v6665
    %v6667 = vand.u32 %v6543, 4294901760
    %v6668 = vsub.f32 %v6543, %v6667
    %v6669 = vand.u32 %v6668, 4294901760
    %6670 = vmatmul.f32.gmra.mxu0 %v6669
    %v6671 = vpop.f32.mrf.mxu0
    %v6672 = vadd.f32 %v6642, %v6671
    %v6673 = vand.u32 %v6546, 4294901760
    %v6674 = vsub.f32 %v6546, %v6673
    %v6675 = vand.u32 %v6674, 4294901760
    %6676 = vmatmul.f32.gmra.mxu0 %v6675
    %v6677 = vpop.f32.mrf.mxu0
    %v6678 = vadd.f32 %v6647, %v6677
    %6679 = vdwg.mxu0
    %6680 = vmatpush.msra.mxu0 0.0
    %6681 = vmatpush.msra.mxu0 0.0
    %6682 = vmatpush.msra.mxu0 0.0
    %6683 = vmatpush.msra.mxu0 0.0
    %6684 = vmatpush.msra.mxu0 0.0
    %6685 = vmatpush.msra.mxu0 0.0
    %6686 = vmatpush.msra.mxu0 0.0
    %6687 = vmatpush.msra.mxu0 0.0
    %6688 = vmatpush.msra.mxu0 0.0
    %6689 = vmatpush.msra.mxu0 0.0
    %6690 = vmatpush.msra.mxu0 0.0
    %6691 = vmatpush.msra.mxu0 0.0
    %6692 = vmatpush.msra.mxu0 0.0
    %6693 = vmatpush.msra.mxu0 0.0
    %v6694 = vand.u32 %v82, 4294901760
    %v6695 = vsub.f32 %v82, %v6694
    %v6696 = vand.u32 %v6695, 4294901760
    %6697 = vmatpush.msra.mxu0 %v6696
    %v6698 = vand.u32 %v81, 4294901760
    %v6699 = vsub.f32 %v81, %v6698
    %v6700 = vand.u32 %v6699, 4294901760
    %6701 = vmatpush.msra.mxu0 %v6700
    %v6702 = vand.u32 %v6543, 4294901760
    %6703 = vmatmul.f32.gmra.mxu0 %v6702
    %v6704 = vpop.f32.mrf.mxu0
    %v6705 = vadd.f32 %v6672, %v6704
    %v6706 = vand.u32 %v6546, 4294901760
    %6707 = vmatmul.f32.gmra.mxu0 %v6706
    %v6708 = vpop.f32.mrf.mxu0
    %v6709 = vadd.f32 %v6678, %v6708
    %6710 = vdwg.mxu0
    %6711 = vmatpush.msra.mxu0 0.0
    %6712 = vmatpush.msra.mxu0 0.0
    %6713 = vmatpush.msra.mxu0 0.0
    %6714 = vmatpush.msra.mxu0 0.0
    %6715 = vmatpush.msra.mxu0 0.0
    %6716 = vmatpush.msra.mxu0 0.0
    %6717 = vmatpush.msra.mxu0 0.0
    %6718 = vmatpush.msra.mxu0 0.0
    %6719 = vmatpush.msra.mxu0 0.0
    %6720 = vmatpush.msra.mxu0 0.0
    %6721 = vmatpush.msra.mxu0 0.0
    %6722 = vmatpush.msra.mxu0 0.0
    %6723 = vmatpush.msra.mxu0 0.0
    %6724 = vmatpush.msra.mxu0 0.0
    %v6725 = vand.u32 %v82, 4294901760
    %6726 = vmatpush.msra.mxu0 %v6725
    %v6727 = vand.u32 %v81, 4294901760
    %6728 = vmatpush.msra.mxu0 %v6727
    %v6729 = vand.u32 %v6543, 4294901760
    %6730 = vmatmul.f32.gmra.mxu0 %v6729
    %v6731 = vpop.f32.mrf.mxu0
    %v6732 = vadd.f32 %v6705, %v6731
    %v6733 = vand.u32 %v6546, 4294901760
    %6734 = vmatmul.f32.gmra.mxu0 %v6733
    %v6735 = vpop.f32.mrf.mxu0
    %v6736 = vadd.f32 %v6709, %v6735
    %6737 = vdwg.mxu0
    %6738 = vmatpush.msra.mxu0 0.0
    %6739 = vmatpush.msra.mxu0 0.0
    %6740 = vmatpush.msra.mxu0 0.0
    %6741 = vmatpush.msra.mxu0 0.0
    %6742 = vmatpush.msra.mxu0 0.0
    %6743 = vmatpush.msra.mxu0 0.0
    %6744 = vmatpush.msra.mxu0 0.0
    %6745 = vmatpush.msra.mxu0 0.0
    %6746 = vmatpush.msra.mxu0 0.0
    %6747 = vmatpush.msra.mxu0 0.0
    %6748 = vmatpush.msra.mxu0 0.0
    %6749 = vmatpush.msra.mxu0 0.0
    %6750 = vmatpush.msra.mxu0 0.0
    %6751 = vmatpush.msra.mxu0 0.0
    %v6752 = vand.u32 %v6736, 4294901760
    %6753 = vmatpush.msra.mxu0 %v6752
    %v6754 = vand.u32 %v6732, 4294901760
    %6755 = vmatpush.msra.mxu0 %v6754
    %v6756 = vand.u32 %v287, 4294901760
    %v6757 = vsub.f32 %v287, %v6756
    %v6758 = vand.u32 %v6757, 4294901760
    %v6759 = vsub.f32 %v6757, %v6758
    %v6760 = vand.u32 %v6759, 4294901760
    %6761 = vmatmul.f32.gmra.mxu0 %v6760
    %v6762 = vpop.f32.mrf.mxu0
    %v6763 = vadd.f32 0.0, %v6762
    %v6764 = vand.u32 %v290, 4294901760
    %v6765 = vsub.f32 %v290, %v6764
    %v6766 = vand.u32 %v6765, 4294901760
    %v6767 = vsub.f32 %v6765, %v6766
    %v6768 = vand.u32 %v6767, 4294901760
    %6769 = vmatmul.f32.gmra.mxu0 %v6768
    %v6770 = vpop.f32.mrf.mxu0
    %v6771 = vadd.f32 0.0, %v6770
    %6772 = vdwg.mxu0
    %6773 = vmatpush.msra.mxu0 0.0
    %6774 = vmatpush.msra.mxu0 0.0
    %6775 = vmatpush.msra.mxu0 0.0
    %6776 = vmatpush.msra.mxu0 0.0
    %6777 = vmatpush.msra.mxu0 0.0
    %6778 = vmatpush.msra.mxu0 0.0
    %6779 = vmatpush.msra.mxu0 0.0
    %6780 = vmatpush.msra.mxu0 0.0
    %6781 = vmatpush.msra.mxu0 0.0
    %6782 = vmatpush.msra.mxu0 0.0
    %6783 = vmatpush.msra.mxu0 0.0
    %6784 = vmatpush.msra.mxu0 0.0
    %6785 = vmatpush.msra.mxu0 0.0
    %6786 = vmatpush.msra.mxu0 0.0
    %v6787 = vand.u32 %v6736, 4294901760
    %v6788 = vsub.f32 %v6736, %v6787
    %v6789 = vand.u32 %v6788, 4294901760
    %v6790 = vsub.f32 %v6788, %v6789
    %v6791 = vand.u32 %v6790, 4294901760
    %6792 = vmatpush.msra.mxu0 %v6791
    %v6793 = vand.u32 %v6732, 4294901760
    %v6794 = vsub.f32 %v6732, %v6793
    %v6795 = vand.u32 %v6794, 4294901760
    %v6796 = vsub.f32 %v6794, %v6795
    %v6797 = vand.u32 %v6796, 4294901760
    %6798 = vmatpush.msra.mxu0 %v6797
    %v6799 = vand.u32 %v287, 4294901760
    %6800 = vmatmul.f32.gmra.mxu0 %v6799
    %v6801 = vpop.f32.mrf.mxu0
    %v6802 = vadd.f32 %v6763, %v6801
    %v6803 = vand.u32 %v290, 4294901760
    %6804 = vmatmul.f32.gmra.mxu0 %v6803
    %v6805 = vpop.f32.mrf.mxu0
    %v6806 = vadd.f32 %v6771, %v6805
    %6807 = vdwg.mxu0
    %6808 = vmatpush.msra.mxu0 0.0
    %6809 = vmatpush.msra.mxu0 0.0
    %6810 = vmatpush.msra.mxu0 0.0
    %6811 = vmatpush.msra.mxu0 0.0
    %6812 = vmatpush.msra.mxu0 0.0
    %6813 = vmatpush.msra.mxu0 0.0
    %6814 = vmatpush.msra.mxu0 0.0
    %6815 = vmatpush.msra.mxu0 0.0
    %6816 = vmatpush.msra.mxu0 0.0
    %6817 = vmatpush.msra.mxu0 0.0
    %6818 = vmatpush.msra.mxu0 0.0
    %6819 = vmatpush.msra.mxu0 0.0
    %6820 = vmatpush.msra.mxu0 0.0
    %6821 = vmatpush.msra.mxu0 0.0
    %v6822 = vand.u32 %v6736, 4294901760
    %v6823 = vsub.f32 %v6736, %v6822
    %6824 = vmatpush.msra.mxu0 %v6823
    %v6825 = vand.u32 %v6732, 4294901760
    %v6826 = vsub.f32 %v6732, %v6825
    %6827 = vmatpush.msra.mxu0 %v6826
    %v6828 = vand.u32 %v287, 4294901760
    %v6829 = vsub.f32 %v287, %v6828
    %6830 = vmatmul.f32.gmra.mxu0 %v6829
    %v6831 = vpop.f32.mrf.mxu0
    %v6832 = vadd.f32 %v6802, %v6831
    %v6833 = vand.u32 %v290, 4294901760
    %v6834 = vsub.f32 %v290, %v6833
    %6835 = vmatmul.f32.gmra.mxu0 %v6834
    %v6836 = vpop.f32.mrf.mxu0
    %v6837 = vadd.f32 %v6806, %v6836
    %6838 = vdwg.mxu0
    %6839 = vmatpush.msra.mxu0 0.0
    %6840 = vmatpush.msra.mxu0 0.0
    %6841 = vmatpush.msra.mxu0 0.0
    %6842 = vmatpush.msra.mxu0 0.0
    %6843 = vmatpush.msra.mxu0 0.0
    %6844 = vmatpush.msra.mxu0 0.0
    %6845 = vmatpush.msra.mxu0 0.0
    %6846 = vmatpush.msra.mxu0 0.0
    %6847 = vmatpush.msra.mxu0 0.0
    %6848 = vmatpush.msra.mxu0 0.0
    %6849 = vmatpush.msra.mxu0 0.0
    %6850 = vmatpush.msra.mxu0 0.0
    %6851 = vmatpush.msra.mxu0 0.0
    %6852 = vmatpush.msra.mxu0 0.0
    %v6853 = vand.u32 %v6736, 4294901760
    %6854 = vmatpush.msra.mxu0 %v6853
    %v6855 = vand.u32 %v6732, 4294901760
    %6856 = vmatpush.msra.mxu0 %v6855
    %v6857 = vand.u32 %v287, 4294901760
    %v6858 = vsub.f32 %v287, %v6857
    %v6859 = vand.u32 %v6858, 4294901760
    %6860 = vmatmul.f32.gmra.mxu0 %v6859
    %v6861 = vpop.f32.mrf.mxu0
    %v6862 = vadd.f32 %v6832, %v6861
    %v6863 = vand.u32 %v290, 4294901760
    %v6864 = vsub.f32 %v290, %v6863
    %v6865 = vand.u32 %v6864, 4294901760
    %6866 = vmatmul.f32.gmra.mxu0 %v6865
    %v6867 = vpop.f32.mrf.mxu0
    %v6868 = vadd.f32 %v6837, %v6867
    %6869 = vdwg.mxu0
    %6870 = vmatpush.msra.mxu0 0.0
    %6871 = vmatpush.msra.mxu0 0.0
    %6872 = vmatpush.msra.mxu0 0.0
    %6873 = vmatpush.msra.mxu0 0.0
    %6874 = vmatpush.msra.mxu0 0.0
    %6875 = vmatpush.msra.mxu0 0.0
    %6876 = vmatpush.msra.mxu0 0.0
    %6877 = vmatpush.msra.mxu0 0.0
    %6878 = vmatpush.msra.mxu0 0.0
    %6879 = vmatpush.msra.mxu0 0.0
    %6880 = vmatpush.msra.mxu0 0.0
    %6881 = vmatpush.msra.mxu0 0.0
    %6882 = vmatpush.msra.mxu0 0.0
    %6883 = vmatpush.msra.mxu0 0.0
    %v6884 = vand.u32 %v6736, 4294901760
    %v6885 = vsub.f32 %v6736, %v6884
    %v6886 = vand.u32 %v6885, 4294901760
    %6887 = vmatpush.msra.mxu0 %v6886
    %v6888 = vand.u32 %v6732, 4294901760
    %v6889 = vsub.f32 %v6732, %v6888
    %v6890 = vand.u32 %v6889, 4294901760
    %6891 = vmatpush.msra.mxu0 %v6890
    %v6892 = vand.u32 %v287, 4294901760
    %6893 = vmatmul.f32.gmra.mxu0 %v6892
    %v6894 = vpop.f32.mrf.mxu0
    %v6895 = vadd.f32 %v6862, %v6894
    %v6896 = vand.u32 %v290, 4294901760
    %6897 = vmatmul.f32.gmra.mxu0 %v6896
    %v6898 = vpop.f32.mrf.mxu0
    %v6899 = vadd.f32 %v6868, %v6898
    %6900 = vdwg.mxu0
    %6901 = vmatpush.msra.mxu0 0.0
    %6902 = vmatpush.msra.mxu0 0.0
    %6903 = vmatpush.msra.mxu0 0.0
    %6904 = vmatpush.msra.mxu0 0.0
    %6905 = vmatpush.msra.mxu0 0.0
    %6906 = vmatpush.msra.mxu0 0.0
    %6907 = vmatpush.msra.mxu0 0.0
    %6908 = vmatpush.msra.mxu0 0.0
    %6909 = vmatpush.msra.mxu0 0.0
    %6910 = vmatpush.msra.mxu0 0.0
    %6911 = vmatpush.msra.mxu0 0.0
    %6912 = vmatpush.msra.mxu0 0.0
    %6913 = vmatpush.msra.mxu0 0.0
    %6914 = vmatpush.msra.mxu0 0.0
    %v6915 = vand.u32 %v6736, 4294901760
    %6916 = vmatpush.msra.mxu0 %v6915
    %v6917 = vand.u32 %v6732, 4294901760
    %6918 = vmatpush.msra.mxu0 %v6917
    %v6919 = vand.u32 %v287, 4294901760
    %6920 = vmatmul.f32.gmra.mxu0 %v6919
    %v6921 = vpop.f32.mrf.mxu0
    %v6922 = vadd.f32 %v6895, %v6921
    %v6923 = vand.u32 %v290, 4294901760
    %6924 = vmatmul.f32.gmra.mxu0 %v6923
    %v6925 = vpop.f32.mrf.mxu0
    %v6926 = vadd.f32 %v6899, %v6925
    %6927 = vdwg.mxu0
    %v6928 = vmul.f32 %v6536, %v6536
    %v6929 = vmul.f32 %v6540, %v6540
    %v6930 = vmul.f32 %v6922, %v6922
    %v6931 = vmul.f32 %v6926, %v6926
    %v6932 = vmul.f32 %v6536, %v6922
    %v6933 = vmul.f32 %v6540, %v6926
    %v6934 = vmul.f32 %v6151, %v6151
    %v6935 = vmul.f32 %v6152, %v6152
    %v6937 = vsel %vm89, %v6934, 0
    %v6940 = vsel %vm89, %v6935, 0
    %6942 = vmatpush.msra.mxu0 0.0
    %6943 = vmatpush.msra.mxu0 0.0
    %6944 = vmatpush.msra.mxu0 0.0
    %6945 = vmatpush.msra.mxu0 0.0
    %6946 = vmatpush.msra.mxu0 0.0
    %6947 = vmatpush.msra.mxu0 0.0
    %6948 = vmatpush.msra.mxu0 0.0
    %6949 = vmatpush.msra.mxu0 0.0
    %6950 = vmatpush.msra.mxu0 0.0
    %6951 = vmatpush.msra.mxu0 0.0
    %6952 = vmatpush.msra.mxu0 0.0
    %6953 = vmatpush.msra.mxu0 0.0
    %6954 = vmatpush.msra.mxu0 0.0
    %6955 = vmatpush.msra.mxu0 0.0
    %v6956 = vand.u32 %v82, 4294901760
    %6957 = vmatpush.msra.mxu0 %v6956
    %v6958 = vand.u32 %v81, 4294901760
    %6959 = vmatpush.msra.mxu0 %v6958
    %v6960 = vand.u32 %v6937, 4294901760
    %v6961 = vsub.f32 %v6937, %v6960
    %v6962 = vand.u32 %v6961, 4294901760
    %v6963 = vsub.f32 %v6961, %v6962
    %v6964 = vand.u32 %v6963, 4294901760
    %6965 = vmatmul.f32.gmra.mxu0 %v6964
    %v6966 = vpop.f32.mrf.mxu0
    %v6967 = vadd.f32 0.0, %v6966
    %v6968 = vand.u32 %v6940, 4294901760
    %v6969 = vsub.f32 %v6940, %v6968
    %v6970 = vand.u32 %v6969, 4294901760
    %v6971 = vsub.f32 %v6969, %v6970
    %v6972 = vand.u32 %v6971, 4294901760
    %6973 = vmatmul.f32.gmra.mxu0 %v6972
    %v6974 = vpop.f32.mrf.mxu0
    %v6975 = vadd.f32 0.0, %v6974
    %6976 = vdwg.mxu0
    %6977 = vmatpush.msra.mxu0 0.0
    %6978 = vmatpush.msra.mxu0 0.0
    %6979 = vmatpush.msra.mxu0 0.0
    %6980 = vmatpush.msra.mxu0 0.0
    %6981 = vmatpush.msra.mxu0 0.0
    %6982 = vmatpush.msra.mxu0 0.0
    %6983 = vmatpush.msra.mxu0 0.0
    %6984 = vmatpush.msra.mxu0 0.0
    %6985 = vmatpush.msra.mxu0 0.0
    %6986 = vmatpush.msra.mxu0 0.0
    %6987 = vmatpush.msra.mxu0 0.0
    %6988 = vmatpush.msra.mxu0 0.0
    %6989 = vmatpush.msra.mxu0 0.0
    %6990 = vmatpush.msra.mxu0 0.0
    %v6991 = vand.u32 %v82, 4294901760
    %v6992 = vsub.f32 %v82, %v6991
    %v6993 = vand.u32 %v6992, 4294901760
    %v6994 = vsub.f32 %v6992, %v6993
    %v6995 = vand.u32 %v6994, 4294901760
    %6996 = vmatpush.msra.mxu0 %v6995
    %v6997 = vand.u32 %v81, 4294901760
    %v6998 = vsub.f32 %v81, %v6997
    %v6999 = vand.u32 %v6998, 4294901760
    %v7000 = vsub.f32 %v6998, %v6999
    %v7001 = vand.u32 %v7000, 4294901760
    %7002 = vmatpush.msra.mxu0 %v7001
    %v7003 = vand.u32 %v6937, 4294901760
    %7004 = vmatmul.f32.gmra.mxu0 %v7003
    %v7005 = vpop.f32.mrf.mxu0
    %v7006 = vadd.f32 %v6967, %v7005
    %v7007 = vand.u32 %v6940, 4294901760
    %7008 = vmatmul.f32.gmra.mxu0 %v7007
    %v7009 = vpop.f32.mrf.mxu0
    %v7010 = vadd.f32 %v6975, %v7009
    %7011 = vdwg.mxu0
    %7012 = vmatpush.msra.mxu0 0.0
    %7013 = vmatpush.msra.mxu0 0.0
    %7014 = vmatpush.msra.mxu0 0.0
    %7015 = vmatpush.msra.mxu0 0.0
    %7016 = vmatpush.msra.mxu0 0.0
    %7017 = vmatpush.msra.mxu0 0.0
    %7018 = vmatpush.msra.mxu0 0.0
    %7019 = vmatpush.msra.mxu0 0.0
    %7020 = vmatpush.msra.mxu0 0.0
    %7021 = vmatpush.msra.mxu0 0.0
    %7022 = vmatpush.msra.mxu0 0.0
    %7023 = vmatpush.msra.mxu0 0.0
    %7024 = vmatpush.msra.mxu0 0.0
    %7025 = vmatpush.msra.mxu0 0.0
    %v7026 = vand.u32 %v82, 4294901760
    %v7027 = vsub.f32 %v82, %v7026
    %7028 = vmatpush.msra.mxu0 %v7027
    %v7029 = vand.u32 %v81, 4294901760
    %v7030 = vsub.f32 %v81, %v7029
    %7031 = vmatpush.msra.mxu0 %v7030
    %v7032 = vand.u32 %v6937, 4294901760
    %v7033 = vsub.f32 %v6937, %v7032
    %7034 = vmatmul.f32.gmra.mxu0 %v7033
    %v7035 = vpop.f32.mrf.mxu0
    %v7036 = vadd.f32 %v7006, %v7035
    %v7037 = vand.u32 %v6940, 4294901760
    %v7038 = vsub.f32 %v6940, %v7037
    %7039 = vmatmul.f32.gmra.mxu0 %v7038
    %v7040 = vpop.f32.mrf.mxu0
    %v7041 = vadd.f32 %v7010, %v7040
    %7042 = vdwg.mxu0
    %7043 = vmatpush.msra.mxu0 0.0
    %7044 = vmatpush.msra.mxu0 0.0
    %7045 = vmatpush.msra.mxu0 0.0
    %7046 = vmatpush.msra.mxu0 0.0
    %7047 = vmatpush.msra.mxu0 0.0
    %7048 = vmatpush.msra.mxu0 0.0
    %7049 = vmatpush.msra.mxu0 0.0
    %7050 = vmatpush.msra.mxu0 0.0
    %7051 = vmatpush.msra.mxu0 0.0
    %7052 = vmatpush.msra.mxu0 0.0
    %7053 = vmatpush.msra.mxu0 0.0
    %7054 = vmatpush.msra.mxu0 0.0
    %7055 = vmatpush.msra.mxu0 0.0
    %7056 = vmatpush.msra.mxu0 0.0
    %v7057 = vand.u32 %v82, 4294901760
    %7058 = vmatpush.msra.mxu0 %v7057
    %v7059 = vand.u32 %v81, 4294901760
    %7060 = vmatpush.msra.mxu0 %v7059
    %v7061 = vand.u32 %v6937, 4294901760
    %v7062 = vsub.f32 %v6937, %v7061
    %v7063 = vand.u32 %v7062, 4294901760
    %7064 = vmatmul.f32.gmra.mxu0 %v7063
    %v7065 = vpop.f32.mrf.mxu0
    %v7066 = vadd.f32 %v7036, %v7065
    %v7067 = vand.u32 %v6940, 4294901760
    %v7068 = vsub.f32 %v6940, %v7067
    %v7069 = vand.u32 %v7068, 4294901760
    %7070 = vmatmul.f32.gmra.mxu0 %v7069
    %v7071 = vpop.f32.mrf.mxu0
    %v7072 = vadd.f32 %v7041, %v7071
    %7073 = vdwg.mxu0
    %7074 = vmatpush.msra.mxu0 0.0
    %7075 = vmatpush.msra.mxu0 0.0
    %7076 = vmatpush.msra.mxu0 0.0
    %7077 = vmatpush.msra.mxu0 0.0
    %7078 = vmatpush.msra.mxu0 0.0
    %7079 = vmatpush.msra.mxu0 0.0
    %7080 = vmatpush.msra.mxu0 0.0
    %7081 = vmatpush.msra.mxu0 0.0
    %7082 = vmatpush.msra.mxu0 0.0
    %7083 = vmatpush.msra.mxu0 0.0
    %7084 = vmatpush.msra.mxu0 0.0
    %7085 = vmatpush.msra.mxu0 0.0
    %7086 = vmatpush.msra.mxu0 0.0
    %7087 = vmatpush.msra.mxu0 0.0
    %v7088 = vand.u32 %v82, 4294901760
    %v7089 = vsub.f32 %v82, %v7088
    %v7090 = vand.u32 %v7089, 4294901760
    %7091 = vmatpush.msra.mxu0 %v7090
    %v7092 = vand.u32 %v81, 4294901760
    %v7093 = vsub.f32 %v81, %v7092
    %v7094 = vand.u32 %v7093, 4294901760
    %7095 = vmatpush.msra.mxu0 %v7094
    %v7096 = vand.u32 %v6937, 4294901760
    %7097 = vmatmul.f32.gmra.mxu0 %v7096
    %v7098 = vpop.f32.mrf.mxu0
    %v7099 = vadd.f32 %v7066, %v7098
    %v7100 = vand.u32 %v6940, 4294901760
    %7101 = vmatmul.f32.gmra.mxu0 %v7100
    %v7102 = vpop.f32.mrf.mxu0
    %v7103 = vadd.f32 %v7072, %v7102
    %7104 = vdwg.mxu0
    %7105 = vmatpush.msra.mxu0 0.0
    %7106 = vmatpush.msra.mxu0 0.0
    %7107 = vmatpush.msra.mxu0 0.0
    %7108 = vmatpush.msra.mxu0 0.0
    %7109 = vmatpush.msra.mxu0 0.0
    %7110 = vmatpush.msra.mxu0 0.0
    %7111 = vmatpush.msra.mxu0 0.0
    %7112 = vmatpush.msra.mxu0 0.0
    %7113 = vmatpush.msra.mxu0 0.0
    %7114 = vmatpush.msra.mxu0 0.0
    %7115 = vmatpush.msra.mxu0 0.0
    %7116 = vmatpush.msra.mxu0 0.0
    %7117 = vmatpush.msra.mxu0 0.0
    %7118 = vmatpush.msra.mxu0 0.0
    %v7119 = vand.u32 %v82, 4294901760
    %7120 = vmatpush.msra.mxu0 %v7119
    %v7121 = vand.u32 %v81, 4294901760
    %7122 = vmatpush.msra.mxu0 %v7121
    %v7123 = vand.u32 %v6937, 4294901760
    %7124 = vmatmul.f32.gmra.mxu0 %v7123
    %v7125 = vpop.f32.mrf.mxu0
    %v7126 = vadd.f32 %v7099, %v7125
    %v7127 = vand.u32 %v6940, 4294901760
    %7128 = vmatmul.f32.gmra.mxu0 %v7127
    %v7129 = vpop.f32.mrf.mxu0
    %v7130 = vadd.f32 %v7103, %v7129
    %7131 = vdwg.mxu0
    %7132 = vmatpush.msra.mxu0 0.0
    %7133 = vmatpush.msra.mxu0 0.0
    %7134 = vmatpush.msra.mxu0 0.0
    %7135 = vmatpush.msra.mxu0 0.0
    %7136 = vmatpush.msra.mxu0 0.0
    %7137 = vmatpush.msra.mxu0 0.0
    %7138 = vmatpush.msra.mxu0 0.0
    %7139 = vmatpush.msra.mxu0 0.0
    %7140 = vmatpush.msra.mxu0 0.0
    %7141 = vmatpush.msra.mxu0 0.0
    %7142 = vmatpush.msra.mxu0 0.0
    %7143 = vmatpush.msra.mxu0 0.0
    %7144 = vmatpush.msra.mxu0 0.0
    %7145 = vmatpush.msra.mxu0 0.0
    %v7146 = vand.u32 %v7130, 4294901760
    %7147 = vmatpush.msra.mxu0 %v7146
    %v7148 = vand.u32 %v7126, 4294901760
    %7149 = vmatpush.msra.mxu0 %v7148
    %v7150 = vand.u32 %v287, 4294901760
    %v7151 = vsub.f32 %v287, %v7150
    %v7152 = vand.u32 %v7151, 4294901760
    %v7153 = vsub.f32 %v7151, %v7152
    %v7154 = vand.u32 %v7153, 4294901760
    %7155 = vmatmul.f32.gmra.mxu0 %v7154
    %v7156 = vpop.f32.mrf.mxu0
    %v7157 = vadd.f32 0.0, %v7156
    %v7158 = vand.u32 %v290, 4294901760
    %v7159 = vsub.f32 %v290, %v7158
    %v7160 = vand.u32 %v7159, 4294901760
    %v7161 = vsub.f32 %v7159, %v7160
    %v7162 = vand.u32 %v7161, 4294901760
    %7163 = vmatmul.f32.gmra.mxu0 %v7162
    %v7164 = vpop.f32.mrf.mxu0
    %v7165 = vadd.f32 0.0, %v7164
    %7166 = vdwg.mxu0
    %7167 = vmatpush.msra.mxu0 0.0
    %7168 = vmatpush.msra.mxu0 0.0
    %7169 = vmatpush.msra.mxu0 0.0
    %7170 = vmatpush.msra.mxu0 0.0
    %7171 = vmatpush.msra.mxu0 0.0
    %7172 = vmatpush.msra.mxu0 0.0
    %7173 = vmatpush.msra.mxu0 0.0
    %7174 = vmatpush.msra.mxu0 0.0
    %7175 = vmatpush.msra.mxu0 0.0
    %7176 = vmatpush.msra.mxu0 0.0
    %7177 = vmatpush.msra.mxu0 0.0
    %7178 = vmatpush.msra.mxu0 0.0
    %7179 = vmatpush.msra.mxu0 0.0
    %7180 = vmatpush.msra.mxu0 0.0
    %v7181 = vand.u32 %v7130, 4294901760
    %v7182 = vsub.f32 %v7130, %v7181
    %v7183 = vand.u32 %v7182, 4294901760
    %v7184 = vsub.f32 %v7182, %v7183
    %v7185 = vand.u32 %v7184, 4294901760
    %7186 = vmatpush.msra.mxu0 %v7185
    %v7187 = vand.u32 %v7126, 4294901760
    %v7188 = vsub.f32 %v7126, %v7187
    %v7189 = vand.u32 %v7188, 4294901760
    %v7190 = vsub.f32 %v7188, %v7189
    %v7191 = vand.u32 %v7190, 4294901760
    %7192 = vmatpush.msra.mxu0 %v7191
    %v7193 = vand.u32 %v287, 4294901760
    %7194 = vmatmul.f32.gmra.mxu0 %v7193
    %v7195 = vpop.f32.mrf.mxu0
    %v7196 = vadd.f32 %v7157, %v7195
    %v7197 = vand.u32 %v290, 4294901760
    %7198 = vmatmul.f32.gmra.mxu0 %v7197
    %v7199 = vpop.f32.mrf.mxu0
    %v7200 = vadd.f32 %v7165, %v7199
    %7201 = vdwg.mxu0
    %7202 = vmatpush.msra.mxu0 0.0
    %7203 = vmatpush.msra.mxu0 0.0
    %7204 = vmatpush.msra.mxu0 0.0
    %7205 = vmatpush.msra.mxu0 0.0
    %7206 = vmatpush.msra.mxu0 0.0
    %7207 = vmatpush.msra.mxu0 0.0
    %7208 = vmatpush.msra.mxu0 0.0
    %7209 = vmatpush.msra.mxu0 0.0
    %7210 = vmatpush.msra.mxu0 0.0
    %7211 = vmatpush.msra.mxu0 0.0
    %7212 = vmatpush.msra.mxu0 0.0
    %7213 = vmatpush.msra.mxu0 0.0
    %7214 = vmatpush.msra.mxu0 0.0
    %7215 = vmatpush.msra.mxu0 0.0
    %v7216 = vand.u32 %v7130, 4294901760
    %v7217 = vsub.f32 %v7130, %v7216
    %7218 = vmatpush.msra.mxu0 %v7217
    %v7219 = vand.u32 %v7126, 4294901760
    %v7220 = vsub.f32 %v7126, %v7219
    %7221 = vmatpush.msra.mxu0 %v7220
    %v7222 = vand.u32 %v287, 4294901760
    %v7223 = vsub.f32 %v287, %v7222
    %7224 = vmatmul.f32.gmra.mxu0 %v7223
    %v7225 = vpop.f32.mrf.mxu0
    %v7226 = vadd.f32 %v7196, %v7225
    %v7227 = vand.u32 %v290, 4294901760
    %v7228 = vsub.f32 %v290, %v7227
    %7229 = vmatmul.f32.gmra.mxu0 %v7228
    %v7230 = vpop.f32.mrf.mxu0
    %v7231 = vadd.f32 %v7200, %v7230
    %7232 = vdwg.mxu0
    %7233 = vmatpush.msra.mxu0 0.0
    %7234 = vmatpush.msra.mxu0 0.0
    %7235 = vmatpush.msra.mxu0 0.0
    %7236 = vmatpush.msra.mxu0 0.0
    %7237 = vmatpush.msra.mxu0 0.0
    %7238 = vmatpush.msra.mxu0 0.0
    %7239 = vmatpush.msra.mxu0 0.0
    %7240 = vmatpush.msra.mxu0 0.0
    %7241 = vmatpush.msra.mxu0 0.0
    %7242 = vmatpush.msra.mxu0 0.0
    %7243 = vmatpush.msra.mxu0 0.0
    %7244 = vmatpush.msra.mxu0 0.0
    %7245 = vmatpush.msra.mxu0 0.0
    %7246 = vmatpush.msra.mxu0 0.0
    %v7247 = vand.u32 %v7130, 4294901760
    %7248 = vmatpush.msra.mxu0 %v7247
    %v7249 = vand.u32 %v7126, 4294901760
    %7250 = vmatpush.msra.mxu0 %v7249
    %v7251 = vand.u32 %v287, 4294901760
    %v7252 = vsub.f32 %v287, %v7251
    %v7253 = vand.u32 %v7252, 4294901760
    %7254 = vmatmul.f32.gmra.mxu0 %v7253
    %v7255 = vpop.f32.mrf.mxu0
    %v7256 = vadd.f32 %v7226, %v7255
    %v7257 = vand.u32 %v290, 4294901760
    %v7258 = vsub.f32 %v290, %v7257
    %v7259 = vand.u32 %v7258, 4294901760
    %7260 = vmatmul.f32.gmra.mxu0 %v7259
    %v7261 = vpop.f32.mrf.mxu0
    %v7262 = vadd.f32 %v7231, %v7261
    %7263 = vdwg.mxu0
    %7264 = vmatpush.msra.mxu0 0.0
    %7265 = vmatpush.msra.mxu0 0.0
    %7266 = vmatpush.msra.mxu0 0.0
    %7267 = vmatpush.msra.mxu0 0.0
    %7268 = vmatpush.msra.mxu0 0.0
    %7269 = vmatpush.msra.mxu0 0.0
    %7270 = vmatpush.msra.mxu0 0.0
    %7271 = vmatpush.msra.mxu0 0.0
    %7272 = vmatpush.msra.mxu0 0.0
    %7273 = vmatpush.msra.mxu0 0.0
    %7274 = vmatpush.msra.mxu0 0.0
    %7275 = vmatpush.msra.mxu0 0.0
    %7276 = vmatpush.msra.mxu0 0.0
    %7277 = vmatpush.msra.mxu0 0.0
    %v7278 = vand.u32 %v7130, 4294901760
    %v7279 = vsub.f32 %v7130, %v7278
    %v7280 = vand.u32 %v7279, 4294901760
    %7281 = vmatpush.msra.mxu0 %v7280
    %v7282 = vand.u32 %v7126, 4294901760
    %v7283 = vsub.f32 %v7126, %v7282
    %v7284 = vand.u32 %v7283, 4294901760
    %7285 = vmatpush.msra.mxu0 %v7284
    %v7286 = vand.u32 %v287, 4294901760
    %7287 = vmatmul.f32.gmra.mxu0 %v7286
    %v7288 = vpop.f32.mrf.mxu0
    %v7289 = vadd.f32 %v7256, %v7288
    %v7290 = vand.u32 %v290, 4294901760
    %7291 = vmatmul.f32.gmra.mxu0 %v7290
    %v7292 = vpop.f32.mrf.mxu0
    %v7293 = vadd.f32 %v7262, %v7292
    %7294 = vdwg.mxu0
    %7295 = vmatpush.msra.mxu0 0.0
    %7296 = vmatpush.msra.mxu0 0.0
    %7297 = vmatpush.msra.mxu0 0.0
    %7298 = vmatpush.msra.mxu0 0.0
    %7299 = vmatpush.msra.mxu0 0.0
    %7300 = vmatpush.msra.mxu0 0.0
    %7301 = vmatpush.msra.mxu0 0.0
    %7302 = vmatpush.msra.mxu0 0.0
    %7303 = vmatpush.msra.mxu0 0.0
    %7304 = vmatpush.msra.mxu0 0.0
    %7305 = vmatpush.msra.mxu0 0.0
    %7306 = vmatpush.msra.mxu0 0.0
    %7307 = vmatpush.msra.mxu0 0.0
    %7308 = vmatpush.msra.mxu0 0.0
    %v7309 = vand.u32 %v7130, 4294901760
    %7310 = vmatpush.msra.mxu0 %v7309
    %v7311 = vand.u32 %v7126, 4294901760
    %7312 = vmatpush.msra.mxu0 %v7311
    %v7313 = vand.u32 %v287, 4294901760
    %7314 = vmatmul.f32.gmra.mxu0 %v7313
    %v7315 = vpop.f32.mrf.mxu0
    %v7316 = vadd.f32 %v7289, %v7315
    %v7317 = vand.u32 %v290, 4294901760
    %7318 = vmatmul.f32.gmra.mxu0 %v7317
    %v7319 = vpop.f32.mrf.mxu0
    %v7320 = vadd.f32 %v7293, %v7319
    %7321 = vdwg.mxu0
    %v7322 = vsub.f32 %v7316, %v6928
    %v7323 = vsub.f32 %v7320, %v6929
    %v7324 = vmul.f32 %v6154, %v6154
    %v7325 = vmul.f32 %v6155, %v6155
    %v7327 = vsel %vm89, %v7324, 0
    %v7330 = vsel %vm89, %v7325, 0
    %7332 = vmatpush.msra.mxu0 0.0
    %7333 = vmatpush.msra.mxu0 0.0
    %7334 = vmatpush.msra.mxu0 0.0
    %7335 = vmatpush.msra.mxu0 0.0
    %7336 = vmatpush.msra.mxu0 0.0
    %7337 = vmatpush.msra.mxu0 0.0
    %7338 = vmatpush.msra.mxu0 0.0
    %7339 = vmatpush.msra.mxu0 0.0
    %7340 = vmatpush.msra.mxu0 0.0
    %7341 = vmatpush.msra.mxu0 0.0
    %7342 = vmatpush.msra.mxu0 0.0
    %7343 = vmatpush.msra.mxu0 0.0
    %7344 = vmatpush.msra.mxu0 0.0
    %7345 = vmatpush.msra.mxu0 0.0
    %v7346 = vand.u32 %v82, 4294901760
    %7347 = vmatpush.msra.mxu0 %v7346
    %v7348 = vand.u32 %v81, 4294901760
    %7349 = vmatpush.msra.mxu0 %v7348
    %v7350 = vand.u32 %v7327, 4294901760
    %v7351 = vsub.f32 %v7327, %v7350
    %v7352 = vand.u32 %v7351, 4294901760
    %v7353 = vsub.f32 %v7351, %v7352
    %v7354 = vand.u32 %v7353, 4294901760
    %7355 = vmatmul.f32.gmra.mxu0 %v7354
    %v7356 = vpop.f32.mrf.mxu0
    %v7357 = vadd.f32 0.0, %v7356
    %v7358 = vand.u32 %v7330, 4294901760
    %v7359 = vsub.f32 %v7330, %v7358
    %v7360 = vand.u32 %v7359, 4294901760
    %v7361 = vsub.f32 %v7359, %v7360
    %v7362 = vand.u32 %v7361, 4294901760
    %7363 = vmatmul.f32.gmra.mxu0 %v7362
    %v7364 = vpop.f32.mrf.mxu0
    %v7365 = vadd.f32 0.0, %v7364
    %7366 = vdwg.mxu0
    %7367 = vmatpush.msra.mxu0 0.0
    %7368 = vmatpush.msra.mxu0 0.0
    %7369 = vmatpush.msra.mxu0 0.0
    %7370 = vmatpush.msra.mxu0 0.0
    %7371 = vmatpush.msra.mxu0 0.0
    %7372 = vmatpush.msra.mxu0 0.0
    %7373 = vmatpush.msra.mxu0 0.0
    %7374 = vmatpush.msra.mxu0 0.0
    %7375 = vmatpush.msra.mxu0 0.0
    %7376 = vmatpush.msra.mxu0 0.0
    %7377 = vmatpush.msra.mxu0 0.0
    %7378 = vmatpush.msra.mxu0 0.0
    %7379 = vmatpush.msra.mxu0 0.0
    %7380 = vmatpush.msra.mxu0 0.0
    %v7381 = vand.u32 %v82, 4294901760
    %v7382 = vsub.f32 %v82, %v7381
    %v7383 = vand.u32 %v7382, 4294901760
    %v7384 = vsub.f32 %v7382, %v7383
    %v7385 = vand.u32 %v7384, 4294901760
    %7386 = vmatpush.msra.mxu0 %v7385
    %v7387 = vand.u32 %v81, 4294901760
    %v7388 = vsub.f32 %v81, %v7387
    %v7389 = vand.u32 %v7388, 4294901760
    %v7390 = vsub.f32 %v7388, %v7389
    %v7391 = vand.u32 %v7390, 4294901760
    %7392 = vmatpush.msra.mxu0 %v7391
    %v7393 = vand.u32 %v7327, 4294901760
    %7394 = vmatmul.f32.gmra.mxu0 %v7393
    %v7395 = vpop.f32.mrf.mxu0
    %v7396 = vadd.f32 %v7357, %v7395
    %v7397 = vand.u32 %v7330, 4294901760
    %7398 = vmatmul.f32.gmra.mxu0 %v7397
    %v7399 = vpop.f32.mrf.mxu0
    %v7400 = vadd.f32 %v7365, %v7399
    %7401 = vdwg.mxu0
    %7402 = vmatpush.msra.mxu0 0.0
    %7403 = vmatpush.msra.mxu0 0.0
    %7404 = vmatpush.msra.mxu0 0.0
    %7405 = vmatpush.msra.mxu0 0.0
    %7406 = vmatpush.msra.mxu0 0.0
    %7407 = vmatpush.msra.mxu0 0.0
    %7408 = vmatpush.msra.mxu0 0.0
    %7409 = vmatpush.msra.mxu0 0.0
    %7410 = vmatpush.msra.mxu0 0.0
    %7411 = vmatpush.msra.mxu0 0.0
    %7412 = vmatpush.msra.mxu0 0.0
    %7413 = vmatpush.msra.mxu0 0.0
    %7414 = vmatpush.msra.mxu0 0.0
    %7415 = vmatpush.msra.mxu0 0.0
    %v7416 = vand.u32 %v82, 4294901760
    %v7417 = vsub.f32 %v82, %v7416
    %7418 = vmatpush.msra.mxu0 %v7417
    %v7419 = vand.u32 %v81, 4294901760
    %v7420 = vsub.f32 %v81, %v7419
    %7421 = vmatpush.msra.mxu0 %v7420
    %v7422 = vand.u32 %v7327, 4294901760
    %v7423 = vsub.f32 %v7327, %v7422
    %7424 = vmatmul.f32.gmra.mxu0 %v7423
    %v7425 = vpop.f32.mrf.mxu0
    %v7426 = vadd.f32 %v7396, %v7425
    %v7427 = vand.u32 %v7330, 4294901760
    %v7428 = vsub.f32 %v7330, %v7427
    %7429 = vmatmul.f32.gmra.mxu0 %v7428
    %v7430 = vpop.f32.mrf.mxu0
    %v7431 = vadd.f32 %v7400, %v7430
    %7432 = vdwg.mxu0
    %7433 = vmatpush.msra.mxu0 0.0
    %7434 = vmatpush.msra.mxu0 0.0
    %7435 = vmatpush.msra.mxu0 0.0
    %7436 = vmatpush.msra.mxu0 0.0
    %7437 = vmatpush.msra.mxu0 0.0
    %7438 = vmatpush.msra.mxu0 0.0
    %7439 = vmatpush.msra.mxu0 0.0
    %7440 = vmatpush.msra.mxu0 0.0
    %7441 = vmatpush.msra.mxu0 0.0
    %7442 = vmatpush.msra.mxu0 0.0
    %7443 = vmatpush.msra.mxu0 0.0
    %7444 = vmatpush.msra.mxu0 0.0
    %7445 = vmatpush.msra.mxu0 0.0
    %7446 = vmatpush.msra.mxu0 0.0
    %v7447 = vand.u32 %v82, 4294901760
    %7448 = vmatpush.msra.mxu0 %v7447
    %v7449 = vand.u32 %v81, 4294901760
    %7450 = vmatpush.msra.mxu0 %v7449
    %v7451 = vand.u32 %v7327, 4294901760
    %v7452 = vsub.f32 %v7327, %v7451
    %v7453 = vand.u32 %v7452, 4294901760
    %7454 = vmatmul.f32.gmra.mxu0 %v7453
    %v7455 = vpop.f32.mrf.mxu0
    %v7456 = vadd.f32 %v7426, %v7455
    %v7457 = vand.u32 %v7330, 4294901760
    %v7458 = vsub.f32 %v7330, %v7457
    %v7459 = vand.u32 %v7458, 4294901760
    %7460 = vmatmul.f32.gmra.mxu0 %v7459
    %v7461 = vpop.f32.mrf.mxu0
    %v7462 = vadd.f32 %v7431, %v7461
    %7463 = vdwg.mxu0
    %7464 = vmatpush.msra.mxu0 0.0
    %7465 = vmatpush.msra.mxu0 0.0
    %7466 = vmatpush.msra.mxu0 0.0
    %7467 = vmatpush.msra.mxu0 0.0
    %7468 = vmatpush.msra.mxu0 0.0
    %7469 = vmatpush.msra.mxu0 0.0
    %7470 = vmatpush.msra.mxu0 0.0
    %7471 = vmatpush.msra.mxu0 0.0
    %7472 = vmatpush.msra.mxu0 0.0
    %7473 = vmatpush.msra.mxu0 0.0
    %7474 = vmatpush.msra.mxu0 0.0
    %7475 = vmatpush.msra.mxu0 0.0
    %7476 = vmatpush.msra.mxu0 0.0
    %7477 = vmatpush.msra.mxu0 0.0
    %v7478 = vand.u32 %v82, 4294901760
    %v7479 = vsub.f32 %v82, %v7478
    %v7480 = vand.u32 %v7479, 4294901760
    %7481 = vmatpush.msra.mxu0 %v7480
    %v7482 = vand.u32 %v81, 4294901760
    %v7483 = vsub.f32 %v81, %v7482
    %v7484 = vand.u32 %v7483, 4294901760
    %7485 = vmatpush.msra.mxu0 %v7484
    %v7486 = vand.u32 %v7327, 4294901760
    %7487 = vmatmul.f32.gmra.mxu0 %v7486
    %v7488 = vpop.f32.mrf.mxu0
    %v7489 = vadd.f32 %v7456, %v7488
    %v7490 = vand.u32 %v7330, 4294901760
    %7491 = vmatmul.f32.gmra.mxu0 %v7490
    %v7492 = vpop.f32.mrf.mxu0
    %v7493 = vadd.f32 %v7462, %v7492
    %7494 = vdwg.mxu0
    %7495 = vmatpush.msra.mxu0 0.0
    %7496 = vmatpush.msra.mxu0 0.0
    %7497 = vmatpush.msra.mxu0 0.0
    %7498 = vmatpush.msra.mxu0 0.0
    %7499 = vmatpush.msra.mxu0 0.0
    %7500 = vmatpush.msra.mxu0 0.0
    %7501 = vmatpush.msra.mxu0 0.0
    %7502 = vmatpush.msra.mxu0 0.0
    %7503 = vmatpush.msra.mxu0 0.0
    %7504 = vmatpush.msra.mxu0 0.0
    %7505 = vmatpush.msra.mxu0 0.0
    %7506 = vmatpush.msra.mxu0 0.0
    %7507 = vmatpush.msra.mxu0 0.0
    %7508 = vmatpush.msra.mxu0 0.0
    %v7509 = vand.u32 %v82, 4294901760
    %7510 = vmatpush.msra.mxu0 %v7509
    %v7511 = vand.u32 %v81, 4294901760
    %7512 = vmatpush.msra.mxu0 %v7511
    %v7513 = vand.u32 %v7327, 4294901760
    %7514 = vmatmul.f32.gmra.mxu0 %v7513
    %v7515 = vpop.f32.mrf.mxu0
    %v7516 = vadd.f32 %v7489, %v7515
    %v7517 = vand.u32 %v7330, 4294901760
    %7518 = vmatmul.f32.gmra.mxu0 %v7517
    %v7519 = vpop.f32.mrf.mxu0
    %v7520 = vadd.f32 %v7493, %v7519
    %7521 = vdwg.mxu0
    %7522 = vmatpush.msra.mxu0 0.0
    %7523 = vmatpush.msra.mxu0 0.0
    %7524 = vmatpush.msra.mxu0 0.0
    %7525 = vmatpush.msra.mxu0 0.0
    %7526 = vmatpush.msra.mxu0 0.0
    %7527 = vmatpush.msra.mxu0 0.0
    %7528 = vmatpush.msra.mxu0 0.0
    %7529 = vmatpush.msra.mxu0 0.0
    %7530 = vmatpush.msra.mxu0 0.0
    %7531 = vmatpush.msra.mxu0 0.0
    %7532 = vmatpush.msra.mxu0 0.0
    %7533 = vmatpush.msra.mxu0 0.0
    %7534 = vmatpush.msra.mxu0 0.0
    %7535 = vmatpush.msra.mxu0 0.0
    %v7536 = vand.u32 %v7520, 4294901760
    %7537 = vmatpush.msra.mxu0 %v7536
    %v7538 = vand.u32 %v7516, 4294901760
    %7539 = vmatpush.msra.mxu0 %v7538
    %v7540 = vand.u32 %v287, 4294901760
    %v7541 = vsub.f32 %v287, %v7540
    %v7542 = vand.u32 %v7541, 4294901760
    %v7543 = vsub.f32 %v7541, %v7542
    %v7544 = vand.u32 %v7543, 4294901760
    %7545 = vmatmul.f32.gmra.mxu0 %v7544
    %v7546 = vpop.f32.mrf.mxu0
    %v7547 = vadd.f32 0.0, %v7546
    %v7548 = vand.u32 %v290, 4294901760
    %v7549 = vsub.f32 %v290, %v7548
    %v7550 = vand.u32 %v7549, 4294901760
    %v7551 = vsub.f32 %v7549, %v7550
    %v7552 = vand.u32 %v7551, 4294901760
    %7553 = vmatmul.f32.gmra.mxu0 %v7552
    %v7554 = vpop.f32.mrf.mxu0
    %v7555 = vadd.f32 0.0, %v7554
    %7556 = vdwg.mxu0
    %7557 = vmatpush.msra.mxu0 0.0
    %7558 = vmatpush.msra.mxu0 0.0
    %7559 = vmatpush.msra.mxu0 0.0
    %7560 = vmatpush.msra.mxu0 0.0
    %7561 = vmatpush.msra.mxu0 0.0
    %7562 = vmatpush.msra.mxu0 0.0
    %7563 = vmatpush.msra.mxu0 0.0
    %7564 = vmatpush.msra.mxu0 0.0
    %7565 = vmatpush.msra.mxu0 0.0
    %7566 = vmatpush.msra.mxu0 0.0
    %7567 = vmatpush.msra.mxu0 0.0
    %7568 = vmatpush.msra.mxu0 0.0
    %7569 = vmatpush.msra.mxu0 0.0
    %7570 = vmatpush.msra.mxu0 0.0
    %v7571 = vand.u32 %v7520, 4294901760
    %v7572 = vsub.f32 %v7520, %v7571
    %v7573 = vand.u32 %v7572, 4294901760
    %v7574 = vsub.f32 %v7572, %v7573
    %v7575 = vand.u32 %v7574, 4294901760
    %7576 = vmatpush.msra.mxu0 %v7575
    %v7577 = vand.u32 %v7516, 4294901760
    %v7578 = vsub.f32 %v7516, %v7577
    %v7579 = vand.u32 %v7578, 4294901760
    %v7580 = vsub.f32 %v7578, %v7579
    %v7581 = vand.u32 %v7580, 4294901760
    %7582 = vmatpush.msra.mxu0 %v7581
    %v7583 = vand.u32 %v287, 4294901760
    %7584 = vmatmul.f32.gmra.mxu0 %v7583
    %v7585 = vpop.f32.mrf.mxu0
    %v7586 = vadd.f32 %v7547, %v7585
    %v7587 = vand.u32 %v290, 4294901760
    %7588 = vmatmul.f32.gmra.mxu0 %v7587
    %v7589 = vpop.f32.mrf.mxu0
    %v7590 = vadd.f32 %v7555, %v7589
    %7591 = vdwg.mxu0
    %7592 = vmatpush.msra.mxu0 0.0
    %7593 = vmatpush.msra.mxu0 0.0
    %7594 = vmatpush.msra.mxu0 0.0
    %7595 = vmatpush.msra.mxu0 0.0
    %7596 = vmatpush.msra.mxu0 0.0
    %7597 = vmatpush.msra.mxu0 0.0
    %7598 = vmatpush.msra.mxu0 0.0
    %7599 = vmatpush.msra.mxu0 0.0
    %7600 = vmatpush.msra.mxu0 0.0
    %7601 = vmatpush.msra.mxu0 0.0
    %7602 = vmatpush.msra.mxu0 0.0
    %7603 = vmatpush.msra.mxu0 0.0
    %7604 = vmatpush.msra.mxu0 0.0
    %7605 = vmatpush.msra.mxu0 0.0
    %v7606 = vand.u32 %v7520, 4294901760
    %v7607 = vsub.f32 %v7520, %v7606
    %7608 = vmatpush.msra.mxu0 %v7607
    %v7609 = vand.u32 %v7516, 4294901760
    %v7610 = vsub.f32 %v7516, %v7609
    %7611 = vmatpush.msra.mxu0 %v7610
    %v7612 = vand.u32 %v287, 4294901760
    %v7613 = vsub.f32 %v287, %v7612
    %7614 = vmatmul.f32.gmra.mxu0 %v7613
    %v7615 = vpop.f32.mrf.mxu0
    %v7616 = vadd.f32 %v7586, %v7615
    %v7617 = vand.u32 %v290, 4294901760
    %v7618 = vsub.f32 %v290, %v7617
    %7619 = vmatmul.f32.gmra.mxu0 %v7618
    %v7620 = vpop.f32.mrf.mxu0
    %v7621 = vadd.f32 %v7590, %v7620
    %7622 = vdwg.mxu0
    %7623 = vmatpush.msra.mxu0 0.0
    %7624 = vmatpush.msra.mxu0 0.0
    %7625 = vmatpush.msra.mxu0 0.0
    %7626 = vmatpush.msra.mxu0 0.0
    %7627 = vmatpush.msra.mxu0 0.0
    %7628 = vmatpush.msra.mxu0 0.0
    %7629 = vmatpush.msra.mxu0 0.0
    %7630 = vmatpush.msra.mxu0 0.0
    %7631 = vmatpush.msra.mxu0 0.0
    %7632 = vmatpush.msra.mxu0 0.0
    %7633 = vmatpush.msra.mxu0 0.0
    %7634 = vmatpush.msra.mxu0 0.0
    %7635 = vmatpush.msra.mxu0 0.0
    %7636 = vmatpush.msra.mxu0 0.0
    %v7637 = vand.u32 %v7520, 4294901760
    %7638 = vmatpush.msra.mxu0 %v7637
    %v7639 = vand.u32 %v7516, 4294901760
    %7640 = vmatpush.msra.mxu0 %v7639
    %v7641 = vand.u32 %v287, 4294901760
    %v7642 = vsub.f32 %v287, %v7641
    %v7643 = vand.u32 %v7642, 4294901760
    %7644 = vmatmul.f32.gmra.mxu0 %v7643
    %v7645 = vpop.f32.mrf.mxu0
    %v7646 = vadd.f32 %v7616, %v7645
    %v7647 = vand.u32 %v290, 4294901760
    %v7648 = vsub.f32 %v290, %v7647
    %v7649 = vand.u32 %v7648, 4294901760
    %7650 = vmatmul.f32.gmra.mxu0 %v7649
    %v7651 = vpop.f32.mrf.mxu0
    %v7652 = vadd.f32 %v7621, %v7651
    %7653 = vdwg.mxu0
    %7654 = vmatpush.msra.mxu0 0.0
    %7655 = vmatpush.msra.mxu0 0.0
    %7656 = vmatpush.msra.mxu0 0.0
    %7657 = vmatpush.msra.mxu0 0.0
    %7658 = vmatpush.msra.mxu0 0.0
    %7659 = vmatpush.msra.mxu0 0.0
    %7660 = vmatpush.msra.mxu0 0.0
    %7661 = vmatpush.msra.mxu0 0.0
    %7662 = vmatpush.msra.mxu0 0.0
    %7663 = vmatpush.msra.mxu0 0.0
    %7664 = vmatpush.msra.mxu0 0.0
    %7665 = vmatpush.msra.mxu0 0.0
    %7666 = vmatpush.msra.mxu0 0.0
    %7667 = vmatpush.msra.mxu0 0.0
    %v7668 = vand.u32 %v7520, 4294901760
    %v7669 = vsub.f32 %v7520, %v7668
    %v7670 = vand.u32 %v7669, 4294901760
    %7671 = vmatpush.msra.mxu0 %v7670
    %v7672 = vand.u32 %v7516, 4294901760
    %v7673 = vsub.f32 %v7516, %v7672
    %v7674 = vand.u32 %v7673, 4294901760
    %7675 = vmatpush.msra.mxu0 %v7674
    %v7676 = vand.u32 %v287, 4294901760
    %7677 = vmatmul.f32.gmra.mxu0 %v7676
    %v7678 = vpop.f32.mrf.mxu0
    %v7679 = vadd.f32 %v7646, %v7678
    %v7680 = vand.u32 %v290, 4294901760
    %7681 = vmatmul.f32.gmra.mxu0 %v7680
    %v7682 = vpop.f32.mrf.mxu0
    %v7683 = vadd.f32 %v7652, %v7682
    %7684 = vdwg.mxu0
    %7685 = vmatpush.msra.mxu0 0.0
    %7686 = vmatpush.msra.mxu0 0.0
    %7687 = vmatpush.msra.mxu0 0.0
    %7688 = vmatpush.msra.mxu0 0.0
    %7689 = vmatpush.msra.mxu0 0.0
    %7690 = vmatpush.msra.mxu0 0.0
    %7691 = vmatpush.msra.mxu0 0.0
    %7692 = vmatpush.msra.mxu0 0.0
    %7693 = vmatpush.msra.mxu0 0.0
    %7694 = vmatpush.msra.mxu0 0.0
    %7695 = vmatpush.msra.mxu0 0.0
    %7696 = vmatpush.msra.mxu0 0.0
    %7697 = vmatpush.msra.mxu0 0.0
    %7698 = vmatpush.msra.mxu0 0.0
    %v7699 = vand.u32 %v7520, 4294901760
    %7700 = vmatpush.msra.mxu0 %v7699
    %v7701 = vand.u32 %v7516, 4294901760
    %7702 = vmatpush.msra.mxu0 %v7701
    %v7703 = vand.u32 %v287, 4294901760
    %7704 = vmatmul.f32.gmra.mxu0 %v7703
    %v7705 = vpop.f32.mrf.mxu0
    %v7706 = vadd.f32 %v7679, %v7705
    %v7707 = vand.u32 %v290, 4294901760
    %7708 = vmatmul.f32.gmra.mxu0 %v7707
    %v7709 = vpop.f32.mrf.mxu0
    %v7710 = vadd.f32 %v7683, %v7709
    %7711 = vdwg.mxu0
    %v7712 = vsub.f32 %v7706, %v6930
    %v7713 = vsub.f32 %v7710, %v6931
    %v7714 = vmul.f32 %v6151, %v6154
    %v7715 = vmul.f32 %v6152, %v6155
    %v7717 = vsel %vm89, %v7714, 0
    %v7720 = vsel %vm89, %v7715, 0
    %7722 = vmatpush.msra.mxu0 0.0
    %7723 = vmatpush.msra.mxu0 0.0
    %7724 = vmatpush.msra.mxu0 0.0
    %7725 = vmatpush.msra.mxu0 0.0
    %7726 = vmatpush.msra.mxu0 0.0
    %7727 = vmatpush.msra.mxu0 0.0
    %7728 = vmatpush.msra.mxu0 0.0
    %7729 = vmatpush.msra.mxu0 0.0
    %7730 = vmatpush.msra.mxu0 0.0
    %7731 = vmatpush.msra.mxu0 0.0
    %7732 = vmatpush.msra.mxu0 0.0
    %7733 = vmatpush.msra.mxu0 0.0
    %7734 = vmatpush.msra.mxu0 0.0
    %7735 = vmatpush.msra.mxu0 0.0
    %v7736 = vand.u32 %v82, 4294901760
    %7737 = vmatpush.msra.mxu0 %v7736
    %v7738 = vand.u32 %v81, 4294901760
    %7739 = vmatpush.msra.mxu0 %v7738
    %v7740 = vand.u32 %v7717, 4294901760
    %v7741 = vsub.f32 %v7717, %v7740
    %v7742 = vand.u32 %v7741, 4294901760
    %v7743 = vsub.f32 %v7741, %v7742
    %v7744 = vand.u32 %v7743, 4294901760
    %7745 = vmatmul.f32.gmra.mxu0 %v7744
    %v7746 = vpop.f32.mrf.mxu0
    %v7747 = vadd.f32 0.0, %v7746
    %v7748 = vand.u32 %v7720, 4294901760
    %v7749 = vsub.f32 %v7720, %v7748
    %v7750 = vand.u32 %v7749, 4294901760
    %v7751 = vsub.f32 %v7749, %v7750
    %v7752 = vand.u32 %v7751, 4294901760
    %7753 = vmatmul.f32.gmra.mxu0 %v7752
    %v7754 = vpop.f32.mrf.mxu0
    %v7755 = vadd.f32 0.0, %v7754
    %7756 = vdwg.mxu0
    %7757 = vmatpush.msra.mxu0 0.0
    %7758 = vmatpush.msra.mxu0 0.0
    %7759 = vmatpush.msra.mxu0 0.0
    %7760 = vmatpush.msra.mxu0 0.0
    %7761 = vmatpush.msra.mxu0 0.0
    %7762 = vmatpush.msra.mxu0 0.0
    %7763 = vmatpush.msra.mxu0 0.0
    %7764 = vmatpush.msra.mxu0 0.0
    %7765 = vmatpush.msra.mxu0 0.0
    %7766 = vmatpush.msra.mxu0 0.0
    %7767 = vmatpush.msra.mxu0 0.0
    %7768 = vmatpush.msra.mxu0 0.0
    %7769 = vmatpush.msra.mxu0 0.0
    %7770 = vmatpush.msra.mxu0 0.0
    %v7771 = vand.u32 %v82, 4294901760
    %v7772 = vsub.f32 %v82, %v7771
    %v7773 = vand.u32 %v7772, 4294901760
    %v7774 = vsub.f32 %v7772, %v7773
    %v7775 = vand.u32 %v7774, 4294901760
    %7776 = vmatpush.msra.mxu0 %v7775
    %v7777 = vand.u32 %v81, 4294901760
    %v7778 = vsub.f32 %v81, %v7777
    %v7779 = vand.u32 %v7778, 4294901760
    %v7780 = vsub.f32 %v7778, %v7779
    %v7781 = vand.u32 %v7780, 4294901760
    %7782 = vmatpush.msra.mxu0 %v7781
    %v7783 = vand.u32 %v7717, 4294901760
    %7784 = vmatmul.f32.gmra.mxu0 %v7783
    %v7785 = vpop.f32.mrf.mxu0
    %v7786 = vadd.f32 %v7747, %v7785
    %v7787 = vand.u32 %v7720, 4294901760
    %7788 = vmatmul.f32.gmra.mxu0 %v7787
    %v7789 = vpop.f32.mrf.mxu0
    %v7790 = vadd.f32 %v7755, %v7789
    %7791 = vdwg.mxu0
    %7792 = vmatpush.msra.mxu0 0.0
    %7793 = vmatpush.msra.mxu0 0.0
    %7794 = vmatpush.msra.mxu0 0.0
    %7795 = vmatpush.msra.mxu0 0.0
    %7796 = vmatpush.msra.mxu0 0.0
    %7797 = vmatpush.msra.mxu0 0.0
    %7798 = vmatpush.msra.mxu0 0.0
    %7799 = vmatpush.msra.mxu0 0.0
    %7800 = vmatpush.msra.mxu0 0.0
    %7801 = vmatpush.msra.mxu0 0.0
    %7802 = vmatpush.msra.mxu0 0.0
    %7803 = vmatpush.msra.mxu0 0.0
    %7804 = vmatpush.msra.mxu0 0.0
    %7805 = vmatpush.msra.mxu0 0.0
    %v7806 = vand.u32 %v82, 4294901760
    %v7807 = vsub.f32 %v82, %v7806
    %7808 = vmatpush.msra.mxu0 %v7807
    %v7809 = vand.u32 %v81, 4294901760
    %v7810 = vsub.f32 %v81, %v7809
    %7811 = vmatpush.msra.mxu0 %v7810
    %v7812 = vand.u32 %v7717, 4294901760
    %v7813 = vsub.f32 %v7717, %v7812
    %7814 = vmatmul.f32.gmra.mxu0 %v7813
    %v7815 = vpop.f32.mrf.mxu0
    %v7816 = vadd.f32 %v7786, %v7815
    %v7817 = vand.u32 %v7720, 4294901760
    %v7818 = vsub.f32 %v7720, %v7817
    %7819 = vmatmul.f32.gmra.mxu0 %v7818
    %v7820 = vpop.f32.mrf.mxu0
    %v7821 = vadd.f32 %v7790, %v7820
    %7822 = vdwg.mxu0
    %7823 = vmatpush.msra.mxu0 0.0
    %7824 = vmatpush.msra.mxu0 0.0
    %7825 = vmatpush.msra.mxu0 0.0
    %7826 = vmatpush.msra.mxu0 0.0
    %7827 = vmatpush.msra.mxu0 0.0
    %7828 = vmatpush.msra.mxu0 0.0
    %7829 = vmatpush.msra.mxu0 0.0
    %7830 = vmatpush.msra.mxu0 0.0
    %7831 = vmatpush.msra.mxu0 0.0
    %7832 = vmatpush.msra.mxu0 0.0
    %7833 = vmatpush.msra.mxu0 0.0
    %7834 = vmatpush.msra.mxu0 0.0
    %7835 = vmatpush.msra.mxu0 0.0
    %7836 = vmatpush.msra.mxu0 0.0
    %v7837 = vand.u32 %v82, 4294901760
    %7838 = vmatpush.msra.mxu0 %v7837
    %v7839 = vand.u32 %v81, 4294901760
    %7840 = vmatpush.msra.mxu0 %v7839
    %v7841 = vand.u32 %v7717, 4294901760
    %v7842 = vsub.f32 %v7717, %v7841
    %v7843 = vand.u32 %v7842, 4294901760
    %7844 = vmatmul.f32.gmra.mxu0 %v7843
    %v7845 = vpop.f32.mrf.mxu0
    %v7846 = vadd.f32 %v7816, %v7845
    %v7847 = vand.u32 %v7720, 4294901760
    %v7848 = vsub.f32 %v7720, %v7847
    %v7849 = vand.u32 %v7848, 4294901760
    %7850 = vmatmul.f32.gmra.mxu0 %v7849
    %v7851 = vpop.f32.mrf.mxu0
    %v7852 = vadd.f32 %v7821, %v7851
    %7853 = vdwg.mxu0
    %7854 = vmatpush.msra.mxu0 0.0
    %7855 = vmatpush.msra.mxu0 0.0
    %7856 = vmatpush.msra.mxu0 0.0
    %7857 = vmatpush.msra.mxu0 0.0
    %7858 = vmatpush.msra.mxu0 0.0
    %7859 = vmatpush.msra.mxu0 0.0
    %7860 = vmatpush.msra.mxu0 0.0
    %7861 = vmatpush.msra.mxu0 0.0
    %7862 = vmatpush.msra.mxu0 0.0
    %7863 = vmatpush.msra.mxu0 0.0
    %7864 = vmatpush.msra.mxu0 0.0
    %7865 = vmatpush.msra.mxu0 0.0
    %7866 = vmatpush.msra.mxu0 0.0
    %7867 = vmatpush.msra.mxu0 0.0
    %v7868 = vand.u32 %v82, 4294901760
    %v7869 = vsub.f32 %v82, %v7868
    %v7870 = vand.u32 %v7869, 4294901760
    %7871 = vmatpush.msra.mxu0 %v7870
    %v7872 = vand.u32 %v81, 4294901760
    %v7873 = vsub.f32 %v81, %v7872
    %v7874 = vand.u32 %v7873, 4294901760
    %7875 = vmatpush.msra.mxu0 %v7874
    %v7876 = vand.u32 %v7717, 4294901760
    %7877 = vmatmul.f32.gmra.mxu0 %v7876
    %v7878 = vpop.f32.mrf.mxu0
    %v7879 = vadd.f32 %v7846, %v7878
    %v7880 = vand.u32 %v7720, 4294901760
    %7881 = vmatmul.f32.gmra.mxu0 %v7880
    %v7882 = vpop.f32.mrf.mxu0
    %v7883 = vadd.f32 %v7852, %v7882
    %7884 = vdwg.mxu0
    %7885 = vmatpush.msra.mxu0 0.0
    %7886 = vmatpush.msra.mxu0 0.0
    %7887 = vmatpush.msra.mxu0 0.0
    %7888 = vmatpush.msra.mxu0 0.0
    %7889 = vmatpush.msra.mxu0 0.0
    %7890 = vmatpush.msra.mxu0 0.0
    %7891 = vmatpush.msra.mxu0 0.0
    %7892 = vmatpush.msra.mxu0 0.0
    %7893 = vmatpush.msra.mxu0 0.0
    %7894 = vmatpush.msra.mxu0 0.0
    %7895 = vmatpush.msra.mxu0 0.0
    %7896 = vmatpush.msra.mxu0 0.0
    %7897 = vmatpush.msra.mxu0 0.0
    %7898 = vmatpush.msra.mxu0 0.0
    %v7899 = vand.u32 %v82, 4294901760
    %7900 = vmatpush.msra.mxu0 %v7899
    %v7901 = vand.u32 %v81, 4294901760
    %7902 = vmatpush.msra.mxu0 %v7901
    %v7903 = vand.u32 %v7717, 4294901760
    %7904 = vmatmul.f32.gmra.mxu0 %v7903
    %v7905 = vpop.f32.mrf.mxu0
    %v7906 = vadd.f32 %v7879, %v7905
    %v7907 = vand.u32 %v7720, 4294901760
    %7908 = vmatmul.f32.gmra.mxu0 %v7907
    %v7909 = vpop.f32.mrf.mxu0
    %v7910 = vadd.f32 %v7883, %v7909
    %7911 = vdwg.mxu0
    %7912 = vmatpush.msra.mxu0 0.0
    %7913 = vmatpush.msra.mxu0 0.0
    %7914 = vmatpush.msra.mxu0 0.0
    %7915 = vmatpush.msra.mxu0 0.0
    %7916 = vmatpush.msra.mxu0 0.0
    %7917 = vmatpush.msra.mxu0 0.0
    %7918 = vmatpush.msra.mxu0 0.0
    %7919 = vmatpush.msra.mxu0 0.0
    %7920 = vmatpush.msra.mxu0 0.0
    %7921 = vmatpush.msra.mxu0 0.0
    %7922 = vmatpush.msra.mxu0 0.0
    %7923 = vmatpush.msra.mxu0 0.0
    %7924 = vmatpush.msra.mxu0 0.0
    %7925 = vmatpush.msra.mxu0 0.0
    %v7926 = vand.u32 %v7910, 4294901760
    %7927 = vmatpush.msra.mxu0 %v7926
    %v7928 = vand.u32 %v7906, 4294901760
    %7929 = vmatpush.msra.mxu0 %v7928
    %v7930 = vand.u32 %v287, 4294901760
    %v7931 = vsub.f32 %v287, %v7930
    %v7932 = vand.u32 %v7931, 4294901760
    %v7933 = vsub.f32 %v7931, %v7932
    %v7934 = vand.u32 %v7933, 4294901760
    %7935 = vmatmul.f32.gmra.mxu0 %v7934
    %v7936 = vpop.f32.mrf.mxu0
    %v7937 = vadd.f32 0.0, %v7936
    %v7938 = vand.u32 %v290, 4294901760
    %v7939 = vsub.f32 %v290, %v7938
    %v7940 = vand.u32 %v7939, 4294901760
    %v7941 = vsub.f32 %v7939, %v7940
    %v7942 = vand.u32 %v7941, 4294901760
    %7943 = vmatmul.f32.gmra.mxu0 %v7942
    %v7944 = vpop.f32.mrf.mxu0
    %v7945 = vadd.f32 0.0, %v7944
    %7946 = vdwg.mxu0
    %7947 = vmatpush.msra.mxu0 0.0
    %7948 = vmatpush.msra.mxu0 0.0
    %7949 = vmatpush.msra.mxu0 0.0
    %7950 = vmatpush.msra.mxu0 0.0
    %7951 = vmatpush.msra.mxu0 0.0
    %7952 = vmatpush.msra.mxu0 0.0
    %7953 = vmatpush.msra.mxu0 0.0
    %7954 = vmatpush.msra.mxu0 0.0
    %7955 = vmatpush.msra.mxu0 0.0
    %7956 = vmatpush.msra.mxu0 0.0
    %7957 = vmatpush.msra.mxu0 0.0
    %7958 = vmatpush.msra.mxu0 0.0
    %7959 = vmatpush.msra.mxu0 0.0
    %7960 = vmatpush.msra.mxu0 0.0
    %v7961 = vand.u32 %v7910, 4294901760
    %v7962 = vsub.f32 %v7910, %v7961
    %v7963 = vand.u32 %v7962, 4294901760
    %v7964 = vsub.f32 %v7962, %v7963
    %v7965 = vand.u32 %v7964, 4294901760
    %7966 = vmatpush.msra.mxu0 %v7965
    %v7967 = vand.u32 %v7906, 4294901760
    %v7968 = vsub.f32 %v7906, %v7967
    %v7969 = vand.u32 %v7968, 4294901760
    %v7970 = vsub.f32 %v7968, %v7969
    %v7971 = vand.u32 %v7970, 4294901760
    %7972 = vmatpush.msra.mxu0 %v7971
    %v7973 = vand.u32 %v287, 4294901760
    %7974 = vmatmul.f32.gmra.mxu0 %v7973
    %v7975 = vpop.f32.mrf.mxu0
    %v7976 = vadd.f32 %v7937, %v7975
    %v7977 = vand.u32 %v290, 4294901760
    %7978 = vmatmul.f32.gmra.mxu0 %v7977
    %v7979 = vpop.f32.mrf.mxu0
    %v7980 = vadd.f32 %v7945, %v7979
    %7981 = vdwg.mxu0
    %7982 = vmatpush.msra.mxu0 0.0
    %7983 = vmatpush.msra.mxu0 0.0
    %7984 = vmatpush.msra.mxu0 0.0
    %7985 = vmatpush.msra.mxu0 0.0
    %7986 = vmatpush.msra.mxu0 0.0
    %7987 = vmatpush.msra.mxu0 0.0
    %7988 = vmatpush.msra.mxu0 0.0
    %7989 = vmatpush.msra.mxu0 0.0
    %7990 = vmatpush.msra.mxu0 0.0
    %7991 = vmatpush.msra.mxu0 0.0
    %7992 = vmatpush.msra.mxu0 0.0
    %7993 = vmatpush.msra.mxu0 0.0
    %7994 = vmatpush.msra.mxu0 0.0
    %7995 = vmatpush.msra.mxu0 0.0
    %v7996 = vand.u32 %v7910, 4294901760
    %v7997 = vsub.f32 %v7910, %v7996
    %7998 = vmatpush.msra.mxu0 %v7997
    %v7999 = vand.u32 %v7906, 4294901760
    %v8000 = vsub.f32 %v7906, %v7999
    %8001 = vmatpush.msra.mxu0 %v8000
    %v8002 = vand.u32 %v287, 4294901760
    %v8003 = vsub.f32 %v287, %v8002
    %8004 = vmatmul.f32.gmra.mxu0 %v8003
    %v8005 = vpop.f32.mrf.mxu0
    %v8006 = vadd.f32 %v7976, %v8005
    %v8007 = vand.u32 %v290, 4294901760
    %v8008 = vsub.f32 %v290, %v8007
    %8009 = vmatmul.f32.gmra.mxu0 %v8008
    %v8010 = vpop.f32.mrf.mxu0
    %v8011 = vadd.f32 %v7980, %v8010
    %8012 = vdwg.mxu0
    %8013 = vmatpush.msra.mxu0 0.0
    %8014 = vmatpush.msra.mxu0 0.0
    %8015 = vmatpush.msra.mxu0 0.0
    %8016 = vmatpush.msra.mxu0 0.0
    %8017 = vmatpush.msra.mxu0 0.0
    %8018 = vmatpush.msra.mxu0 0.0
    %8019 = vmatpush.msra.mxu0 0.0
    %8020 = vmatpush.msra.mxu0 0.0
    %8021 = vmatpush.msra.mxu0 0.0
    %8022 = vmatpush.msra.mxu0 0.0
    %8023 = vmatpush.msra.mxu0 0.0
    %8024 = vmatpush.msra.mxu0 0.0
    %8025 = vmatpush.msra.mxu0 0.0
    %8026 = vmatpush.msra.mxu0 0.0
    %v8027 = vand.u32 %v7910, 4294901760
    %8028 = vmatpush.msra.mxu0 %v8027
    %v8029 = vand.u32 %v7906, 4294901760
    %8030 = vmatpush.msra.mxu0 %v8029
    %v8031 = vand.u32 %v287, 4294901760
    %v8032 = vsub.f32 %v287, %v8031
    %v8033 = vand.u32 %v8032, 4294901760
    %8034 = vmatmul.f32.gmra.mxu0 %v8033
    %v8035 = vpop.f32.mrf.mxu0
    %v8036 = vadd.f32 %v8006, %v8035
    %v8037 = vand.u32 %v290, 4294901760
    %v8038 = vsub.f32 %v290, %v8037
    %v8039 = vand.u32 %v8038, 4294901760
    %8040 = vmatmul.f32.gmra.mxu0 %v8039
    %v8041 = vpop.f32.mrf.mxu0
    %v8042 = vadd.f32 %v8011, %v8041
    %8043 = vdwg.mxu0
    %8044 = vmatpush.msra.mxu0 0.0
    %8045 = vmatpush.msra.mxu0 0.0
    %8046 = vmatpush.msra.mxu0 0.0
    %8047 = vmatpush.msra.mxu0 0.0
    %8048 = vmatpush.msra.mxu0 0.0
    %8049 = vmatpush.msra.mxu0 0.0
    %8050 = vmatpush.msra.mxu0 0.0
    %8051 = vmatpush.msra.mxu0 0.0
    %8052 = vmatpush.msra.mxu0 0.0
    %8053 = vmatpush.msra.mxu0 0.0
    %8054 = vmatpush.msra.mxu0 0.0
    %8055 = vmatpush.msra.mxu0 0.0
    %8056 = vmatpush.msra.mxu0 0.0
    %8057 = vmatpush.msra.mxu0 0.0
    %v8058 = vand.u32 %v7910, 4294901760
    %v8059 = vsub.f32 %v7910, %v8058
    %v8060 = vand.u32 %v8059, 4294901760
    %8061 = vmatpush.msra.mxu0 %v8060
    %v8062 = vand.u32 %v7906, 4294901760
    %v8063 = vsub.f32 %v7906, %v8062
    %v8064 = vand.u32 %v8063, 4294901760
    %8065 = vmatpush.msra.mxu0 %v8064
    %v8066 = vand.u32 %v287, 4294901760
    %8067 = vmatmul.f32.gmra.mxu0 %v8066
    %v8068 = vpop.f32.mrf.mxu0
    %v8069 = vadd.f32 %v8036, %v8068
    %v8070 = vand.u32 %v290, 4294901760
    %8071 = vmatmul.f32.gmra.mxu0 %v8070
    %v8072 = vpop.f32.mrf.mxu0
    %v8073 = vadd.f32 %v8042, %v8072
    %8074 = vdwg.mxu0
    %8075 = vmatpush.msra.mxu0 0.0
    %8076 = vmatpush.msra.mxu0 0.0
    %8077 = vmatpush.msra.mxu0 0.0
    %8078 = vmatpush.msra.mxu0 0.0
    %8079 = vmatpush.msra.mxu0 0.0
    %8080 = vmatpush.msra.mxu0 0.0
    %8081 = vmatpush.msra.mxu0 0.0
    %8082 = vmatpush.msra.mxu0 0.0
    %8083 = vmatpush.msra.mxu0 0.0
    %8084 = vmatpush.msra.mxu0 0.0
    %8085 = vmatpush.msra.mxu0 0.0
    %8086 = vmatpush.msra.mxu0 0.0
    %8087 = vmatpush.msra.mxu0 0.0
    %8088 = vmatpush.msra.mxu0 0.0
    %v8089 = vand.u32 %v7910, 4294901760
    %8090 = vmatpush.msra.mxu0 %v8089
    %v8091 = vand.u32 %v7906, 4294901760
    %8092 = vmatpush.msra.mxu0 %v8091
    %v8093 = vand.u32 %v287, 4294901760
    %8094 = vmatmul.f32.gmra.mxu0 %v8093
    %v8095 = vpop.f32.mrf.mxu0
    %v8096 = vadd.f32 %v8069, %v8095
    %v8097 = vand.u32 %v290, 4294901760
    %8098 = vmatmul.f32.gmra.mxu0 %v8097
    %v8099 = vpop.f32.mrf.mxu0
    %v8100 = vadd.f32 %v8073, %v8099
    %8101 = vdwg.mxu0
    %v8102 = vsub.f32 %v8096, %v6932
    %v8103 = vsub.f32 %v8100, %v6933
    %v8104 = vmul.f32 %v6932, 2.0
    %v8105 = vmul.f32 %v6933, 2.0
    %v8106 = vadd.f32 %v8104, 0.0001
    %v8107 = vadd.f32 %v8105, 0.0001
    %v8108 = vmul.f32 %v8102, 2.0
    %v8109 = vmul.f32 %v8103, 2.0
    %v8110 = vadd.f32 %v8108, 0.0009
    %v8111 = vadd.f32 %v8109, 0.0009
    %v8112 = vmul.f32 %v8106, %v8110
    %v8113 = vmul.f32 %v8107, %v8111
    %v8114 = vadd.f32 %v6928, %v6930
    %v8115 = vadd.f32 %v6929, %v6931
    %v8116 = vadd.f32 %v8114, 0.0001
    %v8117 = vadd.f32 %v8115, 0.0001
    %v8118 = vadd.f32 %v7322, %v7712
    %v8119 = vadd.f32 %v7323, %v7713
    %v8120 = vadd.f32 %v8118, 0.0009
    %v8121 = vadd.f32 %v8119, 0.0009
    %v8122 = vmul.f32 %v8116, %v8120
    %v8123 = vmul.f32 %v8117, %v8121
    %v8124 = vadd.f32 %v8122, 1e-12
    %v8125 = vadd.f32 %v8123, 1e-12
    %v8126 = vrcp.pop %v8124
    %v8127 = vmul.f32 %v8124, %v8126
    %v8128 = vsub.f32 1.0, %v8127
    %v8129 = vmul.f32 %v8126, %v8128
    %v8130 = vadd.f32 %v8126, %v8129
    %vm8131 = vweird.f32 %v8124
    %vm8132 = vweird.f32 %v8126
    %vm8133 = vmor %vm8131, %vm8132
    %v8134 = vsel %vm8133, %v8126, %v8130
    %v8135 = vand.u32 2147483647, %v8124
    %vm8136 = vcmp.eq.f32.partialorder %v8135, 8.507059e+37
    %v8137 = vand.u32 %v8124, 2147483648
    %v8138 = vor.u32 1.1754944e-38, %v8137
    %v8139 = vsel %vm8136, %v8138, %v8134
    %v8140 = vrcp.pop %v8125
    %v8141 = vmul.f32 %v8125, %v8140
    %v8142 = vsub.f32 1.0, %v8141
    %v8143 = vmul.f32 %v8140, %v8142
    %v8144 = vadd.f32 %v8140, %v8143
    %vm8145 = vweird.f32 %v8125
    %vm8146 = vweird.f32 %v8140
    %vm8147 = vmor %vm8145, %vm8146
    %v8148 = vsel %vm8147, %v8140, %v8144
    %v8149 = vand.u32 2147483647, %v8125
    %vm8150 = vcmp.eq.f32.partialorder %v8149, 8.507059e+37
    %v8151 = vand.u32 %v8125, 2147483648
    %v8152 = vor.u32 1.1754944e-38, %v8151
    %v8153 = vsel %vm8150, %v8152, %v8148
    %v8154 = vmul.f32 %v8112, %v8139
    %v8155 = vmul.f32 %v8113, %v8153
    %v8156 = vsel %vm89, %v8154, 0.0
    %v8157 = vsel %vm89, %v8155, 0.0
    %v8158 = vadd.f32 %v8156, %v8157
    %8159 = vadd.xlane.f32.xlu0 %v8158
    %v8160 = vpop.xlane.xlu0 %8159
    %v8161 = vrot.slane %v8160, 4
    %v8162 = vadd.f32 %v8160, %v8161
    %v8163 = vrot.slane %v8162, 2
    %v8164 = vadd.f32 %v8162, %v8163
    %v8165 = vrot.slane %v8164, 1
    %v8166 = vadd.f32 %v8164, %v8165
    %s8167 = vtos %v8166
    %v8168 = vstv %s8167
    %v8169 = vadd.f32 %v6149, %v8168
    %s8170 = scalar_lea.vmem [#allocation2], 64
    %v8171 = vld [vmem:[%s8170] sm:$0xff]
    %v8172 = vld [vmem:[%s8170 + $0x8] sm:$0xff]
    %s8173 = scalar_lea.vmem [#allocation5], 64
    %v8174 = vld [vmem:[%s8173] sm:$0xff]
    %v8175 = vld [vmem:[%s8173 + $0x8] sm:$0xff]
    %v8177 = vsel %vm89, %v8171, 0
    %v8180 = vsel %vm89, %v8172, 0
    %8182 = vmatpush.msra.mxu0 0.0
    %8183 = vmatpush.msra.mxu0 0.0
    %8184 = vmatpush.msra.mxu0 0.0
    %8185 = vmatpush.msra.mxu0 0.0
    %8186 = vmatpush.msra.mxu0 0.0
    %8187 = vmatpush.msra.mxu0 0.0
    %8188 = vmatpush.msra.mxu0 0.0
    %8189 = vmatpush.msra.mxu0 0.0
    %8190 = vmatpush.msra.mxu0 0.0
    %8191 = vmatpush.msra.mxu0 0.0
    %8192 = vmatpush.msra.mxu0 0.0
    %8193 = vmatpush.msra.mxu0 0.0
    %8194 = vmatpush.msra.mxu0 0.0
    %8195 = vmatpush.msra.mxu0 0.0
    %v8196 = vand.u32 %v82, 4294901760
    %8197 = vmatpush.msra.mxu0 %v8196
    %v8198 = vand.u32 %v81, 4294901760
    %8199 = vmatpush.msra.mxu0 %v8198
    %v8200 = vand.u32 %v8177, 4294901760
    %v8201 = vsub.f32 %v8177, %v8200
    %v8202 = vand.u32 %v8201, 4294901760
    %v8203 = vsub.f32 %v8201, %v8202
    %v8204 = vand.u32 %v8203, 4294901760
    %8205 = vmatmul.f32.gmra.mxu0 %v8204
    %v8206 = vpop.f32.mrf.mxu0
    %v8207 = vadd.f32 0.0, %v8206
    %v8208 = vand.u32 %v8180, 4294901760
    %v8209 = vsub.f32 %v8180, %v8208
    %v8210 = vand.u32 %v8209, 4294901760
    %v8211 = vsub.f32 %v8209, %v8210
    %v8212 = vand.u32 %v8211, 4294901760
    %8213 = vmatmul.f32.gmra.mxu0 %v8212
    %v8214 = vpop.f32.mrf.mxu0
    %v8215 = vadd.f32 0.0, %v8214
    %8216 = vdwg.mxu0
    %8217 = vmatpush.msra.mxu0 0.0
    %8218 = vmatpush.msra.mxu0 0.0
    %8219 = vmatpush.msra.mxu0 0.0
    %8220 = vmatpush.msra.mxu0 0.0
    %8221 = vmatpush.msra.mxu0 0.0
    %8222 = vmatpush.msra.mxu0 0.0
    %8223 = vmatpush.msra.mxu0 0.0
    %8224 = vmatpush.msra.mxu0 0.0
    %8225 = vmatpush.msra.mxu0 0.0
    %8226 = vmatpush.msra.mxu0 0.0
    %8227 = vmatpush.msra.mxu0 0.0
    %8228 = vmatpush.msra.mxu0 0.0
    %8229 = vmatpush.msra.mxu0 0.0
    %8230 = vmatpush.msra.mxu0 0.0
    %v8231 = vand.u32 %v82, 4294901760
    %v8232 = vsub.f32 %v82, %v8231
    %v8233 = vand.u32 %v8232, 4294901760
    %v8234 = vsub.f32 %v8232, %v8233
    %v8235 = vand.u32 %v8234, 4294901760
    %8236 = vmatpush.msra.mxu0 %v8235
    %v8237 = vand.u32 %v81, 4294901760
    %v8238 = vsub.f32 %v81, %v8237
    %v8239 = vand.u32 %v8238, 4294901760
    %v8240 = vsub.f32 %v8238, %v8239
    %v8241 = vand.u32 %v8240, 4294901760
    %8242 = vmatpush.msra.mxu0 %v8241
    %v8243 = vand.u32 %v8177, 4294901760
    %8244 = vmatmul.f32.gmra.mxu0 %v8243
    %v8245 = vpop.f32.mrf.mxu0
    %v8246 = vadd.f32 %v8207, %v8245
    %v8247 = vand.u32 %v8180, 4294901760
    %8248 = vmatmul.f32.gmra.mxu0 %v8247
    %v8249 = vpop.f32.mrf.mxu0
    %v8250 = vadd.f32 %v8215, %v8249
    %8251 = vdwg.mxu0
    %8252 = vmatpush.msra.mxu0 0.0
    %8253 = vmatpush.msra.mxu0 0.0
    %8254 = vmatpush.msra.mxu0 0.0
    %8255 = vmatpush.msra.mxu0 0.0
    %8256 = vmatpush.msra.mxu0 0.0
    %8257 = vmatpush.msra.mxu0 0.0
    %8258 = vmatpush.msra.mxu0 0.0
    %8259 = vmatpush.msra.mxu0 0.0
    %8260 = vmatpush.msra.mxu0 0.0
    %8261 = vmatpush.msra.mxu0 0.0
    %8262 = vmatpush.msra.mxu0 0.0
    %8263 = vmatpush.msra.mxu0 0.0
    %8264 = vmatpush.msra.mxu0 0.0
    %8265 = vmatpush.msra.mxu0 0.0
    %v8266 = vand.u32 %v82, 4294901760
    %v8267 = vsub.f32 %v82, %v8266
    %8268 = vmatpush.msra.mxu0 %v8267
    %v8269 = vand.u32 %v81, 4294901760
    %v8270 = vsub.f32 %v81, %v8269
    %8271 = vmatpush.msra.mxu0 %v8270
    %v8272 = vand.u32 %v8177, 4294901760
    %v8273 = vsub.f32 %v8177, %v8272
    %8274 = vmatmul.f32.gmra.mxu0 %v8273
    %v8275 = vpop.f32.mrf.mxu0
    %v8276 = vadd.f32 %v8246, %v8275
    %v8277 = vand.u32 %v8180, 4294901760
    %v8278 = vsub.f32 %v8180, %v8277
    %8279 = vmatmul.f32.gmra.mxu0 %v8278
    %v8280 = vpop.f32.mrf.mxu0
    %v8281 = vadd.f32 %v8250, %v8280
    %8282 = vdwg.mxu0
    %8283 = vmatpush.msra.mxu0 0.0
    %8284 = vmatpush.msra.mxu0 0.0
    %8285 = vmatpush.msra.mxu0 0.0
    %8286 = vmatpush.msra.mxu0 0.0
    %8287 = vmatpush.msra.mxu0 0.0
    %8288 = vmatpush.msra.mxu0 0.0
    %8289 = vmatpush.msra.mxu0 0.0
    %8290 = vmatpush.msra.mxu0 0.0
    %8291 = vmatpush.msra.mxu0 0.0
    %8292 = vmatpush.msra.mxu0 0.0
    %8293 = vmatpush.msra.mxu0 0.0
    %8294 = vmatpush.msra.mxu0 0.0
    %8295 = vmatpush.msra.mxu0 0.0
    %8296 = vmatpush.msra.mxu0 0.0
    %v8297 = vand.u32 %v82, 4294901760
    %8298 = vmatpush.msra.mxu0 %v8297
    %v8299 = vand.u32 %v81, 4294901760
    %8300 = vmatpush.msra.mxu0 %v8299
    %v8301 = vand.u32 %v8177, 4294901760
    %v8302 = vsub.f32 %v8177, %v8301
    %v8303 = vand.u32 %v8302, 4294901760
    %8304 = vmatmul.f32.gmra.mxu0 %v8303
    %v8305 = vpop.f32.mrf.mxu0
    %v8306 = vadd.f32 %v8276, %v8305
    %v8307 = vand.u32 %v8180, 4294901760
    %v8308 = vsub.f32 %v8180, %v8307
    %v8309 = vand.u32 %v8308, 4294901760
    %8310 = vmatmul.f32.gmra.mxu0 %v8309
    %v8311 = vpop.f32.mrf.mxu0
    %v8312 = vadd.f32 %v8281, %v8311
    %8313 = vdwg.mxu0
    %8314 = vmatpush.msra.mxu0 0.0
    %8315 = vmatpush.msra.mxu0 0.0
    %8316 = vmatpush.msra.mxu0 0.0
    %8317 = vmatpush.msra.mxu0 0.0
    %8318 = vmatpush.msra.mxu0 0.0
    %8319 = vmatpush.msra.mxu0 0.0
    %8320 = vmatpush.msra.mxu0 0.0
    %8321 = vmatpush.msra.mxu0 0.0
    %8322 = vmatpush.msra.mxu0 0.0
    %8323 = vmatpush.msra.mxu0 0.0
    %8324 = vmatpush.msra.mxu0 0.0
    %8325 = vmatpush.msra.mxu0 0.0
    %8326 = vmatpush.msra.mxu0 0.0
    %8327 = vmatpush.msra.mxu0 0.0
    %v8328 = vand.u32 %v82, 4294901760
    %v8329 = vsub.f32 %v82, %v8328
    %v8330 = vand.u32 %v8329, 4294901760
    %8331 = vmatpush.msra.mxu0 %v8330
    %v8332 = vand.u32 %v81, 4294901760
    %v8333 = vsub.f32 %v81, %v8332
    %v8334 = vand.u32 %v8333, 4294901760
    %8335 = vmatpush.msra.mxu0 %v8334
    %v8336 = vand.u32 %v8177, 4294901760
    %8337 = vmatmul.f32.gmra.mxu0 %v8336
    %v8338 = vpop.f32.mrf.mxu0
    %v8339 = vadd.f32 %v8306, %v8338
    %v8340 = vand.u32 %v8180, 4294901760
    %8341 = vmatmul.f32.gmra.mxu0 %v8340
    %v8342 = vpop.f32.mrf.mxu0
    %v8343 = vadd.f32 %v8312, %v8342
    %8344 = vdwg.mxu0
    %8345 = vmatpush.msra.mxu0 0.0
    %8346 = vmatpush.msra.mxu0 0.0
    %8347 = vmatpush.msra.mxu0 0.0
    %8348 = vmatpush.msra.mxu0 0.0
    %8349 = vmatpush.msra.mxu0 0.0
    %8350 = vmatpush.msra.mxu0 0.0
    %8351 = vmatpush.msra.mxu0 0.0
    %8352 = vmatpush.msra.mxu0 0.0
    %8353 = vmatpush.msra.mxu0 0.0
    %8354 = vmatpush.msra.mxu0 0.0
    %8355 = vmatpush.msra.mxu0 0.0
    %8356 = vmatpush.msra.mxu0 0.0
    %8357 = vmatpush.msra.mxu0 0.0
    %8358 = vmatpush.msra.mxu0 0.0
    %v8359 = vand.u32 %v82, 4294901760
    %8360 = vmatpush.msra.mxu0 %v8359
    %v8361 = vand.u32 %v81, 4294901760
    %8362 = vmatpush.msra.mxu0 %v8361
    %v8363 = vand.u32 %v8177, 4294901760
    %8364 = vmatmul.f32.gmra.mxu0 %v8363
    %v8365 = vpop.f32.mrf.mxu0
    %v8366 = vadd.f32 %v8339, %v8365
    %v8367 = vand.u32 %v8180, 4294901760
    %8368 = vmatmul.f32.gmra.mxu0 %v8367
    %v8369 = vpop.f32.mrf.mxu0
    %v8370 = vadd.f32 %v8343, %v8369
    %8371 = vdwg.mxu0
    %8372 = vmatpush.msra.mxu0 0.0
    %8373 = vmatpush.msra.mxu0 0.0
    %8374 = vmatpush.msra.mxu0 0.0
    %8375 = vmatpush.msra.mxu0 0.0
    %8376 = vmatpush.msra.mxu0 0.0
    %8377 = vmatpush.msra.mxu0 0.0
    %8378 = vmatpush.msra.mxu0 0.0
    %8379 = vmatpush.msra.mxu0 0.0
    %8380 = vmatpush.msra.mxu0 0.0
    %8381 = vmatpush.msra.mxu0 0.0
    %8382 = vmatpush.msra.mxu0 0.0
    %8383 = vmatpush.msra.mxu0 0.0
    %8384 = vmatpush.msra.mxu0 0.0
    %8385 = vmatpush.msra.mxu0 0.0
    %v8386 = vand.u32 %v8370, 4294901760
    %8387 = vmatpush.msra.mxu0 %v8386
    %v8388 = vand.u32 %v8366, 4294901760
    %8389 = vmatpush.msra.mxu0 %v8388
    %v8390 = vand.u32 %v287, 4294901760
    %v8391 = vsub.f32 %v287, %v8390
    %v8392 = vand.u32 %v8391, 4294901760
    %v8393 = vsub.f32 %v8391, %v8392
    %v8394 = vand.u32 %v8393, 4294901760
    %8395 = vmatmul.f32.gmra.mxu0 %v8394
    %v8396 = vpop.f32.mrf.mxu0
    %v8397 = vadd.f32 0.0, %v8396
    %v8398 = vand.u32 %v290, 4294901760
    %v8399 = vsub.f32 %v290, %v8398
    %v8400 = vand.u32 %v8399, 4294901760
    %v8401 = vsub.f32 %v8399, %v8400
    %v8402 = vand.u32 %v8401, 4294901760
    %8403 = vmatmul.f32.gmra.mxu0 %v8402
    %v8404 = vpop.f32.mrf.mxu0
    %v8405 = vadd.f32 0.0, %v8404
    %8406 = vdwg.mxu0
    %8407 = vmatpush.msra.mxu0 0.0
    %8408 = vmatpush.msra.mxu0 0.0
    %8409 = vmatpush.msra.mxu0 0.0
    %8410 = vmatpush.msra.mxu0 0.0
    %8411 = vmatpush.msra.mxu0 0.0
    %8412 = vmatpush.msra.mxu0 0.0
    %8413 = vmatpush.msra.mxu0 0.0
    %8414 = vmatpush.msra.mxu0 0.0
    %8415 = vmatpush.msra.mxu0 0.0
    %8416 = vmatpush.msra.mxu0 0.0
    %8417 = vmatpush.msra.mxu0 0.0
    %8418 = vmatpush.msra.mxu0 0.0
    %8419 = vmatpush.msra.mxu0 0.0
    %8420 = vmatpush.msra.mxu0 0.0
    %v8421 = vand.u32 %v8370, 4294901760
    %v8422 = vsub.f32 %v8370, %v8421
    %v8423 = vand.u32 %v8422, 4294901760
    %v8424 = vsub.f32 %v8422, %v8423
    %v8425 = vand.u32 %v8424, 4294901760
    %8426 = vmatpush.msra.mxu0 %v8425
    %v8427 = vand.u32 %v8366, 4294901760
    %v8428 = vsub.f32 %v8366, %v8427
    %v8429 = vand.u32 %v8428, 4294901760
    %v8430 = vsub.f32 %v8428, %v8429
    %v8431 = vand.u32 %v8430, 4294901760
    %8432 = vmatpush.msra.mxu0 %v8431
    %v8433 = vand.u32 %v287, 4294901760
    %8434 = vmatmul.f32.gmra.mxu0 %v8433
    %v8435 = vpop.f32.mrf.mxu0
    %v8436 = vadd.f32 %v8397, %v8435
    %v8437 = vand.u32 %v290, 4294901760
    %8438 = vmatmul.f32.gmra.mxu0 %v8437
    %v8439 = vpop.f32.mrf.mxu0
    %v8440 = vadd.f32 %v8405, %v8439
    %8441 = vdwg.mxu0
    %8442 = vmatpush.msra.mxu0 0.0
    %8443 = vmatpush.msra.mxu0 0.0
    %8444 = vmatpush.msra.mxu0 0.0
    %8445 = vmatpush.msra.mxu0 0.0
    %8446 = vmatpush.msra.mxu0 0.0
    %8447 = vmatpush.msra.mxu0 0.0
    %8448 = vmatpush.msra.mxu0 0.0
    %8449 = vmatpush.msra.mxu0 0.0
    %8450 = vmatpush.msra.mxu0 0.0
    %8451 = vmatpush.msra.mxu0 0.0
    %8452 = vmatpush.msra.mxu0 0.0
    %8453 = vmatpush.msra.mxu0 0.0
    %8454 = vmatpush.msra.mxu0 0.0
    %8455 = vmatpush.msra.mxu0 0.0
    %v8456 = vand.u32 %v8370, 4294901760
    %v8457 = vsub.f32 %v8370, %v8456
    %8458 = vmatpush.msra.mxu0 %v8457
    %v8459 = vand.u32 %v8366, 4294901760
    %v8460 = vsub.f32 %v8366, %v8459
    %8461 = vmatpush.msra.mxu0 %v8460
    %v8462 = vand.u32 %v287, 4294901760
    %v8463 = vsub.f32 %v287, %v8462
    %8464 = vmatmul.f32.gmra.mxu0 %v8463
    %v8465 = vpop.f32.mrf.mxu0
    %v8466 = vadd.f32 %v8436, %v8465
    %v8467 = vand.u32 %v290, 4294901760
    %v8468 = vsub.f32 %v290, %v8467
    %8469 = vmatmul.f32.gmra.mxu0 %v8468
    %v8470 = vpop.f32.mrf.mxu0
    %v8471 = vadd.f32 %v8440, %v8470
    %8472 = vdwg.mxu0
    %8473 = vmatpush.msra.mxu0 0.0
    %8474 = vmatpush.msra.mxu0 0.0
    %8475 = vmatpush.msra.mxu0 0.0
    %8476 = vmatpush.msra.mxu0 0.0
    %8477 = vmatpush.msra.mxu0 0.0
    %8478 = vmatpush.msra.mxu0 0.0
    %8479 = vmatpush.msra.mxu0 0.0
    %8480 = vmatpush.msra.mxu0 0.0
    %8481 = vmatpush.msra.mxu0 0.0
    %8482 = vmatpush.msra.mxu0 0.0
    %8483 = vmatpush.msra.mxu0 0.0
    %8484 = vmatpush.msra.mxu0 0.0
    %8485 = vmatpush.msra.mxu0 0.0
    %8486 = vmatpush.msra.mxu0 0.0
    %v8487 = vand.u32 %v8370, 4294901760
    %8488 = vmatpush.msra.mxu0 %v8487
    %v8489 = vand.u32 %v8366, 4294901760
    %8490 = vmatpush.msra.mxu0 %v8489
    %v8491 = vand.u32 %v287, 4294901760
    %v8492 = vsub.f32 %v287, %v8491
    %v8493 = vand.u32 %v8492, 4294901760
    %8494 = vmatmul.f32.gmra.mxu0 %v8493
    %v8495 = vpop.f32.mrf.mxu0
    %v8496 = vadd.f32 %v8466, %v8495
    %v8497 = vand.u32 %v290, 4294901760
    %v8498 = vsub.f32 %v290, %v8497
    %v8499 = vand.u32 %v8498, 4294901760
    %8500 = vmatmul.f32.gmra.mxu0 %v8499
    %v8501 = vpop.f32.mrf.mxu0
    %v8502 = vadd.f32 %v8471, %v8501
    %8503 = vdwg.mxu0
    %8504 = vmatpush.msra.mxu0 0.0
    %8505 = vmatpush.msra.mxu0 0.0
    %8506 = vmatpush.msra.mxu0 0.0
    %8507 = vmatpush.msra.mxu0 0.0
    %8508 = vmatpush.msra.mxu0 0.0
    %8509 = vmatpush.msra.mxu0 0.0
    %8510 = vmatpush.msra.mxu0 0.0
    %8511 = vmatpush.msra.mxu0 0.0
    %8512 = vmatpush.msra.mxu0 0.0
    %8513 = vmatpush.msra.mxu0 0.0
    %8514 = vmatpush.msra.mxu0 0.0
    %8515 = vmatpush.msra.mxu0 0.0
    %8516 = vmatpush.msra.mxu0 0.0
    %8517 = vmatpush.msra.mxu0 0.0
    %v8518 = vand.u32 %v8370, 4294901760
    %v8519 = vsub.f32 %v8370, %v8518
    %v8520 = vand.u32 %v8519, 4294901760
    %8521 = vmatpush.msra.mxu0 %v8520
    %v8522 = vand.u32 %v8366, 4294901760
    %v8523 = vsub.f32 %v8366, %v8522
    %v8524 = vand.u32 %v8523, 4294901760
    %8525 = vmatpush.msra.mxu0 %v8524
    %v8526 = vand.u32 %v287, 4294901760
    %8527 = vmatmul.f32.gmra.mxu0 %v8526
    %v8528 = vpop.f32.mrf.mxu0
    %v8529 = vadd.f32 %v8496, %v8528
    %v8530 = vand.u32 %v290, 4294901760
    %8531 = vmatmul.f32.gmra.mxu0 %v8530
    %v8532 = vpop.f32.mrf.mxu0
    %v8533 = vadd.f32 %v8502, %v8532
    %8534 = vdwg.mxu0
    %8535 = vmatpush.msra.mxu0 0.0
    %8536 = vmatpush.msra.mxu0 0.0
    %8537 = vmatpush.msra.mxu0 0.0
    %8538 = vmatpush.msra.mxu0 0.0
    %8539 = vmatpush.msra.mxu0 0.0
    %8540 = vmatpush.msra.mxu0 0.0
    %8541 = vmatpush.msra.mxu0 0.0
    %8542 = vmatpush.msra.mxu0 0.0
    %8543 = vmatpush.msra.mxu0 0.0
    %8544 = vmatpush.msra.mxu0 0.0
    %8545 = vmatpush.msra.mxu0 0.0
    %8546 = vmatpush.msra.mxu0 0.0
    %8547 = vmatpush.msra.mxu0 0.0
    %8548 = vmatpush.msra.mxu0 0.0
    %v8549 = vand.u32 %v8370, 4294901760
    %8550 = vmatpush.msra.mxu0 %v8549
    %v8551 = vand.u32 %v8366, 4294901760
    %8552 = vmatpush.msra.mxu0 %v8551
    %v8553 = vand.u32 %v287, 4294901760
    %8554 = vmatmul.f32.gmra.mxu0 %v8553
    %v8555 = vpop.f32.mrf.mxu0
    %v8556 = vadd.f32 %v8529, %v8555
    %v8557 = vand.u32 %v290, 4294901760
    %8558 = vmatmul.f32.gmra.mxu0 %v8557
    %v8559 = vpop.f32.mrf.mxu0
    %v8560 = vadd.f32 %v8533, %v8559
    %8561 = vdwg.mxu0
    %v8563 = vsel %vm89, %v8174, 0
    %v8566 = vsel %vm89, %v8175, 0
    %8568 = vmatpush.msra.mxu0 0.0
    %8569 = vmatpush.msra.mxu0 0.0
    %8570 = vmatpush.msra.mxu0 0.0
    %8571 = vmatpush.msra.mxu0 0.0
    %8572 = vmatpush.msra.mxu0 0.0
    %8573 = vmatpush.msra.mxu0 0.0
    %8574 = vmatpush.msra.mxu0 0.0
    %8575 = vmatpush.msra.mxu0 0.0
    %8576 = vmatpush.msra.mxu0 0.0
    %8577 = vmatpush.msra.mxu0 0.0
    %8578 = vmatpush.msra.mxu0 0.0
    %8579 = vmatpush.msra.mxu0 0.0
    %8580 = vmatpush.msra.mxu0 0.0
    %8581 = vmatpush.msra.mxu0 0.0
    %v8582 = vand.u32 %v82, 4294901760
    %8583 = vmatpush.msra.mxu0 %v8582
    %v8584 = vand.u32 %v81, 4294901760
    %8585 = vmatpush.msra.mxu0 %v8584
    %v8586 = vand.u32 %v8563, 4294901760
    %v8587 = vsub.f32 %v8563, %v8586
    %v8588 = vand.u32 %v8587, 4294901760
    %v8589 = vsub.f32 %v8587, %v8588
    %v8590 = vand.u32 %v8589, 4294901760
    %8591 = vmatmul.f32.gmra.mxu0 %v8590
    %v8592 = vpop.f32.mrf.mxu0
    %v8593 = vadd.f32 0.0, %v8592
    %v8594 = vand.u32 %v8566, 4294901760
    %v8595 = vsub.f32 %v8566, %v8594
    %v8596 = vand.u32 %v8595, 4294901760
    %v8597 = vsub.f32 %v8595, %v8596
    %v8598 = vand.u32 %v8597, 4294901760
    %8599 = vmatmul.f32.gmra.mxu0 %v8598
    %v8600 = vpop.f32.mrf.mxu0
    %v8601 = vadd.f32 0.0, %v8600
    %8602 = vdwg.mxu0
    %8603 = vmatpush.msra.mxu0 0.0
    %8604 = vmatpush.msra.mxu0 0.0
    %8605 = vmatpush.msra.mxu0 0.0
    %8606 = vmatpush.msra.mxu0 0.0
    %8607 = vmatpush.msra.mxu0 0.0
    %8608 = vmatpush.msra.mxu0 0.0
    %8609 = vmatpush.msra.mxu0 0.0
    %8610 = vmatpush.msra.mxu0 0.0
    %8611 = vmatpush.msra.mxu0 0.0
    %8612 = vmatpush.msra.mxu0 0.0
    %8613 = vmatpush.msra.mxu0 0.0
    %8614 = vmatpush.msra.mxu0 0.0
    %8615 = vmatpush.msra.mxu0 0.0
    %8616 = vmatpush.msra.mxu0 0.0
    %v8617 = vand.u32 %v82, 4294901760
    %v8618 = vsub.f32 %v82, %v8617
    %v8619 = vand.u32 %v8618, 4294901760
    %v8620 = vsub.f32 %v8618, %v8619
    %v8621 = vand.u32 %v8620, 4294901760
    %8622 = vmatpush.msra.mxu0 %v8621
    %v8623 = vand.u32 %v81, 4294901760
    %v8624 = vsub.f32 %v81, %v8623
    %v8625 = vand.u32 %v8624, 4294901760
    %v8626 = vsub.f32 %v8624, %v8625
    %v8627 = vand.u32 %v8626, 4294901760
    %8628 = vmatpush.msra.mxu0 %v8627
    %v8629 = vand.u32 %v8563, 4294901760
    %8630 = vmatmul.f32.gmra.mxu0 %v8629
    %v8631 = vpop.f32.mrf.mxu0
    %v8632 = vadd.f32 %v8593, %v8631
    %v8633 = vand.u32 %v8566, 4294901760
    %8634 = vmatmul.f32.gmra.mxu0 %v8633
    %v8635 = vpop.f32.mrf.mxu0
    %v8636 = vadd.f32 %v8601, %v8635
    %8637 = vdwg.mxu0
    %8638 = vmatpush.msra.mxu0 0.0
    %8639 = vmatpush.msra.mxu0 0.0
    %8640 = vmatpush.msra.mxu0 0.0
    %8641 = vmatpush.msra.mxu0 0.0
    %8642 = vmatpush.msra.mxu0 0.0
    %8643 = vmatpush.msra.mxu0 0.0
    %8644 = vmatpush.msra.mxu0 0.0
    %8645 = vmatpush.msra.mxu0 0.0
    %8646 = vmatpush.msra.mxu0 0.0
    %8647 = vmatpush.msra.mxu0 0.0
    %8648 = vmatpush.msra.mxu0 0.0
    %8649 = vmatpush.msra.mxu0 0.0
    %8650 = vmatpush.msra.mxu0 0.0
    %8651 = vmatpush.msra.mxu0 0.0
    %v8652 = vand.u32 %v82, 4294901760
    %v8653 = vsub.f32 %v82, %v8652
    %8654 = vmatpush.msra.mxu0 %v8653
    %v8655 = vand.u32 %v81, 4294901760
    %v8656 = vsub.f32 %v81, %v8655
    %8657 = vmatpush.msra.mxu0 %v8656
    %v8658 = vand.u32 %v8563, 4294901760
    %v8659 = vsub.f32 %v8563, %v8658
    %8660 = vmatmul.f32.gmra.mxu0 %v8659
    %v8661 = vpop.f32.mrf.mxu0
    %v8662 = vadd.f32 %v8632, %v8661
    %v8663 = vand.u32 %v8566, 4294901760
    %v8664 = vsub.f32 %v8566, %v8663
    %8665 = vmatmul.f32.gmra.mxu0 %v8664
    %v8666 = vpop.f32.mrf.mxu0
    %v8667 = vadd.f32 %v8636, %v8666
    %8668 = vdwg.mxu0
    %8669 = vmatpush.msra.mxu0 0.0
    %8670 = vmatpush.msra.mxu0 0.0
    %8671 = vmatpush.msra.mxu0 0.0
    %8672 = vmatpush.msra.mxu0 0.0
    %8673 = vmatpush.msra.mxu0 0.0
    %8674 = vmatpush.msra.mxu0 0.0
    %8675 = vmatpush.msra.mxu0 0.0
    %8676 = vmatpush.msra.mxu0 0.0
    %8677 = vmatpush.msra.mxu0 0.0
    %8678 = vmatpush.msra.mxu0 0.0
    %8679 = vmatpush.msra.mxu0 0.0
    %8680 = vmatpush.msra.mxu0 0.0
    %8681 = vmatpush.msra.mxu0 0.0
    %8682 = vmatpush.msra.mxu0 0.0
    %v8683 = vand.u32 %v82, 4294901760
    %8684 = vmatpush.msra.mxu0 %v8683
    %v8685 = vand.u32 %v81, 4294901760
    %8686 = vmatpush.msra.mxu0 %v8685
    %v8687 = vand.u32 %v8563, 4294901760
    %v8688 = vsub.f32 %v8563, %v8687
    %v8689 = vand.u32 %v8688, 4294901760
    %8690 = vmatmul.f32.gmra.mxu0 %v8689
    %v8691 = vpop.f32.mrf.mxu0
    %v8692 = vadd.f32 %v8662, %v8691
    %v8693 = vand.u32 %v8566, 4294901760
    %v8694 = vsub.f32 %v8566, %v8693
    %v8695 = vand.u32 %v8694, 4294901760
    %8696 = vmatmul.f32.gmra.mxu0 %v8695
    %v8697 = vpop.f32.mrf.mxu0
    %v8698 = vadd.f32 %v8667, %v8697
    %8699 = vdwg.mxu0
    %8700 = vmatpush.msra.mxu0 0.0
    %8701 = vmatpush.msra.mxu0 0.0
    %8702 = vmatpush.msra.mxu0 0.0
    %8703 = vmatpush.msra.mxu0 0.0
    %8704 = vmatpush.msra.mxu0 0.0
    %8705 = vmatpush.msra.mxu0 0.0
    %8706 = vmatpush.msra.mxu0 0.0
    %8707 = vmatpush.msra.mxu0 0.0
    %8708 = vmatpush.msra.mxu0 0.0
    %8709 = vmatpush.msra.mxu0 0.0
    %8710 = vmatpush.msra.mxu0 0.0
    %8711 = vmatpush.msra.mxu0 0.0
    %8712 = vmatpush.msra.mxu0 0.0
    %8713 = vmatpush.msra.mxu0 0.0
    %v8714 = vand.u32 %v82, 4294901760
    %v8715 = vsub.f32 %v82, %v8714
    %v8716 = vand.u32 %v8715, 4294901760
    %8717 = vmatpush.msra.mxu0 %v8716
    %v8718 = vand.u32 %v81, 4294901760
    %v8719 = vsub.f32 %v81, %v8718
    %v8720 = vand.u32 %v8719, 4294901760
    %8721 = vmatpush.msra.mxu0 %v8720
    %v8722 = vand.u32 %v8563, 4294901760
    %8723 = vmatmul.f32.gmra.mxu0 %v8722
    %v8724 = vpop.f32.mrf.mxu0
    %v8725 = vadd.f32 %v8692, %v8724
    %v8726 = vand.u32 %v8566, 4294901760
    %8727 = vmatmul.f32.gmra.mxu0 %v8726
    %v8728 = vpop.f32.mrf.mxu0
    %v8729 = vadd.f32 %v8698, %v8728
    %8730 = vdwg.mxu0
    %8731 = vmatpush.msra.mxu0 0.0
    %8732 = vmatpush.msra.mxu0 0.0
    %8733 = vmatpush.msra.mxu0 0.0
    %8734 = vmatpush.msra.mxu0 0.0
    %8735 = vmatpush.msra.mxu0 0.0
    %8736 = vmatpush.msra.mxu0 0.0
    %8737 = vmatpush.msra.mxu0 0.0
    %8738 = vmatpush.msra.mxu0 0.0
    %8739 = vmatpush.msra.mxu0 0.0
    %8740 = vmatpush.msra.mxu0 0.0
    %8741 = vmatpush.msra.mxu0 0.0
    %8742 = vmatpush.msra.mxu0 0.0
    %8743 = vmatpush.msra.mxu0 0.0
    %8744 = vmatpush.msra.mxu0 0.0
    %v8745 = vand.u32 %v82, 4294901760
    %8746 = vmatpush.msra.mxu0 %v8745
    %v8747 = vand.u32 %v81, 4294901760
    %8748 = vmatpush.msra.mxu0 %v8747
    %v8749 = vand.u32 %v8563, 4294901760
    %8750 = vmatmul.f32.gmra.mxu0 %v8749
    %v8751 = vpop.f32.mrf.mxu0
    %v8752 = vadd.f32 %v8725, %v8751
    %v8753 = vand.u32 %v8566, 4294901760
    %8754 = vmatmul.f32.gmra.mxu0 %v8753
    %v8755 = vpop.f32.mrf.mxu0
    %v8756 = vadd.f32 %v8729, %v8755
    %8757 = vdwg.mxu0
    %8758 = vmatpush.msra.mxu0 0.0
    %8759 = vmatpush.msra.mxu0 0.0
    %8760 = vmatpush.msra.mxu0 0.0
    %8761 = vmatpush.msra.mxu0 0.0
    %8762 = vmatpush.msra.mxu0 0.0
    %8763 = vmatpush.msra.mxu0 0.0
    %8764 = vmatpush.msra.mxu0 0.0
    %8765 = vmatpush.msra.mxu0 0.0
    %8766 = vmatpush.msra.mxu0 0.0
    %8767 = vmatpush.msra.mxu0 0.0
    %8768 = vmatpush.msra.mxu0 0.0
    %8769 = vmatpush.msra.mxu0 0.0
    %8770 = vmatpush.msra.mxu0 0.0
    %8771 = vmatpush.msra.mxu0 0.0
    %v8772 = vand.u32 %v8756, 4294901760
    %8773 = vmatpush.msra.mxu0 %v8772
    %v8774 = vand.u32 %v8752, 4294901760
    %8775 = vmatpush.msra.mxu0 %v8774
    %v8776 = vand.u32 %v287, 4294901760
    %v8777 = vsub.f32 %v287, %v8776
    %v8778 = vand.u32 %v8777, 4294901760
    %v8779 = vsub.f32 %v8777, %v8778
    %v8780 = vand.u32 %v8779, 4294901760
    %8781 = vmatmul.f32.gmra.mxu0 %v8780
    %v8782 = vpop.f32.mrf.mxu0
    %v8783 = vadd.f32 0.0, %v8782
    %v8784 = vand.u32 %v290, 4294901760
    %v8785 = vsub.f32 %v290, %v8784
    %v8786 = vand.u32 %v8785, 4294901760
    %v8787 = vsub.f32 %v8785, %v8786
    %v8788 = vand.u32 %v8787, 4294901760
    %8789 = vmatmul.f32.gmra.mxu0 %v8788
    %v8790 = vpop.f32.mrf.mxu0
    %v8791 = vadd.f32 0.0, %v8790
    %8792 = vdwg.mxu0
    %8793 = vmatpush.msra.mxu0 0.0
    %8794 = vmatpush.msra.mxu0 0.0
    %8795 = vmatpush.msra.mxu0 0.0
    %8796 = vmatpush.msra.mxu0 0.0
    %8797 = vmatpush.msra.mxu0 0.0
    %8798 = vmatpush.msra.mxu0 0.0
    %8799 = vmatpush.msra.mxu0 0.0
    %8800 = vmatpush.msra.mxu0 0.0
    %8801 = vmatpush.msra.mxu0 0.0
    %8802 = vmatpush.msra.mxu0 0.0
    %8803 = vmatpush.msra.mxu0 0.0
    %8804 = vmatpush.msra.mxu0 0.0
    %8805 = vmatpush.msra.mxu0 0.0
    %8806 = vmatpush.msra.mxu0 0.0
    %v8807 = vand.u32 %v8756, 4294901760
    %v8808 = vsub.f32 %v8756, %v8807
    %v8809 = vand.u32 %v8808, 4294901760
    %v8810 = vsub.f32 %v8808, %v8809
    %v8811 = vand.u32 %v8810, 4294901760
    %8812 = vmatpush.msra.mxu0 %v8811
    %v8813 = vand.u32 %v8752, 4294901760
    %v8814 = vsub.f32 %v8752, %v8813
    %v8815 = vand.u32 %v8814, 4294901760
    %v8816 = vsub.f32 %v8814, %v8815
    %v8817 = vand.u32 %v8816, 4294901760
    %8818 = vmatpush.msra.mxu0 %v8817
    %v8819 = vand.u32 %v287, 4294901760
    %8820 = vmatmul.f32.gmra.mxu0 %v8819
    %v8821 = vpop.f32.mrf.mxu0
    %v8822 = vadd.f32 %v8783, %v8821
    %v8823 = vand.u32 %v290, 4294901760
    %8824 = vmatmul.f32.gmra.mxu0 %v8823
    %v8825 = vpop.f32.mrf.mxu0
    %v8826 = vadd.f32 %v8791, %v8825
    %8827 = vdwg.mxu0
    %8828 = vmatpush.msra.mxu0 0.0
    %8829 = vmatpush.msra.mxu0 0.0
    %8830 = vmatpush.msra.mxu0 0.0
    %8831 = vmatpush.msra.mxu0 0.0
    %8832 = vmatpush.msra.mxu0 0.0
    %8833 = vmatpush.msra.mxu0 0.0
    %8834 = vmatpush.msra.mxu0 0.0
    %8835 = vmatpush.msra.mxu0 0.0
    %8836 = vmatpush.msra.mxu0 0.0
    %8837 = vmatpush.msra.mxu0 0.0
    %8838 = vmatpush.msra.mxu0 0.0
    %8839 = vmatpush.msra.mxu0 0.0
    %8840 = vmatpush.msra.mxu0 0.0
    %8841 = vmatpush.msra.mxu0 0.0
    %v8842 = vand.u32 %v8756, 4294901760
    %v8843 = vsub.f32 %v8756, %v8842
    %8844 = vmatpush.msra.mxu0 %v8843
    %v8845 = vand.u32 %v8752, 4294901760
    %v8846 = vsub.f32 %v8752, %v8845
    %8847 = vmatpush.msra.mxu0 %v8846
    %v8848 = vand.u32 %v287, 4294901760
    %v8849 = vsub.f32 %v287, %v8848
    %8850 = vmatmul.f32.gmra.mxu0 %v8849
    %v8851 = vpop.f32.mrf.mxu0
    %v8852 = vadd.f32 %v8822, %v8851
    %v8853 = vand.u32 %v290, 4294901760
    %v8854 = vsub.f32 %v290, %v8853
    %8855 = vmatmul.f32.gmra.mxu0 %v8854
    %v8856 = vpop.f32.mrf.mxu0
    %v8857 = vadd.f32 %v8826, %v8856
    %8858 = vdwg.mxu0
    %8859 = vmatpush.msra.mxu0 0.0
    %8860 = vmatpush.msra.mxu0 0.0
    %8861 = vmatpush.msra.mxu0 0.0
    %8862 = vmatpush.msra.mxu0 0.0
    %8863 = vmatpush.msra.mxu0 0.0
    %8864 = vmatpush.msra.mxu0 0.0
    %8865 = vmatpush.msra.mxu0 0.0
    %8866 = vmatpush.msra.mxu0 0.0
    %8867 = vmatpush.msra.mxu0 0.0
    %8868 = vmatpush.msra.mxu0 0.0
    %8869 = vmatpush.msra.mxu0 0.0
    %8870 = vmatpush.msra.mxu0 0.0
    %8871 = vmatpush.msra.mxu0 0.0
    %8872 = vmatpush.msra.mxu0 0.0
    %v8873 = vand.u32 %v8756, 4294901760
    %8874 = vmatpush.msra.mxu0 %v8873
    %v8875 = vand.u32 %v8752, 4294901760
    %8876 = vmatpush.msra.mxu0 %v8875
    %v8877 = vand.u32 %v287, 4294901760
    %v8878 = vsub.f32 %v287, %v8877
    %v8879 = vand.u32 %v8878, 4294901760
    %8880 = vmatmul.f32.gmra.mxu0 %v8879
    %v8881 = vpop.f32.mrf.mxu0
    %v8882 = vadd.f32 %v8852, %v8881
    %v8883 = vand.u32 %v290, 4294901760
    %v8884 = vsub.f32 %v290, %v8883
    %v8885 = vand.u32 %v8884, 4294901760
    %8886 = vmatmul.f32.gmra.mxu0 %v8885
    %v8887 = vpop.f32.mrf.mxu0
    %v8888 = vadd.f32 %v8857, %v8887
    %8889 = vdwg.mxu0
    %8890 = vmatpush.msra.mxu0 0.0
    %8891 = vmatpush.msra.mxu0 0.0
    %8892 = vmatpush.msra.mxu0 0.0
    %8893 = vmatpush.msra.mxu0 0.0
    %8894 = vmatpush.msra.mxu0 0.0
    %8895 = vmatpush.msra.mxu0 0.0
    %8896 = vmatpush.msra.mxu0 0.0
    %8897 = vmatpush.msra.mxu0 0.0
    %8898 = vmatpush.msra.mxu0 0.0
    %8899 = vmatpush.msra.mxu0 0.0
    %8900 = vmatpush.msra.mxu0 0.0
    %8901 = vmatpush.msra.mxu0 0.0
    %8902 = vmatpush.msra.mxu0 0.0
    %8903 = vmatpush.msra.mxu0 0.0
    %v8904 = vand.u32 %v8756, 4294901760
    %v8905 = vsub.f32 %v8756, %v8904
    %v8906 = vand.u32 %v8905, 4294901760
    %8907 = vmatpush.msra.mxu0 %v8906
    %v8908 = vand.u32 %v8752, 4294901760
    %v8909 = vsub.f32 %v8752, %v8908
    %v8910 = vand.u32 %v8909, 4294901760
    %8911 = vmatpush.msra.mxu0 %v8910
    %v8912 = vand.u32 %v287, 4294901760
    %8913 = vmatmul.f32.gmra.mxu0 %v8912
    %v8914 = vpop.f32.mrf.mxu0
    %v8915 = vadd.f32 %v8882, %v8914
    %v8916 = vand.u32 %v290, 4294901760
    %8917 = vmatmul.f32.gmra.mxu0 %v8916
    %v8918 = vpop.f32.mrf.mxu0
    %v8919 = vadd.f32 %v8888, %v8918
    %8920 = vdwg.mxu0
    %8921 = vmatpush.msra.mxu0 0.0
    %8922 = vmatpush.msra.mxu0 0.0
    %8923 = vmatpush.msra.mxu0 0.0
    %8924 = vmatpush.msra.mxu0 0.0
    %8925 = vmatpush.msra.mxu0 0.0
    %8926 = vmatpush.msra.mxu0 0.0
    %8927 = vmatpush.msra.mxu0 0.0
    %8928 = vmatpush.msra.mxu0 0.0
    %8929 = vmatpush.msra.mxu0 0.0
    %8930 = vmatpush.msra.mxu0 0.0
    %8931 = vmatpush.msra.mxu0 0.0
    %8932 = vmatpush.msra.mxu0 0.0
    %8933 = vmatpush.msra.mxu0 0.0
    %8934 = vmatpush.msra.mxu0 0.0
    %v8935 = vand.u32 %v8756, 4294901760
    %8936 = vmatpush.msra.mxu0 %v8935
    %v8937 = vand.u32 %v8752, 4294901760
    %8938 = vmatpush.msra.mxu0 %v8937
    %v8939 = vand.u32 %v287, 4294901760
    %8940 = vmatmul.f32.gmra.mxu0 %v8939
    %v8941 = vpop.f32.mrf.mxu0
    %v8942 = vadd.f32 %v8915, %v8941
    %v8943 = vand.u32 %v290, 4294901760
    %8944 = vmatmul.f32.gmra.mxu0 %v8943
    %v8945 = vpop.f32.mrf.mxu0
    %v8946 = vadd.f32 %v8919, %v8945
    %8947 = vdwg.mxu0
    %v8948 = vmul.f32 %v8556, %v8556
    %v8949 = vmul.f32 %v8560, %v8560
    %v8950 = vmul.f32 %v8942, %v8942
    %v8951 = vmul.f32 %v8946, %v8946
    %v8952 = vmul.f32 %v8556, %v8942
    %v8953 = vmul.f32 %v8560, %v8946
    %v8954 = vmul.f32 %v8171, %v8171
    %v8955 = vmul.f32 %v8172, %v8172
    %v8957 = vsel %vm89, %v8954, 0
    %v8960 = vsel %vm89, %v8955, 0
    %8962 = vmatpush.msra.mxu0 0.0
    %8963 = vmatpush.msra.mxu0 0.0
    %8964 = vmatpush.msra.mxu0 0.0
    %8965 = vmatpush.msra.mxu0 0.0
    %8966 = vmatpush.msra.mxu0 0.0
    %8967 = vmatpush.msra.mxu0 0.0
    %8968 = vmatpush.msra.mxu0 0.0
    %8969 = vmatpush.msra.mxu0 0.0
    %8970 = vmatpush.msra.mxu0 0.0
    %8971 = vmatpush.msra.mxu0 0.0
    %8972 = vmatpush.msra.mxu0 0.0
    %8973 = vmatpush.msra.mxu0 0.0
    %8974 = vmatpush.msra.mxu0 0.0
    %8975 = vmatpush.msra.mxu0 0.0
    %v8976 = vand.u32 %v82, 4294901760
    %8977 = vmatpush.msra.mxu0 %v8976
    %v8978 = vand.u32 %v81, 4294901760
    %8979 = vmatpush.msra.mxu0 %v8978
    %v8980 = vand.u32 %v8957, 4294901760
    %v8981 = vsub.f32 %v8957, %v8980
    %v8982 = vand.u32 %v8981, 4294901760
    %v8983 = vsub.f32 %v8981, %v8982
    %v8984 = vand.u32 %v8983, 4294901760
    %8985 = vmatmul.f32.gmra.mxu0 %v8984
    %v8986 = vpop.f32.mrf.mxu0
    %v8987 = vadd.f32 0.0, %v8986
    %v8988 = vand.u32 %v8960, 4294901760
    %v8989 = vsub.f32 %v8960, %v8988
    %v8990 = vand.u32 %v8989, 4294901760
    %v8991 = vsub.f32 %v8989, %v8990
    %v8992 = vand.u32 %v8991, 4294901760
    %8993 = vmatmul.f32.gmra.mxu0 %v8992
    %v8994 = vpop.f32.mrf.mxu0
    %v8995 = vadd.f32 0.0, %v8994
    %8996 = vdwg.mxu0
    %8997 = vmatpush.msra.mxu0 0.0
    %8998 = vmatpush.msra.mxu0 0.0
    %8999 = vmatpush.msra.mxu0 0.0
    %9000 = vmatpush.msra.mxu0 0.0
    %9001 = vmatpush.msra.mxu0 0.0
    %9002 = vmatpush.msra.mxu0 0.0
    %9003 = vmatpush.msra.mxu0 0.0
    %9004 = vmatpush.msra.mxu0 0.0
    %9005 = vmatpush.msra.mxu0 0.0
    %9006 = vmatpush.msra.mxu0 0.0
    %9007 = vmatpush.msra.mxu0 0.0
    %9008 = vmatpush.msra.mxu0 0.0
    %9009 = vmatpush.msra.mxu0 0.0
    %9010 = vmatpush.msra.mxu0 0.0
    %v9011 = vand.u32 %v82, 4294901760
    %v9012 = vsub.f32 %v82, %v9011
    %v9013 = vand.u32 %v9012, 4294901760
    %v9014 = vsub.f32 %v9012, %v9013
    %v9015 = vand.u32 %v9014, 4294901760
    %9016 = vmatpush.msra.mxu0 %v9015
    %v9017 = vand.u32 %v81, 4294901760
    %v9018 = vsub.f32 %v81, %v9017
    %v9019 = vand.u32 %v9018, 4294901760
    %v9020 = vsub.f32 %v9018, %v9019
    %v9021 = vand.u32 %v9020, 4294901760
    %9022 = vmatpush.msra.mxu0 %v9021
    %v9023 = vand.u32 %v8957, 4294901760
    %9024 = vmatmul.f32.gmra.mxu0 %v9023
    %v9025 = vpop.f32.mrf.mxu0
    %v9026 = vadd.f32 %v8987, %v9025
    %v9027 = vand.u32 %v8960, 4294901760
    %9028 = vmatmul.f32.gmra.mxu0 %v9027
    %v9029 = vpop.f32.mrf.mxu0
    %v9030 = vadd.f32 %v8995, %v9029
    %9031 = vdwg.mxu0
    %9032 = vmatpush.msra.mxu0 0.0
    %9033 = vmatpush.msra.mxu0 0.0
    %9034 = vmatpush.msra.mxu0 0.0
    %9035 = vmatpush.msra.mxu0 0.0
    %9036 = vmatpush.msra.mxu0 0.0
    %9037 = vmatpush.msra.mxu0 0.0
    %9038 = vmatpush.msra.mxu0 0.0
    %9039 = vmatpush.msra.mxu0 0.0
    %9040 = vmatpush.msra.mxu0 0.0
    %9041 = vmatpush.msra.mxu0 0.0
    %9042 = vmatpush.msra.mxu0 0.0
    %9043 = vmatpush.msra.mxu0 0.0
    %9044 = vmatpush.msra.mxu0 0.0
    %9045 = vmatpush.msra.mxu0 0.0
    %v9046 = vand.u32 %v82, 4294901760
    %v9047 = vsub.f32 %v82, %v9046
    %9048 = vmatpush.msra.mxu0 %v9047
    %v9049 = vand.u32 %v81, 4294901760
    %v9050 = vsub.f32 %v81, %v9049
    %9051 = vmatpush.msra.mxu0 %v9050
    %v9052 = vand.u32 %v8957, 4294901760
    %v9053 = vsub.f32 %v8957, %v9052
    %9054 = vmatmul.f32.gmra.mxu0 %v9053
    %v9055 = vpop.f32.mrf.mxu0
    %v9056 = vadd.f32 %v9026, %v9055
    %v9057 = vand.u32 %v8960, 4294901760
    %v9058 = vsub.f32 %v8960, %v9057
    %9059 = vmatmul.f32.gmra.mxu0 %v9058
    %v9060 = vpop.f32.mrf.mxu0
    %v9061 = vadd.f32 %v9030, %v9060
    %9062 = vdwg.mxu0
    %9063 = vmatpush.msra.mxu0 0.0
    %9064 = vmatpush.msra.mxu0 0.0
    %9065 = vmatpush.msra.mxu0 0.0
    %9066 = vmatpush.msra.mxu0 0.0
    %9067 = vmatpush.msra.mxu0 0.0
    %9068 = vmatpush.msra.mxu0 0.0
    %9069 = vmatpush.msra.mxu0 0.0
    %9070 = vmatpush.msra.mxu0 0.0
    %9071 = vmatpush.msra.mxu0 0.0
    %9072 = vmatpush.msra.mxu0 0.0
    %9073 = vmatpush.msra.mxu0 0.0
    %9074 = vmatpush.msra.mxu0 0.0
    %9075 = vmatpush.msra.mxu0 0.0
    %9076 = vmatpush.msra.mxu0 0.0
    %v9077 = vand.u32 %v82, 4294901760
    %9078 = vmatpush.msra.mxu0 %v9077
    %v9079 = vand.u32 %v81, 4294901760
    %9080 = vmatpush.msra.mxu0 %v9079
    %v9081 = vand.u32 %v8957, 4294901760
    %v9082 = vsub.f32 %v8957, %v9081
    %v9083 = vand.u32 %v9082, 4294901760
    %9084 = vmatmul.f32.gmra.mxu0 %v9083
    %v9085 = vpop.f32.mrf.mxu0
    %v9086 = vadd.f32 %v9056, %v9085
    %v9087 = vand.u32 %v8960, 4294901760
    %v9088 = vsub.f32 %v8960, %v9087
    %v9089 = vand.u32 %v9088, 4294901760
    %9090 = vmatmul.f32.gmra.mxu0 %v9089
    %v9091 = vpop.f32.mrf.mxu0
    %v9092 = vadd.f32 %v9061, %v9091
    %9093 = vdwg.mxu0
    %9094 = vmatpush.msra.mxu0 0.0
    %9095 = vmatpush.msra.mxu0 0.0
    %9096 = vmatpush.msra.mxu0 0.0
    %9097 = vmatpush.msra.mxu0 0.0
    %9098 = vmatpush.msra.mxu0 0.0
    %9099 = vmatpush.msra.mxu0 0.0
    %9100 = vmatpush.msra.mxu0 0.0
    %9101 = vmatpush.msra.mxu0 0.0
    %9102 = vmatpush.msra.mxu0 0.0
    %9103 = vmatpush.msra.mxu0 0.0
    %9104 = vmatpush.msra.mxu0 0.0
    %9105 = vmatpush.msra.mxu0 0.0
    %9106 = vmatpush.msra.mxu0 0.0
    %9107 = vmatpush.msra.mxu0 0.0
    %v9108 = vand.u32 %v82, 4294901760
    %v9109 = vsub.f32 %v82, %v9108
    %v9110 = vand.u32 %v9109, 4294901760
    %9111 = vmatpush.msra.mxu0 %v9110
    %v9112 = vand.u32 %v81, 4294901760
    %v9113 = vsub.f32 %v81, %v9112
    %v9114 = vand.u32 %v9113, 4294901760
    %9115 = vmatpush.msra.mxu0 %v9114
    %v9116 = vand.u32 %v8957, 4294901760
    %9117 = vmatmul.f32.gmra.mxu0 %v9116
    %v9118 = vpop.f32.mrf.mxu0
    %v9119 = vadd.f32 %v9086, %v9118
    %v9120 = vand.u32 %v8960, 4294901760
    %9121 = vmatmul.f32.gmra.mxu0 %v9120
    %v9122 = vpop.f32.mrf.mxu0
    %v9123 = vadd.f32 %v9092, %v9122
    %9124 = vdwg.mxu0
    %9125 = vmatpush.msra.mxu0 0.0
    %9126 = vmatpush.msra.mxu0 0.0
    %9127 = vmatpush.msra.mxu0 0.0
    %9128 = vmatpush.msra.mxu0 0.0
    %9129 = vmatpush.msra.mxu0 0.0
    %9130 = vmatpush.msra.mxu0 0.0
    %9131 = vmatpush.msra.mxu0 0.0
    %9132 = vmatpush.msra.mxu0 0.0
    %9133 = vmatpush.msra.mxu0 0.0
    %9134 = vmatpush.msra.mxu0 0.0
    %9135 = vmatpush.msra.mxu0 0.0
    %9136 = vmatpush.msra.mxu0 0.0
    %9137 = vmatpush.msra.mxu0 0.0
    %9138 = vmatpush.msra.mxu0 0.0
    %v9139 = vand.u32 %v82, 4294901760
    %9140 = vmatpush.msra.mxu0 %v9139
    %v9141 = vand.u32 %v81, 4294901760
    %9142 = vmatpush.msra.mxu0 %v9141
    %v9143 = vand.u32 %v8957, 4294901760
    %9144 = vmatmul.f32.gmra.mxu0 %v9143
    %v9145 = vpop.f32.mrf.mxu0
    %v9146 = vadd.f32 %v9119, %v9145
    %v9147 = vand.u32 %v8960, 4294901760
    %9148 = vmatmul.f32.gmra.mxu0 %v9147
    %v9149 = vpop.f32.mrf.mxu0
    %v9150 = vadd.f32 %v9123, %v9149
    %9151 = vdwg.mxu0
    %9152 = vmatpush.msra.mxu0 0.0
    %9153 = vmatpush.msra.mxu0 0.0
    %9154 = vmatpush.msra.mxu0 0.0
    %9155 = vmatpush.msra.mxu0 0.0
    %9156 = vmatpush.msra.mxu0 0.0
    %9157 = vmatpush.msra.mxu0 0.0
    %9158 = vmatpush.msra.mxu0 0.0
    %9159 = vmatpush.msra.mxu0 0.0
    %9160 = vmatpush.msra.mxu0 0.0
    %9161 = vmatpush.msra.mxu0 0.0
    %9162 = vmatpush.msra.mxu0 0.0
    %9163 = vmatpush.msra.mxu0 0.0
    %9164 = vmatpush.msra.mxu0 0.0
    %9165 = vmatpush.msra.mxu0 0.0
    %v9166 = vand.u32 %v9150, 4294901760
    %9167 = vmatpush.msra.mxu0 %v9166
    %v9168 = vand.u32 %v9146, 4294901760
    %9169 = vmatpush.msra.mxu0 %v9168
    %v9170 = vand.u32 %v287, 4294901760
    %v9171 = vsub.f32 %v287, %v9170
    %v9172 = vand.u32 %v9171, 4294901760
    %v9173 = vsub.f32 %v9171, %v9172
    %v9174 = vand.u32 %v9173, 4294901760
    %9175 = vmatmul.f32.gmra.mxu0 %v9174
    %v9176 = vpop.f32.mrf.mxu0
    %v9177 = vadd.f32 0.0, %v9176
    %v9178 = vand.u32 %v290, 4294901760
    %v9179 = vsub.f32 %v290, %v9178
    %v9180 = vand.u32 %v9179, 4294901760
    %v9181 = vsub.f32 %v9179, %v9180
    %v9182 = vand.u32 %v9181, 4294901760
    %9183 = vmatmul.f32.gmra.mxu0 %v9182
    %v9184 = vpop.f32.mrf.mxu0
    %v9185 = vadd.f32 0.0, %v9184
    %9186 = vdwg.mxu0
    %9187 = vmatpush.msra.mxu0 0.0
    %9188 = vmatpush.msra.mxu0 0.0
    %9189 = vmatpush.msra.mxu0 0.0
    %9190 = vmatpush.msra.mxu0 0.0
    %9191 = vmatpush.msra.mxu0 0.0
    %9192 = vmatpush.msra.mxu0 0.0
    %9193 = vmatpush.msra.mxu0 0.0
    %9194 = vmatpush.msra.mxu0 0.0
    %9195 = vmatpush.msra.mxu0 0.0
    %9196 = vmatpush.msra.mxu0 0.0
    %9197 = vmatpush.msra.mxu0 0.0
    %9198 = vmatpush.msra.mxu0 0.0
    %9199 = vmatpush.msra.mxu0 0.0
    %9200 = vmatpush.msra.mxu0 0.0
    %v9201 = vand.u32 %v9150, 4294901760
    %v9202 = vsub.f32 %v9150, %v9201
    %v9203 = vand.u32 %v9202, 4294901760
    %v9204 = vsub.f32 %v9202, %v9203
    %v9205 = vand.u32 %v9204, 4294901760
    %9206 = vmatpush.msra.mxu0 %v9205
    %v9207 = vand.u32 %v9146, 4294901760
    %v9208 = vsub.f32 %v9146, %v9207
    %v9209 = vand.u32 %v9208, 4294901760
    %v9210 = vsub.f32 %v9208, %v9209
    %v9211 = vand.u32 %v9210, 4294901760
    %9212 = vmatpush.msra.mxu0 %v9211
    %v9213 = vand.u32 %v287, 4294901760
    %9214 = vmatmul.f32.gmra.mxu0 %v9213
    %v9215 = vpop.f32.mrf.mxu0
    %v9216 = vadd.f32 %v9177, %v9215
    %v9217 = vand.u32 %v290, 4294901760
    %9218 = vmatmul.f32.gmra.mxu0 %v9217
    %v9219 = vpop.f32.mrf.mxu0
    %v9220 = vadd.f32 %v9185, %v9219
    %9221 = vdwg.mxu0
    %9222 = vmatpush.msra.mxu0 0.0
    %9223 = vmatpush.msra.mxu0 0.0
    %9224 = vmatpush.msra.mxu0 0.0
    %9225 = vmatpush.msra.mxu0 0.0
    %9226 = vmatpush.msra.mxu0 0.0
    %9227 = vmatpush.msra.mxu0 0.0
    %9228 = vmatpush.msra.mxu0 0.0
    %9229 = vmatpush.msra.mxu0 0.0
    %9230 = vmatpush.msra.mxu0 0.0
    %9231 = vmatpush.msra.mxu0 0.0
    %9232 = vmatpush.msra.mxu0 0.0
    %9233 = vmatpush.msra.mxu0 0.0
    %9234 = vmatpush.msra.mxu0 0.0
    %9235 = vmatpush.msra.mxu0 0.0
    %v9236 = vand.u32 %v9150, 4294901760
    %v9237 = vsub.f32 %v9150, %v9236
    %9238 = vmatpush.msra.mxu0 %v9237
    %v9239 = vand.u32 %v9146, 4294901760
    %v9240 = vsub.f32 %v9146, %v9239
    %9241 = vmatpush.msra.mxu0 %v9240
    %v9242 = vand.u32 %v287, 4294901760
    %v9243 = vsub.f32 %v287, %v9242
    %9244 = vmatmul.f32.gmra.mxu0 %v9243
    %v9245 = vpop.f32.mrf.mxu0
    %v9246 = vadd.f32 %v9216, %v9245
    %v9247 = vand.u32 %v290, 4294901760
    %v9248 = vsub.f32 %v290, %v9247
    %9249 = vmatmul.f32.gmra.mxu0 %v9248
    %v9250 = vpop.f32.mrf.mxu0
    %v9251 = vadd.f32 %v9220, %v9250
    %9252 = vdwg.mxu0
    %9253 = vmatpush.msra.mxu0 0.0
    %9254 = vmatpush.msra.mxu0 0.0
    %9255 = vmatpush.msra.mxu0 0.0
    %9256 = vmatpush.msra.mxu0 0.0
    %9257 = vmatpush.msra.mxu0 0.0
    %9258 = vmatpush.msra.mxu0 0.0
    %9259 = vmatpush.msra.mxu0 0.0
    %9260 = vmatpush.msra.mxu0 0.0
    %9261 = vmatpush.msra.mxu0 0.0
    %9262 = vmatpush.msra.mxu0 0.0
    %9263 = vmatpush.msra.mxu0 0.0
    %9264 = vmatpush.msra.mxu0 0.0
    %9265 = vmatpush.msra.mxu0 0.0
    %9266 = vmatpush.msra.mxu0 0.0
    %v9267 = vand.u32 %v9150, 4294901760
    %9268 = vmatpush.msra.mxu0 %v9267
    %v9269 = vand.u32 %v9146, 4294901760
    %9270 = vmatpush.msra.mxu0 %v9269
    %v9271 = vand.u32 %v287, 4294901760
    %v9272 = vsub.f32 %v287, %v9271
    %v9273 = vand.u32 %v9272, 4294901760
    %9274 = vmatmul.f32.gmra.mxu0 %v9273
    %v9275 = vpop.f32.mrf.mxu0
    %v9276 = vadd.f32 %v9246, %v9275
    %v9277 = vand.u32 %v290, 4294901760
    %v9278 = vsub.f32 %v290, %v9277
    %v9279 = vand.u32 %v9278, 4294901760
    %9280 = vmatmul.f32.gmra.mxu0 %v9279
    %v9281 = vpop.f32.mrf.mxu0
    %v9282 = vadd.f32 %v9251, %v9281
    %9283 = vdwg.mxu0
    %9284 = vmatpush.msra.mxu0 0.0
    %9285 = vmatpush.msra.mxu0 0.0
    %9286 = vmatpush.msra.mxu0 0.0
    %9287 = vmatpush.msra.mxu0 0.0
    %9288 = vmatpush.msra.mxu0 0.0
    %9289 = vmatpush.msra.mxu0 0.0
    %9290 = vmatpush.msra.mxu0 0.0
    %9291 = vmatpush.msra.mxu0 0.0
    %9292 = vmatpush.msra.mxu0 0.0
    %9293 = vmatpush.msra.mxu0 0.0
    %9294 = vmatpush.msra.mxu0 0.0
    %9295 = vmatpush.msra.mxu0 0.0
    %9296 = vmatpush.msra.mxu0 0.0
    %9297 = vmatpush.msra.mxu0 0.0
    %v9298 = vand.u32 %v9150, 4294901760
    %v9299 = vsub.f32 %v9150, %v9298
    %v9300 = vand.u32 %v9299, 4294901760
    %9301 = vmatpush.msra.mxu0 %v9300
    %v9302 = vand.u32 %v9146, 4294901760
    %v9303 = vsub.f32 %v9146, %v9302
    %v9304 = vand.u32 %v9303, 4294901760
    %9305 = vmatpush.msra.mxu0 %v9304
    %v9306 = vand.u32 %v287, 4294901760
    %9307 = vmatmul.f32.gmra.mxu0 %v9306
    %v9308 = vpop.f32.mrf.mxu0
    %v9309 = vadd.f32 %v9276, %v9308
    %v9310 = vand.u32 %v290, 4294901760
    %9311 = vmatmul.f32.gmra.mxu0 %v9310
    %v9312 = vpop.f32.mrf.mxu0
    %v9313 = vadd.f32 %v9282, %v9312
    %9314 = vdwg.mxu0
    %9315 = vmatpush.msra.mxu0 0.0
    %9316 = vmatpush.msra.mxu0 0.0
    %9317 = vmatpush.msra.mxu0 0.0
    %9318 = vmatpush.msra.mxu0 0.0
    %9319 = vmatpush.msra.mxu0 0.0
    %9320 = vmatpush.msra.mxu0 0.0
    %9321 = vmatpush.msra.mxu0 0.0
    %9322 = vmatpush.msra.mxu0 0.0
    %9323 = vmatpush.msra.mxu0 0.0
    %9324 = vmatpush.msra.mxu0 0.0
    %9325 = vmatpush.msra.mxu0 0.0
    %9326 = vmatpush.msra.mxu0 0.0
    %9327 = vmatpush.msra.mxu0 0.0
    %9328 = vmatpush.msra.mxu0 0.0
    %v9329 = vand.u32 %v9150, 4294901760
    %9330 = vmatpush.msra.mxu0 %v9329
    %v9331 = vand.u32 %v9146, 4294901760
    %9332 = vmatpush.msra.mxu0 %v9331
    %v9333 = vand.u32 %v287, 4294901760
    %9334 = vmatmul.f32.gmra.mxu0 %v9333
    %v9335 = vpop.f32.mrf.mxu0
    %v9336 = vadd.f32 %v9309, %v9335
    %v9337 = vand.u32 %v290, 4294901760
    %9338 = vmatmul.f32.gmra.mxu0 %v9337
    %v9339 = vpop.f32.mrf.mxu0
    %v9340 = vadd.f32 %v9313, %v9339
    %9341 = vdwg.mxu0
    %v9342 = vsub.f32 %v9336, %v8948
    %v9343 = vsub.f32 %v9340, %v8949
    %v9344 = vmul.f32 %v8174, %v8174
    %v9345 = vmul.f32 %v8175, %v8175
    %v9347 = vsel %vm89, %v9344, 0
    %v9350 = vsel %vm89, %v9345, 0
    %9352 = vmatpush.msra.mxu0 0.0
    %9353 = vmatpush.msra.mxu0 0.0
    %9354 = vmatpush.msra.mxu0 0.0
    %9355 = vmatpush.msra.mxu0 0.0
    %9356 = vmatpush.msra.mxu0 0.0
    %9357 = vmatpush.msra.mxu0 0.0
    %9358 = vmatpush.msra.mxu0 0.0
    %9359 = vmatpush.msra.mxu0 0.0
    %9360 = vmatpush.msra.mxu0 0.0
    %9361 = vmatpush.msra.mxu0 0.0
    %9362 = vmatpush.msra.mxu0 0.0
    %9363 = vmatpush.msra.mxu0 0.0
    %9364 = vmatpush.msra.mxu0 0.0
    %9365 = vmatpush.msra.mxu0 0.0
    %v9366 = vand.u32 %v82, 4294901760
    %9367 = vmatpush.msra.mxu0 %v9366
    %v9368 = vand.u32 %v81, 4294901760
    %9369 = vmatpush.msra.mxu0 %v9368
    %v9370 = vand.u32 %v9347, 4294901760
    %v9371 = vsub.f32 %v9347, %v9370
    %v9372 = vand.u32 %v9371, 4294901760
    %v9373 = vsub.f32 %v9371, %v9372
    %v9374 = vand.u32 %v9373, 4294901760
    %9375 = vmatmul.f32.gmra.mxu0 %v9374
    %v9376 = vpop.f32.mrf.mxu0
    %v9377 = vadd.f32 0.0, %v9376
    %v9378 = vand.u32 %v9350, 4294901760
    %v9379 = vsub.f32 %v9350, %v9378
    %v9380 = vand.u32 %v9379, 4294901760
    %v9381 = vsub.f32 %v9379, %v9380
    %v9382 = vand.u32 %v9381, 4294901760
    %9383 = vmatmul.f32.gmra.mxu0 %v9382
    %v9384 = vpop.f32.mrf.mxu0
    %v9385 = vadd.f32 0.0, %v9384
    %9386 = vdwg.mxu0
    %9387 = vmatpush.msra.mxu0 0.0
    %9388 = vmatpush.msra.mxu0 0.0
    %9389 = vmatpush.msra.mxu0 0.0
    %9390 = vmatpush.msra.mxu0 0.0
    %9391 = vmatpush.msra.mxu0 0.0
    %9392 = vmatpush.msra.mxu0 0.0
    %9393 = vmatpush.msra.mxu0 0.0
    %9394 = vmatpush.msra.mxu0 0.0
    %9395 = vmatpush.msra.mxu0 0.0
    %9396 = vmatpush.msra.mxu0 0.0
    %9397 = vmatpush.msra.mxu0 0.0
    %9398 = vmatpush.msra.mxu0 0.0
    %9399 = vmatpush.msra.mxu0 0.0
    %9400 = vmatpush.msra.mxu0 0.0
    %v9401 = vand.u32 %v82, 4294901760
    %v9402 = vsub.f32 %v82, %v9401
    %v9403 = vand.u32 %v9402, 4294901760
    %v9404 = vsub.f32 %v9402, %v9403
    %v9405 = vand.u32 %v9404, 4294901760
    %9406 = vmatpush.msra.mxu0 %v9405
    %v9407 = vand.u32 %v81, 4294901760
    %v9408 = vsub.f32 %v81, %v9407
    %v9409 = vand.u32 %v9408, 4294901760
    %v9410 = vsub.f32 %v9408, %v9409
    %v9411 = vand.u32 %v9410, 4294901760
    %9412 = vmatpush.msra.mxu0 %v9411
    %v9413 = vand.u32 %v9347, 4294901760
    %9414 = vmatmul.f32.gmra.mxu0 %v9413
    %v9415 = vpop.f32.mrf.mxu0
    %v9416 = vadd.f32 %v9377, %v9415
    %v9417 = vand.u32 %v9350, 4294901760
    %9418 = vmatmul.f32.gmra.mxu0 %v9417
    %v9419 = vpop.f32.mrf.mxu0
    %v9420 = vadd.f32 %v9385, %v9419
    %9421 = vdwg.mxu0
    %9422 = vmatpush.msra.mxu0 0.0
    %9423 = vmatpush.msra.mxu0 0.0
    %9424 = vmatpush.msra.mxu0 0.0
    %9425 = vmatpush.msra.mxu0 0.0
    %9426 = vmatpush.msra.mxu0 0.0
    %9427 = vmatpush.msra.mxu0 0.0
    %9428 = vmatpush.msra.mxu0 0.0
    %9429 = vmatpush.msra.mxu0 0.0
    %9430 = vmatpush.msra.mxu0 0.0
    %9431 = vmatpush.msra.mxu0 0.0
    %9432 = vmatpush.msra.mxu0 0.0
    %9433 = vmatpush.msra.mxu0 0.0
    %9434 = vmatpush.msra.mxu0 0.0
    %9435 = vmatpush.msra.mxu0 0.0
    %v9436 = vand.u32 %v82, 4294901760
    %v9437 = vsub.f32 %v82, %v9436
    %9438 = vmatpush.msra.mxu0 %v9437
    %v9439 = vand.u32 %v81, 4294901760
    %v9440 = vsub.f32 %v81, %v9439
    %9441 = vmatpush.msra.mxu0 %v9440
    %v9442 = vand.u32 %v9347, 4294901760
    %v9443 = vsub.f32 %v9347, %v9442
    %9444 = vmatmul.f32.gmra.mxu0 %v9443
    %v9445 = vpop.f32.mrf.mxu0
    %v9446 = vadd.f32 %v9416, %v9445
    %v9447 = vand.u32 %v9350, 4294901760
    %v9448 = vsub.f32 %v9350, %v9447
    %9449 = vmatmul.f32.gmra.mxu0 %v9448
    %v9450 = vpop.f32.mrf.mxu0
    %v9451 = vadd.f32 %v9420, %v9450
    %9452 = vdwg.mxu0
    %9453 = vmatpush.msra.mxu0 0.0
    %9454 = vmatpush.msra.mxu0 0.0
    %9455 = vmatpush.msra.mxu0 0.0
    %9456 = vmatpush.msra.mxu0 0.0
    %9457 = vmatpush.msra.mxu0 0.0
    %9458 = vmatpush.msra.mxu0 0.0
    %9459 = vmatpush.msra.mxu0 0.0
    %9460 = vmatpush.msra.mxu0 0.0
    %9461 = vmatpush.msra.mxu0 0.0
    %9462 = vmatpush.msra.mxu0 0.0
    %9463 = vmatpush.msra.mxu0 0.0
    %9464 = vmatpush.msra.mxu0 0.0
    %9465 = vmatpush.msra.mxu0 0.0
    %9466 = vmatpush.msra.mxu0 0.0
    %v9467 = vand.u32 %v82, 4294901760
    %9468 = vmatpush.msra.mxu0 %v9467
    %v9469 = vand.u32 %v81, 4294901760
    %9470 = vmatpush.msra.mxu0 %v9469
    %v9471 = vand.u32 %v9347, 4294901760
    %v9472 = vsub.f32 %v9347, %v9471
    %v9473 = vand.u32 %v9472, 4294901760
    %9474 = vmatmul.f32.gmra.mxu0 %v9473
    %v9475 = vpop.f32.mrf.mxu0
    %v9476 = vadd.f32 %v9446, %v9475
    %v9477 = vand.u32 %v9350, 4294901760
    %v9478 = vsub.f32 %v9350, %v9477
    %v9479 = vand.u32 %v9478, 4294901760
    %9480 = vmatmul.f32.gmra.mxu0 %v9479
    %v9481 = vpop.f32.mrf.mxu0
    %v9482 = vadd.f32 %v9451, %v9481
    %9483 = vdwg.mxu0
    %9484 = vmatpush.msra.mxu0 0.0
    %9485 = vmatpush.msra.mxu0 0.0
    %9486 = vmatpush.msra.mxu0 0.0
    %9487 = vmatpush.msra.mxu0 0.0
    %9488 = vmatpush.msra.mxu0 0.0
    %9489 = vmatpush.msra.mxu0 0.0
    %9490 = vmatpush.msra.mxu0 0.0
    %9491 = vmatpush.msra.mxu0 0.0
    %9492 = vmatpush.msra.mxu0 0.0
    %9493 = vmatpush.msra.mxu0 0.0
    %9494 = vmatpush.msra.mxu0 0.0
    %9495 = vmatpush.msra.mxu0 0.0
    %9496 = vmatpush.msra.mxu0 0.0
    %9497 = vmatpush.msra.mxu0 0.0
    %v9498 = vand.u32 %v82, 4294901760
    %v9499 = vsub.f32 %v82, %v9498
    %v9500 = vand.u32 %v9499, 4294901760
    %9501 = vmatpush.msra.mxu0 %v9500
    %v9502 = vand.u32 %v81, 4294901760
    %v9503 = vsub.f32 %v81, %v9502
    %v9504 = vand.u32 %v9503, 4294901760
    %9505 = vmatpush.msra.mxu0 %v9504
    %v9506 = vand.u32 %v9347, 4294901760
    %9507 = vmatmul.f32.gmra.mxu0 %v9506
    %v9508 = vpop.f32.mrf.mxu0
    %v9509 = vadd.f32 %v9476, %v9508
    %v9510 = vand.u32 %v9350, 4294901760
    %9511 = vmatmul.f32.gmra.mxu0 %v9510
    %v9512 = vpop.f32.mrf.mxu0
    %v9513 = vadd.f32 %v9482, %v9512
    %9514 = vdwg.mxu0
    %9515 = vmatpush.msra.mxu0 0.0
    %9516 = vmatpush.msra.mxu0 0.0
    %9517 = vmatpush.msra.mxu0 0.0
    %9518 = vmatpush.msra.mxu0 0.0
    %9519 = vmatpush.msra.mxu0 0.0
    %9520 = vmatpush.msra.mxu0 0.0
    %9521 = vmatpush.msra.mxu0 0.0
    %9522 = vmatpush.msra.mxu0 0.0
    %9523 = vmatpush.msra.mxu0 0.0
    %9524 = vmatpush.msra.mxu0 0.0
    %9525 = vmatpush.msra.mxu0 0.0
    %9526 = vmatpush.msra.mxu0 0.0
    %9527 = vmatpush.msra.mxu0 0.0
    %9528 = vmatpush.msra.mxu0 0.0
    %v9529 = vand.u32 %v82, 4294901760
    %9530 = vmatpush.msra.mxu0 %v9529
    %v9531 = vand.u32 %v81, 4294901760
    %9532 = vmatpush.msra.mxu0 %v9531
    %v9533 = vand.u32 %v9347, 4294901760
    %9534 = vmatmul.f32.gmra.mxu0 %v9533
    %v9535 = vpop.f32.mrf.mxu0
    %v9536 = vadd.f32 %v9509, %v9535
    %v9537 = vand.u32 %v9350, 4294901760
    %9538 = vmatmul.f32.gmra.mxu0 %v9537
    %v9539 = vpop.f32.mrf.mxu0
    %v9540 = vadd.f32 %v9513, %v9539
    %9541 = vdwg.mxu0
    %9542 = vmatpush.msra.mxu0 0.0
    %9543 = vmatpush.msra.mxu0 0.0
    %9544 = vmatpush.msra.mxu0 0.0
    %9545 = vmatpush.msra.mxu0 0.0
    %9546 = vmatpush.msra.mxu0 0.0
    %9547 = vmatpush.msra.mxu0 0.0
    %9548 = vmatpush.msra.mxu0 0.0
    %9549 = vmatpush.msra.mxu0 0.0
    %9550 = vmatpush.msra.mxu0 0.0
    %9551 = vmatpush.msra.mxu0 0.0
    %9552 = vmatpush.msra.mxu0 0.0
    %9553 = vmatpush.msra.mxu0 0.0
    %9554 = vmatpush.msra.mxu0 0.0
    %9555 = vmatpush.msra.mxu0 0.0
    %v9556 = vand.u32 %v9540, 4294901760
    %9557 = vmatpush.msra.mxu0 %v9556
    %v9558 = vand.u32 %v9536, 4294901760
    %9559 = vmatpush.msra.mxu0 %v9558
    %v9560 = vand.u32 %v287, 4294901760
    %v9561 = vsub.f32 %v287, %v9560
    %v9562 = vand.u32 %v9561, 4294901760
    %v9563 = vsub.f32 %v9561, %v9562
    %v9564 = vand.u32 %v9563, 4294901760
    %9565 = vmatmul.f32.gmra.mxu0 %v9564
    %v9566 = vpop.f32.mrf.mxu0
    %v9567 = vadd.f32 0.0, %v9566
    %v9568 = vand.u32 %v290, 4294901760
    %v9569 = vsub.f32 %v290, %v9568
    %v9570 = vand.u32 %v9569, 4294901760
    %v9571 = vsub.f32 %v9569, %v9570
    %v9572 = vand.u32 %v9571, 4294901760
    %9573 = vmatmul.f32.gmra.mxu0 %v9572
    %v9574 = vpop.f32.mrf.mxu0
    %v9575 = vadd.f32 0.0, %v9574
    %9576 = vdwg.mxu0
    %9577 = vmatpush.msra.mxu0 0.0
    %9578 = vmatpush.msra.mxu0 0.0
    %9579 = vmatpush.msra.mxu0 0.0
    %9580 = vmatpush.msra.mxu0 0.0
    %9581 = vmatpush.msra.mxu0 0.0
    %9582 = vmatpush.msra.mxu0 0.0
    %9583 = vmatpush.msra.mxu0 0.0
    %9584 = vmatpush.msra.mxu0 0.0
    %9585 = vmatpush.msra.mxu0 0.0
    %9586 = vmatpush.msra.mxu0 0.0
    %9587 = vmatpush.msra.mxu0 0.0
    %9588 = vmatpush.msra.mxu0 0.0
    %9589 = vmatpush.msra.mxu0 0.0
    %9590 = vmatpush.msra.mxu0 0.0
    %v9591 = vand.u32 %v9540, 4294901760
    %v9592 = vsub.f32 %v9540, %v9591
    %v9593 = vand.u32 %v9592, 4294901760
    %v9594 = vsub.f32 %v9592, %v9593
    %v9595 = vand.u32 %v9594, 4294901760
    %9596 = vmatpush.msra.mxu0 %v9595
    %v9597 = vand.u32 %v9536, 4294901760
    %v9598 = vsub.f32 %v9536, %v9597
    %v9599 = vand.u32 %v9598, 4294901760
    %v9600 = vsub.f32 %v9598, %v9599
    %v9601 = vand.u32 %v9600, 4294901760
    %9602 = vmatpush.msra.mxu0 %v9601
    %v9603 = vand.u32 %v287, 4294901760
    %9604 = vmatmul.f32.gmra.mxu0 %v9603
    %v9605 = vpop.f32.mrf.mxu0
    %v9606 = vadd.f32 %v9567, %v9605
    %v9607 = vand.u32 %v290, 4294901760
    %9608 = vmatmul.f32.gmra.mxu0 %v9607
    %v9609 = vpop.f32.mrf.mxu0
    %v9610 = vadd.f32 %v9575, %v9609
    %9611 = vdwg.mxu0
    %9612 = vmatpush.msra.mxu0 0.0
    %9613 = vmatpush.msra.mxu0 0.0
    %9614 = vmatpush.msra.mxu0 0.0
    %9615 = vmatpush.msra.mxu0 0.0
    %9616 = vmatpush.msra.mxu0 0.0
    %9617 = vmatpush.msra.mxu0 0.0
    %9618 = vmatpush.msra.mxu0 0.0
    %9619 = vmatpush.msra.mxu0 0.0
    %9620 = vmatpush.msra.mxu0 0.0
    %9621 = vmatpush.msra.mxu0 0.0
    %9622 = vmatpush.msra.mxu0 0.0
    %9623 = vmatpush.msra.mxu0 0.0
    %9624 = vmatpush.msra.mxu0 0.0
    %9625 = vmatpush.msra.mxu0 0.0
    %v9626 = vand.u32 %v9540, 4294901760
    %v9627 = vsub.f32 %v9540, %v9626
    %9628 = vmatpush.msra.mxu0 %v9627
    %v9629 = vand.u32 %v9536, 4294901760
    %v9630 = vsub.f32 %v9536, %v9629
    %9631 = vmatpush.msra.mxu0 %v9630
    %v9632 = vand.u32 %v287, 4294901760
    %v9633 = vsub.f32 %v287, %v9632
    %9634 = vmatmul.f32.gmra.mxu0 %v9633
    %v9635 = vpop.f32.mrf.mxu0
    %v9636 = vadd.f32 %v9606, %v9635
    %v9637 = vand.u32 %v290, 4294901760
    %v9638 = vsub.f32 %v290, %v9637
    %9639 = vmatmul.f32.gmra.mxu0 %v9638
    %v9640 = vpop.f32.mrf.mxu0
    %v9641 = vadd.f32 %v9610, %v9640
    %9642 = vdwg.mxu0
    %9643 = vmatpush.msra.mxu0 0.0
    %9644 = vmatpush.msra.mxu0 0.0
    %9645 = vmatpush.msra.mxu0 0.0
    %9646 = vmatpush.msra.mxu0 0.0
    %9647 = vmatpush.msra.mxu0 0.0
    %9648 = vmatpush.msra.mxu0 0.0
    %9649 = vmatpush.msra.mxu0 0.0
    %9650 = vmatpush.msra.mxu0 0.0
    %9651 = vmatpush.msra.mxu0 0.0
    %9652 = vmatpush.msra.mxu0 0.0
    %9653 = vmatpush.msra.mxu0 0.0
    %9654 = vmatpush.msra.mxu0 0.0
    %9655 = vmatpush.msra.mxu0 0.0
    %9656 = vmatpush.msra.mxu0 0.0
    %v9657 = vand.u32 %v9540, 4294901760
    %9658 = vmatpush.msra.mxu0 %v9657
    %v9659 = vand.u32 %v9536, 4294901760
    %9660 = vmatpush.msra.mxu0 %v9659
    %v9661 = vand.u32 %v287, 4294901760
    %v9662 = vsub.f32 %v287, %v9661
    %v9663 = vand.u32 %v9662, 4294901760
    %9664 = vmatmul.f32.gmra.mxu0 %v9663
    %v9665 = vpop.f32.mrf.mxu0
    %v9666 = vadd.f32 %v9636, %v9665
    %v9667 = vand.u32 %v290, 4294901760
    %v9668 = vsub.f32 %v290, %v9667
    %v9669 = vand.u32 %v9668, 4294901760
    %9670 = vmatmul.f32.gmra.mxu0 %v9669
    %v9671 = vpop.f32.mrf.mxu0
    %v9672 = vadd.f32 %v9641, %v9671
    %9673 = vdwg.mxu0
    %9674 = vmatpush.msra.mxu0 0.0
    %9675 = vmatpush.msra.mxu0 0.0
    %9676 = vmatpush.msra.mxu0 0.0
    %9677 = vmatpush.msra.mxu0 0.0
    %9678 = vmatpush.msra.mxu0 0.0
    %9679 = vmatpush.msra.mxu0 0.0
    %9680 = vmatpush.msra.mxu0 0.0
    %9681 = vmatpush.msra.mxu0 0.0
    %9682 = vmatpush.msra.mxu0 0.0
    %9683 = vmatpush.msra.mxu0 0.0
    %9684 = vmatpush.msra.mxu0 0.0
    %9685 = vmatpush.msra.mxu0 0.0
    %9686 = vmatpush.msra.mxu0 0.0
    %9687 = vmatpush.msra.mxu0 0.0
    %v9688 = vand.u32 %v9540, 4294901760
    %v9689 = vsub.f32 %v9540, %v9688
    %v9690 = vand.u32 %v9689, 4294901760
    %9691 = vmatpush.msra.mxu0 %v9690
    %v9692 = vand.u32 %v9536, 4294901760
    %v9693 = vsub.f32 %v9536, %v9692
    %v9694 = vand.u32 %v9693, 4294901760
    %9695 = vmatpush.msra.mxu0 %v9694
    %v9696 = vand.u32 %v287, 4294901760
    %9697 = vmatmul.f32.gmra.mxu0 %v9696
    %v9698 = vpop.f32.mrf.mxu0
    %v9699 = vadd.f32 %v9666, %v9698
    %v9700 = vand.u32 %v290, 4294901760
    %9701 = vmatmul.f32.gmra.mxu0 %v9700
    %v9702 = vpop.f32.mrf.mxu0
    %v9703 = vadd.f32 %v9672, %v9702
    %9704 = vdwg.mxu0
    %9705 = vmatpush.msra.mxu0 0.0
    %9706 = vmatpush.msra.mxu0 0.0
    %9707 = vmatpush.msra.mxu0 0.0
    %9708 = vmatpush.msra.mxu0 0.0
    %9709 = vmatpush.msra.mxu0 0.0
    %9710 = vmatpush.msra.mxu0 0.0
    %9711 = vmatpush.msra.mxu0 0.0
    %9712 = vmatpush.msra.mxu0 0.0
    %9713 = vmatpush.msra.mxu0 0.0
    %9714 = vmatpush.msra.mxu0 0.0
    %9715 = vmatpush.msra.mxu0 0.0
    %9716 = vmatpush.msra.mxu0 0.0
    %9717 = vmatpush.msra.mxu0 0.0
    %9718 = vmatpush.msra.mxu0 0.0
    %v9719 = vand.u32 %v9540, 4294901760
    %9720 = vmatpush.msra.mxu0 %v9719
    %v9721 = vand.u32 %v9536, 4294901760
    %9722 = vmatpush.msra.mxu0 %v9721
    %v9723 = vand.u32 %v287, 4294901760
    %9724 = vmatmul.f32.gmra.mxu0 %v9723
    %v9725 = vpop.f32.mrf.mxu0
    %v9726 = vadd.f32 %v9699, %v9725
    %v9727 = vand.u32 %v290, 4294901760
    %9728 = vmatmul.f32.gmra.mxu0 %v9727
    %v9729 = vpop.f32.mrf.mxu0
    %v9730 = vadd.f32 %v9703, %v9729
    %9731 = vdwg.mxu0
    %v9732 = vsub.f32 %v9726, %v8950
    %v9733 = vsub.f32 %v9730, %v8951
    %v9734 = vmul.f32 %v8171, %v8174
    %v9735 = vmul.f32 %v8172, %v8175
    %v9737 = vsel %vm89, %v9734, 0
    %v9740 = vsel %vm89, %v9735, 0
    %9742 = vmatpush.msra.mxu0 0.0
    %9743 = vmatpush.msra.mxu0 0.0
    %9744 = vmatpush.msra.mxu0 0.0
    %9745 = vmatpush.msra.mxu0 0.0
    %9746 = vmatpush.msra.mxu0 0.0
    %9747 = vmatpush.msra.mxu0 0.0
    %9748 = vmatpush.msra.mxu0 0.0
    %9749 = vmatpush.msra.mxu0 0.0
    %9750 = vmatpush.msra.mxu0 0.0
    %9751 = vmatpush.msra.mxu0 0.0
    %9752 = vmatpush.msra.mxu0 0.0
    %9753 = vmatpush.msra.mxu0 0.0
    %9754 = vmatpush.msra.mxu0 0.0
    %9755 = vmatpush.msra.mxu0 0.0
    %v9756 = vand.u32 %v82, 4294901760
    %9757 = vmatpush.msra.mxu0 %v9756
    %v9758 = vand.u32 %v81, 4294901760
    %9759 = vmatpush.msra.mxu0 %v9758
    %v9760 = vand.u32 %v9737, 4294901760
    %v9761 = vsub.f32 %v9737, %v9760
    %v9762 = vand.u32 %v9761, 4294901760
    %v9763 = vsub.f32 %v9761, %v9762
    %v9764 = vand.u32 %v9763, 4294901760
    %9765 = vmatmul.f32.gmra.mxu0 %v9764
    %v9766 = vpop.f32.mrf.mxu0
    %v9767 = vadd.f32 0.0, %v9766
    %v9768 = vand.u32 %v9740, 4294901760
    %v9769 = vsub.f32 %v9740, %v9768
    %v9770 = vand.u32 %v9769, 4294901760
    %v9771 = vsub.f32 %v9769, %v9770
    %v9772 = vand.u32 %v9771, 4294901760
    %9773 = vmatmul.f32.gmra.mxu0 %v9772
    %v9774 = vpop.f32.mrf.mxu0
    %v9775 = vadd.f32 0.0, %v9774
    %9776 = vdwg.mxu0
    %9777 = vmatpush.msra.mxu0 0.0
    %9778 = vmatpush.msra.mxu0 0.0
    %9779 = vmatpush.msra.mxu0 0.0
    %9780 = vmatpush.msra.mxu0 0.0
    %9781 = vmatpush.msra.mxu0 0.0
    %9782 = vmatpush.msra.mxu0 0.0
    %9783 = vmatpush.msra.mxu0 0.0
    %9784 = vmatpush.msra.mxu0 0.0
    %9785 = vmatpush.msra.mxu0 0.0
    %9786 = vmatpush.msra.mxu0 0.0
    %9787 = vmatpush.msra.mxu0 0.0
    %9788 = vmatpush.msra.mxu0 0.0
    %9789 = vmatpush.msra.mxu0 0.0
    %9790 = vmatpush.msra.mxu0 0.0
    %v9791 = vand.u32 %v82, 4294901760
    %v9792 = vsub.f32 %v82, %v9791
    %v9793 = vand.u32 %v9792, 4294901760
    %v9794 = vsub.f32 %v9792, %v9793
    %v9795 = vand.u32 %v9794, 4294901760
    %9796 = vmatpush.msra.mxu0 %v9795
    %v9797 = vand.u32 %v81, 4294901760
    %v9798 = vsub.f32 %v81, %v9797
    %v9799 = vand.u32 %v9798, 4294901760
    %v9800 = vsub.f32 %v9798, %v9799
    %v9801 = vand.u32 %v9800, 4294901760
    %9802 = vmatpush.msra.mxu0 %v9801
    %v9803 = vand.u32 %v9737, 4294901760
    %9804 = vmatmul.f32.gmra.mxu0 %v9803
    %v9805 = vpop.f32.mrf.mxu0
    %v9806 = vadd.f32 %v9767, %v9805
    %v9807 = vand.u32 %v9740, 4294901760
    %9808 = vmatmul.f32.gmra.mxu0 %v9807
    %v9809 = vpop.f32.mrf.mxu0
    %v9810 = vadd.f32 %v9775, %v9809
    %9811 = vdwg.mxu0
    %9812 = vmatpush.msra.mxu0 0.0
    %9813 = vmatpush.msra.mxu0 0.0
    %9814 = vmatpush.msra.mxu0 0.0
    %9815 = vmatpush.msra.mxu0 0.0
    %9816 = vmatpush.msra.mxu0 0.0
    %9817 = vmatpush.msra.mxu0 0.0
    %9818 = vmatpush.msra.mxu0 0.0
    %9819 = vmatpush.msra.mxu0 0.0
    %9820 = vmatpush.msra.mxu0 0.0
    %9821 = vmatpush.msra.mxu0 0.0
    %9822 = vmatpush.msra.mxu0 0.0
    %9823 = vmatpush.msra.mxu0 0.0
    %9824 = vmatpush.msra.mxu0 0.0
    %9825 = vmatpush.msra.mxu0 0.0
    %v9826 = vand.u32 %v82, 4294901760
    %v9827 = vsub.f32 %v82, %v9826
    %9828 = vmatpush.msra.mxu0 %v9827
    %v9829 = vand.u32 %v81, 4294901760
    %v9830 = vsub.f32 %v81, %v9829
    %9831 = vmatpush.msra.mxu0 %v9830
    %v9832 = vand.u32 %v9737, 4294901760
    %v9833 = vsub.f32 %v9737, %v9832
    %9834 = vmatmul.f32.gmra.mxu0 %v9833
    %v9835 = vpop.f32.mrf.mxu0
    %v9836 = vadd.f32 %v9806, %v9835
    %v9837 = vand.u32 %v9740, 4294901760
    %v9838 = vsub.f32 %v9740, %v9837
    %9839 = vmatmul.f32.gmra.mxu0 %v9838
    %v9840 = vpop.f32.mrf.mxu0
    %v9841 = vadd.f32 %v9810, %v9840
    %9842 = vdwg.mxu0
    %9843 = vmatpush.msra.mxu0 0.0
    %9844 = vmatpush.msra.mxu0 0.0
    %9845 = vmatpush.msra.mxu0 0.0
    %9846 = vmatpush.msra.mxu0 0.0
    %9847 = vmatpush.msra.mxu0 0.0
    %9848 = vmatpush.msra.mxu0 0.0
    %9849 = vmatpush.msra.mxu0 0.0
    %9850 = vmatpush.msra.mxu0 0.0
    %9851 = vmatpush.msra.mxu0 0.0
    %9852 = vmatpush.msra.mxu0 0.0
    %9853 = vmatpush.msra.mxu0 0.0
    %9854 = vmatpush.msra.mxu0 0.0
    %9855 = vmatpush.msra.mxu0 0.0
    %9856 = vmatpush.msra.mxu0 0.0
    %v9857 = vand.u32 %v82, 4294901760
    %9858 = vmatpush.msra.mxu0 %v9857
    %v9859 = vand.u32 %v81, 4294901760
    %9860 = vmatpush.msra.mxu0 %v9859
    %v9861 = vand.u32 %v9737, 4294901760
    %v9862 = vsub.f32 %v9737, %v9861
    %v9863 = vand.u32 %v9862, 4294901760
    %9864 = vmatmul.f32.gmra.mxu0 %v9863
    %v9865 = vpop.f32.mrf.mxu0
    %v9866 = vadd.f32 %v9836, %v9865
    %v9867 = vand.u32 %v9740, 4294901760
    %v9868 = vsub.f32 %v9740, %v9867
    %v9869 = vand.u32 %v9868, 4294901760
    %9870 = vmatmul.f32.gmra.mxu0 %v9869
    %v9871 = vpop.f32.mrf.mxu0
    %v9872 = vadd.f32 %v9841, %v9871
    %9873 = vdwg.mxu0
    %9874 = vmatpush.msra.mxu0 0.0
    %9875 = vmatpush.msra.mxu0 0.0
    %9876 = vmatpush.msra.mxu0 0.0
    %9877 = vmatpush.msra.mxu0 0.0
    %9878 = vmatpush.msra.mxu0 0.0
    %9879 = vmatpush.msra.mxu0 0.0
    %9880 = vmatpush.msra.mxu0 0.0
    %9881 = vmatpush.msra.mxu0 0.0
    %9882 = vmatpush.msra.mxu0 0.0
    %9883 = vmatpush.msra.mxu0 0.0
    %9884 = vmatpush.msra.mxu0 0.0
    %9885 = vmatpush.msra.mxu0 0.0
    %9886 = vmatpush.msra.mxu0 0.0
    %9887 = vmatpush.msra.mxu0 0.0
    %v9888 = vand.u32 %v82, 4294901760
    %v9889 = vsub.f32 %v82, %v9888
    %v9890 = vand.u32 %v9889, 4294901760
    %9891 = vmatpush.msra.mxu0 %v9890
    %v9892 = vand.u32 %v81, 4294901760
    %v9893 = vsub.f32 %v81, %v9892
    %v9894 = vand.u32 %v9893, 4294901760
    %9895 = vmatpush.msra.mxu0 %v9894
    %v9896 = vand.u32 %v9737, 4294901760
    %9897 = vmatmul.f32.gmra.mxu0 %v9896
    %v9898 = vpop.f32.mrf.mxu0
    %v9899 = vadd.f32 %v9866, %v9898
    %v9900 = vand.u32 %v9740, 4294901760
    %9901 = vmatmul.f32.gmra.mxu0 %v9900
    %v9902 = vpop.f32.mrf.mxu0
    %v9903 = vadd.f32 %v9872, %v9902
    %9904 = vdwg.mxu0
    %9905 = vmatpush.msra.mxu0 0.0
    %9906 = vmatpush.msra.mxu0 0.0
    %9907 = vmatpush.msra.mxu0 0.0
    %9908 = vmatpush.msra.mxu0 0.0
    %9909 = vmatpush.msra.mxu0 0.0
    %9910 = vmatpush.msra.mxu0 0.0
    %9911 = vmatpush.msra.mxu0 0.0
    %9912 = vmatpush.msra.mxu0 0.0
    %9913 = vmatpush.msra.mxu0 0.0
    %9914 = vmatpush.msra.mxu0 0.0
    %9915 = vmatpush.msra.mxu0 0.0
    %9916 = vmatpush.msra.mxu0 0.0
    %9917 = vmatpush.msra.mxu0 0.0
    %9918 = vmatpush.msra.mxu0 0.0
    %v9919 = vand.u32 %v82, 4294901760
    %9920 = vmatpush.msra.mxu0 %v9919
    %v9921 = vand.u32 %v81, 4294901760
    %9922 = vmatpush.msra.mxu0 %v9921
    %v9923 = vand.u32 %v9737, 4294901760
    %9924 = vmatmul.f32.gmra.mxu0 %v9923
    %v9925 = vpop.f32.mrf.mxu0
    %v9926 = vadd.f32 %v9899, %v9925
    %v9927 = vand.u32 %v9740, 4294901760
    %9928 = vmatmul.f32.gmra.mxu0 %v9927
    %v9929 = vpop.f32.mrf.mxu0
    %v9930 = vadd.f32 %v9903, %v9929
    %9931 = vdwg.mxu0
    %9932 = vmatpush.msra.mxu0 0.0
    %9933 = vmatpush.msra.mxu0 0.0
    %9934 = vmatpush.msra.mxu0 0.0
    %9935 = vmatpush.msra.mxu0 0.0
    %9936 = vmatpush.msra.mxu0 0.0
    %9937 = vmatpush.msra.mxu0 0.0
    %9938 = vmatpush.msra.mxu0 0.0
    %9939 = vmatpush.msra.mxu0 0.0
    %9940 = vmatpush.msra.mxu0 0.0
    %9941 = vmatpush.msra.mxu0 0.0
    %9942 = vmatpush.msra.mxu0 0.0
    %9943 = vmatpush.msra.mxu0 0.0
    %9944 = vmatpush.msra.mxu0 0.0
    %9945 = vmatpush.msra.mxu0 0.0
    %v9946 = vand.u32 %v9930, 4294901760
    %9947 = vmatpush.msra.mxu0 %v9946
    %v9948 = vand.u32 %v9926, 4294901760
    %9949 = vmatpush.msra.mxu0 %v9948
    %v9950 = vand.u32 %v287, 4294901760
    %v9951 = vsub.f32 %v287, %v9950
    %v9952 = vand.u32 %v9951, 4294901760
    %v9953 = vsub.f32 %v9951, %v9952
    %v9954 = vand.u32 %v9953, 4294901760
    %9955 = vmatmul.f32.gmra.mxu0 %v9954
    %v9956 = vpop.f32.mrf.mxu0
    %v9957 = vadd.f32 0.0, %v9956
    %v9958 = vand.u32 %v290, 4294901760
    %v9959 = vsub.f32 %v290, %v9958
    %v9960 = vand.u32 %v9959, 4294901760
    %v9961 = vsub.f32 %v9959, %v9960
    %v9962 = vand.u32 %v9961, 4294901760
    %9963 = vmatmul.f32.gmra.mxu0 %v9962
    %v9964 = vpop.f32.mrf.mxu0
    %v9965 = vadd.f32 0.0, %v9964
    %9966 = vdwg.mxu0
    %9967 = vmatpush.msra.mxu0 0.0
    %9968 = vmatpush.msra.mxu0 0.0
    %9969 = vmatpush.msra.mxu0 0.0
    %9970 = vmatpush.msra.mxu0 0.0
    %9971 = vmatpush.msra.mxu0 0.0
    %9972 = vmatpush.msra.mxu0 0.0
    %9973 = vmatpush.msra.mxu0 0.0
    %9974 = vmatpush.msra.mxu0 0.0
    %9975 = vmatpush.msra.mxu0 0.0
    %9976 = vmatpush.msra.mxu0 0.0
    %9977 = vmatpush.msra.mxu0 0.0
    %9978 = vmatpush.msra.mxu0 0.0
    %9979 = vmatpush.msra.mxu0 0.0
    %9980 = vmatpush.msra.mxu0 0.0
    %v9981 = vand.u32 %v9930, 4294901760
    %v9982 = vsub.f32 %v9930, %v9981
    %v9983 = vand.u32 %v9982, 4294901760
    %v9984 = vsub.f32 %v9982, %v9983
    %v9985 = vand.u32 %v9984, 4294901760
    %9986 = vmatpush.msra.mxu0 %v9985
    %v9987 = vand.u32 %v9926, 4294901760
    %v9988 = vsub.f32 %v9926, %v9987
    %v9989 = vand.u32 %v9988, 4294901760
    %v9990 = vsub.f32 %v9988, %v9989
    %v9991 = vand.u32 %v9990, 4294901760
    %9992 = vmatpush.msra.mxu0 %v9991
    %v9993 = vand.u32 %v287, 4294901760
    %9994 = vmatmul.f32.gmra.mxu0 %v9993
    %v9995 = vpop.f32.mrf.mxu0
    %v9996 = vadd.f32 %v9957, %v9995
    %v9997 = vand.u32 %v290, 4294901760
    %9998 = vmatmul.f32.gmra.mxu0 %v9997
    %v9999 = vpop.f32.mrf.mxu0
    %v10000 = vadd.f32 %v9965, %v9999
    %10001 = vdwg.mxu0
    %10002 = vmatpush.msra.mxu0 0.0
    %10003 = vmatpush.msra.mxu0 0.0
    %10004 = vmatpush.msra.mxu0 0.0
    %10005 = vmatpush.msra.mxu0 0.0
    %10006 = vmatpush.msra.mxu0 0.0
    %10007 = vmatpush.msra.mxu0 0.0
    %10008 = vmatpush.msra.mxu0 0.0
    %10009 = vmatpush.msra.mxu0 0.0
    %10010 = vmatpush.msra.mxu0 0.0
    %10011 = vmatpush.msra.mxu0 0.0
    %10012 = vmatpush.msra.mxu0 0.0
    %10013 = vmatpush.msra.mxu0 0.0
    %10014 = vmatpush.msra.mxu0 0.0
    %10015 = vmatpush.msra.mxu0 0.0
    %v10016 = vand.u32 %v9930, 4294901760
    %v10017 = vsub.f32 %v9930, %v10016
    %10018 = vmatpush.msra.mxu0 %v10017
    %v10019 = vand.u32 %v9926, 4294901760
    %v10020 = vsub.f32 %v9926, %v10019
    %10021 = vmatpush.msra.mxu0 %v10020
    %v10022 = vand.u32 %v287, 4294901760
    %v10023 = vsub.f32 %v287, %v10022
    %10024 = vmatmul.f32.gmra.mxu0 %v10023
    %v10025 = vpop.f32.mrf.mxu0
    %v10026 = vadd.f32 %v9996, %v10025
    %v10027 = vand.u32 %v290, 4294901760
    %v10028 = vsub.f32 %v290, %v10027
    %10029 = vmatmul.f32.gmra.mxu0 %v10028
    %v10030 = vpop.f32.mrf.mxu0
    %v10031 = vadd.f32 %v10000, %v10030
    %10032 = vdwg.mxu0
    %10033 = vmatpush.msra.mxu0 0.0
    %10034 = vmatpush.msra.mxu0 0.0
    %10035 = vmatpush.msra.mxu0 0.0
    %10036 = vmatpush.msra.mxu0 0.0
    %10037 = vmatpush.msra.mxu0 0.0
    %10038 = vmatpush.msra.mxu0 0.0
    %10039 = vmatpush.msra.mxu0 0.0
    %10040 = vmatpush.msra.mxu0 0.0
    %10041 = vmatpush.msra.mxu0 0.0
    %10042 = vmatpush.msra.mxu0 0.0
    %10043 = vmatpush.msra.mxu0 0.0
    %10044 = vmatpush.msra.mxu0 0.0
    %10045 = vmatpush.msra.mxu0 0.0
    %10046 = vmatpush.msra.mxu0 0.0
    %v10047 = vand.u32 %v9930, 4294901760
    %10048 = vmatpush.msra.mxu0 %v10047
    %v10049 = vand.u32 %v9926, 4294901760
    %10050 = vmatpush.msra.mxu0 %v10049
    %v10051 = vand.u32 %v287, 4294901760
    %v10052 = vsub.f32 %v287, %v10051
    %v10053 = vand.u32 %v10052, 4294901760
    %10054 = vmatmul.f32.gmra.mxu0 %v10053
    %v10055 = vpop.f32.mrf.mxu0
    %v10056 = vadd.f32 %v10026, %v10055
    %v10057 = vand.u32 %v290, 4294901760
    %v10058 = vsub.f32 %v290, %v10057
    %v10059 = vand.u32 %v10058, 4294901760
    %10060 = vmatmul.f32.gmra.mxu0 %v10059
    %v10061 = vpop.f32.mrf.mxu0
    %v10062 = vadd.f32 %v10031, %v10061
    %10063 = vdwg.mxu0
    %10064 = vmatpush.msra.mxu0 0.0
    %10065 = vmatpush.msra.mxu0 0.0
    %10066 = vmatpush.msra.mxu0 0.0
    %10067 = vmatpush.msra.mxu0 0.0
    %10068 = vmatpush.msra.mxu0 0.0
    %10069 = vmatpush.msra.mxu0 0.0
    %10070 = vmatpush.msra.mxu0 0.0
    %10071 = vmatpush.msra.mxu0 0.0
    %10072 = vmatpush.msra.mxu0 0.0
    %10073 = vmatpush.msra.mxu0 0.0
    %10074 = vmatpush.msra.mxu0 0.0
    %10075 = vmatpush.msra.mxu0 0.0
    %10076 = vmatpush.msra.mxu0 0.0
    %10077 = vmatpush.msra.mxu0 0.0
    %v10078 = vand.u32 %v9930, 4294901760
    %v10079 = vsub.f32 %v9930, %v10078
    %v10080 = vand.u32 %v10079, 4294901760
    %10081 = vmatpush.msra.mxu0 %v10080
    %v10082 = vand.u32 %v9926, 4294901760
    %v10083 = vsub.f32 %v9926, %v10082
    %v10084 = vand.u32 %v10083, 4294901760
    %10085 = vmatpush.msra.mxu0 %v10084
    %v10086 = vand.u32 %v287, 4294901760
    %10087 = vmatmul.f32.gmra.mxu0 %v10086
    %v10088 = vpop.f32.mrf.mxu0
    %v10089 = vadd.f32 %v10056, %v10088
    %v10090 = vand.u32 %v290, 4294901760
    %10091 = vmatmul.f32.gmra.mxu0 %v10090
    %v10092 = vpop.f32.mrf.mxu0
    %v10093 = vadd.f32 %v10062, %v10092
    %10094 = vdwg.mxu0
    %10095 = vmatpush.msra.mxu0 0.0
    %10096 = vmatpush.msra.mxu0 0.0
    %10097 = vmatpush.msra.mxu0 0.0
    %10098 = vmatpush.msra.mxu0 0.0
    %10099 = vmatpush.msra.mxu0 0.0
    %10100 = vmatpush.msra.mxu0 0.0
    %10101 = vmatpush.msra.mxu0 0.0
    %10102 = vmatpush.msra.mxu0 0.0
    %10103 = vmatpush.msra.mxu0 0.0
    %10104 = vmatpush.msra.mxu0 0.0
    %10105 = vmatpush.msra.mxu0 0.0
    %10106 = vmatpush.msra.mxu0 0.0
    %10107 = vmatpush.msra.mxu0 0.0
    %10108 = vmatpush.msra.mxu0 0.0
    %v10109 = vand.u32 %v9930, 4294901760
    %10110 = vmatpush.msra.mxu0 %v10109
    %v10111 = vand.u32 %v9926, 4294901760
    %10112 = vmatpush.msra.mxu0 %v10111
    %v10113 = vand.u32 %v287, 4294901760
    %10114 = vmatmul.f32.gmra.mxu0 %v10113
    %v10115 = vpop.f32.mrf.mxu0
    %v10116 = vadd.f32 %v10089, %v10115
    %v10117 = vand.u32 %v290, 4294901760
    %10118 = vmatmul.f32.gmra.mxu0 %v10117
    %v10119 = vpop.f32.mrf.mxu0
    %v10120 = vadd.f32 %v10093, %v10119
    %10121 = vdwg.mxu0
    %v10122 = vsub.f32 %v10116, %v8952
    %v10123 = vsub.f32 %v10120, %v8953
    %v10124 = vmul.f32 %v8952, 2.0
    %v10125 = vmul.f32 %v8953, 2.0
    %v10126 = vadd.f32 %v10124, 0.0001
    %v10127 = vadd.f32 %v10125, 0.0001
    %v10128 = vmul.f32 %v10122, 2.0
    %v10129 = vmul.f32 %v10123, 2.0
    %v10130 = vadd.f32 %v10128, 0.0009
    %v10131 = vadd.f32 %v10129, 0.0009
    %v10132 = vmul.f32 %v10126, %v10130
    %v10133 = vmul.f32 %v10127, %v10131
    %v10134 = vadd.f32 %v8948, %v8950
    %v10135 = vadd.f32 %v8949, %v8951
    %v10136 = vadd.f32 %v10134, 0.0001
    %v10137 = vadd.f32 %v10135, 0.0001
    %v10138 = vadd.f32 %v9342, %v9732
    %v10139 = vadd.f32 %v9343, %v9733
    %v10140 = vadd.f32 %v10138, 0.0009
    %v10141 = vadd.f32 %v10139, 0.0009
    %v10142 = vmul.f32 %v10136, %v10140
    %v10143 = vmul.f32 %v10137, %v10141
    %v10144 = vadd.f32 %v10142, 1e-12
    %v10145 = vadd.f32 %v10143, 1e-12
    %v10146 = vrcp.pop %v10144
    %v10147 = vmul.f32 %v10144, %v10146
    %v10148 = vsub.f32 1.0, %v10147
    %v10149 = vmul.f32 %v10146, %v10148
    %v10150 = vadd.f32 %v10146, %v10149
    %vm10151 = vweird.f32 %v10144
    %vm10152 = vweird.f32 %v10146
    %vm10153 = vmor %vm10151, %vm10152
    %v10154 = vsel %vm10153, %v10146, %v10150
    %v10155 = vand.u32 2147483647, %v10144
    %vm10156 = vcmp.eq.f32.partialorder %v10155, 8.507059e+37
    %v10157 = vand.u32 %v10144, 2147483648
    %v10158 = vor.u32 1.1754944e-38, %v10157
    %v10159 = vsel %vm10156, %v10158, %v10154
    %v10160 = vrcp.pop %v10145
    %v10161 = vmul.f32 %v10145, %v10160
    %v10162 = vsub.f32 1.0, %v10161
    %v10163 = vmul.f32 %v10160, %v10162
    %v10164 = vadd.f32 %v10160, %v10163
    %vm10165 = vweird.f32 %v10145
    %vm10166 = vweird.f32 %v10160
    %vm10167 = vmor %vm10165, %vm10166
    %v10168 = vsel %vm10167, %v10160, %v10164
    %v10169 = vand.u32 2147483647, %v10145
    %vm10170 = vcmp.eq.f32.partialorder %v10169, 8.507059e+37
    %v10171 = vand.u32 %v10145, 2147483648
    %v10172 = vor.u32 1.1754944e-38, %v10171
    %v10173 = vsel %vm10170, %v10172, %v10168
    %v10174 = vmul.f32 %v10132, %v10159
    %v10175 = vmul.f32 %v10133, %v10173
    %v10176 = vsel %vm89, %v10174, 0.0
    %v10177 = vsel %vm89, %v10175, 0.0
    %v10178 = vadd.f32 %v10176, %v10177
    %10179 = vadd.xlane.f32.xlu0 %v10178
    %v10180 = vpop.xlane.xlu0 %10179
    %v10181 = vrot.slane %v10180, 4
    %v10182 = vadd.f32 %v10180, %v10181
    %v10183 = vrot.slane %v10182, 2
    %v10184 = vadd.f32 %v10182, %v10183
    %v10185 = vrot.slane %v10184, 1
    %v10186 = vadd.f32 %v10184, %v10185
    %s10187 = vtos %v10186
    %v10188 = vstv %s10187
    %v10189 = vadd.f32 %v8169, %v10188
    %s10190 = scalar_lea.vmem [#allocation2], 80
    %v10191 = vld [vmem:[%s10190] sm:$0xff]
    %v10192 = vld [vmem:[%s10190 + $0x8] sm:$0xff]
    %s10193 = scalar_lea.vmem [#allocation5], 80
    %v10194 = vld [vmem:[%s10193] sm:$0xff]
    %v10195 = vld [vmem:[%s10193 + $0x8] sm:$0xff]
    %v10197 = vsel %vm89, %v10191, 0
    %v10200 = vsel %vm89, %v10192, 0
    %10202 = vmatpush.msra.mxu0 0.0
    %10203 = vmatpush.msra.mxu0 0.0
    %10204 = vmatpush.msra.mxu0 0.0
    %10205 = vmatpush.msra.mxu0 0.0
    %10206 = vmatpush.msra.mxu0 0.0
    %10207 = vmatpush.msra.mxu0 0.0
    %10208 = vmatpush.msra.mxu0 0.0
    %10209 = vmatpush.msra.mxu0 0.0
    %10210 = vmatpush.msra.mxu0 0.0
    %10211 = vmatpush.msra.mxu0 0.0
    %10212 = vmatpush.msra.mxu0 0.0
    %10213 = vmatpush.msra.mxu0 0.0
    %10214 = vmatpush.msra.mxu0 0.0
    %10215 = vmatpush.msra.mxu0 0.0
    %v10216 = vand.u32 %v82, 4294901760
    %10217 = vmatpush.msra.mxu0 %v10216
    %v10218 = vand.u32 %v81, 4294901760
    %10219 = vmatpush.msra.mxu0 %v10218
    %v10220 = vand.u32 %v10197, 4294901760
    %v10221 = vsub.f32 %v10197, %v10220
    %v10222 = vand.u32 %v10221, 4294901760
    %v10223 = vsub.f32 %v10221, %v10222
    %v10224 = vand.u32 %v10223, 4294901760
    %10225 = vmatmul.f32.gmra.mxu0 %v10224
    %v10226 = vpop.f32.mrf.mxu0
    %v10227 = vadd.f32 0.0, %v10226
    %v10228 = vand.u32 %v10200, 4294901760
    %v10229 = vsub.f32 %v10200, %v10228
    %v10230 = vand.u32 %v10229, 4294901760
    %v10231 = vsub.f32 %v10229, %v10230
    %v10232 = vand.u32 %v10231, 4294901760
    %10233 = vmatmul.f32.gmra.mxu0 %v10232
    %v10234 = vpop.f32.mrf.mxu0
    %v10235 = vadd.f32 0.0, %v10234
    %10236 = vdwg.mxu0
    %10237 = vmatpush.msra.mxu0 0.0
    %10238 = vmatpush.msra.mxu0 0.0
    %10239 = vmatpush.msra.mxu0 0.0
    %10240 = vmatpush.msra.mxu0 0.0
    %10241 = vmatpush.msra.mxu0 0.0
    %10242 = vmatpush.msra.mxu0 0.0
    %10243 = vmatpush.msra.mxu0 0.0
    %10244 = vmatpush.msra.mxu0 0.0
    %10245 = vmatpush.msra.mxu0 0.0
    %10246 = vmatpush.msra.mxu0 0.0
    %10247 = vmatpush.msra.mxu0 0.0
    %10248 = vmatpush.msra.mxu0 0.0
    %10249 = vmatpush.msra.mxu0 0.0
    %10250 = vmatpush.msra.mxu0 0.0
    %v10251 = vand.u32 %v82, 4294901760
    %v10252 = vsub.f32 %v82, %v10251
    %v10253 = vand.u32 %v10252, 4294901760
    %v10254 = vsub.f32 %v10252, %v10253
    %v10255 = vand.u32 %v10254, 4294901760
    %10256 = vmatpush.msra.mxu0 %v10255
    %v10257 = vand.u32 %v81, 4294901760
    %v10258 = vsub.f32 %v81, %v10257
    %v10259 = vand.u32 %v10258, 4294901760
    %v10260 = vsub.f32 %v10258, %v10259
    %v10261 = vand.u32 %v10260, 4294901760
    %10262 = vmatpush.msra.mxu0 %v10261
    %v10263 = vand.u32 %v10197, 4294901760
    %10264 = vmatmul.f32.gmra.mxu0 %v10263
    %v10265 = vpop.f32.mrf.mxu0
    %v10266 = vadd.f32 %v10227, %v10265
    %v10267 = vand.u32 %v10200, 4294901760
    %10268 = vmatmul.f32.gmra.mxu0 %v10267
    %v10269 = vpop.f32.mrf.mxu0
    %v10270 = vadd.f32 %v10235, %v10269
    %10271 = vdwg.mxu0
    %10272 = vmatpush.msra.mxu0 0.0
    %10273 = vmatpush.msra.mxu0 0.0
    %10274 = vmatpush.msra.mxu0 0.0
    %10275 = vmatpush.msra.mxu0 0.0
    %10276 = vmatpush.msra.mxu0 0.0
    %10277 = vmatpush.msra.mxu0 0.0
    %10278 = vmatpush.msra.mxu0 0.0
    %10279 = vmatpush.msra.mxu0 0.0
    %10280 = vmatpush.msra.mxu0 0.0
    %10281 = vmatpush.msra.mxu0 0.0
    %10282 = vmatpush.msra.mxu0 0.0
    %10283 = vmatpush.msra.mxu0 0.0
    %10284 = vmatpush.msra.mxu0 0.0
    %10285 = vmatpush.msra.mxu0 0.0
    %v10286 = vand.u32 %v82, 4294901760
    %v10287 = vsub.f32 %v82, %v10286
    %10288 = vmatpush.msra.mxu0 %v10287
    %v10289 = vand.u32 %v81, 4294901760
    %v10290 = vsub.f32 %v81, %v10289
    %10291 = vmatpush.msra.mxu0 %v10290
    %v10292 = vand.u32 %v10197, 4294901760
    %v10293 = vsub.f32 %v10197, %v10292
    %10294 = vmatmul.f32.gmra.mxu0 %v10293
    %v10295 = vpop.f32.mrf.mxu0
    %v10296 = vadd.f32 %v10266, %v10295
    %v10297 = vand.u32 %v10200, 4294901760
    %v10298 = vsub.f32 %v10200, %v10297
    %10299 = vmatmul.f32.gmra.mxu0 %v10298
    %v10300 = vpop.f32.mrf.mxu0
    %v10301 = vadd.f32 %v10270, %v10300
    %10302 = vdwg.mxu0
    %10303 = vmatpush.msra.mxu0 0.0
    %10304 = vmatpush.msra.mxu0 0.0
    %10305 = vmatpush.msra.mxu0 0.0
    %10306 = vmatpush.msra.mxu0 0.0
    %10307 = vmatpush.msra.mxu0 0.0
    %10308 = vmatpush.msra.mxu0 0.0
    %10309 = vmatpush.msra.mxu0 0.0
    %10310 = vmatpush.msra.mxu0 0.0
    %10311 = vmatpush.msra.mxu0 0.0
    %10312 = vmatpush.msra.mxu0 0.0
    %10313 = vmatpush.msra.mxu0 0.0
    %10314 = vmatpush.msra.mxu0 0.0
    %10315 = vmatpush.msra.mxu0 0.0
    %10316 = vmatpush.msra.mxu0 0.0
    %v10317 = vand.u32 %v82, 4294901760
    %10318 = vmatpush.msra.mxu0 %v10317
    %v10319 = vand.u32 %v81, 4294901760
    %10320 = vmatpush.msra.mxu0 %v10319
    %v10321 = vand.u32 %v10197, 4294901760
    %v10322 = vsub.f32 %v10197, %v10321
    %v10323 = vand.u32 %v10322, 4294901760
    %10324 = vmatmul.f32.gmra.mxu0 %v10323
    %v10325 = vpop.f32.mrf.mxu0
    %v10326 = vadd.f32 %v10296, %v10325
    %v10327 = vand.u32 %v10200, 4294901760
    %v10328 = vsub.f32 %v10200, %v10327
    %v10329 = vand.u32 %v10328, 4294901760
    %10330 = vmatmul.f32.gmra.mxu0 %v10329
    %v10331 = vpop.f32.mrf.mxu0
    %v10332 = vadd.f32 %v10301, %v10331
    %10333 = vdwg.mxu0
    %10334 = vmatpush.msra.mxu0 0.0
    %10335 = vmatpush.msra.mxu0 0.0
    %10336 = vmatpush.msra.mxu0 0.0
    %10337 = vmatpush.msra.mxu0 0.0
    %10338 = vmatpush.msra.mxu0 0.0
    %10339 = vmatpush.msra.mxu0 0.0
    %10340 = vmatpush.msra.mxu0 0.0
    %10341 = vmatpush.msra.mxu0 0.0
    %10342 = vmatpush.msra.mxu0 0.0
    %10343 = vmatpush.msra.mxu0 0.0
    %10344 = vmatpush.msra.mxu0 0.0
    %10345 = vmatpush.msra.mxu0 0.0
    %10346 = vmatpush.msra.mxu0 0.0
    %10347 = vmatpush.msra.mxu0 0.0
    %v10348 = vand.u32 %v82, 4294901760
    %v10349 = vsub.f32 %v82, %v10348
    %v10350 = vand.u32 %v10349, 4294901760
    %10351 = vmatpush.msra.mxu0 %v10350
    %v10352 = vand.u32 %v81, 4294901760
    %v10353 = vsub.f32 %v81, %v10352
    %v10354 = vand.u32 %v10353, 4294901760
    %10355 = vmatpush.msra.mxu0 %v10354
    %v10356 = vand.u32 %v10197, 4294901760
    %10357 = vmatmul.f32.gmra.mxu0 %v10356
    %v10358 = vpop.f32.mrf.mxu0
    %v10359 = vadd.f32 %v10326, %v10358
    %v10360 = vand.u32 %v10200, 4294901760
    %10361 = vmatmul.f32.gmra.mxu0 %v10360
    %v10362 = vpop.f32.mrf.mxu0
    %v10363 = vadd.f32 %v10332, %v10362
    %10364 = vdwg.mxu0
    %10365 = vmatpush.msra.mxu0 0.0
    %10366 = vmatpush.msra.mxu0 0.0
    %10367 = vmatpush.msra.mxu0 0.0
    %10368 = vmatpush.msra.mxu0 0.0
    %10369 = vmatpush.msra.mxu0 0.0
    %10370 = vmatpush.msra.mxu0 0.0
    %10371 = vmatpush.msra.mxu0 0.0
    %10372 = vmatpush.msra.mxu0 0.0
    %10373 = vmatpush.msra.mxu0 0.0
    %10374 = vmatpush.msra.mxu0 0.0
    %10375 = vmatpush.msra.mxu0 0.0
    %10376 = vmatpush.msra.mxu0 0.0
    %10377 = vmatpush.msra.mxu0 0.0
    %10378 = vmatpush.msra.mxu0 0.0
    %v10379 = vand.u32 %v82, 4294901760
    %10380 = vmatpush.msra.mxu0 %v10379
    %v10381 = vand.u32 %v81, 4294901760
    %10382 = vmatpush.msra.mxu0 %v10381
    %v10383 = vand.u32 %v10197, 4294901760
    %10384 = vmatmul.f32.gmra.mxu0 %v10383
    %v10385 = vpop.f32.mrf.mxu0
    %v10386 = vadd.f32 %v10359, %v10385
    %v10387 = vand.u32 %v10200, 4294901760
    %10388 = vmatmul.f32.gmra.mxu0 %v10387
    %v10389 = vpop.f32.mrf.mxu0
    %v10390 = vadd.f32 %v10363, %v10389
    %10391 = vdwg.mxu0
    %10392 = vmatpush.msra.mxu0 0.0
    %10393 = vmatpush.msra.mxu0 0.0
    %10394 = vmatpush.msra.mxu0 0.0
    %10395 = vmatpush.msra.mxu0 0.0
    %10396 = vmatpush.msra.mxu0 0.0
    %10397 = vmatpush.msra.mxu0 0.0
    %10398 = vmatpush.msra.mxu0 0.0
    %10399 = vmatpush.msra.mxu0 0.0
    %10400 = vmatpush.msra.mxu0 0.0
    %10401 = vmatpush.msra.mxu0 0.0
    %10402 = vmatpush.msra.mxu0 0.0
    %10403 = vmatpush.msra.mxu0 0.0
    %10404 = vmatpush.msra.mxu0 0.0
    %10405 = vmatpush.msra.mxu0 0.0
    %v10406 = vand.u32 %v10390, 4294901760
    %10407 = vmatpush.msra.mxu0 %v10406
    %v10408 = vand.u32 %v10386, 4294901760
    %10409 = vmatpush.msra.mxu0 %v10408
    %v10410 = vand.u32 %v287, 4294901760
    %v10411 = vsub.f32 %v287, %v10410
    %v10412 = vand.u32 %v10411, 4294901760
    %v10413 = vsub.f32 %v10411, %v10412
    %v10414 = vand.u32 %v10413, 4294901760
    %10415 = vmatmul.f32.gmra.mxu0 %v10414
    %v10416 = vpop.f32.mrf.mxu0
    %v10417 = vadd.f32 0.0, %v10416
    %v10418 = vand.u32 %v290, 4294901760
    %v10419 = vsub.f32 %v290, %v10418
    %v10420 = vand.u32 %v10419, 4294901760
    %v10421 = vsub.f32 %v10419, %v10420
    %v10422 = vand.u32 %v10421, 4294901760
    %10423 = vmatmul.f32.gmra.mxu0 %v10422
    %v10424 = vpop.f32.mrf.mxu0
    %v10425 = vadd.f32 0.0, %v10424
    %10426 = vdwg.mxu0
    %10427 = vmatpush.msra.mxu0 0.0
    %10428 = vmatpush.msra.mxu0 0.0
    %10429 = vmatpush.msra.mxu0 0.0
    %10430 = vmatpush.msra.mxu0 0.0
    %10431 = vmatpush.msra.mxu0 0.0
    %10432 = vmatpush.msra.mxu0 0.0
    %10433 = vmatpush.msra.mxu0 0.0
    %10434 = vmatpush.msra.mxu0 0.0
    %10435 = vmatpush.msra.mxu0 0.0
    %10436 = vmatpush.msra.mxu0 0.0
    %10437 = vmatpush.msra.mxu0 0.0
    %10438 = vmatpush.msra.mxu0 0.0
    %10439 = vmatpush.msra.mxu0 0.0
    %10440 = vmatpush.msra.mxu0 0.0
    %v10441 = vand.u32 %v10390, 4294901760
    %v10442 = vsub.f32 %v10390, %v10441
    %v10443 = vand.u32 %v10442, 4294901760
    %v10444 = vsub.f32 %v10442, %v10443
    %v10445 = vand.u32 %v10444, 4294901760
    %10446 = vmatpush.msra.mxu0 %v10445
    %v10447 = vand.u32 %v10386, 4294901760
    %v10448 = vsub.f32 %v10386, %v10447
    %v10449 = vand.u32 %v10448, 4294901760
    %v10450 = vsub.f32 %v10448, %v10449
    %v10451 = vand.u32 %v10450, 4294901760
    %10452 = vmatpush.msra.mxu0 %v10451
    %v10453 = vand.u32 %v287, 4294901760
    %10454 = vmatmul.f32.gmra.mxu0 %v10453
    %v10455 = vpop.f32.mrf.mxu0
    %v10456 = vadd.f32 %v10417, %v10455
    %v10457 = vand.u32 %v290, 4294901760
    %10458 = vmatmul.f32.gmra.mxu0 %v10457
    %v10459 = vpop.f32.mrf.mxu0
    %v10460 = vadd.f32 %v10425, %v10459
    %10461 = vdwg.mxu0
    %10462 = vmatpush.msra.mxu0 0.0
    %10463 = vmatpush.msra.mxu0 0.0
    %10464 = vmatpush.msra.mxu0 0.0
    %10465 = vmatpush.msra.mxu0 0.0
    %10466 = vmatpush.msra.mxu0 0.0
    %10467 = vmatpush.msra.mxu0 0.0
    %10468 = vmatpush.msra.mxu0 0.0
    %10469 = vmatpush.msra.mxu0 0.0
    %10470 = vmatpush.msra.mxu0 0.0
    %10471 = vmatpush.msra.mxu0 0.0
    %10472 = vmatpush.msra.mxu0 0.0
    %10473 = vmatpush.msra.mxu0 0.0
    %10474 = vmatpush.msra.mxu0 0.0
    %10475 = vmatpush.msra.mxu0 0.0
    %v10476 = vand.u32 %v10390, 4294901760
    %v10477 = vsub.f32 %v10390, %v10476
    %10478 = vmatpush.msra.mxu0 %v10477
    %v10479 = vand.u32 %v10386, 4294901760
    %v10480 = vsub.f32 %v10386, %v10479
    %10481 = vmatpush.msra.mxu0 %v10480
    %v10482 = vand.u32 %v287, 4294901760
    %v10483 = vsub.f32 %v287, %v10482
    %10484 = vmatmul.f32.gmra.mxu0 %v10483
    %v10485 = vpop.f32.mrf.mxu0
    %v10486 = vadd.f32 %v10456, %v10485
    %v10487 = vand.u32 %v290, 4294901760
    %v10488 = vsub.f32 %v290, %v10487
    %10489 = vmatmul.f32.gmra.mxu0 %v10488
    %v10490 = vpop.f32.mrf.mxu0
    %v10491 = vadd.f32 %v10460, %v10490
    %10492 = vdwg.mxu0
    %10493 = vmatpush.msra.mxu0 0.0
    %10494 = vmatpush.msra.mxu0 0.0
    %10495 = vmatpush.msra.mxu0 0.0
    %10496 = vmatpush.msra.mxu0 0.0
    %10497 = vmatpush.msra.mxu0 0.0
    %10498 = vmatpush.msra.mxu0 0.0
    %10499 = vmatpush.msra.mxu0 0.0
    %10500 = vmatpush.msra.mxu0 0.0
    %10501 = vmatpush.msra.mxu0 0.0
    %10502 = vmatpush.msra.mxu0 0.0
    %10503 = vmatpush.msra.mxu0 0.0
    %10504 = vmatpush.msra.mxu0 0.0
    %10505 = vmatpush.msra.mxu0 0.0
    %10506 = vmatpush.msra.mxu0 0.0
    %v10507 = vand.u32 %v10390, 4294901760
    %10508 = vmatpush.msra.mxu0 %v10507
    %v10509 = vand.u32 %v10386, 4294901760
    %10510 = vmatpush.msra.mxu0 %v10509
    %v10511 = vand.u32 %v287, 4294901760
    %v10512 = vsub.f32 %v287, %v10511
    %v10513 = vand.u32 %v10512, 4294901760
    %10514 = vmatmul.f32.gmra.mxu0 %v10513
    %v10515 = vpop.f32.mrf.mxu0
    %v10516 = vadd.f32 %v10486, %v10515
    %v10517 = vand.u32 %v290, 4294901760
    %v10518 = vsub.f32 %v290, %v10517
    %v10519 = vand.u32 %v10518, 4294901760
    %10520 = vmatmul.f32.gmra.mxu0 %v10519
    %v10521 = vpop.f32.mrf.mxu0
    %v10522 = vadd.f32 %v10491, %v10521
    %10523 = vdwg.mxu0
    %10524 = vmatpush.msra.mxu0 0.0
    %10525 = vmatpush.msra.mxu0 0.0
    %10526 = vmatpush.msra.mxu0 0.0
    %10527 = vmatpush.msra.mxu0 0.0
    %10528 = vmatpush.msra.mxu0 0.0
    %10529 = vmatpush.msra.mxu0 0.0
    %10530 = vmatpush.msra.mxu0 0.0
    %10531 = vmatpush.msra.mxu0 0.0
    %10532 = vmatpush.msra.mxu0 0.0
    %10533 = vmatpush.msra.mxu0 0.0
    %10534 = vmatpush.msra.mxu0 0.0
    %10535 = vmatpush.msra.mxu0 0.0
    %10536 = vmatpush.msra.mxu0 0.0
    %10537 = vmatpush.msra.mxu0 0.0
    %v10538 = vand.u32 %v10390, 4294901760
    %v10539 = vsub.f32 %v10390, %v10538
    %v10540 = vand.u32 %v10539, 4294901760
    %10541 = vmatpush.msra.mxu0 %v10540
    %v10542 = vand.u32 %v10386, 4294901760
    %v10543 = vsub.f32 %v10386, %v10542
    %v10544 = vand.u32 %v10543, 4294901760
    %10545 = vmatpush.msra.mxu0 %v10544
    %v10546 = vand.u32 %v287, 4294901760
    %10547 = vmatmul.f32.gmra.mxu0 %v10546
    %v10548 = vpop.f32.mrf.mxu0
    %v10549 = vadd.f32 %v10516, %v10548
    %v10550 = vand.u32 %v290, 4294901760
    %10551 = vmatmul.f32.gmra.mxu0 %v10550
    %v10552 = vpop.f32.mrf.mxu0
    %v10553 = vadd.f32 %v10522, %v10552
    %10554 = vdwg.mxu0
    %10555 = vmatpush.msra.mxu0 0.0
    %10556 = vmatpush.msra.mxu0 0.0
    %10557 = vmatpush.msra.mxu0 0.0
    %10558 = vmatpush.msra.mxu0 0.0
    %10559 = vmatpush.msra.mxu0 0.0
    %10560 = vmatpush.msra.mxu0 0.0
    %10561 = vmatpush.msra.mxu0 0.0
    %10562 = vmatpush.msra.mxu0 0.0
    %10563 = vmatpush.msra.mxu0 0.0
    %10564 = vmatpush.msra.mxu0 0.0
    %10565 = vmatpush.msra.mxu0 0.0
    %10566 = vmatpush.msra.mxu0 0.0
    %10567 = vmatpush.msra.mxu0 0.0
    %10568 = vmatpush.msra.mxu0 0.0
    %v10569 = vand.u32 %v10390, 4294901760
    %10570 = vmatpush.msra.mxu0 %v10569
    %v10571 = vand.u32 %v10386, 4294901760
    %10572 = vmatpush.msra.mxu0 %v10571
    %v10573 = vand.u32 %v287, 4294901760
    %10574 = vmatmul.f32.gmra.mxu0 %v10573
    %v10575 = vpop.f32.mrf.mxu0
    %v10576 = vadd.f32 %v10549, %v10575
    %v10577 = vand.u32 %v290, 4294901760
    %10578 = vmatmul.f32.gmra.mxu0 %v10577
    %v10579 = vpop.f32.mrf.mxu0
    %v10580 = vadd.f32 %v10553, %v10579
    %10581 = vdwg.mxu0
    %v10583 = vsel %vm89, %v10194, 0
    %v10586 = vsel %vm89, %v10195, 0
    %10588 = vmatpush.msra.mxu0 0.0
    %10589 = vmatpush.msra.mxu0 0.0
    %10590 = vmatpush.msra.mxu0 0.0
    %10591 = vmatpush.msra.mxu0 0.0
    %10592 = vmatpush.msra.mxu0 0.0
    %10593 = vmatpush.msra.mxu0 0.0
    %10594 = vmatpush.msra.mxu0 0.0
    %10595 = vmatpush.msra.mxu0 0.0
    %10596 = vmatpush.msra.mxu0 0.0
    %10597 = vmatpush.msra.mxu0 0.0
    %10598 = vmatpush.msra.mxu0 0.0
    %10599 = vmatpush.msra.mxu0 0.0
    %10600 = vmatpush.msra.mxu0 0.0
    %10601 = vmatpush.msra.mxu0 0.0
    %v10602 = vand.u32 %v82, 4294901760
    %10603 = vmatpush.msra.mxu0 %v10602
    %v10604 = vand.u32 %v81, 4294901760
    %10605 = vmatpush.msra.mxu0 %v10604
    %v10606 = vand.u32 %v10583, 4294901760
    %v10607 = vsub.f32 %v10583, %v10606
    %v10608 = vand.u32 %v10607, 4294901760
    %v10609 = vsub.f32 %v10607, %v10608
    %v10610 = vand.u32 %v10609, 4294901760
    %10611 = vmatmul.f32.gmra.mxu0 %v10610
    %v10612 = vpop.f32.mrf.mxu0
    %v10613 = vadd.f32 0.0, %v10612
    %v10614 = vand.u32 %v10586, 4294901760
    %v10615 = vsub.f32 %v10586, %v10614
    %v10616 = vand.u32 %v10615, 4294901760
    %v10617 = vsub.f32 %v10615, %v10616
    %v10618 = vand.u32 %v10617, 4294901760
    %10619 = vmatmul.f32.gmra.mxu0 %v10618
    %v10620 = vpop.f32.mrf.mxu0
    %v10621 = vadd.f32 0.0, %v10620
    %10622 = vdwg.mxu0
    %10623 = vmatpush.msra.mxu0 0.0
    %10624 = vmatpush.msra.mxu0 0.0
    %10625 = vmatpush.msra.mxu0 0.0
    %10626 = vmatpush.msra.mxu0 0.0
    %10627 = vmatpush.msra.mxu0 0.0
    %10628 = vmatpush.msra.mxu0 0.0
    %10629 = vmatpush.msra.mxu0 0.0
    %10630 = vmatpush.msra.mxu0 0.0
    %10631 = vmatpush.msra.mxu0 0.0
    %10632 = vmatpush.msra.mxu0 0.0
    %10633 = vmatpush.msra.mxu0 0.0
    %10634 = vmatpush.msra.mxu0 0.0
    %10635 = vmatpush.msra.mxu0 0.0
    %10636 = vmatpush.msra.mxu0 0.0
    %v10637 = vand.u32 %v82, 4294901760
    %v10638 = vsub.f32 %v82, %v10637
    %v10639 = vand.u32 %v10638, 4294901760
    %v10640 = vsub.f32 %v10638, %v10639
    %v10641 = vand.u32 %v10640, 4294901760
    %10642 = vmatpush.msra.mxu0 %v10641
    %v10643 = vand.u32 %v81, 4294901760
    %v10644 = vsub.f32 %v81, %v10643
    %v10645 = vand.u32 %v10644, 4294901760
    %v10646 = vsub.f32 %v10644, %v10645
    %v10647 = vand.u32 %v10646, 4294901760
    %10648 = vmatpush.msra.mxu0 %v10647
    %v10649 = vand.u32 %v10583, 4294901760
    %10650 = vmatmul.f32.gmra.mxu0 %v10649
    %v10651 = vpop.f32.mrf.mxu0
    %v10652 = vadd.f32 %v10613, %v10651
    %v10653 = vand.u32 %v10586, 4294901760
    %10654 = vmatmul.f32.gmra.mxu0 %v10653
    %v10655 = vpop.f32.mrf.mxu0
    %v10656 = vadd.f32 %v10621, %v10655
    %10657 = vdwg.mxu0
    %10658 = vmatpush.msra.mxu0 0.0
    %10659 = vmatpush.msra.mxu0 0.0
    %10660 = vmatpush.msra.mxu0 0.0
    %10661 = vmatpush.msra.mxu0 0.0
    %10662 = vmatpush.msra.mxu0 0.0
    %10663 = vmatpush.msra.mxu0 0.0
    %10664 = vmatpush.msra.mxu0 0.0
    %10665 = vmatpush.msra.mxu0 0.0
    %10666 = vmatpush.msra.mxu0 0.0
    %10667 = vmatpush.msra.mxu0 0.0
    %10668 = vmatpush.msra.mxu0 0.0
    %10669 = vmatpush.msra.mxu0 0.0
    %10670 = vmatpush.msra.mxu0 0.0
    %10671 = vmatpush.msra.mxu0 0.0
    %v10672 = vand.u32 %v82, 4294901760
    %v10673 = vsub.f32 %v82, %v10672
    %10674 = vmatpush.msra.mxu0 %v10673
    %v10675 = vand.u32 %v81, 4294901760
    %v10676 = vsub.f32 %v81, %v10675
    %10677 = vmatpush.msra.mxu0 %v10676
    %v10678 = vand.u32 %v10583, 4294901760
    %v10679 = vsub.f32 %v10583, %v10678
    %10680 = vmatmul.f32.gmra.mxu0 %v10679
    %v10681 = vpop.f32.mrf.mxu0
    %v10682 = vadd.f32 %v10652, %v10681
    %v10683 = vand.u32 %v10586, 4294901760
    %v10684 = vsub.f32 %v10586, %v10683
    %10685 = vmatmul.f32.gmra.mxu0 %v10684
    %v10686 = vpop.f32.mrf.mxu0
    %v10687 = vadd.f32 %v10656, %v10686
    %10688 = vdwg.mxu0
    %10689 = vmatpush.msra.mxu0 0.0
    %10690 = vmatpush.msra.mxu0 0.0
    %10691 = vmatpush.msra.mxu0 0.0
    %10692 = vmatpush.msra.mxu0 0.0
    %10693 = vmatpush.msra.mxu0 0.0
    %10694 = vmatpush.msra.mxu0 0.0
    %10695 = vmatpush.msra.mxu0 0.0
    %10696 = vmatpush.msra.mxu0 0.0
    %10697 = vmatpush.msra.mxu0 0.0
    %10698 = vmatpush.msra.mxu0 0.0
    %10699 = vmatpush.msra.mxu0 0.0
    %10700 = vmatpush.msra.mxu0 0.0
    %10701 = vmatpush.msra.mxu0 0.0
    %10702 = vmatpush.msra.mxu0 0.0
    %v10703 = vand.u32 %v82, 4294901760
    %10704 = vmatpush.msra.mxu0 %v10703
    %v10705 = vand.u32 %v81, 4294901760
    %10706 = vmatpush.msra.mxu0 %v10705
    %v10707 = vand.u32 %v10583, 4294901760
    %v10708 = vsub.f32 %v10583, %v10707
    %v10709 = vand.u32 %v10708, 4294901760
    %10710 = vmatmul.f32.gmra.mxu0 %v10709
    %v10711 = vpop.f32.mrf.mxu0
    %v10712 = vadd.f32 %v10682, %v10711
    %v10713 = vand.u32 %v10586, 4294901760
    %v10714 = vsub.f32 %v10586, %v10713
    %v10715 = vand.u32 %v10714, 4294901760
    %10716 = vmatmul.f32.gmra.mxu0 %v10715
    %v10717 = vpop.f32.mrf.mxu0
    %v10718 = vadd.f32 %v10687, %v10717
    %10719 = vdwg.mxu0
    %10720 = vmatpush.msra.mxu0 0.0
    %10721 = vmatpush.msra.mxu0 0.0
    %10722 = vmatpush.msra.mxu0 0.0
    %10723 = vmatpush.msra.mxu0 0.0
    %10724 = vmatpush.msra.mxu0 0.0
    %10725 = vmatpush.msra.mxu0 0.0
    %10726 = vmatpush.msra.mxu0 0.0
    %10727 = vmatpush.msra.mxu0 0.0
    %10728 = vmatpush.msra.mxu0 0.0
    %10729 = vmatpush.msra.mxu0 0.0
    %10730 = vmatpush.msra.mxu0 0.0
    %10731 = vmatpush.msra.mxu0 0.0
    %10732 = vmatpush.msra.mxu0 0.0
    %10733 = vmatpush.msra.mxu0 0.0
    %v10734 = vand.u32 %v82, 4294901760
    %v10735 = vsub.f32 %v82, %v10734
    %v10736 = vand.u32 %v10735, 4294901760
    %10737 = vmatpush.msra.mxu0 %v10736
    %v10738 = vand.u32 %v81, 4294901760
    %v10739 = vsub.f32 %v81, %v10738
    %v10740 = vand.u32 %v10739, 4294901760
    %10741 = vmatpush.msra.mxu0 %v10740
    %v10742 = vand.u32 %v10583, 4294901760
    %10743 = vmatmul.f32.gmra.mxu0 %v10742
    %v10744 = vpop.f32.mrf.mxu0
    %v10745 = vadd.f32 %v10712, %v10744
    %v10746 = vand.u32 %v10586, 4294901760
    %10747 = vmatmul.f32.gmra.mxu0 %v10746
    %v10748 = vpop.f32.mrf.mxu0
    %v10749 = vadd.f32 %v10718, %v10748
    %10750 = vdwg.mxu0
    %10751 = vmatpush.msra.mxu0 0.0
    %10752 = vmatpush.msra.mxu0 0.0
    %10753 = vmatpush.msra.mxu0 0.0
    %10754 = vmatpush.msra.mxu0 0.0
    %10755 = vmatpush.msra.mxu0 0.0
    %10756 = vmatpush.msra.mxu0 0.0
    %10757 = vmatpush.msra.mxu0 0.0
    %10758 = vmatpush.msra.mxu0 0.0
    %10759 = vmatpush.msra.mxu0 0.0
    %10760 = vmatpush.msra.mxu0 0.0
    %10761 = vmatpush.msra.mxu0 0.0
    %10762 = vmatpush.msra.mxu0 0.0
    %10763 = vmatpush.msra.mxu0 0.0
    %10764 = vmatpush.msra.mxu0 0.0
    %v10765 = vand.u32 %v82, 4294901760
    %10766 = vmatpush.msra.mxu0 %v10765
    %v10767 = vand.u32 %v81, 4294901760
    %10768 = vmatpush.msra.mxu0 %v10767
    %v10769 = vand.u32 %v10583, 4294901760
    %10770 = vmatmul.f32.gmra.mxu0 %v10769
    %v10771 = vpop.f32.mrf.mxu0
    %v10772 = vadd.f32 %v10745, %v10771
    %v10773 = vand.u32 %v10586, 4294901760
    %10774 = vmatmul.f32.gmra.mxu0 %v10773
    %v10775 = vpop.f32.mrf.mxu0
    %v10776 = vadd.f32 %v10749, %v10775
    %10777 = vdwg.mxu0
    %10778 = vmatpush.msra.mxu0 0.0
    %10779 = vmatpush.msra.mxu0 0.0
    %10780 = vmatpush.msra.mxu0 0.0
    %10781 = vmatpush.msra.mxu0 0.0
    %10782 = vmatpush.msra.mxu0 0.0
    %10783 = vmatpush.msra.mxu0 0.0
    %10784 = vmatpush.msra.mxu0 0.0
    %10785 = vmatpush.msra.mxu0 0.0
    %10786 = vmatpush.msra.mxu0 0.0
    %10787 = vmatpush.msra.mxu0 0.0
    %10788 = vmatpush.msra.mxu0 0.0
    %10789 = vmatpush.msra.mxu0 0.0
    %10790 = vmatpush.msra.mxu0 0.0
    %10791 = vmatpush.msra.mxu0 0.0
    %v10792 = vand.u32 %v10776, 4294901760
    %10793 = vmatpush.msra.mxu0 %v10792
    %v10794 = vand.u32 %v10772, 4294901760
    %10795 = vmatpush.msra.mxu0 %v10794
    %v10796 = vand.u32 %v287, 4294901760
    %v10797 = vsub.f32 %v287, %v10796
    %v10798 = vand.u32 %v10797, 4294901760
    %v10799 = vsub.f32 %v10797, %v10798
    %v10800 = vand.u32 %v10799, 4294901760
    %10801 = vmatmul.f32.gmra.mxu0 %v10800
    %v10802 = vpop.f32.mrf.mxu0
    %v10803 = vadd.f32 0.0, %v10802
    %v10804 = vand.u32 %v290, 4294901760
    %v10805 = vsub.f32 %v290, %v10804
    %v10806 = vand.u32 %v10805, 4294901760
    %v10807 = vsub.f32 %v10805, %v10806
    %v10808 = vand.u32 %v10807, 4294901760
    %10809 = vmatmul.f32.gmra.mxu0 %v10808
    %v10810 = vpop.f32.mrf.mxu0
    %v10811 = vadd.f32 0.0, %v10810
    %10812 = vdwg.mxu0
    %10813 = vmatpush.msra.mxu0 0.0
    %10814 = vmatpush.msra.mxu0 0.0
    %10815 = vmatpush.msra.mxu0 0.0
    %10816 = vmatpush.msra.mxu0 0.0
    %10817 = vmatpush.msra.mxu0 0.0
    %10818 = vmatpush.msra.mxu0 0.0
    %10819 = vmatpush.msra.mxu0 0.0
    %10820 = vmatpush.msra.mxu0 0.0
    %10821 = vmatpush.msra.mxu0 0.0
    %10822 = vmatpush.msra.mxu0 0.0
    %10823 = vmatpush.msra.mxu0 0.0
    %10824 = vmatpush.msra.mxu0 0.0
    %10825 = vmatpush.msra.mxu0 0.0
    %10826 = vmatpush.msra.mxu0 0.0
    %v10827 = vand.u32 %v10776, 4294901760
    %v10828 = vsub.f32 %v10776, %v10827
    %v10829 = vand.u32 %v10828, 4294901760
    %v10830 = vsub.f32 %v10828, %v10829
    %v10831 = vand.u32 %v10830, 4294901760
    %10832 = vmatpush.msra.mxu0 %v10831
    %v10833 = vand.u32 %v10772, 4294901760
    %v10834 = vsub.f32 %v10772, %v10833
    %v10835 = vand.u32 %v10834, 4294901760
    %v10836 = vsub.f32 %v10834, %v10835
    %v10837 = vand.u32 %v10836, 4294901760
    %10838 = vmatpush.msra.mxu0 %v10837
    %v10839 = vand.u32 %v287, 4294901760
    %10840 = vmatmul.f32.gmra.mxu0 %v10839
    %v10841 = vpop.f32.mrf.mxu0
    %v10842 = vadd.f32 %v10803, %v10841
    %v10843 = vand.u32 %v290, 4294901760
    %10844 = vmatmul.f32.gmra.mxu0 %v10843
    %v10845 = vpop.f32.mrf.mxu0
    %v10846 = vadd.f32 %v10811, %v10845
    %10847 = vdwg.mxu0
    %10848 = vmatpush.msra.mxu0 0.0
    %10849 = vmatpush.msra.mxu0 0.0
    %10850 = vmatpush.msra.mxu0 0.0
    %10851 = vmatpush.msra.mxu0 0.0
    %10852 = vmatpush.msra.mxu0 0.0
    %10853 = vmatpush.msra.mxu0 0.0
    %10854 = vmatpush.msra.mxu0 0.0
    %10855 = vmatpush.msra.mxu0 0.0
    %10856 = vmatpush.msra.mxu0 0.0
    %10857 = vmatpush.msra.mxu0 0.0
    %10858 = vmatpush.msra.mxu0 0.0
    %10859 = vmatpush.msra.mxu0 0.0
    %10860 = vmatpush.msra.mxu0 0.0
    %10861 = vmatpush.msra.mxu0 0.0
    %v10862 = vand.u32 %v10776, 4294901760
    %v10863 = vsub.f32 %v10776, %v10862
    %10864 = vmatpush.msra.mxu0 %v10863
    %v10865 = vand.u32 %v10772, 4294901760
    %v10866 = vsub.f32 %v10772, %v10865
    %10867 = vmatpush.msra.mxu0 %v10866
    %v10868 = vand.u32 %v287, 4294901760
    %v10869 = vsub.f32 %v287, %v10868
    %10870 = vmatmul.f32.gmra.mxu0 %v10869
    %v10871 = vpop.f32.mrf.mxu0
    %v10872 = vadd.f32 %v10842, %v10871
    %v10873 = vand.u32 %v290, 4294901760
    %v10874 = vsub.f32 %v290, %v10873
    %10875 = vmatmul.f32.gmra.mxu0 %v10874
    %v10876 = vpop.f32.mrf.mxu0
    %v10877 = vadd.f32 %v10846, %v10876
    %10878 = vdwg.mxu0
    %10879 = vmatpush.msra.mxu0 0.0
    %10880 = vmatpush.msra.mxu0 0.0
    %10881 = vmatpush.msra.mxu0 0.0
    %10882 = vmatpush.msra.mxu0 0.0
    %10883 = vmatpush.msra.mxu0 0.0
    %10884 = vmatpush.msra.mxu0 0.0
    %10885 = vmatpush.msra.mxu0 0.0
    %10886 = vmatpush.msra.mxu0 0.0
    %10887 = vmatpush.msra.mxu0 0.0
    %10888 = vmatpush.msra.mxu0 0.0
    %10889 = vmatpush.msra.mxu0 0.0
    %10890 = vmatpush.msra.mxu0 0.0
    %10891 = vmatpush.msra.mxu0 0.0
    %10892 = vmatpush.msra.mxu0 0.0
    %v10893 = vand.u32 %v10776, 4294901760
    %10894 = vmatpush.msra.mxu0 %v10893
    %v10895 = vand.u32 %v10772, 4294901760
    %10896 = vmatpush.msra.mxu0 %v10895
    %v10897 = vand.u32 %v287, 4294901760
    %v10898 = vsub.f32 %v287, %v10897
    %v10899 = vand.u32 %v10898, 4294901760
    %10900 = vmatmul.f32.gmra.mxu0 %v10899
    %v10901 = vpop.f32.mrf.mxu0
    %v10902 = vadd.f32 %v10872, %v10901
    %v10903 = vand.u32 %v290, 4294901760
    %v10904 = vsub.f32 %v290, %v10903
    %v10905 = vand.u32 %v10904, 4294901760
    %10906 = vmatmul.f32.gmra.mxu0 %v10905
    %v10907 = vpop.f32.mrf.mxu0
    %v10908 = vadd.f32 %v10877, %v10907
    %10909 = vdwg.mxu0
    %10910 = vmatpush.msra.mxu0 0.0
    %10911 = vmatpush.msra.mxu0 0.0
    %10912 = vmatpush.msra.mxu0 0.0
    %10913 = vmatpush.msra.mxu0 0.0
    %10914 = vmatpush.msra.mxu0 0.0
    %10915 = vmatpush.msra.mxu0 0.0
    %10916 = vmatpush.msra.mxu0 0.0
    %10917 = vmatpush.msra.mxu0 0.0
    %10918 = vmatpush.msra.mxu0 0.0
    %10919 = vmatpush.msra.mxu0 0.0
    %10920 = vmatpush.msra.mxu0 0.0
    %10921 = vmatpush.msra.mxu0 0.0
    %10922 = vmatpush.msra.mxu0 0.0
    %10923 = vmatpush.msra.mxu0 0.0
    %v10924 = vand.u32 %v10776, 4294901760
    %v10925 = vsub.f32 %v10776, %v10924
    %v10926 = vand.u32 %v10925, 4294901760
    %10927 = vmatpush.msra.mxu0 %v10926
    %v10928 = vand.u32 %v10772, 4294901760
    %v10929 = vsub.f32 %v10772, %v10928
    %v10930 = vand.u32 %v10929, 4294901760
    %10931 = vmatpush.msra.mxu0 %v10930
    %v10932 = vand.u32 %v287, 4294901760
    %10933 = vmatmul.f32.gmra.mxu0 %v10932
    %v10934 = vpop.f32.mrf.mxu0
    %v10935 = vadd.f32 %v10902, %v10934
    %v10936 = vand.u32 %v290, 4294901760
    %10937 = vmatmul.f32.gmra.mxu0 %v10936
    %v10938 = vpop.f32.mrf.mxu0
    %v10939 = vadd.f32 %v10908, %v10938
    %10940 = vdwg.mxu0
    %10941 = vmatpush.msra.mxu0 0.0
    %10942 = vmatpush.msra.mxu0 0.0
    %10943 = vmatpush.msra.mxu0 0.0
    %10944 = vmatpush.msra.mxu0 0.0
    %10945 = vmatpush.msra.mxu0 0.0
    %10946 = vmatpush.msra.mxu0 0.0
    %10947 = vmatpush.msra.mxu0 0.0
    %10948 = vmatpush.msra.mxu0 0.0
    %10949 = vmatpush.msra.mxu0 0.0
    %10950 = vmatpush.msra.mxu0 0.0
    %10951 = vmatpush.msra.mxu0 0.0
    %10952 = vmatpush.msra.mxu0 0.0
    %10953 = vmatpush.msra.mxu0 0.0
    %10954 = vmatpush.msra.mxu0 0.0
    %v10955 = vand.u32 %v10776, 4294901760
    %10956 = vmatpush.msra.mxu0 %v10955
    %v10957 = vand.u32 %v10772, 4294901760
    %10958 = vmatpush.msra.mxu0 %v10957
    %v10959 = vand.u32 %v287, 4294901760
    %10960 = vmatmul.f32.gmra.mxu0 %v10959
    %v10961 = vpop.f32.mrf.mxu0
    %v10962 = vadd.f32 %v10935, %v10961
    %v10963 = vand.u32 %v290, 4294901760
    %10964 = vmatmul.f32.gmra.mxu0 %v10963
    %v10965 = vpop.f32.mrf.mxu0
    %v10966 = vadd.f32 %v10939, %v10965
    %10967 = vdwg.mxu0
    %v10968 = vmul.f32 %v10576, %v10576
    %v10969 = vmul.f32 %v10580, %v10580
    %v10970 = vmul.f32 %v10962, %v10962
    %v10971 = vmul.f32 %v10966, %v10966
    %v10972 = vmul.f32 %v10576, %v10962
    %v10973 = vmul.f32 %v10580, %v10966
    %v10974 = vmul.f32 %v10191, %v10191
    %v10975 = vmul.f32 %v10192, %v10192
    %v10977 = vsel %vm89, %v10974, 0
    %v10980 = vsel %vm89, %v10975, 0
    %10982 = vmatpush.msra.mxu0 0.0
    %10983 = vmatpush.msra.mxu0 0.0
    %10984 = vmatpush.msra.mxu0 0.0
    %10985 = vmatpush.msra.mxu0 0.0
    %10986 = vmatpush.msra.mxu0 0.0
    %10987 = vmatpush.msra.mxu0 0.0
    %10988 = vmatpush.msra.mxu0 0.0
    %10989 = vmatpush.msra.mxu0 0.0
    %10990 = vmatpush.msra.mxu0 0.0
    %10991 = vmatpush.msra.mxu0 0.0
    %10992 = vmatpush.msra.mxu0 0.0
    %10993 = vmatpush.msra.mxu0 0.0
    %10994 = vmatpush.msra.mxu0 0.0
    %10995 = vmatpush.msra.mxu0 0.0
    %v10996 = vand.u32 %v82, 4294901760
    %10997 = vmatpush.msra.mxu0 %v10996
    %v10998 = vand.u32 %v81, 4294901760
    %10999 = vmatpush.msra.mxu0 %v10998
    %v11000 = vand.u32 %v10977, 4294901760
    %v11001 = vsub.f32 %v10977, %v11000
    %v11002 = vand.u32 %v11001, 4294901760
    %v11003 = vsub.f32 %v11001, %v11002
    %v11004 = vand.u32 %v11003, 4294901760
    %11005 = vmatmul.f32.gmra.mxu0 %v11004
    %v11006 = vpop.f32.mrf.mxu0
    %v11007 = vadd.f32 0.0, %v11006
    %v11008 = vand.u32 %v10980, 4294901760
    %v11009 = vsub.f32 %v10980, %v11008
    %v11010 = vand.u32 %v11009, 4294901760
    %v11011 = vsub.f32 %v11009, %v11010
    %v11012 = vand.u32 %v11011, 4294901760
    %11013 = vmatmul.f32.gmra.mxu0 %v11012
    %v11014 = vpop.f32.mrf.mxu0
    %v11015 = vadd.f32 0.0, %v11014
    %11016 = vdwg.mxu0
    %11017 = vmatpush.msra.mxu0 0.0
    %11018 = vmatpush.msra.mxu0 0.0
    %11019 = vmatpush.msra.mxu0 0.0
    %11020 = vmatpush.msra.mxu0 0.0
    %11021 = vmatpush.msra.mxu0 0.0
    %11022 = vmatpush.msra.mxu0 0.0
    %11023 = vmatpush.msra.mxu0 0.0
    %11024 = vmatpush.msra.mxu0 0.0
    %11025 = vmatpush.msra.mxu0 0.0
    %11026 = vmatpush.msra.mxu0 0.0
    %11027 = vmatpush.msra.mxu0 0.0
    %11028 = vmatpush.msra.mxu0 0.0
    %11029 = vmatpush.msra.mxu0 0.0
    %11030 = vmatpush.msra.mxu0 0.0
    %v11031 = vand.u32 %v82, 4294901760
    %v11032 = vsub.f32 %v82, %v11031
    %v11033 = vand.u32 %v11032, 4294901760
    %v11034 = vsub.f32 %v11032, %v11033
    %v11035 = vand.u32 %v11034, 4294901760
    %11036 = vmatpush.msra.mxu0 %v11035
    %v11037 = vand.u32 %v81, 4294901760
    %v11038 = vsub.f32 %v81, %v11037
    %v11039 = vand.u32 %v11038, 4294901760
    %v11040 = vsub.f32 %v11038, %v11039
    %v11041 = vand.u32 %v11040, 4294901760
    %11042 = vmatpush.msra.mxu0 %v11041
    %v11043 = vand.u32 %v10977, 4294901760
    %11044 = vmatmul.f32.gmra.mxu0 %v11043
    %v11045 = vpop.f32.mrf.mxu0
    %v11046 = vadd.f32 %v11007, %v11045
    %v11047 = vand.u32 %v10980, 4294901760
    %11048 = vmatmul.f32.gmra.mxu0 %v11047
    %v11049 = vpop.f32.mrf.mxu0
    %v11050 = vadd.f32 %v11015, %v11049
    %11051 = vdwg.mxu0
    %11052 = vmatpush.msra.mxu0 0.0
    %11053 = vmatpush.msra.mxu0 0.0
    %11054 = vmatpush.msra.mxu0 0.0
    %11055 = vmatpush.msra.mxu0 0.0
    %11056 = vmatpush.msra.mxu0 0.0
    %11057 = vmatpush.msra.mxu0 0.0
    %11058 = vmatpush.msra.mxu0 0.0
    %11059 = vmatpush.msra.mxu0 0.0
    %11060 = vmatpush.msra.mxu0 0.0
    %11061 = vmatpush.msra.mxu0 0.0
    %11062 = vmatpush.msra.mxu0 0.0
    %11063 = vmatpush.msra.mxu0 0.0
    %11064 = vmatpush.msra.mxu0 0.0
    %11065 = vmatpush.msra.mxu0 0.0
    %v11066 = vand.u32 %v82, 4294901760
    %v11067 = vsub.f32 %v82, %v11066
    %11068 = vmatpush.msra.mxu0 %v11067
    %v11069 = vand.u32 %v81, 4294901760
    %v11070 = vsub.f32 %v81, %v11069
    %11071 = vmatpush.msra.mxu0 %v11070
    %v11072 = vand.u32 %v10977, 4294901760
    %v11073 = vsub.f32 %v10977, %v11072
    %11074 = vmatmul.f32.gmra.mxu0 %v11073
    %v11075 = vpop.f32.mrf.mxu0
    %v11076 = vadd.f32 %v11046, %v11075
    %v11077 = vand.u32 %v10980, 4294901760
    %v11078 = vsub.f32 %v10980, %v11077
    %11079 = vmatmul.f32.gmra.mxu0 %v11078
    %v11080 = vpop.f32.mrf.mxu0
    %v11081 = vadd.f32 %v11050, %v11080
    %11082 = vdwg.mxu0
    %11083 = vmatpush.msra.mxu0 0.0
    %11084 = vmatpush.msra.mxu0 0.0
    %11085 = vmatpush.msra.mxu0 0.0
    %11086 = vmatpush.msra.mxu0 0.0
    %11087 = vmatpush.msra.mxu0 0.0
    %11088 = vmatpush.msra.mxu0 0.0
    %11089 = vmatpush.msra.mxu0 0.0
    %11090 = vmatpush.msra.mxu0 0.0
    %11091 = vmatpush.msra.mxu0 0.0
    %11092 = vmatpush.msra.mxu0 0.0
    %11093 = vmatpush.msra.mxu0 0.0
    %11094 = vmatpush.msra.mxu0 0.0
    %11095 = vmatpush.msra.mxu0 0.0
    %11096 = vmatpush.msra.mxu0 0.0
    %v11097 = vand.u32 %v82, 4294901760
    %11098 = vmatpush.msra.mxu0 %v11097
    %v11099 = vand.u32 %v81, 4294901760
    %11100 = vmatpush.msra.mxu0 %v11099
    %v11101 = vand.u32 %v10977, 4294901760
    %v11102 = vsub.f32 %v10977, %v11101
    %v11103 = vand.u32 %v11102, 4294901760
    %11104 = vmatmul.f32.gmra.mxu0 %v11103
    %v11105 = vpop.f32.mrf.mxu0
    %v11106 = vadd.f32 %v11076, %v11105
    %v11107 = vand.u32 %v10980, 4294901760
    %v11108 = vsub.f32 %v10980, %v11107
    %v11109 = vand.u32 %v11108, 4294901760
    %11110 = vmatmul.f32.gmra.mxu0 %v11109
    %v11111 = vpop.f32.mrf.mxu0
    %v11112 = vadd.f32 %v11081, %v11111
    %11113 = vdwg.mxu0
    %11114 = vmatpush.msra.mxu0 0.0
    %11115 = vmatpush.msra.mxu0 0.0
    %11116 = vmatpush.msra.mxu0 0.0
    %11117 = vmatpush.msra.mxu0 0.0
    %11118 = vmatpush.msra.mxu0 0.0
    %11119 = vmatpush.msra.mxu0 0.0
    %11120 = vmatpush.msra.mxu0 0.0
    %11121 = vmatpush.msra.mxu0 0.0
    %11122 = vmatpush.msra.mxu0 0.0
    %11123 = vmatpush.msra.mxu0 0.0
    %11124 = vmatpush.msra.mxu0 0.0
    %11125 = vmatpush.msra.mxu0 0.0
    %11126 = vmatpush.msra.mxu0 0.0
    %11127 = vmatpush.msra.mxu0 0.0
    %v11128 = vand.u32 %v82, 4294901760
    %v11129 = vsub.f32 %v82, %v11128
    %v11130 = vand.u32 %v11129, 4294901760
    %11131 = vmatpush.msra.mxu0 %v11130
    %v11132 = vand.u32 %v81, 4294901760
    %v11133 = vsub.f32 %v81, %v11132
    %v11134 = vand.u32 %v11133, 4294901760
    %11135 = vmatpush.msra.mxu0 %v11134
    %v11136 = vand.u32 %v10977, 4294901760
    %11137 = vmatmul.f32.gmra.mxu0 %v11136
    %v11138 = vpop.f32.mrf.mxu0
    %v11139 = vadd.f32 %v11106, %v11138
    %v11140 = vand.u32 %v10980, 4294901760
    %11141 = vmatmul.f32.gmra.mxu0 %v11140
    %v11142 = vpop.f32.mrf.mxu0
    %v11143 = vadd.f32 %v11112, %v11142
    %11144 = vdwg.mxu0
    %11145 = vmatpush.msra.mxu0 0.0
    %11146 = vmatpush.msra.mxu0 0.0
    %11147 = vmatpush.msra.mxu0 0.0
    %11148 = vmatpush.msra.mxu0 0.0
    %11149 = vmatpush.msra.mxu0 0.0
    %11150 = vmatpush.msra.mxu0 0.0
    %11151 = vmatpush.msra.mxu0 0.0
    %11152 = vmatpush.msra.mxu0 0.0
    %11153 = vmatpush.msra.mxu0 0.0
    %11154 = vmatpush.msra.mxu0 0.0
    %11155 = vmatpush.msra.mxu0 0.0
    %11156 = vmatpush.msra.mxu0 0.0
    %11157 = vmatpush.msra.mxu0 0.0
    %11158 = vmatpush.msra.mxu0 0.0
    %v11159 = vand.u32 %v82, 4294901760
    %11160 = vmatpush.msra.mxu0 %v11159
    %v11161 = vand.u32 %v81, 4294901760
    %11162 = vmatpush.msra.mxu0 %v11161
    %v11163 = vand.u32 %v10977, 4294901760
    %11164 = vmatmul.f32.gmra.mxu0 %v11163
    %v11165 = vpop.f32.mrf.mxu0
    %v11166 = vadd.f32 %v11139, %v11165
    %v11167 = vand.u32 %v10980, 4294901760
    %11168 = vmatmul.f32.gmra.mxu0 %v11167
    %v11169 = vpop.f32.mrf.mxu0
    %v11170 = vadd.f32 %v11143, %v11169
    %11171 = vdwg.mxu0
    %11172 = vmatpush.msra.mxu0 0.0
    %11173 = vmatpush.msra.mxu0 0.0
    %11174 = vmatpush.msra.mxu0 0.0
    %11175 = vmatpush.msra.mxu0 0.0
    %11176 = vmatpush.msra.mxu0 0.0
    %11177 = vmatpush.msra.mxu0 0.0
    %11178 = vmatpush.msra.mxu0 0.0
    %11179 = vmatpush.msra.mxu0 0.0
    %11180 = vmatpush.msra.mxu0 0.0
    %11181 = vmatpush.msra.mxu0 0.0
    %11182 = vmatpush.msra.mxu0 0.0
    %11183 = vmatpush.msra.mxu0 0.0
    %11184 = vmatpush.msra.mxu0 0.0
    %11185 = vmatpush.msra.mxu0 0.0
    %v11186 = vand.u32 %v11170, 4294901760
    %11187 = vmatpush.msra.mxu0 %v11186
    %v11188 = vand.u32 %v11166, 4294901760
    %11189 = vmatpush.msra.mxu0 %v11188
    %v11190 = vand.u32 %v287, 4294901760
    %v11191 = vsub.f32 %v287, %v11190
    %v11192 = vand.u32 %v11191, 4294901760
    %v11193 = vsub.f32 %v11191, %v11192
    %v11194 = vand.u32 %v11193, 4294901760
    %11195 = vmatmul.f32.gmra.mxu0 %v11194
    %v11196 = vpop.f32.mrf.mxu0
    %v11197 = vadd.f32 0.0, %v11196
    %v11198 = vand.u32 %v290, 4294901760
    %v11199 = vsub.f32 %v290, %v11198
    %v11200 = vand.u32 %v11199, 4294901760
    %v11201 = vsub.f32 %v11199, %v11200
    %v11202 = vand.u32 %v11201, 4294901760
    %11203 = vmatmul.f32.gmra.mxu0 %v11202
    %v11204 = vpop.f32.mrf.mxu0
    %v11205 = vadd.f32 0.0, %v11204
    %11206 = vdwg.mxu0
    %11207 = vmatpush.msra.mxu0 0.0
    %11208 = vmatpush.msra.mxu0 0.0
    %11209 = vmatpush.msra.mxu0 0.0
    %11210 = vmatpush.msra.mxu0 0.0
    %11211 = vmatpush.msra.mxu0 0.0
    %11212 = vmatpush.msra.mxu0 0.0
    %11213 = vmatpush.msra.mxu0 0.0
    %11214 = vmatpush.msra.mxu0 0.0
    %11215 = vmatpush.msra.mxu0 0.0
    %11216 = vmatpush.msra.mxu0 0.0
    %11217 = vmatpush.msra.mxu0 0.0
    %11218 = vmatpush.msra.mxu0 0.0
    %11219 = vmatpush.msra.mxu0 0.0
    %11220 = vmatpush.msra.mxu0 0.0
    %v11221 = vand.u32 %v11170, 4294901760
    %v11222 = vsub.f32 %v11170, %v11221
    %v11223 = vand.u32 %v11222, 4294901760
    %v11224 = vsub.f32 %v11222, %v11223
    %v11225 = vand.u32 %v11224, 4294901760
    %11226 = vmatpush.msra.mxu0 %v11225
    %v11227 = vand.u32 %v11166, 4294901760
    %v11228 = vsub.f32 %v11166, %v11227
    %v11229 = vand.u32 %v11228, 4294901760
    %v11230 = vsub.f32 %v11228, %v11229
    %v11231 = vand.u32 %v11230, 4294901760
    %11232 = vmatpush.msra.mxu0 %v11231
    %v11233 = vand.u32 %v287, 4294901760
    %11234 = vmatmul.f32.gmra.mxu0 %v11233
    %v11235 = vpop.f32.mrf.mxu0
    %v11236 = vadd.f32 %v11197, %v11235
    %v11237 = vand.u32 %v290, 4294901760
    %11238 = vmatmul.f32.gmra.mxu0 %v11237
    %v11239 = vpop.f32.mrf.mxu0
    %v11240 = vadd.f32 %v11205, %v11239
    %11241 = vdwg.mxu0
    %11242 = vmatpush.msra.mxu0 0.0
    %11243 = vmatpush.msra.mxu0 0.0
    %11244 = vmatpush.msra.mxu0 0.0
    %11245 = vmatpush.msra.mxu0 0.0
    %11246 = vmatpush.msra.mxu0 0.0
    %11247 = vmatpush.msra.mxu0 0.0
    %11248 = vmatpush.msra.mxu0 0.0
    %11249 = vmatpush.msra.mxu0 0.0
    %11250 = vmatpush.msra.mxu0 0.0
    %11251 = vmatpush.msra.mxu0 0.0
    %11252 = vmatpush.msra.mxu0 0.0
    %11253 = vmatpush.msra.mxu0 0.0
    %11254 = vmatpush.msra.mxu0 0.0
    %11255 = vmatpush.msra.mxu0 0.0
    %v11256 = vand.u32 %v11170, 4294901760
    %v11257 = vsub.f32 %v11170, %v11256
    %11258 = vmatpush.msra.mxu0 %v11257
    %v11259 = vand.u32 %v11166, 4294901760
    %v11260 = vsub.f32 %v11166, %v11259
    %11261 = vmatpush.msra.mxu0 %v11260
    %v11262 = vand.u32 %v287, 4294901760
    %v11263 = vsub.f32 %v287, %v11262
    %11264 = vmatmul.f32.gmra.mxu0 %v11263
    %v11265 = vpop.f32.mrf.mxu0
    %v11266 = vadd.f32 %v11236, %v11265
    %v11267 = vand.u32 %v290, 4294901760
    %v11268 = vsub.f32 %v290, %v11267
    %11269 = vmatmul.f32.gmra.mxu0 %v11268
    %v11270 = vpop.f32.mrf.mxu0
    %v11271 = vadd.f32 %v11240, %v11270
    %11272 = vdwg.mxu0
    %11273 = vmatpush.msra.mxu0 0.0
    %11274 = vmatpush.msra.mxu0 0.0
    %11275 = vmatpush.msra.mxu0 0.0
    %11276 = vmatpush.msra.mxu0 0.0
    %11277 = vmatpush.msra.mxu0 0.0
    %11278 = vmatpush.msra.mxu0 0.0
    %11279 = vmatpush.msra.mxu0 0.0
    %11280 = vmatpush.msra.mxu0 0.0
    %11281 = vmatpush.msra.mxu0 0.0
    %11282 = vmatpush.msra.mxu0 0.0
    %11283 = vmatpush.msra.mxu0 0.0
    %11284 = vmatpush.msra.mxu0 0.0
    %11285 = vmatpush.msra.mxu0 0.0
    %11286 = vmatpush.msra.mxu0 0.0
    %v11287 = vand.u32 %v11170, 4294901760
    %11288 = vmatpush.msra.mxu0 %v11287
    %v11289 = vand.u32 %v11166, 4294901760
    %11290 = vmatpush.msra.mxu0 %v11289
    %v11291 = vand.u32 %v287, 4294901760
    %v11292 = vsub.f32 %v287, %v11291
    %v11293 = vand.u32 %v11292, 4294901760
    %11294 = vmatmul.f32.gmra.mxu0 %v11293
    %v11295 = vpop.f32.mrf.mxu0
    %v11296 = vadd.f32 %v11266, %v11295
    %v11297 = vand.u32 %v290, 4294901760
    %v11298 = vsub.f32 %v290, %v11297
    %v11299 = vand.u32 %v11298, 4294901760
    %11300 = vmatmul.f32.gmra.mxu0 %v11299
    %v11301 = vpop.f32.mrf.mxu0
    %v11302 = vadd.f32 %v11271, %v11301
    %11303 = vdwg.mxu0
    %11304 = vmatpush.msra.mxu0 0.0
    %11305 = vmatpush.msra.mxu0 0.0
    %11306 = vmatpush.msra.mxu0 0.0
    %11307 = vmatpush.msra.mxu0 0.0
    %11308 = vmatpush.msra.mxu0 0.0
    %11309 = vmatpush.msra.mxu0 0.0
    %11310 = vmatpush.msra.mxu0 0.0
    %11311 = vmatpush.msra.mxu0 0.0
    %11312 = vmatpush.msra.mxu0 0.0
    %11313 = vmatpush.msra.mxu0 0.0
    %11314 = vmatpush.msra.mxu0 0.0
    %11315 = vmatpush.msra.mxu0 0.0
    %11316 = vmatpush.msra.mxu0 0.0
    %11317 = vmatpush.msra.mxu0 0.0
    %v11318 = vand.u32 %v11170, 4294901760
    %v11319 = vsub.f32 %v11170, %v11318
    %v11320 = vand.u32 %v11319, 4294901760
    %11321 = vmatpush.msra.mxu0 %v11320
    %v11322 = vand.u32 %v11166, 4294901760
    %v11323 = vsub.f32 %v11166, %v11322
    %v11324 = vand.u32 %v11323, 4294901760
    %11325 = vmatpush.msra.mxu0 %v11324
    %v11326 = vand.u32 %v287, 4294901760
    %11327 = vmatmul.f32.gmra.mxu0 %v11326
    %v11328 = vpop.f32.mrf.mxu0
    %v11329 = vadd.f32 %v11296, %v11328
    %v11330 = vand.u32 %v290, 4294901760
    %11331 = vmatmul.f32.gmra.mxu0 %v11330
    %v11332 = vpop.f32.mrf.mxu0
    %v11333 = vadd.f32 %v11302, %v11332
    %11334 = vdwg.mxu0
    %11335 = vmatpush.msra.mxu0 0.0
    %11336 = vmatpush.msra.mxu0 0.0
    %11337 = vmatpush.msra.mxu0 0.0
    %11338 = vmatpush.msra.mxu0 0.0
    %11339 = vmatpush.msra.mxu0 0.0
    %11340 = vmatpush.msra.mxu0 0.0
    %11341 = vmatpush.msra.mxu0 0.0
    %11342 = vmatpush.msra.mxu0 0.0
    %11343 = vmatpush.msra.mxu0 0.0
    %11344 = vmatpush.msra.mxu0 0.0
    %11345 = vmatpush.msra.mxu0 0.0
    %11346 = vmatpush.msra.mxu0 0.0
    %11347 = vmatpush.msra.mxu0 0.0
    %11348 = vmatpush.msra.mxu0 0.0
    %v11349 = vand.u32 %v11170, 4294901760
    %11350 = vmatpush.msra.mxu0 %v11349
    %v11351 = vand.u32 %v11166, 4294901760
    %11352 = vmatpush.msra.mxu0 %v11351
    %v11353 = vand.u32 %v287, 4294901760
    %11354 = vmatmul.f32.gmra.mxu0 %v11353
    %v11355 = vpop.f32.mrf.mxu0
    %v11356 = vadd.f32 %v11329, %v11355
    %v11357 = vand.u32 %v290, 4294901760
    %11358 = vmatmul.f32.gmra.mxu0 %v11357
    %v11359 = vpop.f32.mrf.mxu0
    %v11360 = vadd.f32 %v11333, %v11359
    %11361 = vdwg.mxu0
    %v11362 = vsub.f32 %v11356, %v10968
    %v11363 = vsub.f32 %v11360, %v10969
    %v11364 = vmul.f32 %v10194, %v10194
    %v11365 = vmul.f32 %v10195, %v10195
    %v11367 = vsel %vm89, %v11364, 0
    %v11370 = vsel %vm89, %v11365, 0
    %11372 = vmatpush.msra.mxu0 0.0
    %11373 = vmatpush.msra.mxu0 0.0
    %11374 = vmatpush.msra.mxu0 0.0
    %11375 = vmatpush.msra.mxu0 0.0
    %11376 = vmatpush.msra.mxu0 0.0
    %11377 = vmatpush.msra.mxu0 0.0
    %11378 = vmatpush.msra.mxu0 0.0
    %11379 = vmatpush.msra.mxu0 0.0
    %11380 = vmatpush.msra.mxu0 0.0
    %11381 = vmatpush.msra.mxu0 0.0
    %11382 = vmatpush.msra.mxu0 0.0
    %11383 = vmatpush.msra.mxu0 0.0
    %11384 = vmatpush.msra.mxu0 0.0
    %11385 = vmatpush.msra.mxu0 0.0
    %v11386 = vand.u32 %v82, 4294901760
    %11387 = vmatpush.msra.mxu0 %v11386
    %v11388 = vand.u32 %v81, 4294901760
    %11389 = vmatpush.msra.mxu0 %v11388
    %v11390 = vand.u32 %v11367, 4294901760
    %v11391 = vsub.f32 %v11367, %v11390
    %v11392 = vand.u32 %v11391, 4294901760
    %v11393 = vsub.f32 %v11391, %v11392
    %v11394 = vand.u32 %v11393, 4294901760
    %11395 = vmatmul.f32.gmra.mxu0 %v11394
    %v11396 = vpop.f32.mrf.mxu0
    %v11397 = vadd.f32 0.0, %v11396
    %v11398 = vand.u32 %v11370, 4294901760
    %v11399 = vsub.f32 %v11370, %v11398
    %v11400 = vand.u32 %v11399, 4294901760
    %v11401 = vsub.f32 %v11399, %v11400
    %v11402 = vand.u32 %v11401, 4294901760
    %11403 = vmatmul.f32.gmra.mxu0 %v11402
    %v11404 = vpop.f32.mrf.mxu0
    %v11405 = vadd.f32 0.0, %v11404
    %11406 = vdwg.mxu0
    %11407 = vmatpush.msra.mxu0 0.0
    %11408 = vmatpush.msra.mxu0 0.0
    %11409 = vmatpush.msra.mxu0 0.0
    %11410 = vmatpush.msra.mxu0 0.0
    %11411 = vmatpush.msra.mxu0 0.0
    %11412 = vmatpush.msra.mxu0 0.0
    %11413 = vmatpush.msra.mxu0 0.0
    %11414 = vmatpush.msra.mxu0 0.0
    %11415 = vmatpush.msra.mxu0 0.0
    %11416 = vmatpush.msra.mxu0 0.0
    %11417 = vmatpush.msra.mxu0 0.0
    %11418 = vmatpush.msra.mxu0 0.0
    %11419 = vmatpush.msra.mxu0 0.0
    %11420 = vmatpush.msra.mxu0 0.0
    %v11421 = vand.u32 %v82, 4294901760
    %v11422 = vsub.f32 %v82, %v11421
    %v11423 = vand.u32 %v11422, 4294901760
    %v11424 = vsub.f32 %v11422, %v11423
    %v11425 = vand.u32 %v11424, 4294901760
    %11426 = vmatpush.msra.mxu0 %v11425
    %v11427 = vand.u32 %v81, 4294901760
    %v11428 = vsub.f32 %v81, %v11427
    %v11429 = vand.u32 %v11428, 4294901760
    %v11430 = vsub.f32 %v11428, %v11429
    %v11431 = vand.u32 %v11430, 4294901760
    %11432 = vmatpush.msra.mxu0 %v11431
    %v11433 = vand.u32 %v11367, 4294901760
    %11434 = vmatmul.f32.gmra.mxu0 %v11433
    %v11435 = vpop.f32.mrf.mxu0
    %v11436 = vadd.f32 %v11397, %v11435
    %v11437 = vand.u32 %v11370, 4294901760
    %11438 = vmatmul.f32.gmra.mxu0 %v11437
    %v11439 = vpop.f32.mrf.mxu0
    %v11440 = vadd.f32 %v11405, %v11439
    %11441 = vdwg.mxu0
    %11442 = vmatpush.msra.mxu0 0.0
    %11443 = vmatpush.msra.mxu0 0.0
    %11444 = vmatpush.msra.mxu0 0.0
    %11445 = vmatpush.msra.mxu0 0.0
    %11446 = vmatpush.msra.mxu0 0.0
    %11447 = vmatpush.msra.mxu0 0.0
    %11448 = vmatpush.msra.mxu0 0.0
    %11449 = vmatpush.msra.mxu0 0.0
    %11450 = vmatpush.msra.mxu0 0.0
    %11451 = vmatpush.msra.mxu0 0.0
    %11452 = vmatpush.msra.mxu0 0.0
    %11453 = vmatpush.msra.mxu0 0.0
    %11454 = vmatpush.msra.mxu0 0.0
    %11455 = vmatpush.msra.mxu0 0.0
    %v11456 = vand.u32 %v82, 4294901760
    %v11457 = vsub.f32 %v82, %v11456
    %11458 = vmatpush.msra.mxu0 %v11457
    %v11459 = vand.u32 %v81, 4294901760
    %v11460 = vsub.f32 %v81, %v11459
    %11461 = vmatpush.msra.mxu0 %v11460
    %v11462 = vand.u32 %v11367, 4294901760
    %v11463 = vsub.f32 %v11367, %v11462
    %11464 = vmatmul.f32.gmra.mxu0 %v11463
    %v11465 = vpop.f32.mrf.mxu0
    %v11466 = vadd.f32 %v11436, %v11465
    %v11467 = vand.u32 %v11370, 4294901760
    %v11468 = vsub.f32 %v11370, %v11467
    %11469 = vmatmul.f32.gmra.mxu0 %v11468
    %v11470 = vpop.f32.mrf.mxu0
    %v11471 = vadd.f32 %v11440, %v11470
    %11472 = vdwg.mxu0
    %11473 = vmatpush.msra.mxu0 0.0
    %11474 = vmatpush.msra.mxu0 0.0
    %11475 = vmatpush.msra.mxu0 0.0
    %11476 = vmatpush.msra.mxu0 0.0
    %11477 = vmatpush.msra.mxu0 0.0
    %11478 = vmatpush.msra.mxu0 0.0
    %11479 = vmatpush.msra.mxu0 0.0
    %11480 = vmatpush.msra.mxu0 0.0
    %11481 = vmatpush.msra.mxu0 0.0
    %11482 = vmatpush.msra.mxu0 0.0
    %11483 = vmatpush.msra.mxu0 0.0
    %11484 = vmatpush.msra.mxu0 0.0
    %11485 = vmatpush.msra.mxu0 0.0
    %11486 = vmatpush.msra.mxu0 0.0
    %v11487 = vand.u32 %v82, 4294901760
    %11488 = vmatpush.msra.mxu0 %v11487
    %v11489 = vand.u32 %v81, 4294901760
    %11490 = vmatpush.msra.mxu0 %v11489
    %v11491 = vand.u32 %v11367, 4294901760
    %v11492 = vsub.f32 %v11367, %v11491
    %v11493 = vand.u32 %v11492, 4294901760
    %11494 = vmatmul.f32.gmra.mxu0 %v11493
    %v11495 = vpop.f32.mrf.mxu0
    %v11496 = vadd.f32 %v11466, %v11495
    %v11497 = vand.u32 %v11370, 4294901760
    %v11498 = vsub.f32 %v11370, %v11497
    %v11499 = vand.u32 %v11498, 4294901760
    %11500 = vmatmul.f32.gmra.mxu0 %v11499
    %v11501 = vpop.f32.mrf.mxu0
    %v11502 = vadd.f32 %v11471, %v11501
    %11503 = vdwg.mxu0
    %11504 = vmatpush.msra.mxu0 0.0
    %11505 = vmatpush.msra.mxu0 0.0
    %11506 = vmatpush.msra.mxu0 0.0
    %11507 = vmatpush.msra.mxu0 0.0
    %11508 = vmatpush.msra.mxu0 0.0
    %11509 = vmatpush.msra.mxu0 0.0
    %11510 = vmatpush.msra.mxu0 0.0
    %11511 = vmatpush.msra.mxu0 0.0
    %11512 = vmatpush.msra.mxu0 0.0
    %11513 = vmatpush.msra.mxu0 0.0
    %11514 = vmatpush.msra.mxu0 0.0
    %11515 = vmatpush.msra.mxu0 0.0
    %11516 = vmatpush.msra.mxu0 0.0
    %11517 = vmatpush.msra.mxu0 0.0
    %v11518 = vand.u32 %v82, 4294901760
    %v11519 = vsub.f32 %v82, %v11518
    %v11520 = vand.u32 %v11519, 4294901760
    %11521 = vmatpush.msra.mxu0 %v11520
    %v11522 = vand.u32 %v81, 4294901760
    %v11523 = vsub.f32 %v81, %v11522
    %v11524 = vand.u32 %v11523, 4294901760
    %11525 = vmatpush.msra.mxu0 %v11524
    %v11526 = vand.u32 %v11367, 4294901760
    %11527 = vmatmul.f32.gmra.mxu0 %v11526
    %v11528 = vpop.f32.mrf.mxu0
    %v11529 = vadd.f32 %v11496, %v11528
    %v11530 = vand.u32 %v11370, 4294901760
    %11531 = vmatmul.f32.gmra.mxu0 %v11530
    %v11532 = vpop.f32.mrf.mxu0
    %v11533 = vadd.f32 %v11502, %v11532
    %11534 = vdwg.mxu0
    %11535 = vmatpush.msra.mxu0 0.0
    %11536 = vmatpush.msra.mxu0 0.0
    %11537 = vmatpush.msra.mxu0 0.0
    %11538 = vmatpush.msra.mxu0 0.0
    %11539 = vmatpush.msra.mxu0 0.0
    %11540 = vmatpush.msra.mxu0 0.0
    %11541 = vmatpush.msra.mxu0 0.0
    %11542 = vmatpush.msra.mxu0 0.0
    %11543 = vmatpush.msra.mxu0 0.0
    %11544 = vmatpush.msra.mxu0 0.0
    %11545 = vmatpush.msra.mxu0 0.0
    %11546 = vmatpush.msra.mxu0 0.0
    %11547 = vmatpush.msra.mxu0 0.0
    %11548 = vmatpush.msra.mxu0 0.0
    %v11549 = vand.u32 %v82, 4294901760
    %11550 = vmatpush.msra.mxu0 %v11549
    %v11551 = vand.u32 %v81, 4294901760
    %11552 = vmatpush.msra.mxu0 %v11551
    %v11553 = vand.u32 %v11367, 4294901760
    %11554 = vmatmul.f32.gmra.mxu0 %v11553
    %v11555 = vpop.f32.mrf.mxu0
    %v11556 = vadd.f32 %v11529, %v11555
    %v11557 = vand.u32 %v11370, 4294901760
    %11558 = vmatmul.f32.gmra.mxu0 %v11557
    %v11559 = vpop.f32.mrf.mxu0
    %v11560 = vadd.f32 %v11533, %v11559
    %11561 = vdwg.mxu0
    %11562 = vmatpush.msra.mxu0 0.0
    %11563 = vmatpush.msra.mxu0 0.0
    %11564 = vmatpush.msra.mxu0 0.0
    %11565 = vmatpush.msra.mxu0 0.0
    %11566 = vmatpush.msra.mxu0 0.0
    %11567 = vmatpush.msra.mxu0 0.0
    %11568 = vmatpush.msra.mxu0 0.0
    %11569 = vmatpush.msra.mxu0 0.0
    %11570 = vmatpush.msra.mxu0 0.0
    %11571 = vmatpush.msra.mxu0 0.0
    %11572 = vmatpush.msra.mxu0 0.0
    %11573 = vmatpush.msra.mxu0 0.0
    %11574 = vmatpush.msra.mxu0 0.0
    %11575 = vmatpush.msra.mxu0 0.0
    %v11576 = vand.u32 %v11560, 4294901760
    %11577 = vmatpush.msra.mxu0 %v11576
    %v11578 = vand.u32 %v11556, 4294901760
    %11579 = vmatpush.msra.mxu0 %v11578
    %v11580 = vand.u32 %v287, 4294901760
    %v11581 = vsub.f32 %v287, %v11580
    %v11582 = vand.u32 %v11581, 4294901760
    %v11583 = vsub.f32 %v11581, %v11582
    %v11584 = vand.u32 %v11583, 4294901760
    %11585 = vmatmul.f32.gmra.mxu0 %v11584
    %v11586 = vpop.f32.mrf.mxu0
    %v11587 = vadd.f32 0.0, %v11586
    %v11588 = vand.u32 %v290, 4294901760
    %v11589 = vsub.f32 %v290, %v11588
    %v11590 = vand.u32 %v11589, 4294901760
    %v11591 = vsub.f32 %v11589, %v11590
    %v11592 = vand.u32 %v11591, 4294901760
    %11593 = vmatmul.f32.gmra.mxu0 %v11592
    %v11594 = vpop.f32.mrf.mxu0
    %v11595 = vadd.f32 0.0, %v11594
    %11596 = vdwg.mxu0
    %11597 = vmatpush.msra.mxu0 0.0
    %11598 = vmatpush.msra.mxu0 0.0
    %11599 = vmatpush.msra.mxu0 0.0
    %11600 = vmatpush.msra.mxu0 0.0
    %11601 = vmatpush.msra.mxu0 0.0
    %11602 = vmatpush.msra.mxu0 0.0
    %11603 = vmatpush.msra.mxu0 0.0
    %11604 = vmatpush.msra.mxu0 0.0
    %11605 = vmatpush.msra.mxu0 0.0
    %11606 = vmatpush.msra.mxu0 0.0
    %11607 = vmatpush.msra.mxu0 0.0
    %11608 = vmatpush.msra.mxu0 0.0
    %11609 = vmatpush.msra.mxu0 0.0
    %11610 = vmatpush.msra.mxu0 0.0
    %v11611 = vand.u32 %v11560, 4294901760
    %v11612 = vsub.f32 %v11560, %v11611
    %v11613 = vand.u32 %v11612, 4294901760
    %v11614 = vsub.f32 %v11612, %v11613
    %v11615 = vand.u32 %v11614, 4294901760
    %11616 = vmatpush.msra.mxu0 %v11615
    %v11617 = vand.u32 %v11556, 4294901760
    %v11618 = vsub.f32 %v11556, %v11617
    %v11619 = vand.u32 %v11618, 4294901760
    %v11620 = vsub.f32 %v11618, %v11619
    %v11621 = vand.u32 %v11620, 4294901760
    %11622 = vmatpush.msra.mxu0 %v11621
    %v11623 = vand.u32 %v287, 4294901760
    %11624 = vmatmul.f32.gmra.mxu0 %v11623
    %v11625 = vpop.f32.mrf.mxu0
    %v11626 = vadd.f32 %v11587, %v11625
    %v11627 = vand.u32 %v290, 4294901760
    %11628 = vmatmul.f32.gmra.mxu0 %v11627
    %v11629 = vpop.f32.mrf.mxu0
    %v11630 = vadd.f32 %v11595, %v11629
    %11631 = vdwg.mxu0
    %11632 = vmatpush.msra.mxu0 0.0
    %11633 = vmatpush.msra.mxu0 0.0
    %11634 = vmatpush.msra.mxu0 0.0
    %11635 = vmatpush.msra.mxu0 0.0
    %11636 = vmatpush.msra.mxu0 0.0
    %11637 = vmatpush.msra.mxu0 0.0
    %11638 = vmatpush.msra.mxu0 0.0
    %11639 = vmatpush.msra.mxu0 0.0
    %11640 = vmatpush.msra.mxu0 0.0
    %11641 = vmatpush.msra.mxu0 0.0
    %11642 = vmatpush.msra.mxu0 0.0
    %11643 = vmatpush.msra.mxu0 0.0
    %11644 = vmatpush.msra.mxu0 0.0
    %11645 = vmatpush.msra.mxu0 0.0
    %v11646 = vand.u32 %v11560, 4294901760
    %v11647 = vsub.f32 %v11560, %v11646
    %11648 = vmatpush.msra.mxu0 %v11647
    %v11649 = vand.u32 %v11556, 4294901760
    %v11650 = vsub.f32 %v11556, %v11649
    %11651 = vmatpush.msra.mxu0 %v11650
    %v11652 = vand.u32 %v287, 4294901760
    %v11653 = vsub.f32 %v287, %v11652
    %11654 = vmatmul.f32.gmra.mxu0 %v11653
    %v11655 = vpop.f32.mrf.mxu0
    %v11656 = vadd.f32 %v11626, %v11655
    %v11657 = vand.u32 %v290, 4294901760
    %v11658 = vsub.f32 %v290, %v11657
    %11659 = vmatmul.f32.gmra.mxu0 %v11658
    %v11660 = vpop.f32.mrf.mxu0
    %v11661 = vadd.f32 %v11630, %v11660
    %11662 = vdwg.mxu0
    %11663 = vmatpush.msra.mxu0 0.0
    %11664 = vmatpush.msra.mxu0 0.0
    %11665 = vmatpush.msra.mxu0 0.0
    %11666 = vmatpush.msra.mxu0 0.0
    %11667 = vmatpush.msra.mxu0 0.0
    %11668 = vmatpush.msra.mxu0 0.0
    %11669 = vmatpush.msra.mxu0 0.0
    %11670 = vmatpush.msra.mxu0 0.0
    %11671 = vmatpush.msra.mxu0 0.0
    %11672 = vmatpush.msra.mxu0 0.0
    %11673 = vmatpush.msra.mxu0 0.0
    %11674 = vmatpush.msra.mxu0 0.0
    %11675 = vmatpush.msra.mxu0 0.0
    %11676 = vmatpush.msra.mxu0 0.0
    %v11677 = vand.u32 %v11560, 4294901760
    %11678 = vmatpush.msra.mxu0 %v11677
    %v11679 = vand.u32 %v11556, 4294901760
    %11680 = vmatpush.msra.mxu0 %v11679
    %v11681 = vand.u32 %v287, 4294901760
    %v11682 = vsub.f32 %v287, %v11681
    %v11683 = vand.u32 %v11682, 4294901760
    %11684 = vmatmul.f32.gmra.mxu0 %v11683
    %v11685 = vpop.f32.mrf.mxu0
    %v11686 = vadd.f32 %v11656, %v11685
    %v11687 = vand.u32 %v290, 4294901760
    %v11688 = vsub.f32 %v290, %v11687
    %v11689 = vand.u32 %v11688, 4294901760
    %11690 = vmatmul.f32.gmra.mxu0 %v11689
    %v11691 = vpop.f32.mrf.mxu0
    %v11692 = vadd.f32 %v11661, %v11691
    %11693 = vdwg.mxu0
    %11694 = vmatpush.msra.mxu0 0.0
    %11695 = vmatpush.msra.mxu0 0.0
    %11696 = vmatpush.msra.mxu0 0.0
    %11697 = vmatpush.msra.mxu0 0.0
    %11698 = vmatpush.msra.mxu0 0.0
    %11699 = vmatpush.msra.mxu0 0.0
    %11700 = vmatpush.msra.mxu0 0.0
    %11701 = vmatpush.msra.mxu0 0.0
    %11702 = vmatpush.msra.mxu0 0.0
    %11703 = vmatpush.msra.mxu0 0.0
    %11704 = vmatpush.msra.mxu0 0.0
    %11705 = vmatpush.msra.mxu0 0.0
    %11706 = vmatpush.msra.mxu0 0.0
    %11707 = vmatpush.msra.mxu0 0.0
    %v11708 = vand.u32 %v11560, 4294901760
    %v11709 = vsub.f32 %v11560, %v11708
    %v11710 = vand.u32 %v11709, 4294901760
    %11711 = vmatpush.msra.mxu0 %v11710
    %v11712 = vand.u32 %v11556, 4294901760
    %v11713 = vsub.f32 %v11556, %v11712
    %v11714 = vand.u32 %v11713, 4294901760
    %11715 = vmatpush.msra.mxu0 %v11714
    %v11716 = vand.u32 %v287, 4294901760
    %11717 = vmatmul.f32.gmra.mxu0 %v11716
    %v11718 = vpop.f32.mrf.mxu0
    %v11719 = vadd.f32 %v11686, %v11718
    %v11720 = vand.u32 %v290, 4294901760
    %11721 = vmatmul.f32.gmra.mxu0 %v11720
    %v11722 = vpop.f32.mrf.mxu0
    %v11723 = vadd.f32 %v11692, %v11722
    %11724 = vdwg.mxu0
    %11725 = vmatpush.msra.mxu0 0.0
    %11726 = vmatpush.msra.mxu0 0.0
    %11727 = vmatpush.msra.mxu0 0.0
    %11728 = vmatpush.msra.mxu0 0.0
    %11729 = vmatpush.msra.mxu0 0.0
    %11730 = vmatpush.msra.mxu0 0.0
    %11731 = vmatpush.msra.mxu0 0.0
    %11732 = vmatpush.msra.mxu0 0.0
    %11733 = vmatpush.msra.mxu0 0.0
    %11734 = vmatpush.msra.mxu0 0.0
    %11735 = vmatpush.msra.mxu0 0.0
    %11736 = vmatpush.msra.mxu0 0.0
    %11737 = vmatpush.msra.mxu0 0.0
    %11738 = vmatpush.msra.mxu0 0.0
    %v11739 = vand.u32 %v11560, 4294901760
    %11740 = vmatpush.msra.mxu0 %v11739
    %v11741 = vand.u32 %v11556, 4294901760
    %11742 = vmatpush.msra.mxu0 %v11741
    %v11743 = vand.u32 %v287, 4294901760
    %11744 = vmatmul.f32.gmra.mxu0 %v11743
    %v11745 = vpop.f32.mrf.mxu0
    %v11746 = vadd.f32 %v11719, %v11745
    %v11747 = vand.u32 %v290, 4294901760
    %11748 = vmatmul.f32.gmra.mxu0 %v11747
    %v11749 = vpop.f32.mrf.mxu0
    %v11750 = vadd.f32 %v11723, %v11749
    %11751 = vdwg.mxu0
    %v11752 = vsub.f32 %v11746, %v10970
    %v11753 = vsub.f32 %v11750, %v10971
    %v11754 = vmul.f32 %v10191, %v10194
    %v11755 = vmul.f32 %v10192, %v10195
    %v11757 = vsel %vm89, %v11754, 0
    %v11760 = vsel %vm89, %v11755, 0
    %11762 = vmatpush.msra.mxu0 0.0
    %11763 = vmatpush.msra.mxu0 0.0
    %11764 = vmatpush.msra.mxu0 0.0
    %11765 = vmatpush.msra.mxu0 0.0
    %11766 = vmatpush.msra.mxu0 0.0
    %11767 = vmatpush.msra.mxu0 0.0
    %11768 = vmatpush.msra.mxu0 0.0
    %11769 = vmatpush.msra.mxu0 0.0
    %11770 = vmatpush.msra.mxu0 0.0
    %11771 = vmatpush.msra.mxu0 0.0
    %11772 = vmatpush.msra.mxu0 0.0
    %11773 = vmatpush.msra.mxu0 0.0
    %11774 = vmatpush.msra.mxu0 0.0
    %11775 = vmatpush.msra.mxu0 0.0
    %v11776 = vand.u32 %v82, 4294901760
    %11777 = vmatpush.msra.mxu0 %v11776
    %v11778 = vand.u32 %v81, 4294901760
    %11779 = vmatpush.msra.mxu0 %v11778
    %v11780 = vand.u32 %v11757, 4294901760
    %v11781 = vsub.f32 %v11757, %v11780
    %v11782 = vand.u32 %v11781, 4294901760
    %v11783 = vsub.f32 %v11781, %v11782
    %v11784 = vand.u32 %v11783, 4294901760
    %11785 = vmatmul.f32.gmra.mxu0 %v11784
    %v11786 = vpop.f32.mrf.mxu0
    %v11787 = vadd.f32 0.0, %v11786
    %v11788 = vand.u32 %v11760, 4294901760
    %v11789 = vsub.f32 %v11760, %v11788
    %v11790 = vand.u32 %v11789, 4294901760
    %v11791 = vsub.f32 %v11789, %v11790
    %v11792 = vand.u32 %v11791, 4294901760
    %11793 = vmatmul.f32.gmra.mxu0 %v11792
    %v11794 = vpop.f32.mrf.mxu0
    %v11795 = vadd.f32 0.0, %v11794
    %11796 = vdwg.mxu0
    %11797 = vmatpush.msra.mxu0 0.0
    %11798 = vmatpush.msra.mxu0 0.0
    %11799 = vmatpush.msra.mxu0 0.0
    %11800 = vmatpush.msra.mxu0 0.0
    %11801 = vmatpush.msra.mxu0 0.0
    %11802 = vmatpush.msra.mxu0 0.0
    %11803 = vmatpush.msra.mxu0 0.0
    %11804 = vmatpush.msra.mxu0 0.0
    %11805 = vmatpush.msra.mxu0 0.0
    %11806 = vmatpush.msra.mxu0 0.0
    %11807 = vmatpush.msra.mxu0 0.0
    %11808 = vmatpush.msra.mxu0 0.0
    %11809 = vmatpush.msra.mxu0 0.0
    %11810 = vmatpush.msra.mxu0 0.0
    %v11811 = vand.u32 %v82, 4294901760
    %v11812 = vsub.f32 %v82, %v11811
    %v11813 = vand.u32 %v11812, 4294901760
    %v11814 = vsub.f32 %v11812, %v11813
    %v11815 = vand.u32 %v11814, 4294901760
    %11816 = vmatpush.msra.mxu0 %v11815
    %v11817 = vand.u32 %v81, 4294901760
    %v11818 = vsub.f32 %v81, %v11817
    %v11819 = vand.u32 %v11818, 4294901760
    %v11820 = vsub.f32 %v11818, %v11819
    %v11821 = vand.u32 %v11820, 4294901760
    %11822 = vmatpush.msra.mxu0 %v11821
    %v11823 = vand.u32 %v11757, 4294901760
    %11824 = vmatmul.f32.gmra.mxu0 %v11823
    %v11825 = vpop.f32.mrf.mxu0
    %v11826 = vadd.f32 %v11787, %v11825
    %v11827 = vand.u32 %v11760, 4294901760
    %11828 = vmatmul.f32.gmra.mxu0 %v11827
    %v11829 = vpop.f32.mrf.mxu0
    %v11830 = vadd.f32 %v11795, %v11829
    %11831 = vdwg.mxu0
    %11832 = vmatpush.msra.mxu0 0.0
    %11833 = vmatpush.msra.mxu0 0.0
    %11834 = vmatpush.msra.mxu0 0.0
    %11835 = vmatpush.msra.mxu0 0.0
    %11836 = vmatpush.msra.mxu0 0.0
    %11837 = vmatpush.msra.mxu0 0.0
    %11838 = vmatpush.msra.mxu0 0.0
    %11839 = vmatpush.msra.mxu0 0.0
    %11840 = vmatpush.msra.mxu0 0.0
    %11841 = vmatpush.msra.mxu0 0.0
    %11842 = vmatpush.msra.mxu0 0.0
    %11843 = vmatpush.msra.mxu0 0.0
    %11844 = vmatpush.msra.mxu0 0.0
    %11845 = vmatpush.msra.mxu0 0.0
    %v11846 = vand.u32 %v82, 4294901760
    %v11847 = vsub.f32 %v82, %v11846
    %11848 = vmatpush.msra.mxu0 %v11847
    %v11849 = vand.u32 %v81, 4294901760
    %v11850 = vsub.f32 %v81, %v11849
    %11851 = vmatpush.msra.mxu0 %v11850
    %v11852 = vand.u32 %v11757, 4294901760
    %v11853 = vsub.f32 %v11757, %v11852
    %11854 = vmatmul.f32.gmra.mxu0 %v11853
    %v11855 = vpop.f32.mrf.mxu0
    %v11856 = vadd.f32 %v11826, %v11855
    %v11857 = vand.u32 %v11760, 4294901760
    %v11858 = vsub.f32 %v11760, %v11857
    %11859 = vmatmul.f32.gmra.mxu0 %v11858
    %v11860 = vpop.f32.mrf.mxu0
    %v11861 = vadd.f32 %v11830, %v11860
    %11862 = vdwg.mxu0
    %11863 = vmatpush.msra.mxu0 0.0
    %11864 = vmatpush.msra.mxu0 0.0
    %11865 = vmatpush.msra.mxu0 0.0
    %11866 = vmatpush.msra.mxu0 0.0
    %11867 = vmatpush.msra.mxu0 0.0
    %11868 = vmatpush.msra.mxu0 0.0
    %11869 = vmatpush.msra.mxu0 0.0
    %11870 = vmatpush.msra.mxu0 0.0
    %11871 = vmatpush.msra.mxu0 0.0
    %11872 = vmatpush.msra.mxu0 0.0
    %11873 = vmatpush.msra.mxu0 0.0
    %11874 = vmatpush.msra.mxu0 0.0
    %11875 = vmatpush.msra.mxu0 0.0
    %11876 = vmatpush.msra.mxu0 0.0
    %v11877 = vand.u32 %v82, 4294901760
    %11878 = vmatpush.msra.mxu0 %v11877
    %v11879 = vand.u32 %v81, 4294901760
    %11880 = vmatpush.msra.mxu0 %v11879
    %v11881 = vand.u32 %v11757, 4294901760
    %v11882 = vsub.f32 %v11757, %v11881
    %v11883 = vand.u32 %v11882, 4294901760
    %11884 = vmatmul.f32.gmra.mxu0 %v11883
    %v11885 = vpop.f32.mrf.mxu0
    %v11886 = vadd.f32 %v11856, %v11885
    %v11887 = vand.u32 %v11760, 4294901760
    %v11888 = vsub.f32 %v11760, %v11887
    %v11889 = vand.u32 %v11888, 4294901760
    %11890 = vmatmul.f32.gmra.mxu0 %v11889
    %v11891 = vpop.f32.mrf.mxu0
    %v11892 = vadd.f32 %v11861, %v11891
    %11893 = vdwg.mxu0
    %11894 = vmatpush.msra.mxu0 0.0
    %11895 = vmatpush.msra.mxu0 0.0
    %11896 = vmatpush.msra.mxu0 0.0
    %11897 = vmatpush.msra.mxu0 0.0
    %11898 = vmatpush.msra.mxu0 0.0
    %11899 = vmatpush.msra.mxu0 0.0
    %11900 = vmatpush.msra.mxu0 0.0
    %11901 = vmatpush.msra.mxu0 0.0
    %11902 = vmatpush.msra.mxu0 0.0
    %11903 = vmatpush.msra.mxu0 0.0
    %11904 = vmatpush.msra.mxu0 0.0
    %11905 = vmatpush.msra.mxu0 0.0
    %11906 = vmatpush.msra.mxu0 0.0
    %11907 = vmatpush.msra.mxu0 0.0
    %v11908 = vand.u32 %v82, 4294901760
    %v11909 = vsub.f32 %v82, %v11908
    %v11910 = vand.u32 %v11909, 4294901760
    %11911 = vmatpush.msra.mxu0 %v11910
    %v11912 = vand.u32 %v81, 4294901760
    %v11913 = vsub.f32 %v81, %v11912
    %v11914 = vand.u32 %v11913, 4294901760
    %11915 = vmatpush.msra.mxu0 %v11914
    %v11916 = vand.u32 %v11757, 4294901760
    %11917 = vmatmul.f32.gmra.mxu0 %v11916
    %v11918 = vpop.f32.mrf.mxu0
    %v11919 = vadd.f32 %v11886, %v11918
    %v11920 = vand.u32 %v11760, 4294901760
    %11921 = vmatmul.f32.gmra.mxu0 %v11920
    %v11922 = vpop.f32.mrf.mxu0
    %v11923 = vadd.f32 %v11892, %v11922
    %11924 = vdwg.mxu0
    %11925 = vmatpush.msra.mxu0 0.0
    %11926 = vmatpush.msra.mxu0 0.0
    %11927 = vmatpush.msra.mxu0 0.0
    %11928 = vmatpush.msra.mxu0 0.0
    %11929 = vmatpush.msra.mxu0 0.0
    %11930 = vmatpush.msra.mxu0 0.0
    %11931 = vmatpush.msra.mxu0 0.0
    %11932 = vmatpush.msra.mxu0 0.0
    %11933 = vmatpush.msra.mxu0 0.0
    %11934 = vmatpush.msra.mxu0 0.0
    %11935 = vmatpush.msra.mxu0 0.0
    %11936 = vmatpush.msra.mxu0 0.0
    %11937 = vmatpush.msra.mxu0 0.0
    %11938 = vmatpush.msra.mxu0 0.0
    %v11939 = vand.u32 %v82, 4294901760
    %11940 = vmatpush.msra.mxu0 %v11939
    %v11941 = vand.u32 %v81, 4294901760
    %11942 = vmatpush.msra.mxu0 %v11941
    %v11943 = vand.u32 %v11757, 4294901760
    %11944 = vmatmul.f32.gmra.mxu0 %v11943
    %v11945 = vpop.f32.mrf.mxu0
    %v11946 = vadd.f32 %v11919, %v11945
    %v11947 = vand.u32 %v11760, 4294901760
    %11948 = vmatmul.f32.gmra.mxu0 %v11947
    %v11949 = vpop.f32.mrf.mxu0
    %v11950 = vadd.f32 %v11923, %v11949
    %11951 = vdwg.mxu0
    %11952 = vmatpush.msra.mxu0 0.0
    %11953 = vmatpush.msra.mxu0 0.0
    %11954 = vmatpush.msra.mxu0 0.0
    %11955 = vmatpush.msra.mxu0 0.0
    %11956 = vmatpush.msra.mxu0 0.0
    %11957 = vmatpush.msra.mxu0 0.0
    %11958 = vmatpush.msra.mxu0 0.0
    %11959 = vmatpush.msra.mxu0 0.0
    %11960 = vmatpush.msra.mxu0 0.0
    %11961 = vmatpush.msra.mxu0 0.0
    %11962 = vmatpush.msra.mxu0 0.0
    %11963 = vmatpush.msra.mxu0 0.0
    %11964 = vmatpush.msra.mxu0 0.0
    %11965 = vmatpush.msra.mxu0 0.0
    %v11966 = vand.u32 %v11950, 4294901760
    %11967 = vmatpush.msra.mxu0 %v11966
    %v11968 = vand.u32 %v11946, 4294901760
    %11969 = vmatpush.msra.mxu0 %v11968
    %v11970 = vand.u32 %v287, 4294901760
    %v11971 = vsub.f32 %v287, %v11970
    %v11972 = vand.u32 %v11971, 4294901760
    %v11973 = vsub.f32 %v11971, %v11972
    %v11974 = vand.u32 %v11973, 4294901760
    %11975 = vmatmul.f32.gmra.mxu0 %v11974
    %v11976 = vpop.f32.mrf.mxu0
    %v11977 = vadd.f32 0.0, %v11976
    %v11978 = vand.u32 %v290, 4294901760
    %v11979 = vsub.f32 %v290, %v11978
    %v11980 = vand.u32 %v11979, 4294901760
    %v11981 = vsub.f32 %v11979, %v11980
    %v11982 = vand.u32 %v11981, 4294901760
    %11983 = vmatmul.f32.gmra.mxu0 %v11982
    %v11984 = vpop.f32.mrf.mxu0
    %v11985 = vadd.f32 0.0, %v11984
    %11986 = vdwg.mxu0
    %11987 = vmatpush.msra.mxu0 0.0
    %11988 = vmatpush.msra.mxu0 0.0
    %11989 = vmatpush.msra.mxu0 0.0
    %11990 = vmatpush.msra.mxu0 0.0
    %11991 = vmatpush.msra.mxu0 0.0
    %11992 = vmatpush.msra.mxu0 0.0
    %11993 = vmatpush.msra.mxu0 0.0
    %11994 = vmatpush.msra.mxu0 0.0
    %11995 = vmatpush.msra.mxu0 0.0
    %11996 = vmatpush.msra.mxu0 0.0
    %11997 = vmatpush.msra.mxu0 0.0
    %11998 = vmatpush.msra.mxu0 0.0
    %11999 = vmatpush.msra.mxu0 0.0
    %12000 = vmatpush.msra.mxu0 0.0
    %v12001 = vand.u32 %v11950, 4294901760
    %v12002 = vsub.f32 %v11950, %v12001
    %v12003 = vand.u32 %v12002, 4294901760
    %v12004 = vsub.f32 %v12002, %v12003
    %v12005 = vand.u32 %v12004, 4294901760
    %12006 = vmatpush.msra.mxu0 %v12005
    %v12007 = vand.u32 %v11946, 4294901760
    %v12008 = vsub.f32 %v11946, %v12007
    %v12009 = vand.u32 %v12008, 4294901760
    %v12010 = vsub.f32 %v12008, %v12009
    %v12011 = vand.u32 %v12010, 4294901760
    %12012 = vmatpush.msra.mxu0 %v12011
    %v12013 = vand.u32 %v287, 4294901760
    %12014 = vmatmul.f32.gmra.mxu0 %v12013
    %v12015 = vpop.f32.mrf.mxu0
    %v12016 = vadd.f32 %v11977, %v12015
    %v12017 = vand.u32 %v290, 4294901760
    %12018 = vmatmul.f32.gmra.mxu0 %v12017
    %v12019 = vpop.f32.mrf.mxu0
    %v12020 = vadd.f32 %v11985, %v12019
    %12021 = vdwg.mxu0
    %12022 = vmatpush.msra.mxu0 0.0
    %12023 = vmatpush.msra.mxu0 0.0
    %12024 = vmatpush.msra.mxu0 0.0
    %12025 = vmatpush.msra.mxu0 0.0
    %12026 = vmatpush.msra.mxu0 0.0
    %12027 = vmatpush.msra.mxu0 0.0
    %12028 = vmatpush.msra.mxu0 0.0
    %12029 = vmatpush.msra.mxu0 0.0
    %12030 = vmatpush.msra.mxu0 0.0
    %12031 = vmatpush.msra.mxu0 0.0
    %12032 = vmatpush.msra.mxu0 0.0
    %12033 = vmatpush.msra.mxu0 0.0
    %12034 = vmatpush.msra.mxu0 0.0
    %12035 = vmatpush.msra.mxu0 0.0
    %v12036 = vand.u32 %v11950, 4294901760
    %v12037 = vsub.f32 %v11950, %v12036
    %12038 = vmatpush.msra.mxu0 %v12037
    %v12039 = vand.u32 %v11946, 4294901760
    %v12040 = vsub.f32 %v11946, %v12039
    %12041 = vmatpush.msra.mxu0 %v12040
    %v12042 = vand.u32 %v287, 4294901760
    %v12043 = vsub.f32 %v287, %v12042
    %12044 = vmatmul.f32.gmra.mxu0 %v12043
    %v12045 = vpop.f32.mrf.mxu0
    %v12046 = vadd.f32 %v12016, %v12045
    %v12047 = vand.u32 %v290, 4294901760
    %v12048 = vsub.f32 %v290, %v12047
    %12049 = vmatmul.f32.gmra.mxu0 %v12048
    %v12050 = vpop.f32.mrf.mxu0
    %v12051 = vadd.f32 %v12020, %v12050
    %12052 = vdwg.mxu0
    %12053 = vmatpush.msra.mxu0 0.0
    %12054 = vmatpush.msra.mxu0 0.0
    %12055 = vmatpush.msra.mxu0 0.0
    %12056 = vmatpush.msra.mxu0 0.0
    %12057 = vmatpush.msra.mxu0 0.0
    %12058 = vmatpush.msra.mxu0 0.0
    %12059 = vmatpush.msra.mxu0 0.0
    %12060 = vmatpush.msra.mxu0 0.0
    %12061 = vmatpush.msra.mxu0 0.0
    %12062 = vmatpush.msra.mxu0 0.0
    %12063 = vmatpush.msra.mxu0 0.0
    %12064 = vmatpush.msra.mxu0 0.0
    %12065 = vmatpush.msra.mxu0 0.0
    %12066 = vmatpush.msra.mxu0 0.0
    %v12067 = vand.u32 %v11950, 4294901760
    %12068 = vmatpush.msra.mxu0 %v12067
    %v12069 = vand.u32 %v11946, 4294901760
    %12070 = vmatpush.msra.mxu0 %v12069
    %v12071 = vand.u32 %v287, 4294901760
    %v12072 = vsub.f32 %v287, %v12071
    %v12073 = vand.u32 %v12072, 4294901760
    %12074 = vmatmul.f32.gmra.mxu0 %v12073
    %v12075 = vpop.f32.mrf.mxu0
    %v12076 = vadd.f32 %v12046, %v12075
    %v12077 = vand.u32 %v290, 4294901760
    %v12078 = vsub.f32 %v290, %v12077
    %v12079 = vand.u32 %v12078, 4294901760
    %12080 = vmatmul.f32.gmra.mxu0 %v12079
    %v12081 = vpop.f32.mrf.mxu0
    %v12082 = vadd.f32 %v12051, %v12081
    %12083 = vdwg.mxu0
    %12084 = vmatpush.msra.mxu0 0.0
    %12085 = vmatpush.msra.mxu0 0.0
    %12086 = vmatpush.msra.mxu0 0.0
    %12087 = vmatpush.msra.mxu0 0.0
    %12088 = vmatpush.msra.mxu0 0.0
    %12089 = vmatpush.msra.mxu0 0.0
    %12090 = vmatpush.msra.mxu0 0.0
    %12091 = vmatpush.msra.mxu0 0.0
    %12092 = vmatpush.msra.mxu0 0.0
    %12093 = vmatpush.msra.mxu0 0.0
    %12094 = vmatpush.msra.mxu0 0.0
    %12095 = vmatpush.msra.mxu0 0.0
    %12096 = vmatpush.msra.mxu0 0.0
    %12097 = vmatpush.msra.mxu0 0.0
    %v12098 = vand.u32 %v11950, 4294901760
    %v12099 = vsub.f32 %v11950, %v12098
    %v12100 = vand.u32 %v12099, 4294901760
    %12101 = vmatpush.msra.mxu0 %v12100
    %v12102 = vand.u32 %v11946, 4294901760
    %v12103 = vsub.f32 %v11946, %v12102
    %v12104 = vand.u32 %v12103, 4294901760
    %12105 = vmatpush.msra.mxu0 %v12104
    %v12106 = vand.u32 %v287, 4294901760
    %12107 = vmatmul.f32.gmra.mxu0 %v12106
    %v12108 = vpop.f32.mrf.mxu0
    %v12109 = vadd.f32 %v12076, %v12108
    %v12110 = vand.u32 %v290, 4294901760
    %12111 = vmatmul.f32.gmra.mxu0 %v12110
    %v12112 = vpop.f32.mrf.mxu0
    %v12113 = vadd.f32 %v12082, %v12112
    %12114 = vdwg.mxu0
    %12115 = vmatpush.msra.mxu0 0.0
    %12116 = vmatpush.msra.mxu0 0.0
    %12117 = vmatpush.msra.mxu0 0.0
    %12118 = vmatpush.msra.mxu0 0.0
    %12119 = vmatpush.msra.mxu0 0.0
    %12120 = vmatpush.msra.mxu0 0.0
    %12121 = vmatpush.msra.mxu0 0.0
    %12122 = vmatpush.msra.mxu0 0.0
    %12123 = vmatpush.msra.mxu0 0.0
    %12124 = vmatpush.msra.mxu0 0.0
    %12125 = vmatpush.msra.mxu0 0.0
    %12126 = vmatpush.msra.mxu0 0.0
    %12127 = vmatpush.msra.mxu0 0.0
    %12128 = vmatpush.msra.mxu0 0.0
    %v12129 = vand.u32 %v11950, 4294901760
    %12130 = vmatpush.msra.mxu0 %v12129
    %v12131 = vand.u32 %v11946, 4294901760
    %12132 = vmatpush.msra.mxu0 %v12131
    %v12133 = vand.u32 %v287, 4294901760
    %12134 = vmatmul.f32.gmra.mxu0 %v12133
    %v12135 = vpop.f32.mrf.mxu0
    %v12136 = vadd.f32 %v12109, %v12135
    %v12137 = vand.u32 %v290, 4294901760
    %12138 = vmatmul.f32.gmra.mxu0 %v12137
    %v12139 = vpop.f32.mrf.mxu0
    %v12140 = vadd.f32 %v12113, %v12139
    %12141 = vdwg.mxu0
    %v12142 = vsub.f32 %v12136, %v10972
    %v12143 = vsub.f32 %v12140, %v10973
    %v12144 = vmul.f32 %v10972, 2.0
    %v12145 = vmul.f32 %v10973, 2.0
    %v12146 = vadd.f32 %v12144, 0.0001
    %v12147 = vadd.f32 %v12145, 0.0001
    %v12148 = vmul.f32 %v12142, 2.0
    %v12149 = vmul.f32 %v12143, 2.0
    %v12150 = vadd.f32 %v12148, 0.0009
    %v12151 = vadd.f32 %v12149, 0.0009
    %v12152 = vmul.f32 %v12146, %v12150
    %v12153 = vmul.f32 %v12147, %v12151
    %v12154 = vadd.f32 %v10968, %v10970
    %v12155 = vadd.f32 %v10969, %v10971
    %v12156 = vadd.f32 %v12154, 0.0001
    %v12157 = vadd.f32 %v12155, 0.0001
    %v12158 = vadd.f32 %v11362, %v11752
    %v12159 = vadd.f32 %v11363, %v11753
    %v12160 = vadd.f32 %v12158, 0.0009
    %v12161 = vadd.f32 %v12159, 0.0009
    %v12162 = vmul.f32 %v12156, %v12160
    %v12163 = vmul.f32 %v12157, %v12161
    %v12164 = vadd.f32 %v12162, 1e-12
    %v12165 = vadd.f32 %v12163, 1e-12
    %v12166 = vrcp.pop %v12164
    %v12167 = vmul.f32 %v12164, %v12166
    %v12168 = vsub.f32 1.0, %v12167
    %v12169 = vmul.f32 %v12166, %v12168
    %v12170 = vadd.f32 %v12166, %v12169
    %vm12171 = vweird.f32 %v12164
    %vm12172 = vweird.f32 %v12166
    %vm12173 = vmor %vm12171, %vm12172
    %v12174 = vsel %vm12173, %v12166, %v12170
    %v12175 = vand.u32 2147483647, %v12164
    %vm12176 = vcmp.eq.f32.partialorder %v12175, 8.507059e+37
    %v12177 = vand.u32 %v12164, 2147483648
    %v12178 = vor.u32 1.1754944e-38, %v12177
    %v12179 = vsel %vm12176, %v12178, %v12174
    %v12180 = vrcp.pop %v12165
    %v12181 = vmul.f32 %v12165, %v12180
    %v12182 = vsub.f32 1.0, %v12181
    %v12183 = vmul.f32 %v12180, %v12182
    %v12184 = vadd.f32 %v12180, %v12183
    %vm12185 = vweird.f32 %v12165
    %vm12186 = vweird.f32 %v12180
    %vm12187 = vmor %vm12185, %vm12186
    %v12188 = vsel %vm12187, %v12180, %v12184
    %v12189 = vand.u32 2147483647, %v12165
    %vm12190 = vcmp.eq.f32.partialorder %v12189, 8.507059e+37
    %v12191 = vand.u32 %v12165, 2147483648
    %v12192 = vor.u32 1.1754944e-38, %v12191
    %v12193 = vsel %vm12190, %v12192, %v12188
    %v12194 = vmul.f32 %v12152, %v12179
    %v12195 = vmul.f32 %v12153, %v12193
    %v12196 = vsel %vm89, %v12194, 0.0
    %v12197 = vsel %vm89, %v12195, 0.0
    %v12198 = vadd.f32 %v12196, %v12197
    %12199 = vadd.xlane.f32.xlu0 %v12198
    %v12200 = vpop.xlane.xlu0 %12199
    %v12201 = vrot.slane %v12200, 4
    %v12202 = vadd.f32 %v12200, %v12201
    %v12203 = vrot.slane %v12202, 2
    %v12204 = vadd.f32 %v12202, %v12203
    %v12205 = vrot.slane %v12204, 1
    %v12206 = vadd.f32 %v12204, %v12205
    %s12207 = vtos %v12206
    %v12208 = vstv %s12207
    %v12209 = vadd.f32 %v10189, %v12208
    %vm12210 = vcmask 0
    %12211 = vst.msk [vmem:[#allocation10] sm:$0x1] %vm12210, %v12209
    // Predicated region
    $region34: #{tpu_custom_call.1} parent=1 // pred_check
      _
    $region35: #{tpu_custom_call.1} parent=1 // pred_check_branch
      %12213 = sbr.rel (0) target = $region37
    $region36: #{tpu_custom_call.1} parent=1 // pred_region
      %12215 = vsyncadd [#allocation4], 0
      %s12217 = sshll.u32 [#allocation10], 4
      %s12218 = int_to_ptr.vmem [resolvable:$true] %s12217
      %s12219 = sshll.u32 %s4, 4
      %s12220 = int_to_ptr.hbm [resolvable:$true] %s12219
      %12222 = dma.vmem_to_hbm [thread:$0]  %s12218, 16, %s12220, [#allocation4]
    $region37: #{tpu_custom_call.1} parent=1 // pred_fallthru
      _
    // Predicated region
    $region38: #{tpu_custom_call.1} parent=1 // pred_check
      _
    $region39: #{tpu_custom_call.1} parent=1 // pred_check_branch
      %12224 = sbr.rel (0) target = $region41
    $region40: #{tpu_custom_call.1} parent=1 // pred_region
      %12226 = dma.done [#allocation4], 16
    $region41: #{tpu_custom_call.1} parent=1 // pred_fallthru
      _
    %12227 = vsyncpa [#allocation3], 1
    %12228 = vsyncpa [#allocation6], 1
    %12229 = vsyncpa [#allocation9], 1
    %12230 = vsyncpa [#allocation4], 1

</llo_original>
